<compile_context>
chip_gen: v5e
topology: v5e:2x2
jax: 0.10.0
libtpu: 0.0.40
codegen_flags: <defaults>
</compile_context>

<pallas_src>
import functools

import jax
import jax.numpy as jnp
from jax import lax
from jax.experimental import pallas as pl
from jax.experimental.pallas import tpu as pltpu


def _round_up(v, m):
    return (v + m - 1) // m * m


def _softplus(x):
    # Matches torch.nn.Softplus(beta=1, threshold=20):
    #   softplus(x) = log1p(exp(x)),  linear (returns x) when x > 20.
    safe = jnp.minimum(x, 20.0)
    return jnp.where(x > 20.0, x, jnp.log1p(jnp.exp(safe)))


def softplusnet_kernel(x_ref,
                       w1_ref, b1_ref,
                       w2_ref, b2_ref,
                       w3_ref, b3_ref,
                       w4_ref, b4_ref,
                       o_ref,
                       *, sub_rows):
    n_sub = x_ref.shape[0] // sub_rows
    cdt = w1_ref.dtype  # matmul operand dtype (bf16 or f32)

    def chunk(c, carry):
        r0 = pl.multiple_of(c * sub_rows, sub_rows)
        xc = x_ref[pl.ds(r0, sub_rows), :]

        h = jnp.dot(xc, w1_ref[...], preferred_element_type=jnp.float32) + b1_ref[...]
        h = _softplus(h).astype(cdt)
        h = jnp.dot(h, w2_ref[...], preferred_element_type=jnp.float32) + b2_ref[...]
        h = _softplus(h).astype(cdt)
        h = jnp.dot(h, w3_ref[...], preferred_element_type=jnp.float32) + b3_ref[...]
        h = _softplus(h).astype(cdt)
        out = jnp.dot(h, w4_ref[...], preferred_element_type=jnp.float32) + b4_ref[...]

        o_ref[pl.ds(r0, sub_rows), :] = out.astype(o_ref.dtype)
        return carry

    # Fully unrolled: the scheduler interleaves independent sub-chunks, so the
    # MXU matmul of chunk i+1 hides the EUP softplus of chunk i.
    lax.fori_loop(0, n_sub, chunk, None, unroll=True)


def _resident_spec(shape):
    """Whole-array block with constant index_map -> DMA'd once, stays resident."""
    index_map = lambda i: (0,) * len(shape)
    try:
        return pl.BlockSpec(shape, index_map, pipeline_mode=pl.Buffered(1))
    except TypeError:  # BlockSpec without pipeline_mode support
        return pl.BlockSpec(shape, index_map)


@functools.partial(jax.jit, static_argnames=("tile_b", "use_bf16"))
def softplusnet_forward(x, params, tile_b=256, use_bf16=True):
    (w1, b1), (w2, b2), (w3, b3), (w4, b4) = params
    B, in_dim = x.shape
    out_dim = w4.shape[1]

    # ---- pad feature dims to multiples of 128 lanes ----
    dims = [in_dim, w1.shape[1], w2.shape[1], w3.shape[1], out_dim]
    pdims = [_round_up(d, 128) for d in dims]

    def pad2(a, rows, cols):
        return jnp.pad(a, ((0, rows - a.shape[0]), (0, cols - a.shape[1])))

    cdt = jnp.bfloat16 if use_bf16 else jnp.float32
    ws = [w1, w2, w3, w4]
    bs = [b1, b2, b3, b4]
    ws_p = [pad2(ws[i], pdims[i], pdims[i + 1]).astype(cdt) for i in range(4)]
    bs_p = [pad2(bs[i], 1, pdims[i + 1]).astype(jnp.float32) for i in range(4)]

    # ---- batch padding & tiling (handles ragged B) ----
    Bp = _round_up(B, 8)
    if Bp <= tile_b:
        # Small batch: still try to give v7x two parallel grid steps.
        tile = Bp // 2 if (Bp >= 16 and Bp % 16 == 0) else Bp
    else:
        Bp = _round_up(B, tile_b)
        tile = tile_b
    x_p = pad2(x, Bp, pdims[0]).astype(cdt)

    sub_rows = 128 if (tile > 128 and tile % 128 == 0) else tile
    grid = (Bp // tile,)

    kernel = functools.partial(softplusnet_kernel, sub_rows=sub_rows)

    in_specs = [pl.BlockSpec((tile, pdims[0]), lambda i: (i, 0))]
    for wp, bp in zip(ws_p, bs_p):
        in_specs += [_resident_spec(wp.shape), _resident_spec(bp.shape)]
    out_specs = pl.BlockSpec((tile, pdims[4]), lambda i: (i, 0))

    # ---- cost estimate & VMEM budget ----
    flops = 2 * Bp * sum(pdims[i] * pdims[i + 1] for i in range(4))
    transcendentals = 2 * Bp * (pdims[1] + pdims[2] + pdims[3])
    weight_bytes = sum(int(a.size) * a.dtype.itemsize for a in ws_p + bs_p)
    io_bytes = Bp * pdims[0] * x_p.dtype.itemsize + Bp * pdims[4] * 4
    bytes_accessed = int(weight_bytes + io_bytes)

    act_bytes = tile * (sum(pdims) + pdims[4]) * 4
    vmem_need = weight_bytes + 2 * tile * (pdims[0] + pdims[4]) * 4 + act_bytes
    vmem_limit = int(min(48 * 2**20, max(32 * 2**20, 2 * vmem_need)))

    out = pl.pallas_call(
        kernel,
        out_shape=jax.ShapeDtypeStruct((Bp, pdims[4]), jnp.float32),
        grid_spec=pltpu.PrefetchScalarGridSpec(
            num_scalar_prefetch=0,
            grid=grid,
            in_specs=in_specs,
            out_specs=out_specs,
        ),
        compiler_params=pltpu.CompilerParams(
            dimension_semantics=("parallel",),
            vmem_limit_bytes=vmem_limit,
        ),
        cost_estimate=pl.CostEstimate(
            flops=int(flops),
            transcendentals=int(transcendentals),
            bytes_accessed=bytes_accessed,
        ),
    )(x_p, ws_p[0], bs_p[0], ws_p[1], bs_p[1], ws_p[2], bs_p[2], ws_p[3], bs_p[3])

    return out[:B, :out_dim]


def init_params(key, input_dim, hidden_dim, hidden_dim_1, output_dim):
    """Deterministic nn.Linear-style init. Weights stored as (in, out)."""
    dims = [(input_dim, hidden_dim),
            (hidden_dim, hidden_dim),
            (hidden_dim, hidden_dim_1),
            (hidden_dim_1, output_dim)]
    params = []
    for fan_in, fan_out in dims:
        key, kw, kb = jax.random.split(key, 3)
        bound = 1.0 / (fan_in ** 0.5)
        w = jax.random.uniform(kw, (fan_in, fan_out), jnp.float32, -bound, bound)
        b = jax.random.uniform(kb, (1, fan_out), jnp.float32, -bound, bound)
        params.append((w, b))
    return params


def reference_forward(x, params, use_bf16=True):
    """Pure-JAX reference with the same bf16 operand casts as the kernel."""
    cdt = jnp.bfloat16 if use_bf16 else jnp.float32
    h = x.astype(cdt)
    for i, (w, b) in enumerate(params):
        h = jnp.dot(h, w.astype(cdt), preferred_element_type=jnp.float32) + b
        if i < 3:
            h = _softplus(h).astype(cdt)
    return h


if __name__ == "__main__":
    # Small shapes consistent with the module's (N, 12N, 4N, N) structure, N=32.
    N_ = 32
    input_dim, hidden_dim, hidden_dim_1, output_dim = N_, 12 * N_, 4 * N_, N_
    batch = 512  # exercises tile_b=256, 2 parallel grid steps, 2 sub-chunks/tile

    key = jax.random.PRNGKey(0)
    key, kx = jax.random.split(key)
    x = jax.random.normal(kx, (batch, input_dim), jnp.float32)
    params = init_params(key, input_dim, hidden_dim, hidden_dim_1, output_dim)

    out = jax.block_until_ready(softplusnet_forward(x, params))
    ref = reference_forward(x, params, use_bf16=True)

    assert out.shape == (batch, output_dim)
    assert jnp.allclose(out, ref, atol=1e-2, rtol=1e-2), "mismatch vs JAX reference"

    print("KERNEL_OK")
</pallas_src>

<mosaic_0001>
module attributes {stable_mosaic.version = 11 : i64} {
  func.func @softplusnet_kernel(%arg0: i32, %arg1: memref<256x128xbf16, #tpu.memory_space<vmem>>, %arg2: memref<128x384xbf16, #tpu.memory_space<vmem>>, %arg3: memref<1x384xf32, #tpu.memory_space<vmem>>, %arg4: memref<384x384xbf16, #tpu.memory_space<vmem>>, %arg5: memref<1x384xf32, #tpu.memory_space<vmem>>, %arg6: memref<384x128xbf16, #tpu.memory_space<vmem>>, %arg7: memref<1x128xf32, #tpu.memory_space<vmem>>, %arg8: memref<128x128xbf16, #tpu.memory_space<vmem>>, %arg9: memref<1x128xf32, #tpu.memory_space<vmem>>, %arg10: memref<256x128xf32, #tpu.memory_space<vmem>>) attributes {dimension_semantics = [#tpu.dimension_semantics<parallel>], iteration_bounds = array<i64: 2>, scalar_prefetch = 0 : i64, scratch_operands = 0 : i64, tpu.core_type = #tpu.core_type<tc>, window_params = [{transform_indices = @transform_0, window_bounds = array<i64: 256, 128>}, {pipeline_mode = #tpu.pipeline_mode<synchronous>, transform_indices = @transform_1, window_bounds = array<i64: 128, 384>}, {pipeline_mode = #tpu.pipeline_mode<synchronous>, transform_indices = @transform_2, window_bounds = array<i64: 1, 384>}, {pipeline_mode = #tpu.pipeline_mode<synchronous>, transform_indices = @transform_3, window_bounds = array<i64: 384, 384>}, {pipeline_mode = #tpu.pipeline_mode<synchronous>, transform_indices = @transform_4, window_bounds = array<i64: 1, 384>}, {pipeline_mode = #tpu.pipeline_mode<synchronous>, transform_indices = @transform_5, window_bounds = array<i64: 384, 128>}, {pipeline_mode = #tpu.pipeline_mode<synchronous>, transform_indices = @transform_6, window_bounds = array<i64: 1, 128>}, {pipeline_mode = #tpu.pipeline_mode<synchronous>, transform_indices = @transform_7, window_bounds = array<i64: 128, 128>}, {pipeline_mode = #tpu.pipeline_mode<synchronous>, transform_indices = @transform_8, window_bounds = array<i64: 1, 128>}, {transform_indices = @transform_9, window_bounds = array<i64: 256, 128>}]} {
    %c0_i32 = arith.constant 0 : i32
    %c128_i32 = arith.constant 128 : i32
    %0 = arith.muli %c0_i32, %c128_i32 : i32
    %1 = tpu.assume_multiple %0, 128 : i32
    %2 = arith.index_cast %1 : i32 to index
    %c0 = arith.constant 0 : index
    %3 = vector.load %arg1[%2, %c0] : memref<256x128xbf16, #tpu.memory_space<vmem>>, vector<128x128xbf16>
    %c0_0 = arith.constant 0 : index
    %c0_1 = arith.constant 0 : index
    %4 = vector.load %arg2[%c0_0, %c0_1] : memref<128x384xbf16, #tpu.memory_space<vmem>>, vector<128x384xbf16>
    %cst = arith.constant dense<0.000000e+00> : vector<128x384xf32>
    %5 = tpu.matmul %3, %4, %cst {dimension_numbers = #tpu.dot_dimension_numbers<[1], [0], [0], [1], [0, 0, 1, 1], [], []>} : vector<128x128xbf16>, vector<128x384xbf16>, vector<128x384xf32> -> vector<128x384xf32>
    %c0_2 = arith.constant 0 : index
    %c0_3 = arith.constant 0 : index
    %6 = vector.load %arg3[%c0_2, %c0_3] : memref<1x384xf32, #tpu.memory_space<vmem>>, vector<1x384xf32>
    %7 = vector.broadcast %6 : vector<1x384xf32> to vector<128x384xf32>
    %8 = arith.addf %5, %7 : vector<128x384xf32>
    %cst_4 = arith.constant 2.000000e+01 : f32
    %9 = vector.broadcast %cst_4 : f32 to vector<128x384xf32>
    %10 = arith.minimumf %8, %9 : vector<128x384xf32>
    %cst_5 = arith.constant 2.000000e+01 : f32
    %11 = vector.broadcast %cst_5 : f32 to vector<128x384xf32>
    %12 = arith.cmpf ogt, %8, %11 : vector<128x384xf32>
    %13 = math.exp %10 : vector<128x384xf32>
    %14 = math.log1p %13 : vector<128x384xf32>
    %15 = arith.select %12, %8, %14 : vector<128x384xi1>, vector<128x384xf32>
    %16 = arith.truncf %15 : vector<128x384xf32> to vector<128x384xbf16>
    %c0_6 = arith.constant 0 : index
    %c0_7 = arith.constant 0 : index
    %17 = vector.load %arg4[%c0_6, %c0_7] : memref<384x384xbf16, #tpu.memory_space<vmem>>, vector<384x384xbf16>
    %cst_8 = arith.constant dense<0.000000e+00> : vector<128x384xf32>
    %18 = tpu.matmul %16, %17, %cst_8 {dimension_numbers = #tpu.dot_dimension_numbers<[1], [0], [0], [1], [0, 0, 1, 1], [], []>} : vector<128x384xbf16>, vector<384x384xbf16>, vector<128x384xf32> -> vector<128x384xf32>
    %c0_9 = arith.constant 0 : index
    %c0_10 = arith.constant 0 : index
    %19 = vector.load %arg5[%c0_9, %c0_10] : memref<1x384xf32, #tpu.memory_space<vmem>>, vector<1x384xf32>
    %20 = vector.broadcast %19 : vector<1x384xf32> to vector<128x384xf32>
    %21 = arith.addf %18, %20 : vector<128x384xf32>
    %cst_11 = arith.constant 2.000000e+01 : f32
    %22 = vector.broadcast %cst_11 : f32 to vector<128x384xf32>
    %23 = arith.minimumf %21, %22 : vector<128x384xf32>
    %cst_12 = arith.constant 2.000000e+01 : f32
    %24 = vector.broadcast %cst_12 : f32 to vector<128x384xf32>
    %25 = arith.cmpf ogt, %21, %24 : vector<128x384xf32>
    %26 = math.exp %23 : vector<128x384xf32>
    %27 = math.log1p %26 : vector<128x384xf32>
    %28 = arith.select %25, %21, %27 : vector<128x384xi1>, vector<128x384xf32>
    %29 = arith.truncf %28 : vector<128x384xf32> to vector<128x384xbf16>
    %c0_13 = arith.constant 0 : index
    %c0_14 = arith.constant 0 : index
    %30 = vector.load %arg6[%c0_13, %c0_14] : memref<384x128xbf16, #tpu.memory_space<vmem>>, vector<384x128xbf16>
    %cst_15 = arith.constant dense<0.000000e+00> : vector<128x128xf32>
    %31 = tpu.matmul %29, %30, %cst_15 {dimension_numbers = #tpu.dot_dimension_numbers<[1], [0], [0], [1], [0, 0, 1, 1], [], []>} : vector<128x384xbf16>, vector<384x128xbf16>, vector<128x128xf32> -> vector<128x128xf32>
    %c0_16 = arith.constant 0 : index
    %c0_17 = arith.constant 0 : index
    %32 = vector.load %arg7[%c0_16, %c0_17] : memref<1x128xf32, #tpu.memory_space<vmem>>, vector<1x128xf32>
    %33 = vector.broadcast %32 : vector<1x128xf32> to vector<128x128xf32>
    %34 = arith.addf %31, %33 : vector<128x128xf32>
    %cst_18 = arith.constant 2.000000e+01 : f32
    %35 = vector.broadcast %cst_18 : f32 to vector<128x128xf32>
    %36 = arith.minimumf %34, %35 : vector<128x128xf32>
    %cst_19 = arith.constant 2.000000e+01 : f32
    %37 = vector.broadcast %cst_19 : f32 to vector<128x128xf32>
    %38 = arith.cmpf ogt, %34, %37 : vector<128x128xf32>
    %39 = math.exp %36 : vector<128x128xf32>
    %40 = math.log1p %39 : vector<128x128xf32>
    %41 = arith.select %38, %34, %40 : vector<128x128xi1>, vector<128x128xf32>
    %42 = arith.truncf %41 : vector<128x128xf32> to vector<128x128xbf16>
    %c0_20 = arith.constant 0 : index
    %c0_21 = arith.constant 0 : index
    %43 = vector.load %arg8[%c0_20, %c0_21] : memref<128x128xbf16, #tpu.memory_space<vmem>>, vector<128x128xbf16>
    %cst_22 = arith.constant dense<0.000000e+00> : vector<128x128xf32>
    %44 = tpu.matmul %42, %43, %cst_22 {dimension_numbers = #tpu.dot_dimension_numbers<[1], [0], [0], [1], [0, 0, 1, 1], [], []>} : vector<128x128xbf16>, vector<128x128xbf16>, vector<128x128xf32> -> vector<128x128xf32>
    %c0_23 = arith.constant 0 : index
    %c0_24 = arith.constant 0 : index
    %45 = vector.load %arg9[%c0_23, %c0_24] : memref<1x128xf32, #tpu.memory_space<vmem>>, vector<1x128xf32>
    %46 = vector.broadcast %45 : vector<1x128xf32> to vector<128x128xf32>
    %47 = arith.addf %44, %46 : vector<128x128xf32>
    %48 = arith.index_cast %1 : i32 to index
    %c0_25 = arith.constant 0 : index
    %49 = vector.load %arg10[%48, %c0_25] : memref<256x128xf32, #tpu.memory_space<vmem>>, vector<128x128xf32>
    tpu.vector_store %arg10[%48, %c0_25], %47 {strides = array<i32>} : memref<256x128xf32, #tpu.memory_space<vmem>>, vector<128x128xf32>,
    %c1_i32 = arith.constant 1 : i32
    %c128_i32_26 = arith.constant 128 : i32
    %50 = arith.muli %c1_i32, %c128_i32_26 : i32
    %51 = tpu.assume_multiple %50, 128 : i32
    %52 = arith.index_cast %51 : i32 to index
    %c0_27 = arith.constant 0 : index
    %53 = vector.load %arg1[%52, %c0_27] : memref<256x128xbf16, #tpu.memory_space<vmem>>, vector<128x128xbf16>
    %c0_28 = arith.constant 0 : index
    %c0_29 = arith.constant 0 : index
    %54 = vector.load %arg2[%c0_28, %c0_29] : memref<128x384xbf16, #tpu.memory_space<vmem>>, vector<128x384xbf16>
    %cst_30 = arith.constant dense<0.000000e+00> : vector<128x384xf32>
    %55 = tpu.matmul %53, %54, %cst_30 {dimension_numbers = #tpu.dot_dimension_numbers<[1], [0], [0], [1], [0, 0, 1, 1], [], []>} : vector<128x128xbf16>, vector<128x384xbf16>, vector<128x384xf32> -> vector<128x384xf32>
    %c0_31 = arith.constant 0 : index
    %c0_32 = arith.constant 0 : index
    %56 = vector.load %arg3[%c0_31, %c0_32] : memref<1x384xf32, #tpu.memory_space<vmem>>, vector<1x384xf32>
    %57 = vector.broadcast %56 : vector<1x384xf32> to vector<128x384xf32>
    %58 = arith.addf %55, %57 : vector<128x384xf32>
    %cst_33 = arith.constant 2.000000e+01 : f32
    %59 = vector.broadcast %cst_33 : f32 to vector<128x384xf32>
    %60 = arith.minimumf %58, %59 : vector<128x384xf32>
    %cst_34 = arith.constant 2.000000e+01 : f32
    %61 = vector.broadcast %cst_34 : f32 to vector<128x384xf32>
    %62 = arith.cmpf ogt, %58, %61 : vector<128x384xf32>
    %63 = math.exp %60 : vector<128x384xf32>
    %64 = math.log1p %63 : vector<128x384xf32>
    %65 = arith.select %62, %58, %64 : vector<128x384xi1>, vector<128x384xf32>
    %66 = arith.truncf %65 : vector<128x384xf32> to vector<128x384xbf16>
    %c0_35 = arith.constant 0 : index
    %c0_36 = arith.constant 0 : index
    %67 = vector.load %arg4[%c0_35, %c0_36] : memref<384x384xbf16, #tpu.memory_space<vmem>>, vector<384x384xbf16>
    %cst_37 = arith.constant dense<0.000000e+00> : vector<128x384xf32>
    %68 = tpu.matmul %66, %67, %cst_37 {dimension_numbers = #tpu.dot_dimension_numbers<[1], [0], [0], [1], [0, 0, 1, 1], [], []>} : vector<128x384xbf16>, vector<384x384xbf16>, vector<128x384xf32> -> vector<128x384xf32>
    %c0_38 = arith.constant 0 : index
    %c0_39 = arith.constant 0 : index
    %69 = vector.load %arg5[%c0_38, %c0_39] : memref<1x384xf32, #tpu.memory_space<vmem>>, vector<1x384xf32>
    %70 = vector.broadcast %69 : vector<1x384xf32> to vector<128x384xf32>
    %71 = arith.addf %68, %70 : vector<128x384xf32>
    %cst_40 = arith.constant 2.000000e+01 : f32
    %72 = vector.broadcast %cst_40 : f32 to vector<128x384xf32>
    %73 = arith.minimumf %71, %72 : vector<128x384xf32>
    %cst_41 = arith.constant 2.000000e+01 : f32
    %74 = vector.broadcast %cst_41 : f32 to vector<128x384xf32>
    %75 = arith.cmpf ogt, %71, %74 : vector<128x384xf32>
    %76 = math.exp %73 : vector<128x384xf32>
    %77 = math.log1p %76 : vector<128x384xf32>
    %78 = arith.select %75, %71, %77 : vector<128x384xi1>, vector<128x384xf32>
    %79 = arith.truncf %78 : vector<128x384xf32> to vector<128x384xbf16>
    %c0_42 = arith.constant 0 : index
    %c0_43 = arith.constant 0 : index
    %80 = vector.load %arg6[%c0_42, %c0_43] : memref<384x128xbf16, #tpu.memory_space<vmem>>, vector<384x128xbf16>
    %cst_44 = arith.constant dense<0.000000e+00> : vector<128x128xf32>
    %81 = tpu.matmul %79, %80, %cst_44 {dimension_numbers = #tpu.dot_dimension_numbers<[1], [0], [0], [1], [0, 0, 1, 1], [], []>} : vector<128x384xbf16>, vector<384x128xbf16>, vector<128x128xf32> -> vector<128x128xf32>
    %c0_45 = arith.constant 0 : index
    %c0_46 = arith.constant 0 : index
    %82 = vector.load %arg7[%c0_45, %c0_46] : memref<1x128xf32, #tpu.memory_space<vmem>>, vector<1x128xf32>
    %83 = vector.broadcast %82 : vector<1x128xf32> to vector<128x128xf32>
    %84 = arith.addf %81, %83 : vector<128x128xf32>
    %cst_47 = arith.constant 2.000000e+01 : f32
    %85 = vector.broadcast %cst_47 : f32 to vector<128x128xf32>
    %86 = arith.minimumf %84, %85 : vector<128x128xf32>
    %cst_48 = arith.constant 2.000000e+01 : f32
    %87 = vector.broadcast %cst_48 : f32 to vector<128x128xf32>
    %88 = arith.cmpf ogt, %84, %87 : vector<128x128xf32>
    %89 = math.exp %86 : vector<128x128xf32>
    %90 = math.log1p %89 : vector<128x128xf32>
    %91 = arith.select %88, %84, %90 : vector<128x128xi1>, vector<128x128xf32>
    %92 = arith.truncf %91 : vector<128x128xf32> to vector<128x128xbf16>
    %c0_49 = arith.constant 0 : index
    %c0_50 = arith.constant 0 : index
    %93 = vector.load %arg8[%c0_49, %c0_50] : memref<128x128xbf16, #tpu.memory_space<vmem>>, vector<128x128xbf16>
    %cst_51 = arith.constant dense<0.000000e+00> : vector<128x128xf32>
    %94 = tpu.matmul %92, %93, %cst_51 {dimension_numbers = #tpu.dot_dimension_numbers<[1], [0], [0], [1], [0, 0, 1, 1], [], []>} : vector<128x128xbf16>, vector<128x128xbf16>, vector<128x128xf32> -> vector<128x128xf32>
    %c0_52 = arith.constant 0 : index
    %c0_53 = arith.constant 0 : index
    %95 = vector.load %arg9[%c0_52, %c0_53] : memref<1x128xf32, #tpu.memory_space<vmem>>, vector<1x128xf32>
    %96 = vector.broadcast %95 : vector<1x128xf32> to vector<128x128xf32>
    %97 = arith.addf %94, %96 : vector<128x128xf32>
    %98 = arith.index_cast %51 : i32 to index
    %c0_54 = arith.constant 0 : index
    %99 = vector.load %arg10[%98, %c0_54] : memref<256x128xf32, #tpu.memory_space<vmem>>, vector<128x128xf32>
    tpu.vector_store %arg10[%98, %c0_54], %97 {strides = array<i32>} : memref<256x128xf32, #tpu.memory_space<vmem>>, vector<128x128xf32>,
    %c2_i32 = arith.constant 2 : i32
    return
  }
  func.func @transform_0(%arg0: i32) -> (i32, i32) {
    %c0_i32 = arith.constant 0 : i32
    %c0_i32_0 = arith.constant 0 : i32
    return %arg0, %c0_i32 : i32, i32
  }
  func.func @transform_1(%arg0: i32) -> (i32, i32) {
    %c0_i32 = arith.constant 0 : i32
    %c0_i32_0 = arith.constant 0 : i32
    %c0_i32_1 = arith.constant 0 : i32
    return %c0_i32, %c0_i32_0 : i32, i32
  }
  func.func @transform_2(%arg0: i32) -> (i32, i32) {
    %c0_i32 = arith.constant 0 : i32
    %c0_i32_0 = arith.constant 0 : i32
    %c0_i32_1 = arith.constant 0 : i32
    return %c0_i32, %c0_i32_0 : i32, i32
  }
  func.func @transform_3(%arg0: i32) -> (i32, i32) {
    %c0_i32 = arith.constant 0 : i32
    %c0_i32_0 = arith.constant 0 : i32
    %c0_i32_1 = arith.constant 0 : i32
    return %c0_i32, %c0_i32_0 : i32, i32
  }
  func.func @transform_4(%arg0: i32) -> (i32, i32) {
    %c0_i32 = arith.constant 0 : i32
    %c0_i32_0 = arith.constant 0 : i32
    %c0_i32_1 = arith.constant 0 : i32
    return %c0_i32, %c0_i32_0 : i32, i32
  }
  func.func @transform_5(%arg0: i32) -> (i32, i32) {
    %c0_i32 = arith.constant 0 : i32
    %c0_i32_0 = arith.constant 0 : i32
    %c0_i32_1 = arith.constant 0 : i32
    return %c0_i32, %c0_i32_0 : i32, i32
  }
  func.func @transform_6(%arg0: i32) -> (i32, i32) {
    %c0_i32 = arith.constant 0 : i32
    %c0_i32_0 = arith.constant 0 : i32
    %c0_i32_1 = arith.constant 0 : i32
    return %c0_i32, %c0_i32_0 : i32, i32
  }
  func.func @transform_7(%arg0: i32) -> (i32, i32) {
    %c0_i32 = arith.constant 0 : i32
    %c0_i32_0 = arith.constant 0 : i32
    %c0_i32_1 = arith.constant 0 : i32
    return %c0_i32, %c0_i32_0 : i32, i32
  }
  func.func @transform_8(%arg0: i32) -> (i32, i32) {
    %c0_i32 = arith.constant 0 : i32
    %c0_i32_0 = arith.constant 0 : i32
    %c0_i32_1 = arith.constant 0 : i32
    return %c0_i32, %c0_i32_0 : i32, i32
  }
  func.func @transform_9(%arg0: i32) -> (i32, i32) {
    %c0_i32 = arith.constant 0 : i32
    %c0_i32_0 = arith.constant 0 : i32
    return %arg0, %c0_i32 : i32, i32
  }
}

</mosaic_0001>

<llo_original>
// kernel: softplusnet_forward.1
$region0: #{softplusnet_forward.1}
  #allocation0 [shape = 'u32[]', space=smem, size = 0x4, offset = 0x4, fixed_abs, tag = 'smem constant byte address 0x4 - core index']
  #allocation1 [shape = 'u32[72,128]{1,0:T(1,128)}', space=vmem, size = 0x9000, scoped, tag = 'internal scratch']
  %s0 = inlined_call_operand.vmem [shape: bf16[512,128], index: 0, kind: input, shape index: {}]
  %s1 = inlined_call_operand.vmem [shape: bf16[128,384], index: 1, kind: input, shape index: {}]
  %s2 = inlined_call_operand.vmem [shape: f32[1,384], index: 2, kind: input, shape index: {}]
  %s3 = inlined_call_operand.vmem [shape: bf16[384,384], index: 3, kind: input, shape index: {}]
  %s4 = inlined_call_operand.vmem [shape: f32[1,384], index: 4, kind: input, shape index: {}]
  %s5 = inlined_call_operand.vmem [shape: bf16[384,128], index: 5, kind: input, shape index: {}]
  %s6 = inlined_call_operand.vmem [shape: f32[1,128], index: 6, kind: input, shape index: {}]
  %s7 = inlined_call_operand.vmem [shape: bf16[128,128], index: 7, kind: input, shape index: {}]
  %s8 = inlined_call_operand.vmem [shape: f32[1,128], index: 8, kind: input, shape index: {}]
  %s9 = inlined_call_operand.vmem [shape: f32[512,128], index: 9, kind: output, shape index: {}]
  %s10 = sld [smem:[#allocation0]]
  $region69: #{softplusnet_forward.1} parent=0
    _
  %s12 = ssub.s32 1, %s10
  %s13 = scalar_select 0, %s12, %s10
  loop: start=0, step=1, limit=4
  $region2: #{softplusnet_forward.1} parent=0 // loop_pre_header
    _
  $region3: #{softplusnet_forward.1} parent=0 // loop_header
    %s15 = sphi 0, %s19
    %p16 = scmp.ge.s32.totalorder %s15, 4
    %s25 = sphi 0, %s27
    %s28 = sphi 0, %s25
    %s29 = sphi 0, %s28
    %s45 = sphi 0, %s29
    %s49 = sphi 0, %s49
    %s51 = sphi 0, %s49
    %s52 = sphi 0, %s51
    %s66 = sphi 0, %s52
    %s70 = sphi 0, %s70
    %s72 = sphi 0, %s70
    %s73 = sphi 0, %s72
    %s87 = sphi 0, %s73
    %s91 = sphi 0, %s91
    %s93 = sphi 0, %s91
    %s94 = sphi 0, %s93
    %s108 = sphi 0, %s94
    %s112 = sphi 0, %s112
    %s114 = sphi 0, %s112
    %s115 = sphi 0, %s114
    %s129 = sphi 0, %s115
    %s133 = sphi 0, %s133
    %s135 = sphi 0, %s133
    %s136 = sphi 0, %s135
    %s150 = sphi 0, %s136
    %s154 = sphi 0, %s154
    %s156 = sphi 0, %s154
    %s157 = sphi 0, %s156
    %s171 = sphi 0, %s157
    %s175 = sphi 0, %s175
    %s177 = sphi 0, %s175
    %s178 = sphi 0, %s177
    %s192 = sphi 0, %s178
    %s196 = sphi 0, %s196
    %s198 = sphi 0, %s196
    %s199 = sphi 0, %s198
    %s213 = sphi 0, %s199
    %s219 = sphi 0, %s221
    %s222 = sphi 0, %s219
    %s223 = sphi 0, %s222
    %s239 = sphi 0, %s223
  $region4: #{softplusnet_forward.1} parent=0 // loop_header_branch
    %18 = sbr.rel (%p16) target = $region8
  $region5: #{softplusnet_forward.1} parent=0 // loop_body
    %s20 = ssub.s32 %s15, 1
    %s21 = ssub.s32 %s15, 2
    %s22 = sadd.s32 %s15, 1
    %s23 = ssub.s32 %s15, %s22
    %p24 = scmp.eq.s32.totalorder %s23, 0
    %s26 = sadd.s32 %s25, 1
    %s27 = scalar_select %p24, %s25, %s26
    %p30 = pneg %p24
    %p31 = scmp.eq.s32.totalorder %s15, 1
    %p32 = por %p30, %p31
    %p33 = scmp.ne.s32.totalorder %s25, %s28
    %p34 = scmp.eq.s32.totalorder %s15, 0
    %p35 = por %p33, %p34
    %p36 = scmp.ne.s32.totalorder %s25, %s28
    %p37 = scmp.eq.s32.totalorder %s20, 1
    %p38 = por %p36, %p37
    %p39 = scmp.ne.s32.totalorder %s28, %s29
    %p40 = scmp.eq.s32.totalorder %s20, 0
    %p41 = por %p39, %p40
    %p42 = scmp.ne.s32.totalorder %s28, %s29
    %p43 = scmp.eq.s32.totalorder %s21, 1
    %p44 = por %p42, %p43
    %p46 = scmp.ne.s32.totalorder %s29, %s45
    %p47 = scmp.eq.s32.totalorder %s21, 0
    %p48 = por %p46, %p47
    %s50 = sadd.s32 %s49, 1
    %p53 = scmp.eq.s32.totalorder %s15, 1
    %p54 = scmp.ne.s32.totalorder %s49, %s51
    %p55 = scmp.eq.s32.totalorder %s15, 0
    %p56 = por %p54, %p55
    %p57 = scmp.ne.s32.totalorder %s49, %s51
    %p58 = scmp.eq.s32.totalorder %s20, 1
    %p59 = por %p57, %p58
    %p60 = scmp.ne.s32.totalorder %s51, %s52
    %p61 = scmp.eq.s32.totalorder %s20, 0
    %p62 = por %p60, %p61
    %p63 = scmp.ne.s32.totalorder %s51, %s52
    %p64 = scmp.eq.s32.totalorder %s21, 1
    %p65 = por %p63, %p64
    %p67 = scmp.ne.s32.totalorder %s52, %s66
    %p68 = scmp.eq.s32.totalorder %s21, 0
    %p69 = por %p67, %p68
    %s71 = sadd.s32 %s70, 1
    %p74 = scmp.eq.s32.totalorder %s15, 1
    %p75 = scmp.ne.s32.totalorder %s70, %s72
    %p76 = scmp.eq.s32.totalorder %s15, 0
    %p77 = por %p75, %p76
    %p78 = scmp.ne.s32.totalorder %s70, %s72
    %p79 = scmp.eq.s32.totalorder %s20, 1
    %p80 = por %p78, %p79
    %p81 = scmp.ne.s32.totalorder %s72, %s73
    %p82 = scmp.eq.s32.totalorder %s20, 0
    %p83 = por %p81, %p82
    %p84 = scmp.ne.s32.totalorder %s72, %s73
    %p85 = scmp.eq.s32.totalorder %s21, 1
    %p86 = por %p84, %p85
    %p88 = scmp.ne.s32.totalorder %s73, %s87
    %p89 = scmp.eq.s32.totalorder %s21, 0
    %p90 = por %p88, %p89
    %s92 = sadd.s32 %s91, 1
    %p95 = scmp.eq.s32.totalorder %s15, 1
    %p96 = scmp.ne.s32.totalorder %s91, %s93
    %p97 = scmp.eq.s32.totalorder %s15, 0
    %p98 = por %p96, %p97
    %p99 = scmp.ne.s32.totalorder %s91, %s93
    %p100 = scmp.eq.s32.totalorder %s20, 1
    %p101 = por %p99, %p100
    %p102 = scmp.ne.s32.totalorder %s93, %s94
    %p103 = scmp.eq.s32.totalorder %s20, 0
    %p104 = por %p102, %p103
    %p105 = scmp.ne.s32.totalorder %s93, %s94
    %p106 = scmp.eq.s32.totalorder %s21, 1
    %p107 = por %p105, %p106
    %p109 = scmp.ne.s32.totalorder %s94, %s108
    %p110 = scmp.eq.s32.totalorder %s21, 0
    %p111 = por %p109, %p110
    %s113 = sadd.s32 %s112, 1
    %p116 = scmp.eq.s32.totalorder %s15, 1
    %p117 = scmp.ne.s32.totalorder %s112, %s114
    %p118 = scmp.eq.s32.totalorder %s15, 0
    %p119 = por %p117, %p118
    %p120 = scmp.ne.s32.totalorder %s112, %s114
    %p121 = scmp.eq.s32.totalorder %s20, 1
    %p122 = por %p120, %p121
    %p123 = scmp.ne.s32.totalorder %s114, %s115
    %p124 = scmp.eq.s32.totalorder %s20, 0
    %p125 = por %p123, %p124
    %p126 = scmp.ne.s32.totalorder %s114, %s115
    %p127 = scmp.eq.s32.totalorder %s21, 1
    %p128 = por %p126, %p127
    %p130 = scmp.ne.s32.totalorder %s115, %s129
    %p131 = scmp.eq.s32.totalorder %s21, 0
    %p132 = por %p130, %p131
    %s134 = sadd.s32 %s133, 1
    %p137 = scmp.eq.s32.totalorder %s15, 1
    %p138 = scmp.ne.s32.totalorder %s133, %s135
    %p139 = scmp.eq.s32.totalorder %s15, 0
    %p140 = por %p138, %p139
    %p141 = scmp.ne.s32.totalorder %s133, %s135
    %p142 = scmp.eq.s32.totalorder %s20, 1
    %p143 = por %p141, %p142
    %p144 = scmp.ne.s32.totalorder %s135, %s136
    %p145 = scmp.eq.s32.totalorder %s20, 0
    %p146 = por %p144, %p145
    %p147 = scmp.ne.s32.totalorder %s135, %s136
    %p148 = scmp.eq.s32.totalorder %s21, 1
    %p149 = por %p147, %p148
    %p151 = scmp.ne.s32.totalorder %s136, %s150
    %p152 = scmp.eq.s32.totalorder %s21, 0
    %p153 = por %p151, %p152
    %s155 = sadd.s32 %s154, 1
    %p158 = scmp.eq.s32.totalorder %s15, 1
    %p159 = scmp.ne.s32.totalorder %s154, %s156
    %p160 = scmp.eq.s32.totalorder %s15, 0
    %p161 = por %p159, %p160
    %p162 = scmp.ne.s32.totalorder %s154, %s156
    %p163 = scmp.eq.s32.totalorder %s20, 1
    %p164 = por %p162, %p163
    %p165 = scmp.ne.s32.totalorder %s156, %s157
    %p166 = scmp.eq.s32.totalorder %s20, 0
    %p167 = por %p165, %p166
    %p168 = scmp.ne.s32.totalorder %s156, %s157
    %p169 = scmp.eq.s32.totalorder %s21, 1
    %p170 = por %p168, %p169
    %p172 = scmp.ne.s32.totalorder %s157, %s171
    %p173 = scmp.eq.s32.totalorder %s21, 0
    %p174 = por %p172, %p173
    %s176 = sadd.s32 %s175, 1
    %p179 = scmp.eq.s32.totalorder %s15, 1
    %p180 = scmp.ne.s32.totalorder %s175, %s177
    %p181 = scmp.eq.s32.totalorder %s15, 0
    %p182 = por %p180, %p181
    %p183 = scmp.ne.s32.totalorder %s175, %s177
    %p184 = scmp.eq.s32.totalorder %s20, 1
    %p185 = por %p183, %p184
    %p186 = scmp.ne.s32.totalorder %s177, %s178
    %p187 = scmp.eq.s32.totalorder %s20, 0
    %p188 = por %p186, %p187
    %p189 = scmp.ne.s32.totalorder %s177, %s178
    %p190 = scmp.eq.s32.totalorder %s21, 1
    %p191 = por %p189, %p190
    %p193 = scmp.ne.s32.totalorder %s178, %s192
    %p194 = scmp.eq.s32.totalorder %s21, 0
    %p195 = por %p193, %p194
    %s197 = sadd.s32 %s196, 1
    %p200 = scmp.eq.s32.totalorder %s15, 1
    %p201 = scmp.ne.s32.totalorder %s196, %s198
    %p202 = scmp.eq.s32.totalorder %s15, 0
    %p203 = por %p201, %p202
    %p204 = scmp.ne.s32.totalorder %s196, %s198
    %p205 = scmp.eq.s32.totalorder %s20, 1
    %p206 = por %p204, %p205
    %p207 = scmp.ne.s32.totalorder %s198, %s199
    %p208 = scmp.eq.s32.totalorder %s20, 0
    %p209 = por %p207, %p208
    %p210 = scmp.ne.s32.totalorder %s198, %s199
    %p211 = scmp.eq.s32.totalorder %s21, 1
    %p212 = por %p210, %p211
    %p214 = scmp.ne.s32.totalorder %s199, %s213
    %p215 = scmp.eq.s32.totalorder %s21, 0
    %p216 = por %p214, %p215
    %s217 = ssub.s32 %s15, %s22
    %p218 = scmp.eq.s32.totalorder %s217, 0
    %s220 = sadd.s32 %s219, 1
    %s221 = scalar_select %p218, %s219, %s220
    %p224 = pneg %p218
    %p225 = scmp.eq.s32.totalorder %s15, 1
    %p226 = por %p224, %p225
    %p227 = scmp.ne.s32.totalorder %s219, %s222
    %p228 = scmp.eq.s32.totalorder %s15, 0
    %p229 = por %p227, %p228
    %p230 = scmp.ne.s32.totalorder %s219, %s222
    %p231 = scmp.eq.s32.totalorder %s20, 1
    %p232 = por %p230, %p231
    %p233 = scmp.ne.s32.totalorder %s222, %s223
    %p234 = scmp.eq.s32.totalorder %s20, 0
    %p235 = por %p233, %p234
    %p236 = scmp.ne.s32.totalorder %s222, %s223
    %p237 = scmp.eq.s32.totalorder %s21, 1
    %p238 = por %p236, %p237
    %p240 = scmp.ne.s32.totalorder %s223, %s239
    %p241 = scmp.eq.s32.totalorder %s21, 0
    %p242 = por %p240, %p241
    %p243 = scmp.le.s32.totalorder 1, %s15
    %p244 = scmp.lt.s32.totalorder %s15, 3
    %p245 = pnand %p243, %p244
    %p246 = pneg %p245
    // Predicated region
    $region9: #{softplusnet_forward.1} parent=5 // pred_check
      _
    $region10: #{softplusnet_forward.1} parent=5 // pred_check_branch
      %248 = sbr.rel (%p245) target = $region12
    $region11: #{softplusnet_forward.1} parent=5 // pred_region
      %s249 = ssub.s32 %s15, 1
      // Predicated region
      $region13: #{softplusnet_forward.1} parent=11 // pred_check
        %p250 = pneg %p62
      $region14: #{softplusnet_forward.1} parent=11 // pred_check_branch
        %252 = sbr.rel (%p250) target = $region16
      $region15: #{softplusnet_forward.1} parent=11 // pred_region
        _
      $region16: #{softplusnet_forward.1} parent=11 // pred_fallthru
        _
      // Predicated region
      $region17: #{softplusnet_forward.1} parent=11 // pred_check
        %p253 = pneg %p83
      $region18: #{softplusnet_forward.1} parent=11 // pred_check_branch
        %255 = sbr.rel (%p253) target = $region20
      $region19: #{softplusnet_forward.1} parent=11 // pred_region
        _
      $region20: #{softplusnet_forward.1} parent=11 // pred_fallthru
        _
      // Predicated region
      $region21: #{softplusnet_forward.1} parent=11 // pred_check
        %p256 = pneg %p104
      $region22: #{softplusnet_forward.1} parent=11 // pred_check_branch
        %258 = sbr.rel (%p256) target = $region24
      $region23: #{softplusnet_forward.1} parent=11 // pred_region
        _
      $region24: #{softplusnet_forward.1} parent=11 // pred_fallthru
        _
      // Predicated region
      $region25: #{softplusnet_forward.1} parent=11 // pred_check
        %p259 = pneg %p125
      $region26: #{softplusnet_forward.1} parent=11 // pred_check_branch
        %261 = sbr.rel (%p259) target = $region28
      $region27: #{softplusnet_forward.1} parent=11 // pred_region
        _
      $region28: #{softplusnet_forward.1} parent=11 // pred_fallthru
        _
      // Predicated region
      $region29: #{softplusnet_forward.1} parent=11 // pred_check
        %p262 = pneg %p146
      $region30: #{softplusnet_forward.1} parent=11 // pred_check_branch
        %264 = sbr.rel (%p262) target = $region32
      $region31: #{softplusnet_forward.1} parent=11 // pred_region
        _
      $region32: #{softplusnet_forward.1} parent=11 // pred_fallthru
        _
      // Predicated region
      $region33: #{softplusnet_forward.1} parent=11 // pred_check
        %p265 = pneg %p167
      $region34: #{softplusnet_forward.1} parent=11 // pred_check_branch
        %267 = sbr.rel (%p265) target = $region36
      $region35: #{softplusnet_forward.1} parent=11 // pred_region
        _
      $region36: #{softplusnet_forward.1} parent=11 // pred_fallthru
        _
      // Predicated region
      $region37: #{softplusnet_forward.1} parent=11 // pred_check
        %p268 = pneg %p188
      $region38: #{softplusnet_forward.1} parent=11 // pred_check_branch
        %270 = sbr.rel (%p268) target = $region40
      $region39: #{softplusnet_forward.1} parent=11 // pred_region
        _
      $region40: #{softplusnet_forward.1} parent=11 // pred_fallthru
        _
      // Predicated region
      $region41: #{softplusnet_forward.1} parent=11 // pred_check
        %p271 = pneg %p209
      $region42: #{softplusnet_forward.1} parent=11 // pred_check_branch
        %273 = sbr.rel (%p271) target = $region44
      $region43: #{softplusnet_forward.1} parent=11 // pred_region
        _
      $region44: #{softplusnet_forward.1} parent=11 // pred_fallthru
        _
    $region12: #{softplusnet_forward.1} parent=5 // pred_fallthru
      _
    %p274 = scmp.lt.s32.totalorder %s15, 2
    // Predicated region
    $region45: #{softplusnet_forward.1} parent=5 // pred_check
      %p275 = pneg %p274
    $region46: #{softplusnet_forward.1} parent=5 // pred_check_branch
      %277 = sbr.rel (%p275) target = $region48
    $region47: #{softplusnet_forward.1} parent=5 // pred_region
      // Predicated region
      $region49: #{softplusnet_forward.1} parent=47 // pred_check
        %p278 = pneg %p35
      $region50: #{softplusnet_forward.1} parent=47 // pred_check_branch
        %280 = sbr.rel (%p278) target = $region52
      $region51: #{softplusnet_forward.1} parent=47 // pred_region
        %s281 = smul.u32 32, %s15
        %p282 = scmp.lt.s32.totalorder %s281, 63
        %s283 = scalar_select %p282, %s281, 63
        %s284 = smul.addr %s283, 4
        %s285 = scalar_lea.vmem %s0, %s284
        %s286 = smul.u32 32, %s15
      $region52: #{softplusnet_forward.1} parent=47 // pred_fallthru
        _
    $region48: #{softplusnet_forward.1} parent=5 // pred_fallthru
      _
    %p287 = scmp.le.s32.totalorder 1, %s15
    %p288 = scmp.lt.s32.totalorder %s15, 3
    %p289 = pnand %p287, %p288
    %p290 = pneg %p289
    // Predicated region
    $region53: #{softplusnet_forward.1} parent=5 // pred_check
      _
    $region54: #{softplusnet_forward.1} parent=5 // pred_check_branch
      %292 = sbr.rel (%p289) target = $region56
    $region55: #{softplusnet_forward.1} parent=5 // pred_region
      %s293 = ssub.s32 %s15, 1
      %s294 = smul.u32 32, %s20
      %p295 = scmp.lt.s32.totalorder %s294, 63
      %s296 = scalar_select %p295, %s294, 63
      %s297 = smul.addr %s296, 4
      %s298 = scalar_lea.vmem %s0, %s297
      %p299 = pneg %p41
      %p300 = pneg %p38
      %p301 = pneg %p62
      %p302 = pneg %p59
      %p303 = pneg %p83
      %p304 = pneg %p80
      %p305 = pneg %p104
      %p306 = pneg %p101
      %p307 = pneg %p125
      %p308 = pneg %p122
      %p309 = pneg %p146
      %p310 = pneg %p143
      %p311 = pneg %p167
      %p312 = pneg %p164
      %p313 = pneg %p188
      %p314 = pneg %p185
      %p315 = pneg %p209
      %p316 = pneg %p206
      %p317 = pneg %p235
      %p318 = pneg %p232
      %s319 = smul.u32 32, %s20
      %p320 = scmp.lt.s32.totalorder %s319, 63
      %s321 = scalar_select %p320, %s319, 63
      %s322 = smul.addr %s321, 8
      %s323 = scalar_lea.vmem %s9, %s322
      %s324 = smul.u32 32, %s20
      %p325 = scmp.lt.s32.totalorder %s324, 63
      %s326 = scalar_select %p325, %s324, 63
      %s327 = smul.addr %s326, 4
      %s328 = scalar_lea.vmem %s0, %s327
      %s329 = smul.u32 32, %s20
      %s330 = smul.u32 32, %s20
      %p331 = scmp.lt.s32.totalorder %s330, 63
      %s332 = scalar_select %p331, %s330, 63
      %s333 = smul.addr %s332, 8
      %s334 = scalar_lea.vmem %s9, %s333
      %s335 = smul.u32 32, %s20
      %v336 = vld [vmem:[%s328] sm:$0xf]
      %v337 = vld [vmem:[%s328 + $0x4] sm:$0xf]
      %v338 = vld [vmem:[%s328 + $0x8] sm:$0xf]
      %v339 = vld [vmem:[%s328 + $0xc] sm:$0xf]
      %v340 = vld [vmem:[%s328 + $0x10] sm:$0xf]
      %v341 = vld [vmem:[%s328 + $0x14] sm:$0xf]
      %v342 = vld [vmem:[%s328 + $0x18] sm:$0xf]
      %v343 = vld [vmem:[%s328 + $0x1c] sm:$0xf]
      %v344 = vld [vmem:[%s328 + $0x20] sm:$0xf]
      %v345 = vld [vmem:[%s328 + $0x24] sm:$0xf]
      %v346 = vld [vmem:[%s328 + $0x28] sm:$0xf]
      %v347 = vld [vmem:[%s328 + $0x2c] sm:$0xf]
      %v348 = vld [vmem:[%s328 + $0x30] sm:$0xf]
      %v349 = vld [vmem:[%s328 + $0x34] sm:$0xf]
      %v350 = vld [vmem:[%s328 + $0x38] sm:$0xf]
      %v351 = vld [vmem:[%s328 + $0x3c] sm:$0xf]
      %v352 = vld [vmem:[%s1] sm:$0xff]
      %v353 = vld [vmem:[%s1 + $0x8] sm:$0xf]
      %v354 = vld [vmem:[%s1 + $0xc] sm:$0xff]
      %v355 = vld [vmem:[%s1 + $0x14] sm:$0xf]
      %v356 = vld [vmem:[%s1 + $0x18] sm:$0xff]
      %v357 = vld [vmem:[%s1 + $0x20] sm:$0xf]
      %v358 = vld [vmem:[%s1 + $0x24] sm:$0xff]
      %v359 = vld [vmem:[%s1 + $0x2c] sm:$0xf]
      %v360 = vld [vmem:[%s1 + $0x30] sm:$0xff]
      %v361 = vld [vmem:[%s1 + $0x38] sm:$0xf]
      %v362 = vld [vmem:[%s1 + $0x3c] sm:$0xff]
      %v363 = vld [vmem:[%s1 + $0x44] sm:$0xf]
      %v364 = vld [vmem:[%s1 + $0x48] sm:$0xff]
      %v365 = vld [vmem:[%s1 + $0x50] sm:$0xf]
      %v366 = vld [vmem:[%s1 + $0x54] sm:$0xff]
      %v367 = vld [vmem:[%s1 + $0x5c] sm:$0xf]
      %v368 = vld [vmem:[%s1 + $0x60] sm:$0xff]
      %v369 = vld [vmem:[%s1 + $0x68] sm:$0xf]
      %v370 = vld [vmem:[%s1 + $0x6c] sm:$0xff]
      %v371 = vld [vmem:[%s1 + $0x74] sm:$0xf]
      %v372 = vld [vmem:[%s1 + $0x78] sm:$0xff]
      %v373 = vld [vmem:[%s1 + $0x80] sm:$0xf]
      %v374 = vld [vmem:[%s1 + $0x84] sm:$0xff]
      %v375 = vld [vmem:[%s1 + $0x8c] sm:$0xf]
      %v376 = vld [vmem:[%s1 + $0x90] sm:$0xff]
      %v377 = vld [vmem:[%s1 + $0x98] sm:$0xf]
      %v378 = vld [vmem:[%s1 + $0x9c] sm:$0xff]
      %v379 = vld [vmem:[%s1 + $0xa4] sm:$0xf]
      %v380 = vld [vmem:[%s1 + $0xa8] sm:$0xff]
      %v381 = vld [vmem:[%s1 + $0xb0] sm:$0xf]
      %v382 = vld [vmem:[%s1 + $0xb4] sm:$0xff]
      %v383 = vld [vmem:[%s1 + $0xbc] sm:$0xf]
      %v384 = vld [vmem:[%s2] sm:$0x7]
      %v386 = vperm.slane %v384, 0
      %v387 = vperm.slane %v384, 1
      %v388 = vperm.slane %v384, 2
      %v408 = vunpack.c.l.b16 %v336
      %v409 = vunpack.c.l.b16 %v337
      %v410 = vunpack.c.l.b16 %v338
      %v411 = vunpack.c.l.b16 %v339
      %v412 = vunpack.c.l.b16 %v340
      %v413 = vunpack.c.l.b16 %v341
      %v414 = vunpack.c.l.b16 %v342
      %v415 = vunpack.c.l.b16 %v343
      %v416 = vunpack.c.l.b16 %v344
      %v417 = vunpack.c.l.b16 %v345
      %v418 = vunpack.c.l.b16 %v346
      %v419 = vunpack.c.l.b16 %v347
      %v420 = vunpack.c.l.b16 %v348
      %v421 = vunpack.c.l.b16 %v349
      %v422 = vunpack.c.l.b16 %v350
      %v423 = vunpack.c.l.b16 %v351
      %v424 = vpack.c.b16 %v409, %v408
      %v425 = vpack.c.b16 %v411, %v410
      %v426 = vpack.c.b16 %v413, %v412
      %v427 = vpack.c.b16 %v415, %v414
      %v428 = vpack.c.b16 %v417, %v416
      %v429 = vpack.c.b16 %v419, %v418
      %v430 = vpack.c.b16 %v421, %v420
      %v431 = vpack.c.b16 %v423, %v422
      %v472 = vunpack.c.l.b16 %v352
      %v473 = vunpack.c.h.b16 %v352
      %v474 = vunpack.c.l.b16 %v353
      %v475 = vunpack.c.l.b16 %v354
      %v476 = vunpack.c.h.b16 %v354
      %v477 = vunpack.c.l.b16 %v355
      %v478 = vunpack.c.l.b16 %v356
      %v479 = vunpack.c.h.b16 %v356
      %v480 = vunpack.c.l.b16 %v357
      %v481 = vunpack.c.l.b16 %v358
      %v482 = vunpack.c.h.b16 %v358
      %v483 = vunpack.c.l.b16 %v359
      %v484 = vunpack.c.l.b16 %v360
      %v485 = vunpack.c.h.b16 %v360
      %v486 = vunpack.c.l.b16 %v361
      %v487 = vunpack.c.l.b16 %v362
      %v488 = vunpack.c.h.b16 %v362
      %v489 = vunpack.c.l.b16 %v363
      %v490 = vunpack.c.l.b16 %v364
      %v491 = vunpack.c.h.b16 %v364
      %v492 = vunpack.c.l.b16 %v365
      %v493 = vunpack.c.l.b16 %v366
      %v494 = vunpack.c.h.b16 %v366
      %v495 = vunpack.c.l.b16 %v367
      %v496 = vunpack.c.l.b16 %v368
      %v497 = vunpack.c.h.b16 %v368
      %v498 = vunpack.c.l.b16 %v369
      %v499 = vunpack.c.l.b16 %v370
      %v500 = vunpack.c.h.b16 %v370
      %v501 = vunpack.c.l.b16 %v371
      %v502 = vunpack.c.l.b16 %v372
      %v503 = vunpack.c.h.b16 %v372
      %v504 = vunpack.c.l.b16 %v373
      %v505 = vunpack.c.l.b16 %v374
      %v506 = vunpack.c.h.b16 %v374
      %v507 = vunpack.c.l.b16 %v375
      %v508 = vunpack.c.l.b16 %v376
      %v509 = vunpack.c.h.b16 %v376
      %v510 = vunpack.c.l.b16 %v377
      %v511 = vunpack.c.l.b16 %v378
      %v512 = vunpack.c.h.b16 %v378
      %v513 = vunpack.c.l.b16 %v379
      %v514 = vunpack.c.l.b16 %v380
      %v515 = vunpack.c.h.b16 %v380
      %v516 = vunpack.c.l.b16 %v381
      %v517 = vunpack.c.l.b16 %v382
      %v518 = vunpack.c.h.b16 %v382
      %v519 = vunpack.c.l.b16 %v383
      %v520 = vpack.c.b16 %v475, %v472
      %v521 = vpack.c.b16 %v476, %v473
      %v522 = vpack.c.b16 %v477, %v474
      %v523 = vpack.c.b16 %v481, %v478
      %v524 = vpack.c.b16 %v482, %v479
      %v525 = vpack.c.b16 %v483, %v480
      %v526 = vpack.c.b16 %v487, %v484
      %v527 = vpack.c.b16 %v488, %v485
      %v528 = vpack.c.b16 %v489, %v486
      %v529 = vpack.c.b16 %v493, %v490
      %v530 = vpack.c.b16 %v494, %v491
      %v531 = vpack.c.b16 %v495, %v492
      %v532 = vpack.c.b16 %v499, %v496
      %v533 = vpack.c.b16 %v500, %v497
      %v534 = vpack.c.b16 %v501, %v498
      %v535 = vpack.c.b16 %v505, %v502
      %v536 = vpack.c.b16 %v506, %v503
      %v537 = vpack.c.b16 %v507, %v504
      %v538 = vpack.c.b16 %v511, %v508
      %v539 = vpack.c.b16 %v512, %v509
      %v540 = vpack.c.b16 %v513, %v510
      %v541 = vpack.c.b16 %v517, %v514
      %v542 = vpack.c.b16 %v518, %v515
      %v543 = vpack.c.b16 %v519, %v516
      %568 = vmatpush.bf16.msra.mxu0 %v541
      %569 = vmatpush.bf16.msra.mxu0 %v538
      %570 = vmatpush.bf16.msra.mxu0 %v535
      %571 = vmatpush.bf16.msra.mxu0 %v532
      %572 = vmatpush.bf16.msra.mxu0 %v529
      %573 = vmatpush.bf16.msra.mxu0 %v526
      %574 = vmatpush.bf16.msra.mxu0 %v523
      %575 = vmatpush.bf16.msra.mxu0 %v520
      %576 = vmatmul.bf16.gmra.mxu0 %v424
      %v577 = vpop.f32.mrf.mxu0
      %v578 = vadd.f32 %v386, %v577
      %v579 = vpop.f32.mrf.mxu0
      %v580 = vadd.f32 %v386, %v579
      %581 = vmatmul.bf16.gmra.mxu0 %v425
      %v582 = vpop.f32.mrf.mxu0
      %v583 = vadd.f32 %v386, %v582
      %v584 = vpop.f32.mrf.mxu0
      %v585 = vadd.f32 %v386, %v584
      %586 = vmatmul.bf16.gmra.mxu0 %v426
      %v587 = vpop.f32.mrf.mxu0
      %v588 = vadd.f32 %v386, %v587
      %v589 = vpop.f32.mrf.mxu0
      %v590 = vadd.f32 %v386, %v589
      %591 = vmatmul.bf16.gmra.mxu0 %v427
      %v592 = vpop.f32.mrf.mxu0
      %v593 = vadd.f32 %v386, %v592
      %v594 = vpop.f32.mrf.mxu0
      %v595 = vadd.f32 %v386, %v594
      %596 = vmatmul.bf16.gmra.mxu0 %v428
      %v597 = vpop.f32.mrf.mxu0
      %v598 = vadd.f32 %v386, %v597
      %v599 = vpop.f32.mrf.mxu0
      %v600 = vadd.f32 %v386, %v599
      %601 = vmatmul.bf16.gmra.mxu0 %v429
      %v602 = vpop.f32.mrf.mxu0
      %v603 = vadd.f32 %v386, %v602
      %v604 = vpop.f32.mrf.mxu0
      %v605 = vadd.f32 %v386, %v604
      %606 = vmatmul.bf16.gmra.mxu0 %v430
      %v607 = vpop.f32.mrf.mxu0
      %v608 = vadd.f32 %v386, %v607
      %v609 = vpop.f32.mrf.mxu0
      %v610 = vadd.f32 %v386, %v609
      %611 = vmatmul.bf16.gmra.mxu0 %v431
      %v612 = vpop.f32.mrf.mxu0
      %v613 = vadd.f32 %v386, %v612
      %v614 = vpop.f32.mrf.mxu0
      %v615 = vadd.f32 %v386, %v614
      %616 = vdwg.mxu0
      %617 = vmatpush.bf16.msra.mxu0 %v542
      %618 = vmatpush.bf16.msra.mxu0 %v539
      %619 = vmatpush.bf16.msra.mxu0 %v536
      %620 = vmatpush.bf16.msra.mxu0 %v533
      %621 = vmatpush.bf16.msra.mxu0 %v530
      %622 = vmatpush.bf16.msra.mxu0 %v527
      %623 = vmatpush.bf16.msra.mxu0 %v524
      %624 = vmatpush.bf16.msra.mxu0 %v521
      %625 = vmatmul.bf16.gmra.mxu0 %v424
      %v626 = vpop.f32.mrf.mxu0
      %v627 = vadd.f32 %v387, %v626
      %v628 = vpop.f32.mrf.mxu0
      %v629 = vadd.f32 %v387, %v628
      %630 = vmatmul.bf16.gmra.mxu0 %v425
      %v631 = vpop.f32.mrf.mxu0
      %v632 = vadd.f32 %v387, %v631
      %v633 = vpop.f32.mrf.mxu0
      %v634 = vadd.f32 %v387, %v633
      %635 = vmatmul.bf16.gmra.mxu0 %v426
      %v636 = vpop.f32.mrf.mxu0
      %v637 = vadd.f32 %v387, %v636
      %v638 = vpop.f32.mrf.mxu0
      %v639 = vadd.f32 %v387, %v638
      %640 = vmatmul.bf16.gmra.mxu0 %v427
      %v641 = vpop.f32.mrf.mxu0
      %v642 = vadd.f32 %v387, %v641
      %v643 = vpop.f32.mrf.mxu0
      %v644 = vadd.f32 %v387, %v643
      %645 = vmatmul.bf16.gmra.mxu0 %v428
      %v646 = vpop.f32.mrf.mxu0
      %v647 = vadd.f32 %v387, %v646
      %v648 = vpop.f32.mrf.mxu0
      %v649 = vadd.f32 %v387, %v648
      %650 = vmatmul.bf16.gmra.mxu0 %v429
      %v651 = vpop.f32.mrf.mxu0
      %v652 = vadd.f32 %v387, %v651
      %v653 = vpop.f32.mrf.mxu0
      %v654 = vadd.f32 %v387, %v653
      %655 = vmatmul.bf16.gmra.mxu0 %v430
      %v656 = vpop.f32.mrf.mxu0
      %v657 = vadd.f32 %v387, %v656
      %v658 = vpop.f32.mrf.mxu0
      %v659 = vadd.f32 %v387, %v658
      %660 = vmatmul.bf16.gmra.mxu0 %v431
      %v661 = vpop.f32.mrf.mxu0
      %v662 = vadd.f32 %v387, %v661
      %v663 = vpop.f32.mrf.mxu0
      %v664 = vadd.f32 %v387, %v663
      %665 = vdwg.mxu0
      %666 = vmatpush.bf16.msra.mxu0 %v543
      %667 = vmatpush.bf16.msra.mxu0 %v540
      %668 = vmatpush.bf16.msra.mxu0 %v537
      %669 = vmatpush.bf16.msra.mxu0 %v534
      %670 = vmatpush.bf16.msra.mxu0 %v531
      %671 = vmatpush.bf16.msra.mxu0 %v528
      %672 = vmatpush.bf16.msra.mxu0 %v525
      %673 = vmatpush.bf16.msra.mxu0 %v522
      %674 = vmatmul.bf16.gmra.mxu0 %v424
      %v675 = vpop.f32.mrf.mxu0
      %v676 = vadd.f32 %v388, %v675
      %v677 = vpop.f32.mrf.mxu0
      %v678 = vadd.f32 %v388, %v677
      %679 = vmatmul.bf16.gmra.mxu0 %v425
      %v680 = vpop.f32.mrf.mxu0
      %v681 = vadd.f32 %v388, %v680
      %v682 = vpop.f32.mrf.mxu0
      %v683 = vadd.f32 %v388, %v682
      %684 = vmatmul.bf16.gmra.mxu0 %v426
      %v685 = vpop.f32.mrf.mxu0
      %v686 = vadd.f32 %v388, %v685
      %v687 = vpop.f32.mrf.mxu0
      %v688 = vadd.f32 %v388, %v687
      %689 = vmatmul.bf16.gmra.mxu0 %v427
      %v690 = vpop.f32.mrf.mxu0
      %v691 = vadd.f32 %v388, %v690
      %v692 = vpop.f32.mrf.mxu0
      %v693 = vadd.f32 %v388, %v692
      %694 = vmatmul.bf16.gmra.mxu0 %v428
      %v695 = vpop.f32.mrf.mxu0
      %v696 = vadd.f32 %v388, %v695
      %v697 = vpop.f32.mrf.mxu0
      %v698 = vadd.f32 %v388, %v697
      %699 = vmatmul.bf16.gmra.mxu0 %v429
      %v700 = vpop.f32.mrf.mxu0
      %v701 = vadd.f32 %v388, %v700
      %v702 = vpop.f32.mrf.mxu0
      %v703 = vadd.f32 %v388, %v702
      %704 = vmatmul.bf16.gmra.mxu0 %v430
      %v705 = vpop.f32.mrf.mxu0
      %v706 = vadd.f32 %v388, %v705
      %v707 = vpop.f32.mrf.mxu0
      %v708 = vadd.f32 %v388, %v707
      %709 = vmatmul.bf16.gmra.mxu0 %v431
      %v710 = vpop.f32.mrf.mxu0
      %v711 = vadd.f32 %v388, %v710
      %v712 = vpop.f32.mrf.mxu0
      %v713 = vadd.f32 %v388, %v712
      %714 = vdwg.mxu0
      %v715 = vmin.f32 %v578, 20.0
      %v716 = vmin.f32 %v627, 20.0
      %v717 = vmin.f32 %v676, 20.0
      %v718 = vmin.f32 %v580, 20.0
      %v719 = vmin.f32 %v629, 20.0
      %v720 = vmin.f32 %v678, 20.0
      %v721 = vmin.f32 %v583, 20.0
      %v722 = vmin.f32 %v632, 20.0
      %v723 = vmin.f32 %v681, 20.0
      %v724 = vmin.f32 %v585, 20.0
      %v725 = vmin.f32 %v634, 20.0
      %v726 = vmin.f32 %v683, 20.0
      %v727 = vmin.f32 %v588, 20.0
      %v728 = vmin.f32 %v637, 20.0
      %v729 = vmin.f32 %v686, 20.0
      %v730 = vmin.f32 %v590, 20.0
      %v731 = vmin.f32 %v639, 20.0
      %v732 = vmin.f32 %v688, 20.0
      %v733 = vmin.f32 %v593, 20.0
      %v734 = vmin.f32 %v642, 20.0
      %v735 = vmin.f32 %v691, 20.0
      %v736 = vmin.f32 %v595, 20.0
      %v737 = vmin.f32 %v644, 20.0
      %v738 = vmin.f32 %v693, 20.0
      %v739 = vmin.f32 %v598, 20.0
      %v740 = vmin.f32 %v647, 20.0
      %v741 = vmin.f32 %v696, 20.0
      %v742 = vmin.f32 %v600, 20.0
      %v743 = vmin.f32 %v649, 20.0
      %v744 = vmin.f32 %v698, 20.0
      %v745 = vmin.f32 %v603, 20.0
      %v746 = vmin.f32 %v652, 20.0
      %v747 = vmin.f32 %v701, 20.0
      %v748 = vmin.f32 %v605, 20.0
      %v749 = vmin.f32 %v654, 20.0
      %v750 = vmin.f32 %v703, 20.0
      %v751 = vmin.f32 %v608, 20.0
      %v752 = vmin.f32 %v657, 20.0
      %v753 = vmin.f32 %v706, 20.0
      %v754 = vmin.f32 %v610, 20.0
      %v755 = vmin.f32 %v659, 20.0
      %v756 = vmin.f32 %v708, 20.0
      %v757 = vmin.f32 %v613, 20.0
      %v758 = vmin.f32 %v662, 20.0
      %v759 = vmin.f32 %v711, 20.0
      %v760 = vmin.f32 %v615, 20.0
      %v761 = vmin.f32 %v664, 20.0
      %v762 = vmin.f32 %v713, 20.0
      %vm763 = vcmp.gt.f32.partialorder %v578, 20.0
      %vm764 = vcmp.gt.f32.partialorder %v627, 20.0
      %vm765 = vcmp.gt.f32.partialorder %v676, 20.0
      %vm766 = vcmp.gt.f32.partialorder %v580, 20.0
      %vm767 = vcmp.gt.f32.partialorder %v629, 20.0
      %vm768 = vcmp.gt.f32.partialorder %v678, 20.0
      %vm769 = vcmp.gt.f32.partialorder %v583, 20.0
      %vm770 = vcmp.gt.f32.partialorder %v632, 20.0
      %vm771 = vcmp.gt.f32.partialorder %v681, 20.0
      %vm772 = vcmp.gt.f32.partialorder %v585, 20.0
      %vm773 = vcmp.gt.f32.partialorder %v634, 20.0
      %vm774 = vcmp.gt.f32.partialorder %v683, 20.0
      %vm775 = vcmp.gt.f32.partialorder %v588, 20.0
      %vm776 = vcmp.gt.f32.partialorder %v637, 20.0
      %vm777 = vcmp.gt.f32.partialorder %v686, 20.0
      %vm778 = vcmp.gt.f32.partialorder %v590, 20.0
      %vm779 = vcmp.gt.f32.partialorder %v639, 20.0
      %vm780 = vcmp.gt.f32.partialorder %v688, 20.0
      %vm781 = vcmp.gt.f32.partialorder %v593, 20.0
      %vm782 = vcmp.gt.f32.partialorder %v642, 20.0
      %vm783 = vcmp.gt.f32.partialorder %v691, 20.0
      %vm784 = vcmp.gt.f32.partialorder %v595, 20.0
      %vm785 = vcmp.gt.f32.partialorder %v644, 20.0
      %vm786 = vcmp.gt.f32.partialorder %v693, 20.0
      %vm787 = vcmp.gt.f32.partialorder %v598, 20.0
      %vm788 = vcmp.gt.f32.partialorder %v647, 20.0
      %vm789 = vcmp.gt.f32.partialorder %v696, 20.0
      %vm790 = vcmp.gt.f32.partialorder %v600, 20.0
      %vm791 = vcmp.gt.f32.partialorder %v649, 20.0
      %vm792 = vcmp.gt.f32.partialorder %v698, 20.0
      %vm793 = vcmp.gt.f32.partialorder %v603, 20.0
      %vm794 = vcmp.gt.f32.partialorder %v652, 20.0
      %vm795 = vcmp.gt.f32.partialorder %v701, 20.0
      %vm796 = vcmp.gt.f32.partialorder %v605, 20.0
      %vm797 = vcmp.gt.f32.partialorder %v654, 20.0
      %vm798 = vcmp.gt.f32.partialorder %v703, 20.0
      %vm799 = vcmp.gt.f32.partialorder %v608, 20.0
      %vm800 = vcmp.gt.f32.partialorder %v657, 20.0
      %vm801 = vcmp.gt.f32.partialorder %v706, 20.0
      %vm802 = vcmp.gt.f32.partialorder %v610, 20.0
      %vm803 = vcmp.gt.f32.partialorder %v659, 20.0
      %vm804 = vcmp.gt.f32.partialorder %v708, 20.0
      %vm805 = vcmp.gt.f32.partialorder %v613, 20.0
      %vm806 = vcmp.gt.f32.partialorder %v662, 20.0
      %vm807 = vcmp.gt.f32.partialorder %v711, 20.0
      %vm808 = vcmp.gt.f32.partialorder %v615, 20.0
      %vm809 = vcmp.gt.f32.partialorder %v664, 20.0
      %vm810 = vcmp.gt.f32.partialorder %v713, 20.0
      %v811 = vmul.f32 %v715, 1.442695
      %v812 = vpow.pop %v811
      %v813 = vmul.f32 %v716, 1.442695
      %v814 = vpow.pop %v813
      %v815 = vmul.f32 %v717, 1.442695
      %v816 = vpow.pop %v815
      %v817 = vmul.f32 %v718, 1.442695
      %v818 = vpow.pop %v817
      %v819 = vmul.f32 %v719, 1.442695
      %v820 = vpow.pop %v819
      %v821 = vmul.f32 %v720, 1.442695
      %v822 = vpow.pop %v821
      %v823 = vmul.f32 %v721, 1.442695
      %v824 = vpow.pop %v823
      %v825 = vmul.f32 %v722, 1.442695
      %v826 = vpow.pop %v825
      %v827 = vmul.f32 %v723, 1.442695
      %v828 = vpow.pop %v827
      %v829 = vmul.f32 %v724, 1.442695
      %v830 = vpow.pop %v829
      %v831 = vmul.f32 %v725, 1.442695
      %v832 = vpow.pop %v831
      %v833 = vmul.f32 %v726, 1.442695
      %v834 = vpow.pop %v833
      %v835 = vmul.f32 %v727, 1.442695
      %v836 = vpow.pop %v835
      %v837 = vmul.f32 %v728, 1.442695
      %v838 = vpow.pop %v837
      %v839 = vmul.f32 %v729, 1.442695
      %v840 = vpow.pop %v839
      %v841 = vmul.f32 %v730, 1.442695
      %v842 = vpow.pop %v841
      %v843 = vmul.f32 %v731, 1.442695
      %v844 = vpow.pop %v843
      %v845 = vmul.f32 %v732, 1.442695
      %v846 = vpow.pop %v845
      %v847 = vmul.f32 %v733, 1.442695
      %v848 = vpow.pop %v847
      %v849 = vmul.f32 %v734, 1.442695
      %v850 = vpow.pop %v849
      %v851 = vmul.f32 %v735, 1.442695
      %v852 = vpow.pop %v851
      %v853 = vmul.f32 %v736, 1.442695
      %v854 = vpow.pop %v853
      %v855 = vmul.f32 %v737, 1.442695
      %v856 = vpow.pop %v855
      %v857 = vmul.f32 %v738, 1.442695
      %v858 = vpow.pop %v857
      %v859 = vmul.f32 %v739, 1.442695
      %v860 = vpow.pop %v859
      %v861 = vmul.f32 %v740, 1.442695
      %v862 = vpow.pop %v861
      %v863 = vmul.f32 %v741, 1.442695
      %v864 = vpow.pop %v863
      %v865 = vmul.f32 %v742, 1.442695
      %v866 = vpow.pop %v865
      %v867 = vmul.f32 %v743, 1.442695
      %v868 = vpow.pop %v867
      %v869 = vmul.f32 %v744, 1.442695
      %v870 = vpow.pop %v869
      %v871 = vmul.f32 %v745, 1.442695
      %v872 = vpow.pop %v871
      %v873 = vmul.f32 %v746, 1.442695
      %v874 = vpow.pop %v873
      %v875 = vmul.f32 %v747, 1.442695
      %v876 = vpow.pop %v875
      %v877 = vmul.f32 %v748, 1.442695
      %v878 = vpow.pop %v877
      %v879 = vmul.f32 %v749, 1.442695
      %v880 = vpow.pop %v879
      %v881 = vmul.f32 %v750, 1.442695
      %v882 = vpow.pop %v881
      %v883 = vmul.f32 %v751, 1.442695
      %v884 = vpow.pop %v883
      %v885 = vmul.f32 %v752, 1.442695
      %v886 = vpow.pop %v885
      %v887 = vmul.f32 %v753, 1.442695
      %v888 = vpow.pop %v887
      %v889 = vmul.f32 %v754, 1.442695
      %v890 = vpow.pop %v889
      %v891 = vmul.f32 %v755, 1.442695
      %v892 = vpow.pop %v891
      %v893 = vmul.f32 %v756, 1.442695
      %v894 = vpow.pop %v893
      %v895 = vmul.f32 %v757, 1.442695
      %v896 = vpow.pop %v895
      %v897 = vmul.f32 %v758, 1.442695
      %v898 = vpow.pop %v897
      %v899 = vmul.f32 %v759, 1.442695
      %v900 = vpow.pop %v899
      %v901 = vmul.f32 %v760, 1.442695
      %v902 = vpow.pop %v901
      %v903 = vmul.f32 %v761, 1.442695
      %v904 = vpow.pop %v903
      %v905 = vmul.f32 %v762, 1.442695
      %v906 = vpow.pop %v905
      %v907 = vadd.f32 %v812, 1.0
      %v908 = vlog2.pop %v907
      %v909 = vmul.f32 %v908, 0.6931472
      %v910 = vmul.f32 -0.5, %v812
      %v911 = vadd.f32 %v910, 1.0
      %v912 = vmul.f32 %v911, %v812
      %v913 = vand.u32 2147483647, %v812
      %vm914 = vcmp.lt.f32.partialorder %v913, 0.0004427343
      %v915 = vsel %vm914, %v912, %v909
      %v916 = vadd.f32 %v814, 1.0
      %v917 = vlog2.pop %v916
      %v918 = vmul.f32 %v917, 0.6931472
      %v919 = vmul.f32 -0.5, %v814
      %v920 = vadd.f32 %v919, 1.0
      %v921 = vmul.f32 %v920, %v814
      %v922 = vand.u32 2147483647, %v814
      %vm923 = vcmp.lt.f32.partialorder %v922, 0.0004427343
      %v924 = vsel %vm923, %v921, %v918
      %v925 = vadd.f32 %v816, 1.0
      %v926 = vlog2.pop %v925
      %v927 = vmul.f32 %v926, 0.6931472
      %v928 = vmul.f32 -0.5, %v816
      %v929 = vadd.f32 %v928, 1.0
      %v930 = vmul.f32 %v929, %v816
      %v931 = vand.u32 2147483647, %v816
      %vm932 = vcmp.lt.f32.partialorder %v931, 0.0004427343
      %v933 = vsel %vm932, %v930, %v927
      %v934 = vadd.f32 %v818, 1.0
      %v935 = vlog2.pop %v934
      %v936 = vmul.f32 %v935, 0.6931472
      %v937 = vmul.f32 -0.5, %v818
      %v938 = vadd.f32 %v937, 1.0
      %v939 = vmul.f32 %v938, %v818
      %v940 = vand.u32 2147483647, %v818
      %vm941 = vcmp.lt.f32.partialorder %v940, 0.0004427343
      %v942 = vsel %vm941, %v939, %v936
      %v943 = vadd.f32 %v820, 1.0
      %v944 = vlog2.pop %v943
      %v945 = vmul.f32 %v944, 0.6931472
      %v946 = vmul.f32 -0.5, %v820
      %v947 = vadd.f32 %v946, 1.0
      %v948 = vmul.f32 %v947, %v820
      %v949 = vand.u32 2147483647, %v820
      %vm950 = vcmp.lt.f32.partialorder %v949, 0.0004427343
      %v951 = vsel %vm950, %v948, %v945
      %v952 = vadd.f32 %v822, 1.0
      %v953 = vlog2.pop %v952
      %v954 = vmul.f32 %v953, 0.6931472
      %v955 = vmul.f32 -0.5, %v822
      %v956 = vadd.f32 %v955, 1.0
      %v957 = vmul.f32 %v956, %v822
      %v958 = vand.u32 2147483647, %v822
      %vm959 = vcmp.lt.f32.partialorder %v958, 0.0004427343
      %v960 = vsel %vm959, %v957, %v954
      %v961 = vadd.f32 %v824, 1.0
      %v962 = vlog2.pop %v961
      %v963 = vmul.f32 %v962, 0.6931472
      %v964 = vmul.f32 -0.5, %v824
      %v965 = vadd.f32 %v964, 1.0
      %v966 = vmul.f32 %v965, %v824
      %v967 = vand.u32 2147483647, %v824
      %vm968 = vcmp.lt.f32.partialorder %v967, 0.0004427343
      %v969 = vsel %vm968, %v966, %v963
      %v970 = vadd.f32 %v826, 1.0
      %v971 = vlog2.pop %v970
      %v972 = vmul.f32 %v971, 0.6931472
      %v973 = vmul.f32 -0.5, %v826
      %v974 = vadd.f32 %v973, 1.0
      %v975 = vmul.f32 %v974, %v826
      %v976 = vand.u32 2147483647, %v826
      %vm977 = vcmp.lt.f32.partialorder %v976, 0.0004427343
      %v978 = vsel %vm977, %v975, %v972
      %v979 = vadd.f32 %v828, 1.0
      %v980 = vlog2.pop %v979
      %v981 = vmul.f32 %v980, 0.6931472
      %v982 = vmul.f32 -0.5, %v828
      %v983 = vadd.f32 %v982, 1.0
      %v984 = vmul.f32 %v983, %v828
      %v985 = vand.u32 2147483647, %v828
      %vm986 = vcmp.lt.f32.partialorder %v985, 0.0004427343
      %v987 = vsel %vm986, %v984, %v981
      %v988 = vadd.f32 %v830, 1.0
      %v989 = vlog2.pop %v988
      %v990 = vmul.f32 %v989, 0.6931472
      %v991 = vmul.f32 -0.5, %v830
      %v992 = vadd.f32 %v991, 1.0
      %v993 = vmul.f32 %v992, %v830
      %v994 = vand.u32 2147483647, %v830
      %vm995 = vcmp.lt.f32.partialorder %v994, 0.0004427343
      %v996 = vsel %vm995, %v993, %v990
      %v997 = vadd.f32 %v832, 1.0
      %v998 = vlog2.pop %v997
      %v999 = vmul.f32 %v998, 0.6931472
      %v1000 = vmul.f32 -0.5, %v832
      %v1001 = vadd.f32 %v1000, 1.0
      %v1002 = vmul.f32 %v1001, %v832
      %v1003 = vand.u32 2147483647, %v832
      %vm1004 = vcmp.lt.f32.partialorder %v1003, 0.0004427343
      %v1005 = vsel %vm1004, %v1002, %v999
      %v1006 = vadd.f32 %v834, 1.0
      %v1007 = vlog2.pop %v1006
      %v1008 = vmul.f32 %v1007, 0.6931472
      %v1009 = vmul.f32 -0.5, %v834
      %v1010 = vadd.f32 %v1009, 1.0
      %v1011 = vmul.f32 %v1010, %v834
      %v1012 = vand.u32 2147483647, %v834
      %vm1013 = vcmp.lt.f32.partialorder %v1012, 0.0004427343
      %v1014 = vsel %vm1013, %v1011, %v1008
      %v1015 = vadd.f32 %v836, 1.0
      %v1016 = vlog2.pop %v1015
      %v1017 = vmul.f32 %v1016, 0.6931472
      %v1018 = vmul.f32 -0.5, %v836
      %v1019 = vadd.f32 %v1018, 1.0
      %v1020 = vmul.f32 %v1019, %v836
      %v1021 = vand.u32 2147483647, %v836
      %vm1022 = vcmp.lt.f32.partialorder %v1021, 0.0004427343
      %v1023 = vsel %vm1022, %v1020, %v1017
      %v1024 = vadd.f32 %v838, 1.0
      %v1025 = vlog2.pop %v1024
      %v1026 = vmul.f32 %v1025, 0.6931472
      %v1027 = vmul.f32 -0.5, %v838
      %v1028 = vadd.f32 %v1027, 1.0
      %v1029 = vmul.f32 %v1028, %v838
      %v1030 = vand.u32 2147483647, %v838
      %vm1031 = vcmp.lt.f32.partialorder %v1030, 0.0004427343
      %v1032 = vsel %vm1031, %v1029, %v1026
      %v1033 = vadd.f32 %v840, 1.0
      %v1034 = vlog2.pop %v1033
      %v1035 = vmul.f32 %v1034, 0.6931472
      %v1036 = vmul.f32 -0.5, %v840
      %v1037 = vadd.f32 %v1036, 1.0
      %v1038 = vmul.f32 %v1037, %v840
      %v1039 = vand.u32 2147483647, %v840
      %vm1040 = vcmp.lt.f32.partialorder %v1039, 0.0004427343
      %v1041 = vsel %vm1040, %v1038, %v1035
      %v1042 = vadd.f32 %v842, 1.0
      %v1043 = vlog2.pop %v1042
      %v1044 = vmul.f32 %v1043, 0.6931472
      %v1045 = vmul.f32 -0.5, %v842
      %v1046 = vadd.f32 %v1045, 1.0
      %v1047 = vmul.f32 %v1046, %v842
      %v1048 = vand.u32 2147483647, %v842
      %vm1049 = vcmp.lt.f32.partialorder %v1048, 0.0004427343
      %v1050 = vsel %vm1049, %v1047, %v1044
      %v1051 = vadd.f32 %v844, 1.0
      %v1052 = vlog2.pop %v1051
      %v1053 = vmul.f32 %v1052, 0.6931472
      %v1054 = vmul.f32 -0.5, %v844
      %v1055 = vadd.f32 %v1054, 1.0
      %v1056 = vmul.f32 %v1055, %v844
      %v1057 = vand.u32 2147483647, %v844
      %vm1058 = vcmp.lt.f32.partialorder %v1057, 0.0004427343
      %v1059 = vsel %vm1058, %v1056, %v1053
      %v1060 = vadd.f32 %v846, 1.0
      %v1061 = vlog2.pop %v1060
      %v1062 = vmul.f32 %v1061, 0.6931472
      %v1063 = vmul.f32 -0.5, %v846
      %v1064 = vadd.f32 %v1063, 1.0
      %v1065 = vmul.f32 %v1064, %v846
      %v1066 = vand.u32 2147483647, %v846
      %vm1067 = vcmp.lt.f32.partialorder %v1066, 0.0004427343
      %v1068 = vsel %vm1067, %v1065, %v1062
      %v1069 = vadd.f32 %v848, 1.0
      %v1070 = vlog2.pop %v1069
      %v1071 = vmul.f32 %v1070, 0.6931472
      %v1072 = vmul.f32 -0.5, %v848
      %v1073 = vadd.f32 %v1072, 1.0
      %v1074 = vmul.f32 %v1073, %v848
      %v1075 = vand.u32 2147483647, %v848
      %vm1076 = vcmp.lt.f32.partialorder %v1075, 0.0004427343
      %v1077 = vsel %vm1076, %v1074, %v1071
      %v1078 = vadd.f32 %v850, 1.0
      %v1079 = vlog2.pop %v1078
      %v1080 = vmul.f32 %v1079, 0.6931472
      %v1081 = vmul.f32 -0.5, %v850
      %v1082 = vadd.f32 %v1081, 1.0
      %v1083 = vmul.f32 %v1082, %v850
      %v1084 = vand.u32 2147483647, %v850
      %vm1085 = vcmp.lt.f32.partialorder %v1084, 0.0004427343
      %v1086 = vsel %vm1085, %v1083, %v1080
      %v1087 = vadd.f32 %v852, 1.0
      %v1088 = vlog2.pop %v1087
      %v1089 = vmul.f32 %v1088, 0.6931472
      %v1090 = vmul.f32 -0.5, %v852
      %v1091 = vadd.f32 %v1090, 1.0
      %v1092 = vmul.f32 %v1091, %v852
      %v1093 = vand.u32 2147483647, %v852
      %vm1094 = vcmp.lt.f32.partialorder %v1093, 0.0004427343
      %v1095 = vsel %vm1094, %v1092, %v1089
      %v1096 = vadd.f32 %v854, 1.0
      %v1097 = vlog2.pop %v1096
      %v1098 = vmul.f32 %v1097, 0.6931472
      %v1099 = vmul.f32 -0.5, %v854
      %v1100 = vadd.f32 %v1099, 1.0
      %v1101 = vmul.f32 %v1100, %v854
      %v1102 = vand.u32 2147483647, %v854
      %vm1103 = vcmp.lt.f32.partialorder %v1102, 0.0004427343
      %v1104 = vsel %vm1103, %v1101, %v1098
      %v1105 = vadd.f32 %v856, 1.0
      %v1106 = vlog2.pop %v1105
      %v1107 = vmul.f32 %v1106, 0.6931472
      %v1108 = vmul.f32 -0.5, %v856
      %v1109 = vadd.f32 %v1108, 1.0
      %v1110 = vmul.f32 %v1109, %v856
      %v1111 = vand.u32 2147483647, %v856
      %vm1112 = vcmp.lt.f32.partialorder %v1111, 0.0004427343
      %v1113 = vsel %vm1112, %v1110, %v1107
      %v1114 = vadd.f32 %v858, 1.0
      %v1115 = vlog2.pop %v1114
      %v1116 = vmul.f32 %v1115, 0.6931472
      %v1117 = vmul.f32 -0.5, %v858
      %v1118 = vadd.f32 %v1117, 1.0
      %v1119 = vmul.f32 %v1118, %v858
      %v1120 = vand.u32 2147483647, %v858
      %vm1121 = vcmp.lt.f32.partialorder %v1120, 0.0004427343
      %v1122 = vsel %vm1121, %v1119, %v1116
      %v1123 = vadd.f32 %v860, 1.0
      %v1124 = vlog2.pop %v1123
      %v1125 = vmul.f32 %v1124, 0.6931472
      %v1126 = vmul.f32 -0.5, %v860
      %v1127 = vadd.f32 %v1126, 1.0
      %v1128 = vmul.f32 %v1127, %v860
      %v1129 = vand.u32 2147483647, %v860
      %vm1130 = vcmp.lt.f32.partialorder %v1129, 0.0004427343
      %v1131 = vsel %vm1130, %v1128, %v1125
      %v1132 = vadd.f32 %v862, 1.0
      %v1133 = vlog2.pop %v1132
      %v1134 = vmul.f32 %v1133, 0.6931472
      %v1135 = vmul.f32 -0.5, %v862
      %v1136 = vadd.f32 %v1135, 1.0
      %v1137 = vmul.f32 %v1136, %v862
      %v1138 = vand.u32 2147483647, %v862
      %vm1139 = vcmp.lt.f32.partialorder %v1138, 0.0004427343
      %v1140 = vsel %vm1139, %v1137, %v1134
      %v1141 = vadd.f32 %v864, 1.0
      %v1142 = vlog2.pop %v1141
      %v1143 = vmul.f32 %v1142, 0.6931472
      %v1144 = vmul.f32 -0.5, %v864
      %v1145 = vadd.f32 %v1144, 1.0
      %v1146 = vmul.f32 %v1145, %v864
      %v1147 = vand.u32 2147483647, %v864
      %vm1148 = vcmp.lt.f32.partialorder %v1147, 0.0004427343
      %v1149 = vsel %vm1148, %v1146, %v1143
      %v1150 = vadd.f32 %v866, 1.0
      %v1151 = vlog2.pop %v1150
      %v1152 = vmul.f32 %v1151, 0.6931472
      %v1153 = vmul.f32 -0.5, %v866
      %v1154 = vadd.f32 %v1153, 1.0
      %v1155 = vmul.f32 %v1154, %v866
      %v1156 = vand.u32 2147483647, %v866
      %vm1157 = vcmp.lt.f32.partialorder %v1156, 0.0004427343
      %v1158 = vsel %vm1157, %v1155, %v1152
      %v1159 = vadd.f32 %v868, 1.0
      %v1160 = vlog2.pop %v1159
      %v1161 = vmul.f32 %v1160, 0.6931472
      %v1162 = vmul.f32 -0.5, %v868
      %v1163 = vadd.f32 %v1162, 1.0
      %v1164 = vmul.f32 %v1163, %v868
      %v1165 = vand.u32 2147483647, %v868
      %vm1166 = vcmp.lt.f32.partialorder %v1165, 0.0004427343
      %v1167 = vsel %vm1166, %v1164, %v1161
      %v1168 = vadd.f32 %v870, 1.0
      %v1169 = vlog2.pop %v1168
      %v1170 = vmul.f32 %v1169, 0.6931472
      %v1171 = vmul.f32 -0.5, %v870
      %v1172 = vadd.f32 %v1171, 1.0
      %v1173 = vmul.f32 %v1172, %v870
      %v1174 = vand.u32 2147483647, %v870
      %vm1175 = vcmp.lt.f32.partialorder %v1174, 0.0004427343
      %v1176 = vsel %vm1175, %v1173, %v1170
      %v1177 = vadd.f32 %v872, 1.0
      %v1178 = vlog2.pop %v1177
      %v1179 = vmul.f32 %v1178, 0.6931472
      %v1180 = vmul.f32 -0.5, %v872
      %v1181 = vadd.f32 %v1180, 1.0
      %v1182 = vmul.f32 %v1181, %v872
      %v1183 = vand.u32 2147483647, %v872
      %vm1184 = vcmp.lt.f32.partialorder %v1183, 0.0004427343
      %v1185 = vsel %vm1184, %v1182, %v1179
      %v1186 = vadd.f32 %v874, 1.0
      %v1187 = vlog2.pop %v1186
      %v1188 = vmul.f32 %v1187, 0.6931472
      %v1189 = vmul.f32 -0.5, %v874
      %v1190 = vadd.f32 %v1189, 1.0
      %v1191 = vmul.f32 %v1190, %v874
      %v1192 = vand.u32 2147483647, %v874
      %vm1193 = vcmp.lt.f32.partialorder %v1192, 0.0004427343
      %v1194 = vsel %vm1193, %v1191, %v1188
      %v1195 = vadd.f32 %v876, 1.0
      %v1196 = vlog2.pop %v1195
      %v1197 = vmul.f32 %v1196, 0.6931472
      %v1198 = vmul.f32 -0.5, %v876
      %v1199 = vadd.f32 %v1198, 1.0
      %v1200 = vmul.f32 %v1199, %v876
      %v1201 = vand.u32 2147483647, %v876
      %vm1202 = vcmp.lt.f32.partialorder %v1201, 0.0004427343
      %v1203 = vsel %vm1202, %v1200, %v1197
      %v1204 = vadd.f32 %v878, 1.0
      %v1205 = vlog2.pop %v1204
      %v1206 = vmul.f32 %v1205, 0.6931472
      %v1207 = vmul.f32 -0.5, %v878
      %v1208 = vadd.f32 %v1207, 1.0
      %v1209 = vmul.f32 %v1208, %v878
      %v1210 = vand.u32 2147483647, %v878
      %vm1211 = vcmp.lt.f32.partialorder %v1210, 0.0004427343
      %v1212 = vsel %vm1211, %v1209, %v1206
      %v1213 = vadd.f32 %v880, 1.0
      %v1214 = vlog2.pop %v1213
      %v1215 = vmul.f32 %v1214, 0.6931472
      %v1216 = vmul.f32 -0.5, %v880
      %v1217 = vadd.f32 %v1216, 1.0
      %v1218 = vmul.f32 %v1217, %v880
      %v1219 = vand.u32 2147483647, %v880
      %vm1220 = vcmp.lt.f32.partialorder %v1219, 0.0004427343
      %v1221 = vsel %vm1220, %v1218, %v1215
      %v1222 = vadd.f32 %v882, 1.0
      %v1223 = vlog2.pop %v1222
      %v1224 = vmul.f32 %v1223, 0.6931472
      %v1225 = vmul.f32 -0.5, %v882
      %v1226 = vadd.f32 %v1225, 1.0
      %v1227 = vmul.f32 %v1226, %v882
      %v1228 = vand.u32 2147483647, %v882
      %vm1229 = vcmp.lt.f32.partialorder %v1228, 0.0004427343
      %v1230 = vsel %vm1229, %v1227, %v1224
      %v1231 = vadd.f32 %v884, 1.0
      %v1232 = vlog2.pop %v1231
      %v1233 = vmul.f32 %v1232, 0.6931472
      %v1234 = vmul.f32 -0.5, %v884
      %v1235 = vadd.f32 %v1234, 1.0
      %v1236 = vmul.f32 %v1235, %v884
      %v1237 = vand.u32 2147483647, %v884
      %vm1238 = vcmp.lt.f32.partialorder %v1237, 0.0004427343
      %v1239 = vsel %vm1238, %v1236, %v1233
      %v1240 = vadd.f32 %v886, 1.0
      %v1241 = vlog2.pop %v1240
      %v1242 = vmul.f32 %v1241, 0.6931472
      %v1243 = vmul.f32 -0.5, %v886
      %v1244 = vadd.f32 %v1243, 1.0
      %v1245 = vmul.f32 %v1244, %v886
      %v1246 = vand.u32 2147483647, %v886
      %vm1247 = vcmp.lt.f32.partialorder %v1246, 0.0004427343
      %v1248 = vsel %vm1247, %v1245, %v1242
      %v1249 = vadd.f32 %v888, 1.0
      %v1250 = vlog2.pop %v1249
      %v1251 = vmul.f32 %v1250, 0.6931472
      %v1252 = vmul.f32 -0.5, %v888
      %v1253 = vadd.f32 %v1252, 1.0
      %v1254 = vmul.f32 %v1253, %v888
      %v1255 = vand.u32 2147483647, %v888
      %vm1256 = vcmp.lt.f32.partialorder %v1255, 0.0004427343
      %v1257 = vsel %vm1256, %v1254, %v1251
      %v1258 = vadd.f32 %v890, 1.0
      %v1259 = vlog2.pop %v1258
      %v1260 = vmul.f32 %v1259, 0.6931472
      %v1261 = vmul.f32 -0.5, %v890
      %v1262 = vadd.f32 %v1261, 1.0
      %v1263 = vmul.f32 %v1262, %v890
      %v1264 = vand.u32 2147483647, %v890
      %vm1265 = vcmp.lt.f32.partialorder %v1264, 0.0004427343
      %v1266 = vsel %vm1265, %v1263, %v1260
      %v1267 = vadd.f32 %v892, 1.0
      %v1268 = vlog2.pop %v1267
      %v1269 = vmul.f32 %v1268, 0.6931472
      %v1270 = vmul.f32 -0.5, %v892
      %v1271 = vadd.f32 %v1270, 1.0
      %v1272 = vmul.f32 %v1271, %v892
      %v1273 = vand.u32 2147483647, %v892
      %vm1274 = vcmp.lt.f32.partialorder %v1273, 0.0004427343
      %v1275 = vsel %vm1274, %v1272, %v1269
      %v1276 = vadd.f32 %v894, 1.0
      %v1277 = vlog2.pop %v1276
      %v1278 = vmul.f32 %v1277, 0.6931472
      %v1279 = vmul.f32 -0.5, %v894
      %v1280 = vadd.f32 %v1279, 1.0
      %v1281 = vmul.f32 %v1280, %v894
      %v1282 = vand.u32 2147483647, %v894
      %vm1283 = vcmp.lt.f32.partialorder %v1282, 0.0004427343
      %v1284 = vsel %vm1283, %v1281, %v1278
      %v1285 = vadd.f32 %v896, 1.0
      %v1286 = vlog2.pop %v1285
      %v1287 = vmul.f32 %v1286, 0.6931472
      %v1288 = vmul.f32 -0.5, %v896
      %v1289 = vadd.f32 %v1288, 1.0
      %v1290 = vmul.f32 %v1289, %v896
      %v1291 = vand.u32 2147483647, %v896
      %vm1292 = vcmp.lt.f32.partialorder %v1291, 0.0004427343
      %v1293 = vsel %vm1292, %v1290, %v1287
      %v1294 = vadd.f32 %v898, 1.0
      %v1295 = vlog2.pop %v1294
      %v1296 = vmul.f32 %v1295, 0.6931472
      %v1297 = vmul.f32 -0.5, %v898
      %v1298 = vadd.f32 %v1297, 1.0
      %v1299 = vmul.f32 %v1298, %v898
      %v1300 = vand.u32 2147483647, %v898
      %vm1301 = vcmp.lt.f32.partialorder %v1300, 0.0004427343
      %v1302 = vsel %vm1301, %v1299, %v1296
      %v1303 = vadd.f32 %v900, 1.0
      %v1304 = vlog2.pop %v1303
      %v1305 = vmul.f32 %v1304, 0.6931472
      %v1306 = vmul.f32 -0.5, %v900
      %v1307 = vadd.f32 %v1306, 1.0
      %v1308 = vmul.f32 %v1307, %v900
      %v1309 = vand.u32 2147483647, %v900
      %vm1310 = vcmp.lt.f32.partialorder %v1309, 0.0004427343
      %v1311 = vsel %vm1310, %v1308, %v1305
      %v1312 = vadd.f32 %v902, 1.0
      %v1313 = vlog2.pop %v1312
      %v1314 = vmul.f32 %v1313, 0.6931472
      %v1315 = vmul.f32 -0.5, %v902
      %v1316 = vadd.f32 %v1315, 1.0
      %v1317 = vmul.f32 %v1316, %v902
      %v1318 = vand.u32 2147483647, %v902
      %vm1319 = vcmp.lt.f32.partialorder %v1318, 0.0004427343
      %v1320 = vsel %vm1319, %v1317, %v1314
      %v1321 = vadd.f32 %v904, 1.0
      %v1322 = vlog2.pop %v1321
      %v1323 = vmul.f32 %v1322, 0.6931472
      %v1324 = vmul.f32 -0.5, %v904
      %v1325 = vadd.f32 %v1324, 1.0
      %v1326 = vmul.f32 %v1325, %v904
      %v1327 = vand.u32 2147483647, %v904
      %vm1328 = vcmp.lt.f32.partialorder %v1327, 0.0004427343
      %v1329 = vsel %vm1328, %v1326, %v1323
      %v1330 = vadd.f32 %v906, 1.0
      %v1331 = vlog2.pop %v1330
      %v1332 = vmul.f32 %v1331, 0.6931472
      %v1333 = vmul.f32 -0.5, %v906
      %v1334 = vadd.f32 %v1333, 1.0
      %v1335 = vmul.f32 %v1334, %v906
      %v1336 = vand.u32 2147483647, %v906
      %vm1337 = vcmp.lt.f32.partialorder %v1336, 0.0004427343
      %v1338 = vsel %vm1337, %v1335, %v1332
      %v1339 = vsel %vm763, %v578, %v915
      %v1340 = vsel %vm764, %v627, %v924
      %v1341 = vsel %vm765, %v676, %v933
      %v1342 = vsel %vm766, %v580, %v942
      %v1343 = vsel %vm767, %v629, %v951
      %v1344 = vsel %vm768, %v678, %v960
      %v1345 = vsel %vm769, %v583, %v969
      %v1346 = vsel %vm770, %v632, %v978
      %v1347 = vsel %vm771, %v681, %v987
      %v1348 = vsel %vm772, %v585, %v996
      %v1349 = vsel %vm773, %v634, %v1005
      %v1350 = vsel %vm774, %v683, %v1014
      %v1351 = vsel %vm775, %v588, %v1023
      %v1352 = vsel %vm776, %v637, %v1032
      %v1353 = vsel %vm777, %v686, %v1041
      %v1354 = vsel %vm778, %v590, %v1050
      %v1355 = vsel %vm779, %v639, %v1059
      %v1356 = vsel %vm780, %v688, %v1068
      %v1357 = vsel %vm781, %v593, %v1077
      %v1358 = vsel %vm782, %v642, %v1086
      %v1359 = vsel %vm783, %v691, %v1095
      %v1360 = vsel %vm784, %v595, %v1104
      %v1361 = vsel %vm785, %v644, %v1113
      %v1362 = vsel %vm786, %v693, %v1122
      %v1363 = vsel %vm787, %v598, %v1131
      %v1364 = vsel %vm788, %v647, %v1140
      %v1365 = vsel %vm789, %v696, %v1149
      %v1366 = vsel %vm790, %v600, %v1158
      %v1367 = vsel %vm791, %v649, %v1167
      %v1368 = vsel %vm792, %v698, %v1176
      %v1369 = vsel %vm793, %v603, %v1185
      %v1370 = vsel %vm794, %v652, %v1194
      %v1371 = vsel %vm795, %v701, %v1203
      %v1372 = vsel %vm796, %v605, %v1212
      %v1373 = vsel %vm797, %v654, %v1221
      %v1374 = vsel %vm798, %v703, %v1230
      %v1375 = vsel %vm799, %v608, %v1239
      %v1376 = vsel %vm800, %v657, %v1248
      %v1377 = vsel %vm801, %v706, %v1257
      %v1378 = vsel %vm802, %v610, %v1266
      %v1379 = vsel %vm803, %v659, %v1275
      %v1380 = vsel %vm804, %v708, %v1284
      %v1381 = vsel %vm805, %v613, %v1293
      %v1382 = vsel %vm806, %v662, %v1302
      %v1383 = vsel %vm807, %v711, %v1311
      %v1384 = vsel %vm808, %v615, %v1320
      %v1385 = vsel %vm809, %v664, %v1329
      %v1386 = vsel %vm810, %v713, %v1338
      %v1387 = vpack.c.bf16 %v1342, %v1339
      %v1388 = vpack.c.bf16 %v1343, %v1340
      %v1389 = vpack.c.bf16 %v1344, %v1341
      %v1390 = vpack.c.bf16 %v1348, %v1345
      %v1391 = vpack.c.bf16 %v1349, %v1346
      %v1392 = vpack.c.bf16 %v1350, %v1347
      %v1393 = vpack.c.bf16 %v1354, %v1351
      %v1394 = vpack.c.bf16 %v1355, %v1352
      %v1395 = vpack.c.bf16 %v1356, %v1353
      %v1396 = vpack.c.bf16 %v1360, %v1357
      %v1397 = vpack.c.bf16 %v1361, %v1358
      %v1398 = vpack.c.bf16 %v1362, %v1359
      %v1399 = vpack.c.bf16 %v1366, %v1363
      %v1400 = vpack.c.bf16 %v1367, %v1364
      %v1401 = vpack.c.bf16 %v1368, %v1365
      %v1402 = vpack.c.bf16 %v1372, %v1369
      %v1403 = vpack.c.bf16 %v1373, %v1370
      %v1404 = vpack.c.bf16 %v1374, %v1371
      %v1405 = vpack.c.bf16 %v1378, %v1375
      %v1406 = vpack.c.bf16 %v1379, %v1376
      %v1407 = vpack.c.bf16 %v1380, %v1377
      %v1408 = vpack.c.bf16 %v1384, %v1381
      %v1409 = vpack.c.bf16 %v1385, %v1382
      %v1410 = vpack.c.bf16 %v1386, %v1383
      %v1411 = vld [vmem:[%s3] sm:$0xff]
      %v1412 = vld [vmem:[%s3 + $0x8] sm:$0xf]
      %v1413 = vld [vmem:[%s3 + $0xc] sm:$0xff]
      %v1414 = vld [vmem:[%s3 + $0x14] sm:$0xf]
      %v1415 = vld [vmem:[%s3 + $0x18] sm:$0xff]
      %v1416 = vld [vmem:[%s3 + $0x20] sm:$0xf]
      %v1417 = vld [vmem:[%s3 + $0x24] sm:$0xff]
      %v1418 = vld [vmem:[%s3 + $0x2c] sm:$0xf]
      %v1419 = vld [vmem:[%s3 + $0x30] sm:$0xff]
      %v1420 = vld [vmem:[%s3 + $0x38] sm:$0xf]
      %v1421 = vld [vmem:[%s3 + $0x3c] sm:$0xff]
      %v1422 = vld [vmem:[%s3 + $0x44] sm:$0xf]
      %v1423 = vld [vmem:[%s3 + $0x48] sm:$0xff]
      %v1424 = vld [vmem:[%s3 + $0x50] sm:$0xf]
      %v1425 = vld [vmem:[%s3 + $0x54] sm:$0xff]
      %v1426 = vld [vmem:[%s3 + $0x5c] sm:$0xf]
      %v1427 = vld [vmem:[%s3 + $0x60] sm:$0xff]
      %v1428 = vld [vmem:[%s3 + $0x68] sm:$0xf]
      %v1429 = vld [vmem:[%s3 + $0x6c] sm:$0xff]
      %v1430 = vld [vmem:[%s3 + $0x74] sm:$0xf]
      %v1431 = vld [vmem:[%s3 + $0x78] sm:$0xff]
      %v1432 = vld [vmem:[%s3 + $0x80] sm:$0xf]
      %v1433 = vld [vmem:[%s3 + $0x84] sm:$0xff]
      %v1434 = vld [vmem:[%s3 + $0x8c] sm:$0xf]
      %v1435 = vld [vmem:[%s3 + $0x90] sm:$0xff]
      %v1436 = vld [vmem:[%s3 + $0x98] sm:$0xf]
      %v1437 = vld [vmem:[%s3 + $0x9c] sm:$0xff]
      %v1438 = vld [vmem:[%s3 + $0xa4] sm:$0xf]
      %v1439 = vld [vmem:[%s3 + $0xa8] sm:$0xff]
      %v1440 = vld [vmem:[%s3 + $0xb0] sm:$0xf]
      %v1441 = vld [vmem:[%s3 + $0xb4] sm:$0xff]
      %v1442 = vld [vmem:[%s3 + $0xbc] sm:$0xf]
      %v1443 = vld [vmem:[%s3 + $0xc0] sm:$0xff]
      %v1444 = vld [vmem:[%s3 + $0xc8] sm:$0xf]
      %v1445 = vld [vmem:[%s3 + $0xcc] sm:$0xff]
      %v1446 = vld [vmem:[%s3 + $0xd4] sm:$0xf]
      %v1447 = vld [vmem:[%s3 + $0xd8] sm:$0xff]
      %v1448 = vld [vmem:[%s3 + $0xe0] sm:$0xf]
      %v1449 = vld [vmem:[%s3 + $0xe4] sm:$0xff]
      %v1450 = vld [vmem:[%s3 + $0xec] sm:$0xf]
      %v1451 = vld [vmem:[%s3 + $0xf0] sm:$0xff]
      %v1452 = vld [vmem:[%s3 + $0xf8] sm:$0xf]
      %v1453 = vld [vmem:[%s3 + $0xfc] sm:$0xff]
      %v1454 = vld [vmem:[%s3 + $0x104] sm:$0xf]
      %v1455 = vld [vmem:[%s3 + $0x108] sm:$0xff]
      %v1456 = vld [vmem:[%s3 + $0x110] sm:$0xf]
      %v1457 = vld [vmem:[%s3 + $0x114] sm:$0xff]
      %v1458 = vld [vmem:[%s3 + $0x11c] sm:$0xf]
      %v1459 = vld [vmem:[%s3 + $0x120] sm:$0xff]
      %v1460 = vld [vmem:[%s3 + $0x128] sm:$0xf]
      %v1461 = vld [vmem:[%s3 + $0x12c] sm:$0xff]
      %v1462 = vld [vmem:[%s3 + $0x134] sm:$0xf]
      %v1463 = vld [vmem:[%s3 + $0x138] sm:$0xff]
      %v1464 = vld [vmem:[%s3 + $0x140] sm:$0xf]
      %v1465 = vld [vmem:[%s3 + $0x144] sm:$0xff]
      %v1466 = vld [vmem:[%s3 + $0x14c] sm:$0xf]
      %v1467 = vld [vmem:[%s3 + $0x150] sm:$0xff]
      %v1468 = vld [vmem:[%s3 + $0x158] sm:$0xf]
      %v1469 = vld [vmem:[%s3 + $0x15c] sm:$0xff]
      %v1470 = vld [vmem:[%s3 + $0x164] sm:$0xf]
      %v1471 = vld [vmem:[%s3 + $0x168] sm:$0xff]
      %v1472 = vld [vmem:[%s3 + $0x170] sm:$0xf]
      %v1473 = vld [vmem:[%s3 + $0x174] sm:$0xff]
      %v1474 = vld [vmem:[%s3 + $0x17c] sm:$0xf]
      %v1475 = vld [vmem:[%s3 + $0x180] sm:$0xff]
      %v1476 = vld [vmem:[%s3 + $0x188] sm:$0xf]
      %v1477 = vld [vmem:[%s3 + $0x18c] sm:$0xff]
      %v1478 = vld [vmem:[%s3 + $0x194] sm:$0xf]
      %v1479 = vld [vmem:[%s3 + $0x198] sm:$0xff]
      %v1480 = vld [vmem:[%s3 + $0x1a0] sm:$0xf]
      %v1481 = vld [vmem:[%s3 + $0x1a4] sm:$0xff]
      %v1482 = vld [vmem:[%s3 + $0x1ac] sm:$0xf]
      %v1483 = vld [vmem:[%s3 + $0x1b0] sm:$0xff]
      %v1484 = vld [vmem:[%s3 + $0x1b8] sm:$0xf]
      %v1485 = vld [vmem:[%s3 + $0x1bc] sm:$0xff]
      %v1486 = vld [vmem:[%s3 + $0x1c4] sm:$0xf]
      %v1487 = vld [vmem:[%s3 + $0x1c8] sm:$0xff]
      %v1488 = vld [vmem:[%s3 + $0x1d0] sm:$0xf]
      %v1489 = vld [vmem:[%s3 + $0x1d4] sm:$0xff]
      %v1490 = vld [vmem:[%s3 + $0x1dc] sm:$0xf]
      %v1491 = vld [vmem:[%s3 + $0x1e0] sm:$0xff]
      %v1492 = vld [vmem:[%s3 + $0x1e8] sm:$0xf]
      %v1493 = vld [vmem:[%s3 + $0x1ec] sm:$0xff]
      %v1494 = vld [vmem:[%s3 + $0x1f4] sm:$0xf]
      %v1495 = vld [vmem:[%s3 + $0x1f8] sm:$0xff]
      %v1496 = vld [vmem:[%s3 + $0x200] sm:$0xf]
      %v1497 = vld [vmem:[%s3 + $0x204] sm:$0xff]
      %v1498 = vld [vmem:[%s3 + $0x20c] sm:$0xf]
      %v1499 = vld [vmem:[%s3 + $0x210] sm:$0xff]
      %v1500 = vld [vmem:[%s3 + $0x218] sm:$0xf]
      %v1501 = vld [vmem:[%s3 + $0x21c] sm:$0xff]
      %v1502 = vld [vmem:[%s3 + $0x224] sm:$0xf]
      %v1503 = vld [vmem:[%s3 + $0x228] sm:$0xff]
      %v1504 = vld [vmem:[%s3 + $0x230] sm:$0xf]
      %v1505 = vld [vmem:[%s3 + $0x234] sm:$0xff]
      %v1506 = vld [vmem:[%s3 + $0x23c] sm:$0xf]
      %v1507 = vld [vmem:[%s4] sm:$0x7]
      %v1509 = vperm.slane %v1507, 0
      %v1510 = vperm.slane %v1507, 1
      %v1511 = vperm.slane %v1507, 2
      %v1611 = vunpack.c.l.b16 %v1411
      %v1612 = vunpack.c.h.b16 %v1411
      %v1613 = vunpack.c.l.b16 %v1412
      %v1614 = vunpack.c.l.b16 %v1413
      %v1615 = vunpack.c.h.b16 %v1413
      %v1616 = vunpack.c.l.b16 %v1414
      %v1617 = vunpack.c.l.b16 %v1415
      %v1618 = vunpack.c.h.b16 %v1415
      %v1619 = vunpack.c.l.b16 %v1416
      %v1620 = vunpack.c.l.b16 %v1417
      %v1621 = vunpack.c.h.b16 %v1417
      %v1622 = vunpack.c.l.b16 %v1418
      %v1623 = vunpack.c.l.b16 %v1419
      %v1624 = vunpack.c.h.b16 %v1419
      %v1625 = vunpack.c.l.b16 %v1420
      %v1626 = vunpack.c.l.b16 %v1421
      %v1627 = vunpack.c.h.b16 %v1421
      %v1628 = vunpack.c.l.b16 %v1422
      %v1629 = vunpack.c.l.b16 %v1423
      %v1630 = vunpack.c.h.b16 %v1423
      %v1631 = vunpack.c.l.b16 %v1424
      %v1632 = vunpack.c.l.b16 %v1425
      %v1633 = vunpack.c.h.b16 %v1425
      %v1634 = vunpack.c.l.b16 %v1426
      %v1635 = vunpack.c.l.b16 %v1427
      %v1636 = vunpack.c.h.b16 %v1427
      %v1637 = vunpack.c.l.b16 %v1428
      %v1638 = vunpack.c.l.b16 %v1429
      %v1639 = vunpack.c.h.b16 %v1429
      %v1640 = vunpack.c.l.b16 %v1430
      %v1641 = vunpack.c.l.b16 %v1431
      %v1642 = vunpack.c.h.b16 %v1431
      %v1643 = vunpack.c.l.b16 %v1432
      %v1644 = vunpack.c.l.b16 %v1433
      %v1645 = vunpack.c.h.b16 %v1433
      %v1646 = vunpack.c.l.b16 %v1434
      %v1647 = vunpack.c.l.b16 %v1435
      %v1648 = vunpack.c.h.b16 %v1435
      %v1649 = vunpack.c.l.b16 %v1436
      %v1650 = vunpack.c.l.b16 %v1437
      %v1651 = vunpack.c.h.b16 %v1437
      %v1652 = vunpack.c.l.b16 %v1438
      %v1653 = vunpack.c.l.b16 %v1439
      %v1654 = vunpack.c.h.b16 %v1439
      %v1655 = vunpack.c.l.b16 %v1440
      %v1656 = vunpack.c.l.b16 %v1441
      %v1657 = vunpack.c.h.b16 %v1441
      %v1658 = vunpack.c.l.b16 %v1442
      %v1659 = vunpack.c.l.b16 %v1443
      %v1660 = vunpack.c.h.b16 %v1443
      %v1661 = vunpack.c.l.b16 %v1444
      %v1662 = vunpack.c.l.b16 %v1445
      %v1663 = vunpack.c.h.b16 %v1445
      %v1664 = vunpack.c.l.b16 %v1446
      %v1665 = vunpack.c.l.b16 %v1447
      %v1666 = vunpack.c.h.b16 %v1447
      %v1667 = vunpack.c.l.b16 %v1448
      %v1668 = vunpack.c.l.b16 %v1449
      %v1669 = vunpack.c.h.b16 %v1449
      %v1670 = vunpack.c.l.b16 %v1450
      %v1671 = vunpack.c.l.b16 %v1451
      %v1672 = vunpack.c.h.b16 %v1451
      %v1673 = vunpack.c.l.b16 %v1452
      %v1674 = vunpack.c.l.b16 %v1453
      %v1675 = vunpack.c.h.b16 %v1453
      %v1676 = vunpack.c.l.b16 %v1454
      %v1677 = vunpack.c.l.b16 %v1455
      %v1678 = vunpack.c.h.b16 %v1455
      %v1679 = vunpack.c.l.b16 %v1456
      %v1680 = vunpack.c.l.b16 %v1457
      %v1681 = vunpack.c.h.b16 %v1457
      %v1682 = vunpack.c.l.b16 %v1458
      %v1683 = vunpack.c.l.b16 %v1459
      %v1684 = vunpack.c.h.b16 %v1459
      %v1685 = vunpack.c.l.b16 %v1460
      %v1686 = vunpack.c.l.b16 %v1461
      %v1687 = vunpack.c.h.b16 %v1461
      %v1688 = vunpack.c.l.b16 %v1462
      %v1689 = vunpack.c.l.b16 %v1463
      %v1690 = vunpack.c.h.b16 %v1463
      %v1691 = vunpack.c.l.b16 %v1464
      %v1692 = vunpack.c.l.b16 %v1465
      %v1693 = vunpack.c.h.b16 %v1465
      %v1694 = vunpack.c.l.b16 %v1466
      %v1695 = vunpack.c.l.b16 %v1467
      %v1696 = vunpack.c.h.b16 %v1467
      %v1697 = vunpack.c.l.b16 %v1468
      %v1698 = vunpack.c.l.b16 %v1469
      %v1699 = vunpack.c.h.b16 %v1469
      %v1700 = vunpack.c.l.b16 %v1470
      %v1701 = vunpack.c.l.b16 %v1471
      %v1702 = vunpack.c.h.b16 %v1471
      %v1703 = vunpack.c.l.b16 %v1472
      %v1704 = vunpack.c.l.b16 %v1473
      %v1705 = vunpack.c.h.b16 %v1473
      %v1706 = vunpack.c.l.b16 %v1474
      %v1707 = vunpack.c.l.b16 %v1475
      %v1708 = vunpack.c.h.b16 %v1475
      %v1709 = vunpack.c.l.b16 %v1476
      %v1710 = vunpack.c.l.b16 %v1477
      %v1711 = vunpack.c.h.b16 %v1477
      %v1712 = vunpack.c.l.b16 %v1478
      %v1713 = vunpack.c.l.b16 %v1479
      %v1714 = vunpack.c.h.b16 %v1479
      %v1715 = vunpack.c.l.b16 %v1480
      %v1716 = vunpack.c.l.b16 %v1481
      %v1717 = vunpack.c.h.b16 %v1481
      %v1718 = vunpack.c.l.b16 %v1482
      %v1719 = vunpack.c.l.b16 %v1483
      %v1720 = vunpack.c.h.b16 %v1483
      %v1721 = vunpack.c.l.b16 %v1484
      %v1722 = vunpack.c.l.b16 %v1485
      %v1723 = vunpack.c.h.b16 %v1485
      %v1724 = vunpack.c.l.b16 %v1486
      %v1725 = vunpack.c.l.b16 %v1487
      %v1726 = vunpack.c.h.b16 %v1487
      %v1727 = vunpack.c.l.b16 %v1488
      %v1728 = vunpack.c.l.b16 %v1489
      %v1729 = vunpack.c.h.b16 %v1489
      %v1730 = vunpack.c.l.b16 %v1490
      %v1731 = vunpack.c.l.b16 %v1491
      %v1732 = vunpack.c.h.b16 %v1491
      %v1733 = vunpack.c.l.b16 %v1492
      %v1734 = vunpack.c.l.b16 %v1493
      %v1735 = vunpack.c.h.b16 %v1493
      %v1736 = vunpack.c.l.b16 %v1494
      %v1737 = vunpack.c.l.b16 %v1495
      %v1738 = vunpack.c.h.b16 %v1495
      %v1739 = vunpack.c.l.b16 %v1496
      %v1740 = vunpack.c.l.b16 %v1497
      %v1741 = vunpack.c.h.b16 %v1497
      %v1742 = vunpack.c.l.b16 %v1498
      %v1743 = vunpack.c.l.b16 %v1499
      %v1744 = vunpack.c.h.b16 %v1499
      %v1745 = vunpack.c.l.b16 %v1500
      %v1746 = vunpack.c.l.b16 %v1501
      %v1747 = vunpack.c.h.b16 %v1501
      %v1748 = vunpack.c.l.b16 %v1502
      %v1749 = vunpack.c.l.b16 %v1503
      %v1750 = vunpack.c.h.b16 %v1503
      %v1751 = vunpack.c.l.b16 %v1504
      %v1752 = vunpack.c.l.b16 %v1505
      %v1753 = vunpack.c.h.b16 %v1505
      %v1754 = vunpack.c.l.b16 %v1506
      %v1755 = vpack.c.b16 %v1614, %v1611
      %v1756 = vpack.c.b16 %v1615, %v1612
      %v1757 = vpack.c.b16 %v1616, %v1613
      %v1758 = vpack.c.b16 %v1620, %v1617
      %v1759 = vpack.c.b16 %v1621, %v1618
      %v1760 = vpack.c.b16 %v1622, %v1619
      %v1761 = vpack.c.b16 %v1626, %v1623
      %v1762 = vpack.c.b16 %v1627, %v1624
      %v1763 = vpack.c.b16 %v1628, %v1625
      %v1764 = vpack.c.b16 %v1632, %v1629
      %v1765 = vpack.c.b16 %v1633, %v1630
      %v1766 = vpack.c.b16 %v1634, %v1631
      %v1767 = vpack.c.b16 %v1638, %v1635
      %v1768 = vpack.c.b16 %v1639, %v1636
      %v1769 = vpack.c.b16 %v1640, %v1637
      %v1770 = vpack.c.b16 %v1644, %v1641
      %v1771 = vpack.c.b16 %v1645, %v1642
      %v1772 = vpack.c.b16 %v1646, %v1643
      %v1773 = vpack.c.b16 %v1650, %v1647
      %v1774 = vpack.c.b16 %v1651, %v1648
      %v1775 = vpack.c.b16 %v1652, %v1649
      %v1776 = vpack.c.b16 %v1656, %v1653
      %v1777 = vpack.c.b16 %v1657, %v1654
      %v1778 = vpack.c.b16 %v1658, %v1655
      %v1779 = vpack.c.b16 %v1662, %v1659
      %v1780 = vpack.c.b16 %v1663, %v1660
      %v1781 = vpack.c.b16 %v1664, %v1661
      %v1782 = vpack.c.b16 %v1668, %v1665
      %v1783 = vpack.c.b16 %v1669, %v1666
      %v1784 = vpack.c.b16 %v1670, %v1667
      %v1785 = vpack.c.b16 %v1674, %v1671
      %v1786 = vpack.c.b16 %v1675, %v1672
      %v1787 = vpack.c.b16 %v1676, %v1673
      %v1788 = vpack.c.b16 %v1680, %v1677
      %v1789 = vpack.c.b16 %v1681, %v1678
      %v1790 = vpack.c.b16 %v1682, %v1679
      %v1791 = vpack.c.b16 %v1686, %v1683
      %v1792 = vpack.c.b16 %v1687, %v1684
      %v1793 = vpack.c.b16 %v1688, %v1685
      %v1794 = vpack.c.b16 %v1692, %v1689
      %v1795 = vpack.c.b16 %v1693, %v1690
      %v1796 = vpack.c.b16 %v1694, %v1691
      %v1797 = vpack.c.b16 %v1698, %v1695
      %v1798 = vpack.c.b16 %v1699, %v1696
      %v1799 = vpack.c.b16 %v1700, %v1697
      %v1800 = vpack.c.b16 %v1704, %v1701
      %v1801 = vpack.c.b16 %v1705, %v1702
      %v1802 = vpack.c.b16 %v1706, %v1703
      %v1803 = vpack.c.b16 %v1710, %v1707
      %v1804 = vpack.c.b16 %v1711, %v1708
      %v1805 = vpack.c.b16 %v1712, %v1709
      %v1806 = vpack.c.b16 %v1716, %v1713
      %v1807 = vpack.c.b16 %v1717, %v1714
      %v1808 = vpack.c.b16 %v1718, %v1715
      %v1809 = vpack.c.b16 %v1722, %v1719
      %v1810 = vpack.c.b16 %v1723, %v1720
      %v1811 = vpack.c.b16 %v1724, %v1721
      %v1812 = vpack.c.b16 %v1728, %v1725
      %v1813 = vpack.c.b16 %v1729, %v1726
      %v1814 = vpack.c.b16 %v1730, %v1727
      %v1815 = vpack.c.b16 %v1734, %v1731
      %v1816 = vpack.c.b16 %v1735, %v1732
      %v1817 = vpack.c.b16 %v1736, %v1733
      %v1818 = vpack.c.b16 %v1740, %v1737
      %v1819 = vpack.c.b16 %v1741, %v1738
      %v1820 = vpack.c.b16 %v1742, %v1739
      %v1821 = vpack.c.b16 %v1746, %v1743
      %v1822 = vpack.c.b16 %v1747, %v1744
      %v1823 = vpack.c.b16 %v1748, %v1745
      %v1824 = vpack.c.b16 %v1752, %v1749
      %v1825 = vpack.c.b16 %v1753, %v1750
      %v1826 = vpack.c.b16 %v1754, %v1751
      %1899 = vmatpush.bf16.msra.mxu0 %v1776
      %1900 = vmatpush.bf16.msra.mxu0 %v1773
      %1901 = vmatpush.bf16.msra.mxu0 %v1770
      %1902 = vmatpush.bf16.msra.mxu0 %v1767
      %1903 = vmatpush.bf16.msra.mxu0 %v1764
      %1904 = vmatpush.bf16.msra.mxu0 %v1761
      %1905 = vmatpush.bf16.msra.mxu0 %v1758
      %1906 = vmatpush.bf16.msra.mxu0 %v1755
      %1907 = vmatmul.bf16.gmra.mxu0 %v1387
      %v1908 = vpop.f32.mrf.mxu0
      %v1909 = vadd.f32 %v1509, %v1908
      %v1910 = vpop.f32.mrf.mxu0
      %v1911 = vadd.f32 %v1509, %v1910
      %1912 = vmatmul.bf16.gmra.mxu0 %v1390
      %v1913 = vpop.f32.mrf.mxu0
      %v1914 = vadd.f32 %v1509, %v1913
      %v1915 = vpop.f32.mrf.mxu0
      %v1916 = vadd.f32 %v1509, %v1915
      %1917 = vmatmul.bf16.gmra.mxu0 %v1393
      %v1918 = vpop.f32.mrf.mxu0
      %v1919 = vadd.f32 %v1509, %v1918
      %v1920 = vpop.f32.mrf.mxu0
      %v1921 = vadd.f32 %v1509, %v1920
      %1922 = vmatmul.bf16.gmra.mxu0 %v1396
      %v1923 = vpop.f32.mrf.mxu0
      %v1924 = vadd.f32 %v1509, %v1923
      %v1925 = vpop.f32.mrf.mxu0
      %v1926 = vadd.f32 %v1509, %v1925
      %1927 = vmatmul.bf16.gmra.mxu0 %v1399
      %v1928 = vpop.f32.mrf.mxu0
      %v1929 = vadd.f32 %v1509, %v1928
      %v1930 = vpop.f32.mrf.mxu0
      %v1931 = vadd.f32 %v1509, %v1930
      %1932 = vmatmul.bf16.gmra.mxu0 %v1402
      %v1933 = vpop.f32.mrf.mxu0
      %v1934 = vadd.f32 %v1509, %v1933
      %v1935 = vpop.f32.mrf.mxu0
      %v1936 = vadd.f32 %v1509, %v1935
      %1937 = vmatmul.bf16.gmra.mxu0 %v1405
      %v1938 = vpop.f32.mrf.mxu0
      %v1939 = vadd.f32 %v1509, %v1938
      %v1940 = vpop.f32.mrf.mxu0
      %v1941 = vadd.f32 %v1509, %v1940
      %1942 = vmatmul.bf16.gmra.mxu0 %v1408
      %v1943 = vpop.f32.mrf.mxu0
      %v1944 = vadd.f32 %v1509, %v1943
      %v1945 = vpop.f32.mrf.mxu0
      %v1946 = vadd.f32 %v1509, %v1945
      %1947 = vdwg.mxu0
      %1948 = vmatpush.bf16.msra.mxu0 %v1800
      %1949 = vmatpush.bf16.msra.mxu0 %v1797
      %1950 = vmatpush.bf16.msra.mxu0 %v1794
      %1951 = vmatpush.bf16.msra.mxu0 %v1791
      %1952 = vmatpush.bf16.msra.mxu0 %v1788
      %1953 = vmatpush.bf16.msra.mxu0 %v1785
      %1954 = vmatpush.bf16.msra.mxu0 %v1782
      %1955 = vmatpush.bf16.msra.mxu0 %v1779
      %1956 = vmatmul.bf16.gmra.mxu0 %v1388
      %v1957 = vpop.f32.mrf.mxu0
      %v1958 = vadd.f32 %v1909, %v1957
      %v1959 = vpop.f32.mrf.mxu0
      %v1960 = vadd.f32 %v1911, %v1959
      %1961 = vmatmul.bf16.gmra.mxu0 %v1391
      %v1962 = vpop.f32.mrf.mxu0
      %v1963 = vadd.f32 %v1914, %v1962
      %v1964 = vpop.f32.mrf.mxu0
      %v1965 = vadd.f32 %v1916, %v1964
      %1966 = vmatmul.bf16.gmra.mxu0 %v1394
      %v1967 = vpop.f32.mrf.mxu0
      %v1968 = vadd.f32 %v1919, %v1967
      %v1969 = vpop.f32.mrf.mxu0
      %v1970 = vadd.f32 %v1921, %v1969
      %1971 = vmatmul.bf16.gmra.mxu0 %v1397
      %v1972 = vpop.f32.mrf.mxu0
      %v1973 = vadd.f32 %v1924, %v1972
      %v1974 = vpop.f32.mrf.mxu0
      %v1975 = vadd.f32 %v1926, %v1974
      %1976 = vmatmul.bf16.gmra.mxu0 %v1400
      %v1977 = vpop.f32.mrf.mxu0
      %v1978 = vadd.f32 %v1929, %v1977
      %v1979 = vpop.f32.mrf.mxu0
      %v1980 = vadd.f32 %v1931, %v1979
      %1981 = vmatmul.bf16.gmra.mxu0 %v1403
      %v1982 = vpop.f32.mrf.mxu0
      %v1983 = vadd.f32 %v1934, %v1982
      %v1984 = vpop.f32.mrf.mxu0
      %v1985 = vadd.f32 %v1936, %v1984
      %1986 = vmatmul.bf16.gmra.mxu0 %v1406
      %v1987 = vpop.f32.mrf.mxu0
      %v1988 = vadd.f32 %v1939, %v1987
      %v1989 = vpop.f32.mrf.mxu0
      %v1990 = vadd.f32 %v1941, %v1989
      %1991 = vmatmul.bf16.gmra.mxu0 %v1409
      %v1992 = vpop.f32.mrf.mxu0
      %v1993 = vadd.f32 %v1944, %v1992
      %v1994 = vpop.f32.mrf.mxu0
      %v1995 = vadd.f32 %v1946, %v1994
      %1996 = vdwg.mxu0
      %1997 = vmatpush.bf16.msra.mxu0 %v1824
      %1998 = vmatpush.bf16.msra.mxu0 %v1821
      %1999 = vmatpush.bf16.msra.mxu0 %v1818
      %2000 = vmatpush.bf16.msra.mxu0 %v1815
      %2001 = vmatpush.bf16.msra.mxu0 %v1812
      %2002 = vmatpush.bf16.msra.mxu0 %v1809
      %2003 = vmatpush.bf16.msra.mxu0 %v1806
      %2004 = vmatpush.bf16.msra.mxu0 %v1803
      %2005 = vmatmul.bf16.gmra.mxu0 %v1389
      %v2006 = vpop.f32.mrf.mxu0
      %v2007 = vadd.f32 %v1958, %v2006
      %v2008 = vpop.f32.mrf.mxu0
      %v2009 = vadd.f32 %v1960, %v2008
      %2010 = vmatmul.bf16.gmra.mxu0 %v1392
      %v2011 = vpop.f32.mrf.mxu0
      %v2012 = vadd.f32 %v1963, %v2011
      %v2013 = vpop.f32.mrf.mxu0
      %v2014 = vadd.f32 %v1965, %v2013
      %2015 = vmatmul.bf16.gmra.mxu0 %v1395
      %v2016 = vpop.f32.mrf.mxu0
      %v2017 = vadd.f32 %v1968, %v2016
      %v2018 = vpop.f32.mrf.mxu0
      %v2019 = vadd.f32 %v1970, %v2018
      %2020 = vmatmul.bf16.gmra.mxu0 %v1398
      %v2021 = vpop.f32.mrf.mxu0
      %v2022 = vadd.f32 %v1973, %v2021
      %v2023 = vpop.f32.mrf.mxu0
      %v2024 = vadd.f32 %v1975, %v2023
      %2025 = vmatmul.bf16.gmra.mxu0 %v1401
      %v2026 = vpop.f32.mrf.mxu0
      %v2027 = vadd.f32 %v1978, %v2026
      %v2028 = vpop.f32.mrf.mxu0
      %v2029 = vadd.f32 %v1980, %v2028
      %2030 = vmatmul.bf16.gmra.mxu0 %v1404
      %v2031 = vpop.f32.mrf.mxu0
      %v2032 = vadd.f32 %v1983, %v2031
      %v2033 = vpop.f32.mrf.mxu0
      %v2034 = vadd.f32 %v1985, %v2033
      %2035 = vmatmul.bf16.gmra.mxu0 %v1407
      %v2036 = vpop.f32.mrf.mxu0
      %v2037 = vadd.f32 %v1988, %v2036
      %v2038 = vpop.f32.mrf.mxu0
      %v2039 = vadd.f32 %v1990, %v2038
      %2040 = vmatmul.bf16.gmra.mxu0 %v1410
      %v2041 = vpop.f32.mrf.mxu0
      %v2042 = vadd.f32 %v1993, %v2041
      %v2043 = vpop.f32.mrf.mxu0
      %v2044 = vadd.f32 %v1995, %v2043
      %2045 = vdwg.mxu0
      %2046 = vmatpush.bf16.msra.mxu0 %v1777
      %2047 = vmatpush.bf16.msra.mxu0 %v1774
      %2048 = vmatpush.bf16.msra.mxu0 %v1771
      %2049 = vmatpush.bf16.msra.mxu0 %v1768
      %2050 = vmatpush.bf16.msra.mxu0 %v1765
      %2051 = vmatpush.bf16.msra.mxu0 %v1762
      %2052 = vmatpush.bf16.msra.mxu0 %v1759
      %2053 = vmatpush.bf16.msra.mxu0 %v1756
      %2054 = vmatmul.bf16.gmra.mxu0 %v1387
      %v2055 = vpop.f32.mrf.mxu0
      %v2056 = vadd.f32 %v1510, %v2055
      %v2057 = vpop.f32.mrf.mxu0
      %v2058 = vadd.f32 %v1510, %v2057
      %2059 = vmatmul.bf16.gmra.mxu0 %v1390
      %v2060 = vpop.f32.mrf.mxu0
      %v2061 = vadd.f32 %v1510, %v2060
      %v2062 = vpop.f32.mrf.mxu0
      %v2063 = vadd.f32 %v1510, %v2062
      %2064 = vmatmul.bf16.gmra.mxu0 %v1393
      %v2065 = vpop.f32.mrf.mxu0
      %v2066 = vadd.f32 %v1510, %v2065
      %v2067 = vpop.f32.mrf.mxu0
      %v2068 = vadd.f32 %v1510, %v2067
      %2069 = vmatmul.bf16.gmra.mxu0 %v1396
      %v2070 = vpop.f32.mrf.mxu0
      %v2071 = vadd.f32 %v1510, %v2070
      %v2072 = vpop.f32.mrf.mxu0
      %v2073 = vadd.f32 %v1510, %v2072
      %2074 = vmatmul.bf16.gmra.mxu0 %v1399
      %v2075 = vpop.f32.mrf.mxu0
      %v2076 = vadd.f32 %v1510, %v2075
      %v2077 = vpop.f32.mrf.mxu0
      %v2078 = vadd.f32 %v1510, %v2077
      %2079 = vmatmul.bf16.gmra.mxu0 %v1402
      %v2080 = vpop.f32.mrf.mxu0
      %v2081 = vadd.f32 %v1510, %v2080
      %v2082 = vpop.f32.mrf.mxu0
      %v2083 = vadd.f32 %v1510, %v2082
      %2084 = vmatmul.bf16.gmra.mxu0 %v1405
      %v2085 = vpop.f32.mrf.mxu0
      %v2086 = vadd.f32 %v1510, %v2085
      %v2087 = vpop.f32.mrf.mxu0
      %v2088 = vadd.f32 %v1510, %v2087
      %2089 = vmatmul.bf16.gmra.mxu0 %v1408
      %v2090 = vpop.f32.mrf.mxu0
      %v2091 = vadd.f32 %v1510, %v2090
      %v2092 = vpop.f32.mrf.mxu0
      %v2093 = vadd.f32 %v1510, %v2092
      %2094 = vdwg.mxu0
      %2095 = vmatpush.bf16.msra.mxu0 %v1801
      %2096 = vmatpush.bf16.msra.mxu0 %v1798
      %2097 = vmatpush.bf16.msra.mxu0 %v1795
      %2098 = vmatpush.bf16.msra.mxu0 %v1792
      %2099 = vmatpush.bf16.msra.mxu0 %v1789
      %2100 = vmatpush.bf16.msra.mxu0 %v1786
      %2101 = vmatpush.bf16.msra.mxu0 %v1783
      %2102 = vmatpush.bf16.msra.mxu0 %v1780
      %2103 = vmatmul.bf16.gmra.mxu0 %v1388
      %v2104 = vpop.f32.mrf.mxu0
      %v2105 = vadd.f32 %v2056, %v2104
      %v2106 = vpop.f32.mrf.mxu0
      %v2107 = vadd.f32 %v2058, %v2106
      %2108 = vmatmul.bf16.gmra.mxu0 %v1391
      %v2109 = vpop.f32.mrf.mxu0
      %v2110 = vadd.f32 %v2061, %v2109
      %v2111 = vpop.f32.mrf.mxu0
      %v2112 = vadd.f32 %v2063, %v2111
      %2113 = vmatmul.bf16.gmra.mxu0 %v1394
      %v2114 = vpop.f32.mrf.mxu0
      %v2115 = vadd.f32 %v2066, %v2114
      %v2116 = vpop.f32.mrf.mxu0
      %v2117 = vadd.f32 %v2068, %v2116
      %2118 = vmatmul.bf16.gmra.mxu0 %v1397
      %v2119 = vpop.f32.mrf.mxu0
      %v2120 = vadd.f32 %v2071, %v2119
      %v2121 = vpop.f32.mrf.mxu0
      %v2122 = vadd.f32 %v2073, %v2121
      %2123 = vmatmul.bf16.gmra.mxu0 %v1400
      %v2124 = vpop.f32.mrf.mxu0
      %v2125 = vadd.f32 %v2076, %v2124
      %v2126 = vpop.f32.mrf.mxu0
      %v2127 = vadd.f32 %v2078, %v2126
      %2128 = vmatmul.bf16.gmra.mxu0 %v1403
      %v2129 = vpop.f32.mrf.mxu0
      %v2130 = vadd.f32 %v2081, %v2129
      %v2131 = vpop.f32.mrf.mxu0
      %v2132 = vadd.f32 %v2083, %v2131
      %2133 = vmatmul.bf16.gmra.mxu0 %v1406
      %v2134 = vpop.f32.mrf.mxu0
      %v2135 = vadd.f32 %v2086, %v2134
      %v2136 = vpop.f32.mrf.mxu0
      %v2137 = vadd.f32 %v2088, %v2136
      %2138 = vmatmul.bf16.gmra.mxu0 %v1409
      %v2139 = vpop.f32.mrf.mxu0
      %v2140 = vadd.f32 %v2091, %v2139
      %v2141 = vpop.f32.mrf.mxu0
      %v2142 = vadd.f32 %v2093, %v2141
      %2143 = vdwg.mxu0
      %2144 = vmatpush.bf16.msra.mxu0 %v1825
      %2145 = vmatpush.bf16.msra.mxu0 %v1822
      %2146 = vmatpush.bf16.msra.mxu0 %v1819
      %2147 = vmatpush.bf16.msra.mxu0 %v1816
      %2148 = vmatpush.bf16.msra.mxu0 %v1813
      %2149 = vmatpush.bf16.msra.mxu0 %v1810
      %2150 = vmatpush.bf16.msra.mxu0 %v1807
      %2151 = vmatpush.bf16.msra.mxu0 %v1804
      %2152 = vmatmul.bf16.gmra.mxu0 %v1389
      %v2153 = vpop.f32.mrf.mxu0
      %v2154 = vadd.f32 %v2105, %v2153
      %v2155 = vpop.f32.mrf.mxu0
      %v2156 = vadd.f32 %v2107, %v2155
      %2157 = vmatmul.bf16.gmra.mxu0 %v1392
      %v2158 = vpop.f32.mrf.mxu0
      %v2159 = vadd.f32 %v2110, %v2158
      %v2160 = vpop.f32.mrf.mxu0
      %v2161 = vadd.f32 %v2112, %v2160
      %2162 = vmatmul.bf16.gmra.mxu0 %v1395
      %v2163 = vpop.f32.mrf.mxu0
      %v2164 = vadd.f32 %v2115, %v2163
      %v2165 = vpop.f32.mrf.mxu0
      %v2166 = vadd.f32 %v2117, %v2165
      %2167 = vmatmul.bf16.gmra.mxu0 %v1398
      %v2168 = vpop.f32.mrf.mxu0
      %v2169 = vadd.f32 %v2120, %v2168
      %v2170 = vpop.f32.mrf.mxu0
      %v2171 = vadd.f32 %v2122, %v2170
      %2172 = vmatmul.bf16.gmra.mxu0 %v1401
      %v2173 = vpop.f32.mrf.mxu0
      %v2174 = vadd.f32 %v2125, %v2173
      %v2175 = vpop.f32.mrf.mxu0
      %v2176 = vadd.f32 %v2127, %v2175
      %2177 = vmatmul.bf16.gmra.mxu0 %v1404
      %v2178 = vpop.f32.mrf.mxu0
      %v2179 = vadd.f32 %v2130, %v2178
      %v2180 = vpop.f32.mrf.mxu0
      %v2181 = vadd.f32 %v2132, %v2180
      %2182 = vmatmul.bf16.gmra.mxu0 %v1407
      %v2183 = vpop.f32.mrf.mxu0
      %v2184 = vadd.f32 %v2135, %v2183
      %v2185 = vpop.f32.mrf.mxu0
      %v2186 = vadd.f32 %v2137, %v2185
      %2187 = vmatmul.bf16.gmra.mxu0 %v1410
      %v2188 = vpop.f32.mrf.mxu0
      %v2189 = vadd.f32 %v2140, %v2188
      %v2190 = vpop.f32.mrf.mxu0
      %v2191 = vadd.f32 %v2142, %v2190
      %2192 = vdwg.mxu0
      %2193 = vmatpush.bf16.msra.mxu0 %v1778
      %2194 = vmatpush.bf16.msra.mxu0 %v1775
      %2195 = vmatpush.bf16.msra.mxu0 %v1772
      %2196 = vmatpush.bf16.msra.mxu0 %v1769
      %2197 = vmatpush.bf16.msra.mxu0 %v1766
      %2198 = vmatpush.bf16.msra.mxu0 %v1763
      %2199 = vmatpush.bf16.msra.mxu0 %v1760
      %2200 = vmatpush.bf16.msra.mxu0 %v1757
      %2201 = vmatmul.bf16.gmra.mxu0 %v1387
      %v2202 = vpop.f32.mrf.mxu0
      %v2203 = vadd.f32 %v1511, %v2202
      %v2204 = vpop.f32.mrf.mxu0
      %v2205 = vadd.f32 %v1511, %v2204
      %2206 = vmatmul.bf16.gmra.mxu0 %v1390
      %v2207 = vpop.f32.mrf.mxu0
      %v2208 = vadd.f32 %v1511, %v2207
      %v2209 = vpop.f32.mrf.mxu0
      %v2210 = vadd.f32 %v1511, %v2209
      %2211 = vmatmul.bf16.gmra.mxu0 %v1393
      %v2212 = vpop.f32.mrf.mxu0
      %v2213 = vadd.f32 %v1511, %v2212
      %v2214 = vpop.f32.mrf.mxu0
      %v2215 = vadd.f32 %v1511, %v2214
      %2216 = vmatmul.bf16.gmra.mxu0 %v1396
      %v2217 = vpop.f32.mrf.mxu0
      %v2218 = vadd.f32 %v1511, %v2217
      %v2219 = vpop.f32.mrf.mxu0
      %v2220 = vadd.f32 %v1511, %v2219
      %2221 = vmatmul.bf16.gmra.mxu0 %v1399
      %v2222 = vpop.f32.mrf.mxu0
      %v2223 = vadd.f32 %v1511, %v2222
      %v2224 = vpop.f32.mrf.mxu0
      %v2225 = vadd.f32 %v1511, %v2224
      %2226 = vmatmul.bf16.gmra.mxu0 %v1402
      %v2227 = vpop.f32.mrf.mxu0
      %v2228 = vadd.f32 %v1511, %v2227
      %v2229 = vpop.f32.mrf.mxu0
      %v2230 = vadd.f32 %v1511, %v2229
      %2231 = vmatmul.bf16.gmra.mxu0 %v1405
      %v2232 = vpop.f32.mrf.mxu0
      %v2233 = vadd.f32 %v1511, %v2232
      %v2234 = vpop.f32.mrf.mxu0
      %v2235 = vadd.f32 %v1511, %v2234
      %2236 = vmatmul.bf16.gmra.mxu0 %v1408
      %v2237 = vpop.f32.mrf.mxu0
      %v2238 = vadd.f32 %v1511, %v2237
      %v2239 = vpop.f32.mrf.mxu0
      %v2240 = vadd.f32 %v1511, %v2239
      %2241 = vdwg.mxu0
      %2242 = vmatpush.bf16.msra.mxu0 %v1802
      %2243 = vmatpush.bf16.msra.mxu0 %v1799
      %2244 = vmatpush.bf16.msra.mxu0 %v1796
      %2245 = vmatpush.bf16.msra.mxu0 %v1793
      %2246 = vmatpush.bf16.msra.mxu0 %v1790
      %2247 = vmatpush.bf16.msra.mxu0 %v1787
      %2248 = vmatpush.bf16.msra.mxu0 %v1784
      %2249 = vmatpush.bf16.msra.mxu0 %v1781
      %2250 = vmatmul.bf16.gmra.mxu0 %v1388
      %v2251 = vpop.f32.mrf.mxu0
      %v2252 = vadd.f32 %v2203, %v2251
      %v2253 = vpop.f32.mrf.mxu0
      %v2254 = vadd.f32 %v2205, %v2253
      %2255 = vmatmul.bf16.gmra.mxu0 %v1391
      %v2256 = vpop.f32.mrf.mxu0
      %v2257 = vadd.f32 %v2208, %v2256
      %v2258 = vpop.f32.mrf.mxu0
      %v2259 = vadd.f32 %v2210, %v2258
      %2260 = vmatmul.bf16.gmra.mxu0 %v1394
      %v2261 = vpop.f32.mrf.mxu0
      %v2262 = vadd.f32 %v2213, %v2261
      %v2263 = vpop.f32.mrf.mxu0
      %v2264 = vadd.f32 %v2215, %v2263
      %2265 = vmatmul.bf16.gmra.mxu0 %v1397
      %v2266 = vpop.f32.mrf.mxu0
      %v2267 = vadd.f32 %v2218, %v2266
      %v2268 = vpop.f32.mrf.mxu0
      %v2269 = vadd.f32 %v2220, %v2268
      %2270 = vmatmul.bf16.gmra.mxu0 %v1400
      %v2271 = vpop.f32.mrf.mxu0
      %v2272 = vadd.f32 %v2223, %v2271
      %v2273 = vpop.f32.mrf.mxu0
      %v2274 = vadd.f32 %v2225, %v2273
      %2275 = vmatmul.bf16.gmra.mxu0 %v1403
      %v2276 = vpop.f32.mrf.mxu0
      %v2277 = vadd.f32 %v2228, %v2276
      %v2278 = vpop.f32.mrf.mxu0
      %v2279 = vadd.f32 %v2230, %v2278
      %2280 = vmatmul.bf16.gmra.mxu0 %v1406
      %v2281 = vpop.f32.mrf.mxu0
      %v2282 = vadd.f32 %v2233, %v2281
      %v2283 = vpop.f32.mrf.mxu0
      %v2284 = vadd.f32 %v2235, %v2283
      %2285 = vmatmul.bf16.gmra.mxu0 %v1409
      %v2286 = vpop.f32.mrf.mxu0
      %v2287 = vadd.f32 %v2238, %v2286
      %v2288 = vpop.f32.mrf.mxu0
      %v2289 = vadd.f32 %v2240, %v2288
      %2290 = vdwg.mxu0
      %2291 = vmatpush.bf16.msra.mxu0 %v1826
      %2292 = vmatpush.bf16.msra.mxu0 %v1823
      %2293 = vmatpush.bf16.msra.mxu0 %v1820
      %2294 = vmatpush.bf16.msra.mxu0 %v1817
      %2295 = vmatpush.bf16.msra.mxu0 %v1814
      %2296 = vmatpush.bf16.msra.mxu0 %v1811
      %2297 = vmatpush.bf16.msra.mxu0 %v1808
      %2298 = vmatpush.bf16.msra.mxu0 %v1805
      %2299 = vmatmul.bf16.gmra.mxu0 %v1389
      %v2300 = vpop.f32.mrf.mxu0
      %v2301 = vadd.f32 %v2252, %v2300
      %v2302 = vpop.f32.mrf.mxu0
      %v2303 = vadd.f32 %v2254, %v2302
      %2304 = vmatmul.bf16.gmra.mxu0 %v1392
      %v2305 = vpop.f32.mrf.mxu0
      %v2306 = vadd.f32 %v2257, %v2305
      %v2307 = vpop.f32.mrf.mxu0
      %v2308 = vadd.f32 %v2259, %v2307
      %2309 = vmatmul.bf16.gmra.mxu0 %v1395
      %v2310 = vpop.f32.mrf.mxu0
      %v2311 = vadd.f32 %v2262, %v2310
      %v2312 = vpop.f32.mrf.mxu0
      %v2313 = vadd.f32 %v2264, %v2312
      %2314 = vmatmul.bf16.gmra.mxu0 %v1398
      %v2315 = vpop.f32.mrf.mxu0
      %v2316 = vadd.f32 %v2267, %v2315
      %v2317 = vpop.f32.mrf.mxu0
      %v2318 = vadd.f32 %v2269, %v2317
      %2319 = vmatmul.bf16.gmra.mxu0 %v1401
      %v2320 = vpop.f32.mrf.mxu0
      %v2321 = vadd.f32 %v2272, %v2320
      %v2322 = vpop.f32.mrf.mxu0
      %v2323 = vadd.f32 %v2274, %v2322
      %2324 = vmatmul.bf16.gmra.mxu0 %v1404
      %v2325 = vpop.f32.mrf.mxu0
      %v2326 = vadd.f32 %v2277, %v2325
      %v2327 = vpop.f32.mrf.mxu0
      %v2328 = vadd.f32 %v2279, %v2327
      %2329 = vmatmul.bf16.gmra.mxu0 %v1407
      %v2330 = vpop.f32.mrf.mxu0
      %v2331 = vadd.f32 %v2282, %v2330
      %v2332 = vpop.f32.mrf.mxu0
      %v2333 = vadd.f32 %v2284, %v2332
      %2334 = vmatmul.bf16.gmra.mxu0 %v1410
      %v2335 = vpop.f32.mrf.mxu0
      %v2336 = vadd.f32 %v2287, %v2335
      %v2337 = vpop.f32.mrf.mxu0
      %v2338 = vadd.f32 %v2289, %v2337
      %2339 = vdwg.mxu0
      %v2340 = vmin.f32 %v2007, 20.0
      %v2341 = vmin.f32 %v2154, 20.0
      %v2342 = vmin.f32 %v2301, 20.0
      %v2343 = vmin.f32 %v2009, 20.0
      %v2344 = vmin.f32 %v2156, 20.0
      %v2345 = vmin.f32 %v2303, 20.0
      %v2346 = vmin.f32 %v2012, 20.0
      %v2347 = vmin.f32 %v2159, 20.0
      %v2348 = vmin.f32 %v2306, 20.0
      %v2349 = vmin.f32 %v2014, 20.0
      %v2350 = vmin.f32 %v2161, 20.0
      %v2351 = vmin.f32 %v2308, 20.0
      %v2352 = vmin.f32 %v2017, 20.0
      %v2353 = vmin.f32 %v2164, 20.0
      %v2354 = vmin.f32 %v2311, 20.0
      %v2355 = vmin.f32 %v2019, 20.0
      %v2356 = vmin.f32 %v2166, 20.0
      %v2357 = vmin.f32 %v2313, 20.0
      %v2358 = vmin.f32 %v2022, 20.0
      %v2359 = vmin.f32 %v2169, 20.0
      %v2360 = vmin.f32 %v2316, 20.0
      %v2361 = vmin.f32 %v2024, 20.0
      %v2362 = vmin.f32 %v2171, 20.0
      %v2363 = vmin.f32 %v2318, 20.0
      %v2364 = vmin.f32 %v2027, 20.0
      %v2365 = vmin.f32 %v2174, 20.0
      %v2366 = vmin.f32 %v2321, 20.0
      %v2367 = vmin.f32 %v2029, 20.0
      %v2368 = vmin.f32 %v2176, 20.0
      %v2369 = vmin.f32 %v2323, 20.0
      %v2370 = vmin.f32 %v2032, 20.0
      %v2371 = vmin.f32 %v2179, 20.0
      %v2372 = vmin.f32 %v2326, 20.0
      %v2373 = vmin.f32 %v2034, 20.0
      %v2374 = vmin.f32 %v2181, 20.0
      %v2375 = vmin.f32 %v2328, 20.0
      %v2376 = vmin.f32 %v2037, 20.0
      %v2377 = vmin.f32 %v2184, 20.0
      %v2378 = vmin.f32 %v2331, 20.0
      %v2379 = vmin.f32 %v2039, 20.0
      %v2380 = vmin.f32 %v2186, 20.0
      %v2381 = vmin.f32 %v2333, 20.0
      %v2382 = vmin.f32 %v2042, 20.0
      %v2383 = vmin.f32 %v2189, 20.0
      %v2384 = vmin.f32 %v2336, 20.0
      %v2385 = vmin.f32 %v2044, 20.0
      %v2386 = vmin.f32 %v2191, 20.0
      %v2387 = vmin.f32 %v2338, 20.0
      %vm2388 = vcmp.gt.f32.partialorder %v2007, 20.0
      %vm2389 = vcmp.gt.f32.partialorder %v2154, 20.0
      %vm2390 = vcmp.gt.f32.partialorder %v2301, 20.0
      %vm2391 = vcmp.gt.f32.partialorder %v2009, 20.0
      %vm2392 = vcmp.gt.f32.partialorder %v2156, 20.0
      %vm2393 = vcmp.gt.f32.partialorder %v2303, 20.0
      %vm2394 = vcmp.gt.f32.partialorder %v2012, 20.0
      %vm2395 = vcmp.gt.f32.partialorder %v2159, 20.0
      %vm2396 = vcmp.gt.f32.partialorder %v2306, 20.0
      %vm2397 = vcmp.gt.f32.partialorder %v2014, 20.0
      %vm2398 = vcmp.gt.f32.partialorder %v2161, 20.0
      %vm2399 = vcmp.gt.f32.partialorder %v2308, 20.0
      %vm2400 = vcmp.gt.f32.partialorder %v2017, 20.0
      %vm2401 = vcmp.gt.f32.partialorder %v2164, 20.0
      %vm2402 = vcmp.gt.f32.partialorder %v2311, 20.0
      %vm2403 = vcmp.gt.f32.partialorder %v2019, 20.0
      %vm2404 = vcmp.gt.f32.partialorder %v2166, 20.0
      %vm2405 = vcmp.gt.f32.partialorder %v2313, 20.0
      %vm2406 = vcmp.gt.f32.partialorder %v2022, 20.0
      %vm2407 = vcmp.gt.f32.partialorder %v2169, 20.0
      %vm2408 = vcmp.gt.f32.partialorder %v2316, 20.0
      %vm2409 = vcmp.gt.f32.partialorder %v2024, 20.0
      %vm2410 = vcmp.gt.f32.partialorder %v2171, 20.0
      %vm2411 = vcmp.gt.f32.partialorder %v2318, 20.0
      %vm2412 = vcmp.gt.f32.partialorder %v2027, 20.0
      %vm2413 = vcmp.gt.f32.partialorder %v2174, 20.0
      %vm2414 = vcmp.gt.f32.partialorder %v2321, 20.0
      %vm2415 = vcmp.gt.f32.partialorder %v2029, 20.0
      %vm2416 = vcmp.gt.f32.partialorder %v2176, 20.0
      %vm2417 = vcmp.gt.f32.partialorder %v2323, 20.0
      %vm2418 = vcmp.gt.f32.partialorder %v2032, 20.0
      %vm2419 = vcmp.gt.f32.partialorder %v2179, 20.0
      %vm2420 = vcmp.gt.f32.partialorder %v2326, 20.0
      %vm2421 = vcmp.gt.f32.partialorder %v2034, 20.0
      %vm2422 = vcmp.gt.f32.partialorder %v2181, 20.0
      %vm2423 = vcmp.gt.f32.partialorder %v2328, 20.0
      %vm2424 = vcmp.gt.f32.partialorder %v2037, 20.0
      %vm2425 = vcmp.gt.f32.partialorder %v2184, 20.0
      %vm2426 = vcmp.gt.f32.partialorder %v2331, 20.0
      %vm2427 = vcmp.gt.f32.partialorder %v2039, 20.0
      %vm2428 = vcmp.gt.f32.partialorder %v2186, 20.0
      %vm2429 = vcmp.gt.f32.partialorder %v2333, 20.0
      %vm2430 = vcmp.gt.f32.partialorder %v2042, 20.0
      %vm2431 = vcmp.gt.f32.partialorder %v2189, 20.0
      %vm2432 = vcmp.gt.f32.partialorder %v2336, 20.0
      %vm2433 = vcmp.gt.f32.partialorder %v2044, 20.0
      %vm2434 = vcmp.gt.f32.partialorder %v2191, 20.0
      %vm2435 = vcmp.gt.f32.partialorder %v2338, 20.0
      %v2436 = vmul.f32 %v2340, 1.442695
      %v2437 = vpow.pop %v2436
      %v2438 = vmul.f32 %v2341, 1.442695
      %v2439 = vpow.pop %v2438
      %v2440 = vmul.f32 %v2342, 1.442695
      %v2441 = vpow.pop %v2440
      %v2442 = vmul.f32 %v2343, 1.442695
      %v2443 = vpow.pop %v2442
      %v2444 = vmul.f32 %v2344, 1.442695
      %v2445 = vpow.pop %v2444
      %v2446 = vmul.f32 %v2345, 1.442695
      %v2447 = vpow.pop %v2446
      %v2448 = vmul.f32 %v2346, 1.442695
      %v2449 = vpow.pop %v2448
      %v2450 = vmul.f32 %v2347, 1.442695
      %v2451 = vpow.pop %v2450
      %v2452 = vmul.f32 %v2348, 1.442695
      %v2453 = vpow.pop %v2452
      %v2454 = vmul.f32 %v2349, 1.442695
      %v2455 = vpow.pop %v2454
      %v2456 = vmul.f32 %v2350, 1.442695
      %v2457 = vpow.pop %v2456
      %v2458 = vmul.f32 %v2351, 1.442695
      %v2459 = vpow.pop %v2458
      %v2460 = vmul.f32 %v2352, 1.442695
      %v2461 = vpow.pop %v2460
      %v2462 = vmul.f32 %v2353, 1.442695
      %v2463 = vpow.pop %v2462
      %v2464 = vmul.f32 %v2354, 1.442695
      %v2465 = vpow.pop %v2464
      %v2466 = vmul.f32 %v2355, 1.442695
      %v2467 = vpow.pop %v2466
      %v2468 = vmul.f32 %v2356, 1.442695
      %v2469 = vpow.pop %v2468
      %v2470 = vmul.f32 %v2357, 1.442695
      %v2471 = vpow.pop %v2470
      %v2472 = vmul.f32 %v2358, 1.442695
      %v2473 = vpow.pop %v2472
      %v2474 = vmul.f32 %v2359, 1.442695
      %v2475 = vpow.pop %v2474
      %v2476 = vmul.f32 %v2360, 1.442695
      %v2477 = vpow.pop %v2476
      %v2478 = vmul.f32 %v2361, 1.442695
      %v2479 = vpow.pop %v2478
      %v2480 = vmul.f32 %v2362, 1.442695
      %v2481 = vpow.pop %v2480
      %v2482 = vmul.f32 %v2363, 1.442695
      %v2483 = vpow.pop %v2482
      %v2484 = vmul.f32 %v2364, 1.442695
      %v2485 = vpow.pop %v2484
      %v2486 = vmul.f32 %v2365, 1.442695
      %v2487 = vpow.pop %v2486
      %v2488 = vmul.f32 %v2366, 1.442695
      %v2489 = vpow.pop %v2488
      %v2490 = vmul.f32 %v2367, 1.442695
      %v2491 = vpow.pop %v2490
      %v2492 = vmul.f32 %v2368, 1.442695
      %v2493 = vpow.pop %v2492
      %v2494 = vmul.f32 %v2369, 1.442695
      %v2495 = vpow.pop %v2494
      %v2496 = vmul.f32 %v2370, 1.442695
      %v2497 = vpow.pop %v2496
      %v2498 = vmul.f32 %v2371, 1.442695
      %v2499 = vpow.pop %v2498
      %v2500 = vmul.f32 %v2372, 1.442695
      %v2501 = vpow.pop %v2500
      %v2502 = vmul.f32 %v2373, 1.442695
      %v2503 = vpow.pop %v2502
      %v2504 = vmul.f32 %v2374, 1.442695
      %v2505 = vpow.pop %v2504
      %v2506 = vmul.f32 %v2375, 1.442695
      %v2507 = vpow.pop %v2506
      %v2508 = vmul.f32 %v2376, 1.442695
      %v2509 = vpow.pop %v2508
      %v2510 = vmul.f32 %v2377, 1.442695
      %v2511 = vpow.pop %v2510
      %v2512 = vmul.f32 %v2378, 1.442695
      %v2513 = vpow.pop %v2512
      %v2514 = vmul.f32 %v2379, 1.442695
      %v2515 = vpow.pop %v2514
      %v2516 = vmul.f32 %v2380, 1.442695
      %v2517 = vpow.pop %v2516
      %v2518 = vmul.f32 %v2381, 1.442695
      %v2519 = vpow.pop %v2518
      %v2520 = vmul.f32 %v2382, 1.442695
      %v2521 = vpow.pop %v2520
      %v2522 = vmul.f32 %v2383, 1.442695
      %v2523 = vpow.pop %v2522
      %v2524 = vmul.f32 %v2384, 1.442695
      %v2525 = vpow.pop %v2524
      %v2526 = vmul.f32 %v2385, 1.442695
      %v2527 = vpow.pop %v2526
      %v2528 = vmul.f32 %v2386, 1.442695
      %v2529 = vpow.pop %v2528
      %v2530 = vmul.f32 %v2387, 1.442695
      %v2531 = vpow.pop %v2530
      %v2532 = vadd.f32 %v2437, 1.0
      %v2533 = vlog2.pop %v2532
      %v2534 = vmul.f32 %v2533, 0.6931472
      %v2535 = vmul.f32 -0.5, %v2437
      %v2536 = vadd.f32 %v2535, 1.0
      %v2537 = vmul.f32 %v2536, %v2437
      %v2538 = vand.u32 2147483647, %v2437
      %vm2539 = vcmp.lt.f32.partialorder %v2538, 0.0004427343
      %v2540 = vsel %vm2539, %v2537, %v2534
      %v2541 = vadd.f32 %v2439, 1.0
      %v2542 = vlog2.pop %v2541
      %v2543 = vmul.f32 %v2542, 0.6931472
      %v2544 = vmul.f32 -0.5, %v2439
      %v2545 = vadd.f32 %v2544, 1.0
      %v2546 = vmul.f32 %v2545, %v2439
      %v2547 = vand.u32 2147483647, %v2439
      %vm2548 = vcmp.lt.f32.partialorder %v2547, 0.0004427343
      %v2549 = vsel %vm2548, %v2546, %v2543
      %v2550 = vadd.f32 %v2441, 1.0
      %v2551 = vlog2.pop %v2550
      %v2552 = vmul.f32 %v2551, 0.6931472
      %v2553 = vmul.f32 -0.5, %v2441
      %v2554 = vadd.f32 %v2553, 1.0
      %v2555 = vmul.f32 %v2554, %v2441
      %v2556 = vand.u32 2147483647, %v2441
      %vm2557 = vcmp.lt.f32.partialorder %v2556, 0.0004427343
      %v2558 = vsel %vm2557, %v2555, %v2552
      %v2559 = vadd.f32 %v2443, 1.0
      %v2560 = vlog2.pop %v2559
      %v2561 = vmul.f32 %v2560, 0.6931472
      %v2562 = vmul.f32 -0.5, %v2443
      %v2563 = vadd.f32 %v2562, 1.0
      %v2564 = vmul.f32 %v2563, %v2443
      %v2565 = vand.u32 2147483647, %v2443
      %vm2566 = vcmp.lt.f32.partialorder %v2565, 0.0004427343
      %v2567 = vsel %vm2566, %v2564, %v2561
      %v2568 = vadd.f32 %v2445, 1.0
      %v2569 = vlog2.pop %v2568
      %v2570 = vmul.f32 %v2569, 0.6931472
      %v2571 = vmul.f32 -0.5, %v2445
      %v2572 = vadd.f32 %v2571, 1.0
      %v2573 = vmul.f32 %v2572, %v2445
      %v2574 = vand.u32 2147483647, %v2445
      %vm2575 = vcmp.lt.f32.partialorder %v2574, 0.0004427343
      %v2576 = vsel %vm2575, %v2573, %v2570
      %v2577 = vadd.f32 %v2447, 1.0
      %v2578 = vlog2.pop %v2577
      %v2579 = vmul.f32 %v2578, 0.6931472
      %v2580 = vmul.f32 -0.5, %v2447
      %v2581 = vadd.f32 %v2580, 1.0
      %v2582 = vmul.f32 %v2581, %v2447
      %v2583 = vand.u32 2147483647, %v2447
      %vm2584 = vcmp.lt.f32.partialorder %v2583, 0.0004427343
      %v2585 = vsel %vm2584, %v2582, %v2579
      %v2586 = vadd.f32 %v2449, 1.0
      %v2587 = vlog2.pop %v2586
      %v2588 = vmul.f32 %v2587, 0.6931472
      %v2589 = vmul.f32 -0.5, %v2449
      %v2590 = vadd.f32 %v2589, 1.0
      %v2591 = vmul.f32 %v2590, %v2449
      %v2592 = vand.u32 2147483647, %v2449
      %vm2593 = vcmp.lt.f32.partialorder %v2592, 0.0004427343
      %v2594 = vsel %vm2593, %v2591, %v2588
      %v2595 = vadd.f32 %v2451, 1.0
      %v2596 = vlog2.pop %v2595
      %v2597 = vmul.f32 %v2596, 0.6931472
      %v2598 = vmul.f32 -0.5, %v2451
      %v2599 = vadd.f32 %v2598, 1.0
      %v2600 = vmul.f32 %v2599, %v2451
      %v2601 = vand.u32 2147483647, %v2451
      %vm2602 = vcmp.lt.f32.partialorder %v2601, 0.0004427343
      %v2603 = vsel %vm2602, %v2600, %v2597
      %v2604 = vadd.f32 %v2453, 1.0
      %v2605 = vlog2.pop %v2604
      %v2606 = vmul.f32 %v2605, 0.6931472
      %v2607 = vmul.f32 -0.5, %v2453
      %v2608 = vadd.f32 %v2607, 1.0
      %v2609 = vmul.f32 %v2608, %v2453
      %v2610 = vand.u32 2147483647, %v2453
      %vm2611 = vcmp.lt.f32.partialorder %v2610, 0.0004427343
      %v2612 = vsel %vm2611, %v2609, %v2606
      %v2613 = vadd.f32 %v2455, 1.0
      %v2614 = vlog2.pop %v2613
      %v2615 = vmul.f32 %v2614, 0.6931472
      %v2616 = vmul.f32 -0.5, %v2455
      %v2617 = vadd.f32 %v2616, 1.0
      %v2618 = vmul.f32 %v2617, %v2455
      %v2619 = vand.u32 2147483647, %v2455
      %vm2620 = vcmp.lt.f32.partialorder %v2619, 0.0004427343
      %v2621 = vsel %vm2620, %v2618, %v2615
      %v2622 = vadd.f32 %v2457, 1.0
      %v2623 = vlog2.pop %v2622
      %v2624 = vmul.f32 %v2623, 0.6931472
      %v2625 = vmul.f32 -0.5, %v2457
      %v2626 = vadd.f32 %v2625, 1.0
      %v2627 = vmul.f32 %v2626, %v2457
      %v2628 = vand.u32 2147483647, %v2457
      %vm2629 = vcmp.lt.f32.partialorder %v2628, 0.0004427343
      %v2630 = vsel %vm2629, %v2627, %v2624
      %v2631 = vadd.f32 %v2459, 1.0
      %v2632 = vlog2.pop %v2631
      %v2633 = vmul.f32 %v2632, 0.6931472
      %v2634 = vmul.f32 -0.5, %v2459
      %v2635 = vadd.f32 %v2634, 1.0
      %v2636 = vmul.f32 %v2635, %v2459
      %v2637 = vand.u32 2147483647, %v2459
      %vm2638 = vcmp.lt.f32.partialorder %v2637, 0.0004427343
      %v2639 = vsel %vm2638, %v2636, %v2633
      %v2640 = vadd.f32 %v2461, 1.0
      %v2641 = vlog2.pop %v2640
      %v2642 = vmul.f32 %v2641, 0.6931472
      %v2643 = vmul.f32 -0.5, %v2461
      %v2644 = vadd.f32 %v2643, 1.0
      %v2645 = vmul.f32 %v2644, %v2461
      %v2646 = vand.u32 2147483647, %v2461
      %vm2647 = vcmp.lt.f32.partialorder %v2646, 0.0004427343
      %v2648 = vsel %vm2647, %v2645, %v2642
      %v2649 = vadd.f32 %v2463, 1.0
      %v2650 = vlog2.pop %v2649
      %v2651 = vmul.f32 %v2650, 0.6931472
      %v2652 = vmul.f32 -0.5, %v2463
      %v2653 = vadd.f32 %v2652, 1.0
      %v2654 = vmul.f32 %v2653, %v2463
      %v2655 = vand.u32 2147483647, %v2463
      %vm2656 = vcmp.lt.f32.partialorder %v2655, 0.0004427343
      %v2657 = vsel %vm2656, %v2654, %v2651
      %v2658 = vadd.f32 %v2465, 1.0
      %v2659 = vlog2.pop %v2658
      %v2660 = vmul.f32 %v2659, 0.6931472
      %v2661 = vmul.f32 -0.5, %v2465
      %v2662 = vadd.f32 %v2661, 1.0
      %v2663 = vmul.f32 %v2662, %v2465
      %v2664 = vand.u32 2147483647, %v2465
      %vm2665 = vcmp.lt.f32.partialorder %v2664, 0.0004427343
      %v2666 = vsel %vm2665, %v2663, %v2660
      %v2667 = vadd.f32 %v2467, 1.0
      %v2668 = vlog2.pop %v2667
      %v2669 = vmul.f32 %v2668, 0.6931472
      %v2670 = vmul.f32 -0.5, %v2467
      %v2671 = vadd.f32 %v2670, 1.0
      %v2672 = vmul.f32 %v2671, %v2467
      %v2673 = vand.u32 2147483647, %v2467
      %vm2674 = vcmp.lt.f32.partialorder %v2673, 0.0004427343
      %v2675 = vsel %vm2674, %v2672, %v2669
      %v2676 = vadd.f32 %v2469, 1.0
      %v2677 = vlog2.pop %v2676
      %v2678 = vmul.f32 %v2677, 0.6931472
      %v2679 = vmul.f32 -0.5, %v2469
      %v2680 = vadd.f32 %v2679, 1.0
      %v2681 = vmul.f32 %v2680, %v2469
      %v2682 = vand.u32 2147483647, %v2469
      %vm2683 = vcmp.lt.f32.partialorder %v2682, 0.0004427343
      %v2684 = vsel %vm2683, %v2681, %v2678
      %v2685 = vadd.f32 %v2471, 1.0
      %v2686 = vlog2.pop %v2685
      %v2687 = vmul.f32 %v2686, 0.6931472
      %v2688 = vmul.f32 -0.5, %v2471
      %v2689 = vadd.f32 %v2688, 1.0
      %v2690 = vmul.f32 %v2689, %v2471
      %v2691 = vand.u32 2147483647, %v2471
      %vm2692 = vcmp.lt.f32.partialorder %v2691, 0.0004427343
      %v2693 = vsel %vm2692, %v2690, %v2687
      %v2694 = vadd.f32 %v2473, 1.0
      %v2695 = vlog2.pop %v2694
      %v2696 = vmul.f32 %v2695, 0.6931472
      %v2697 = vmul.f32 -0.5, %v2473
      %v2698 = vadd.f32 %v2697, 1.0
      %v2699 = vmul.f32 %v2698, %v2473
      %v2700 = vand.u32 2147483647, %v2473
      %vm2701 = vcmp.lt.f32.partialorder %v2700, 0.0004427343
      %v2702 = vsel %vm2701, %v2699, %v2696
      %v2703 = vadd.f32 %v2475, 1.0
      %v2704 = vlog2.pop %v2703
      %v2705 = vmul.f32 %v2704, 0.6931472
      %v2706 = vmul.f32 -0.5, %v2475
      %v2707 = vadd.f32 %v2706, 1.0
      %v2708 = vmul.f32 %v2707, %v2475
      %v2709 = vand.u32 2147483647, %v2475
      %vm2710 = vcmp.lt.f32.partialorder %v2709, 0.0004427343
      %v2711 = vsel %vm2710, %v2708, %v2705
      %v2712 = vadd.f32 %v2477, 1.0
      %v2713 = vlog2.pop %v2712
      %v2714 = vmul.f32 %v2713, 0.6931472
      %v2715 = vmul.f32 -0.5, %v2477
      %v2716 = vadd.f32 %v2715, 1.0
      %v2717 = vmul.f32 %v2716, %v2477
      %v2718 = vand.u32 2147483647, %v2477
      %vm2719 = vcmp.lt.f32.partialorder %v2718, 0.0004427343
      %v2720 = vsel %vm2719, %v2717, %v2714
      %v2721 = vadd.f32 %v2479, 1.0
      %v2722 = vlog2.pop %v2721
      %v2723 = vmul.f32 %v2722, 0.6931472
      %v2724 = vmul.f32 -0.5, %v2479
      %v2725 = vadd.f32 %v2724, 1.0
      %v2726 = vmul.f32 %v2725, %v2479
      %v2727 = vand.u32 2147483647, %v2479
      %vm2728 = vcmp.lt.f32.partialorder %v2727, 0.0004427343
      %v2729 = vsel %vm2728, %v2726, %v2723
      %v2730 = vadd.f32 %v2481, 1.0
      %v2731 = vlog2.pop %v2730
      %v2732 = vmul.f32 %v2731, 0.6931472
      %v2733 = vmul.f32 -0.5, %v2481
      %v2734 = vadd.f32 %v2733, 1.0
      %v2735 = vmul.f32 %v2734, %v2481
      %v2736 = vand.u32 2147483647, %v2481
      %vm2737 = vcmp.lt.f32.partialorder %v2736, 0.0004427343
      %v2738 = vsel %vm2737, %v2735, %v2732
      %v2739 = vadd.f32 %v2483, 1.0
      %v2740 = vlog2.pop %v2739
      %v2741 = vmul.f32 %v2740, 0.6931472
      %v2742 = vmul.f32 -0.5, %v2483
      %v2743 = vadd.f32 %v2742, 1.0
      %v2744 = vmul.f32 %v2743, %v2483
      %v2745 = vand.u32 2147483647, %v2483
      %vm2746 = vcmp.lt.f32.partialorder %v2745, 0.0004427343
      %v2747 = vsel %vm2746, %v2744, %v2741
      %v2748 = vadd.f32 %v2485, 1.0
      %v2749 = vlog2.pop %v2748
      %v2750 = vmul.f32 %v2749, 0.6931472
      %v2751 = vmul.f32 -0.5, %v2485
      %v2752 = vadd.f32 %v2751, 1.0
      %v2753 = vmul.f32 %v2752, %v2485
      %v2754 = vand.u32 2147483647, %v2485
      %vm2755 = vcmp.lt.f32.partialorder %v2754, 0.0004427343
      %v2756 = vsel %vm2755, %v2753, %v2750
      %v2757 = vadd.f32 %v2487, 1.0
      %v2758 = vlog2.pop %v2757
      %v2759 = vmul.f32 %v2758, 0.6931472
      %v2760 = vmul.f32 -0.5, %v2487
      %v2761 = vadd.f32 %v2760, 1.0
      %v2762 = vmul.f32 %v2761, %v2487
      %v2763 = vand.u32 2147483647, %v2487
      %vm2764 = vcmp.lt.f32.partialorder %v2763, 0.0004427343
      %v2765 = vsel %vm2764, %v2762, %v2759
      %v2766 = vadd.f32 %v2489, 1.0
      %v2767 = vlog2.pop %v2766
      %v2768 = vmul.f32 %v2767, 0.6931472
      %v2769 = vmul.f32 -0.5, %v2489
      %v2770 = vadd.f32 %v2769, 1.0
      %v2771 = vmul.f32 %v2770, %v2489
      %v2772 = vand.u32 2147483647, %v2489
      %vm2773 = vcmp.lt.f32.partialorder %v2772, 0.0004427343
      %v2774 = vsel %vm2773, %v2771, %v2768
      %v2775 = vadd.f32 %v2491, 1.0
      %v2776 = vlog2.pop %v2775
      %v2777 = vmul.f32 %v2776, 0.6931472
      %v2778 = vmul.f32 -0.5, %v2491
      %v2779 = vadd.f32 %v2778, 1.0
      %v2780 = vmul.f32 %v2779, %v2491
      %v2781 = vand.u32 2147483647, %v2491
      %vm2782 = vcmp.lt.f32.partialorder %v2781, 0.0004427343
      %v2783 = vsel %vm2782, %v2780, %v2777
      %v2784 = vadd.f32 %v2493, 1.0
      %v2785 = vlog2.pop %v2784
      %v2786 = vmul.f32 %v2785, 0.6931472
      %v2787 = vmul.f32 -0.5, %v2493
      %v2788 = vadd.f32 %v2787, 1.0
      %v2789 = vmul.f32 %v2788, %v2493
      %v2790 = vand.u32 2147483647, %v2493
      %vm2791 = vcmp.lt.f32.partialorder %v2790, 0.0004427343
      %v2792 = vsel %vm2791, %v2789, %v2786
      %v2793 = vadd.f32 %v2495, 1.0
      %v2794 = vlog2.pop %v2793
      %v2795 = vmul.f32 %v2794, 0.6931472
      %v2796 = vmul.f32 -0.5, %v2495
      %v2797 = vadd.f32 %v2796, 1.0
      %v2798 = vmul.f32 %v2797, %v2495
      %v2799 = vand.u32 2147483647, %v2495
      %vm2800 = vcmp.lt.f32.partialorder %v2799, 0.0004427343
      %v2801 = vsel %vm2800, %v2798, %v2795
      %v2802 = vadd.f32 %v2497, 1.0
      %v2803 = vlog2.pop %v2802
      %v2804 = vmul.f32 %v2803, 0.6931472
      %v2805 = vmul.f32 -0.5, %v2497
      %v2806 = vadd.f32 %v2805, 1.0
      %v2807 = vmul.f32 %v2806, %v2497
      %v2808 = vand.u32 2147483647, %v2497
      %vm2809 = vcmp.lt.f32.partialorder %v2808, 0.0004427343
      %v2810 = vsel %vm2809, %v2807, %v2804
      %v2811 = vadd.f32 %v2499, 1.0
      %v2812 = vlog2.pop %v2811
      %v2813 = vmul.f32 %v2812, 0.6931472
      %v2814 = vmul.f32 -0.5, %v2499
      %v2815 = vadd.f32 %v2814, 1.0
      %v2816 = vmul.f32 %v2815, %v2499
      %v2817 = vand.u32 2147483647, %v2499
      %vm2818 = vcmp.lt.f32.partialorder %v2817, 0.0004427343
      %v2819 = vsel %vm2818, %v2816, %v2813
      %v2820 = vadd.f32 %v2501, 1.0
      %v2821 = vlog2.pop %v2820
      %v2822 = vmul.f32 %v2821, 0.6931472
      %v2823 = vmul.f32 -0.5, %v2501
      %v2824 = vadd.f32 %v2823, 1.0
      %v2825 = vmul.f32 %v2824, %v2501
      %v2826 = vand.u32 2147483647, %v2501
      %vm2827 = vcmp.lt.f32.partialorder %v2826, 0.0004427343
      %v2828 = vsel %vm2827, %v2825, %v2822
      %v2829 = vadd.f32 %v2503, 1.0
      %v2830 = vlog2.pop %v2829
      %v2831 = vmul.f32 %v2830, 0.6931472
      %v2832 = vmul.f32 -0.5, %v2503
      %v2833 = vadd.f32 %v2832, 1.0
      %v2834 = vmul.f32 %v2833, %v2503
      %v2835 = vand.u32 2147483647, %v2503
      %vm2836 = vcmp.lt.f32.partialorder %v2835, 0.0004427343
      %v2837 = vsel %vm2836, %v2834, %v2831
      %v2838 = vadd.f32 %v2505, 1.0
      %v2839 = vlog2.pop %v2838
      %v2840 = vmul.f32 %v2839, 0.6931472
      %v2841 = vmul.f32 -0.5, %v2505
      %v2842 = vadd.f32 %v2841, 1.0
      %v2843 = vmul.f32 %v2842, %v2505
      %v2844 = vand.u32 2147483647, %v2505
      %vm2845 = vcmp.lt.f32.partialorder %v2844, 0.0004427343
      %v2846 = vsel %vm2845, %v2843, %v2840
      %v2847 = vadd.f32 %v2507, 1.0
      %v2848 = vlog2.pop %v2847
      %v2849 = vmul.f32 %v2848, 0.6931472
      %v2850 = vmul.f32 -0.5, %v2507
      %v2851 = vadd.f32 %v2850, 1.0
      %v2852 = vmul.f32 %v2851, %v2507
      %v2853 = vand.u32 2147483647, %v2507
      %vm2854 = vcmp.lt.f32.partialorder %v2853, 0.0004427343
      %v2855 = vsel %vm2854, %v2852, %v2849
      %v2856 = vadd.f32 %v2509, 1.0
      %v2857 = vlog2.pop %v2856
      %v2858 = vmul.f32 %v2857, 0.6931472
      %v2859 = vmul.f32 -0.5, %v2509
      %v2860 = vadd.f32 %v2859, 1.0
      %v2861 = vmul.f32 %v2860, %v2509
      %v2862 = vand.u32 2147483647, %v2509
      %vm2863 = vcmp.lt.f32.partialorder %v2862, 0.0004427343
      %v2864 = vsel %vm2863, %v2861, %v2858
      %v2865 = vadd.f32 %v2511, 1.0
      %v2866 = vlog2.pop %v2865
      %v2867 = vmul.f32 %v2866, 0.6931472
      %v2868 = vmul.f32 -0.5, %v2511
      %v2869 = vadd.f32 %v2868, 1.0
      %v2870 = vmul.f32 %v2869, %v2511
      %v2871 = vand.u32 2147483647, %v2511
      %vm2872 = vcmp.lt.f32.partialorder %v2871, 0.0004427343
      %v2873 = vsel %vm2872, %v2870, %v2867
      %v2874 = vadd.f32 %v2513, 1.0
      %v2875 = vlog2.pop %v2874
      %v2876 = vmul.f32 %v2875, 0.6931472
      %v2877 = vmul.f32 -0.5, %v2513
      %v2878 = vadd.f32 %v2877, 1.0
      %v2879 = vmul.f32 %v2878, %v2513
      %v2880 = vand.u32 2147483647, %v2513
      %vm2881 = vcmp.lt.f32.partialorder %v2880, 0.0004427343
      %v2882 = vsel %vm2881, %v2879, %v2876
      %v2883 = vadd.f32 %v2515, 1.0
      %v2884 = vlog2.pop %v2883
      %v2885 = vmul.f32 %v2884, 0.6931472
      %v2886 = vmul.f32 -0.5, %v2515
      %v2887 = vadd.f32 %v2886, 1.0
      %v2888 = vmul.f32 %v2887, %v2515
      %v2889 = vand.u32 2147483647, %v2515
      %vm2890 = vcmp.lt.f32.partialorder %v2889, 0.0004427343
      %v2891 = vsel %vm2890, %v2888, %v2885
      %v2892 = vadd.f32 %v2517, 1.0
      %v2893 = vlog2.pop %v2892
      %v2894 = vmul.f32 %v2893, 0.6931472
      %v2895 = vmul.f32 -0.5, %v2517
      %v2896 = vadd.f32 %v2895, 1.0
      %v2897 = vmul.f32 %v2896, %v2517
      %v2898 = vand.u32 2147483647, %v2517
      %vm2899 = vcmp.lt.f32.partialorder %v2898, 0.0004427343
      %v2900 = vsel %vm2899, %v2897, %v2894
      %v2901 = vadd.f32 %v2519, 1.0
      %v2902 = vlog2.pop %v2901
      %v2903 = vmul.f32 %v2902, 0.6931472
      %v2904 = vmul.f32 -0.5, %v2519
      %v2905 = vadd.f32 %v2904, 1.0
      %v2906 = vmul.f32 %v2905, %v2519
      %v2907 = vand.u32 2147483647, %v2519
      %vm2908 = vcmp.lt.f32.partialorder %v2907, 0.0004427343
      %v2909 = vsel %vm2908, %v2906, %v2903
      %v2910 = vadd.f32 %v2521, 1.0
      %v2911 = vlog2.pop %v2910
      %v2912 = vmul.f32 %v2911, 0.6931472
      %v2913 = vmul.f32 -0.5, %v2521
      %v2914 = vadd.f32 %v2913, 1.0
      %v2915 = vmul.f32 %v2914, %v2521
      %v2916 = vand.u32 2147483647, %v2521
      %vm2917 = vcmp.lt.f32.partialorder %v2916, 0.0004427343
      %v2918 = vsel %vm2917, %v2915, %v2912
      %v2919 = vadd.f32 %v2523, 1.0
      %v2920 = vlog2.pop %v2919
      %v2921 = vmul.f32 %v2920, 0.6931472
      %v2922 = vmul.f32 -0.5, %v2523
      %v2923 = vadd.f32 %v2922, 1.0
      %v2924 = vmul.f32 %v2923, %v2523
      %v2925 = vand.u32 2147483647, %v2523
      %vm2926 = vcmp.lt.f32.partialorder %v2925, 0.0004427343
      %v2927 = vsel %vm2926, %v2924, %v2921
      %v2928 = vadd.f32 %v2525, 1.0
      %v2929 = vlog2.pop %v2928
      %v2930 = vmul.f32 %v2929, 0.6931472
      %v2931 = vmul.f32 -0.5, %v2525
      %v2932 = vadd.f32 %v2931, 1.0
      %v2933 = vmul.f32 %v2932, %v2525
      %v2934 = vand.u32 2147483647, %v2525
      %vm2935 = vcmp.lt.f32.partialorder %v2934, 0.0004427343
      %v2936 = vsel %vm2935, %v2933, %v2930
      %v2937 = vadd.f32 %v2527, 1.0
      %v2938 = vlog2.pop %v2937
      %v2939 = vmul.f32 %v2938, 0.6931472
      %v2940 = vmul.f32 -0.5, %v2527
      %v2941 = vadd.f32 %v2940, 1.0
      %v2942 = vmul.f32 %v2941, %v2527
      %v2943 = vand.u32 2147483647, %v2527
      %vm2944 = vcmp.lt.f32.partialorder %v2943, 0.0004427343
      %v2945 = vsel %vm2944, %v2942, %v2939
      %v2946 = vadd.f32 %v2529, 1.0
      %v2947 = vlog2.pop %v2946
      %v2948 = vmul.f32 %v2947, 0.6931472
      %v2949 = vmul.f32 -0.5, %v2529
      %v2950 = vadd.f32 %v2949, 1.0
      %v2951 = vmul.f32 %v2950, %v2529
      %v2952 = vand.u32 2147483647, %v2529
      %vm2953 = vcmp.lt.f32.partialorder %v2952, 0.0004427343
      %v2954 = vsel %vm2953, %v2951, %v2948
      %v2955 = vadd.f32 %v2531, 1.0
      %v2956 = vlog2.pop %v2955
      %v2957 = vmul.f32 %v2956, 0.6931472
      %v2958 = vmul.f32 -0.5, %v2531
      %v2959 = vadd.f32 %v2958, 1.0
      %v2960 = vmul.f32 %v2959, %v2531
      %v2961 = vand.u32 2147483647, %v2531
      %vm2962 = vcmp.lt.f32.partialorder %v2961, 0.0004427343
      %v2963 = vsel %vm2962, %v2960, %v2957
      %v2964 = vsel %vm2388, %v2007, %v2540
      %v2965 = vsel %vm2389, %v2154, %v2549
      %v2966 = vsel %vm2390, %v2301, %v2558
      %v2967 = vsel %vm2391, %v2009, %v2567
      %v2968 = vsel %vm2392, %v2156, %v2576
      %v2969 = vsel %vm2393, %v2303, %v2585
      %v2970 = vsel %vm2394, %v2012, %v2594
      %v2971 = vsel %vm2395, %v2159, %v2603
      %v2972 = vsel %vm2396, %v2306, %v2612
      %v2973 = vsel %vm2397, %v2014, %v2621
      %v2974 = vsel %vm2398, %v2161, %v2630
      %v2975 = vsel %vm2399, %v2308, %v2639
      %v2976 = vsel %vm2400, %v2017, %v2648
      %v2977 = vsel %vm2401, %v2164, %v2657
      %v2978 = vsel %vm2402, %v2311, %v2666
      %v2979 = vsel %vm2403, %v2019, %v2675
      %v2980 = vsel %vm2404, %v2166, %v2684
      %v2981 = vsel %vm2405, %v2313, %v2693
      %v2982 = vsel %vm2406, %v2022, %v2702
      %v2983 = vsel %vm2407, %v2169, %v2711
      %v2984 = vsel %vm2408, %v2316, %v2720
      %v2985 = vsel %vm2409, %v2024, %v2729
      %v2986 = vsel %vm2410, %v2171, %v2738
      %v2987 = vsel %vm2411, %v2318, %v2747
      %v2988 = vsel %vm2412, %v2027, %v2756
      %v2989 = vsel %vm2413, %v2174, %v2765
      %v2990 = vsel %vm2414, %v2321, %v2774
      %v2991 = vsel %vm2415, %v2029, %v2783
      %v2992 = vsel %vm2416, %v2176, %v2792
      %v2993 = vsel %vm2417, %v2323, %v2801
      %v2994 = vsel %vm2418, %v2032, %v2810
      %v2995 = vsel %vm2419, %v2179, %v2819
      %v2996 = vsel %vm2420, %v2326, %v2828
      %v2997 = vsel %vm2421, %v2034, %v2837
      %v2998 = vsel %vm2422, %v2181, %v2846
      %v2999 = vsel %vm2423, %v2328, %v2855
      %v3000 = vsel %vm2424, %v2037, %v2864
      %v3001 = vsel %vm2425, %v2184, %v2873
      %v3002 = vsel %vm2426, %v2331, %v2882
      %v3003 = vsel %vm2427, %v2039, %v2891
      %v3004 = vsel %vm2428, %v2186, %v2900
      %v3005 = vsel %vm2429, %v2333, %v2909
      %v3006 = vsel %vm2430, %v2042, %v2918
      %v3007 = vsel %vm2431, %v2189, %v2927
      %v3008 = vsel %vm2432, %v2336, %v2936
      %v3009 = vsel %vm2433, %v2044, %v2945
      %v3010 = vsel %vm2434, %v2191, %v2954
      %v3011 = vsel %vm2435, %v2338, %v2963
      %v3012 = vpack.c.bf16 %v2967, %v2964
      %v3013 = vpack.c.bf16 %v2968, %v2965
      %v3014 = vpack.c.bf16 %v2969, %v2966
      %v3015 = vpack.c.bf16 %v2973, %v2970
      %v3016 = vpack.c.bf16 %v2974, %v2971
      %v3017 = vpack.c.bf16 %v2975, %v2972
      %v3018 = vpack.c.bf16 %v2979, %v2976
      %v3019 = vpack.c.bf16 %v2980, %v2977
      %v3020 = vpack.c.bf16 %v2981, %v2978
      %v3021 = vpack.c.bf16 %v2985, %v2982
      %v3022 = vpack.c.bf16 %v2986, %v2983
      %v3023 = vpack.c.bf16 %v2987, %v2984
      %v3024 = vpack.c.bf16 %v2991, %v2988
      %v3025 = vpack.c.bf16 %v2992, %v2989
      %v3026 = vpack.c.bf16 %v2993, %v2990
      %v3027 = vpack.c.bf16 %v2997, %v2994
      %v3028 = vpack.c.bf16 %v2998, %v2995
      %v3029 = vpack.c.bf16 %v2999, %v2996
      %v3030 = vpack.c.bf16 %v3003, %v3000
      %v3031 = vpack.c.bf16 %v3004, %v3001
      %v3032 = vpack.c.bf16 %v3005, %v3002
      %v3033 = vpack.c.bf16 %v3009, %v3006
      %v3034 = vpack.c.bf16 %v3010, %v3007
      %v3035 = vpack.c.bf16 %v3011, %v3008
      %v3036 = vld [vmem:[%s5] sm:$0xf]
      %v3037 = vld [vmem:[%s5 + $0x4] sm:$0xf]
      %v3038 = vld [vmem:[%s5 + $0x8] sm:$0xf]
      %v3039 = vld [vmem:[%s5 + $0xc] sm:$0xf]
      %v3040 = vld [vmem:[%s5 + $0x10] sm:$0xf]
      %v3041 = vld [vmem:[%s5 + $0x14] sm:$0xf]
      %v3042 = vld [vmem:[%s5 + $0x18] sm:$0xf]
      %v3043 = vld [vmem:[%s5 + $0x1c] sm:$0xf]
      %v3044 = vld [vmem:[%s5 + $0x20] sm:$0xf]
      %v3045 = vld [vmem:[%s5 + $0x24] sm:$0xf]
      %v3046 = vld [vmem:[%s5 + $0x28] sm:$0xf]
      %v3047 = vld [vmem:[%s5 + $0x2c] sm:$0xf]
      %v3048 = vld [vmem:[%s5 + $0x30] sm:$0xf]
      %v3049 = vld [vmem:[%s5 + $0x34] sm:$0xf]
      %v3050 = vld [vmem:[%s5 + $0x38] sm:$0xf]
      %v3051 = vld [vmem:[%s5 + $0x3c] sm:$0xf]
      %v3052 = vld [vmem:[%s5 + $0x40] sm:$0xf]
      %v3053 = vld [vmem:[%s5 + $0x44] sm:$0xf]
      %v3054 = vld [vmem:[%s5 + $0x48] sm:$0xf]
      %v3055 = vld [vmem:[%s5 + $0x4c] sm:$0xf]
      %v3056 = vld [vmem:[%s5 + $0x50] sm:$0xf]
      %v3057 = vld [vmem:[%s5 + $0x54] sm:$0xf]
      %v3058 = vld [vmem:[%s5 + $0x58] sm:$0xf]
      %v3059 = vld [vmem:[%s5 + $0x5c] sm:$0xf]
      %v3060 = vld [vmem:[%s5 + $0x60] sm:$0xf]
      %v3061 = vld [vmem:[%s5 + $0x64] sm:$0xf]
      %v3062 = vld [vmem:[%s5 + $0x68] sm:$0xf]
      %v3063 = vld [vmem:[%s5 + $0x6c] sm:$0xf]
      %v3064 = vld [vmem:[%s5 + $0x70] sm:$0xf]
      %v3065 = vld [vmem:[%s5 + $0x74] sm:$0xf]
      %v3066 = vld [vmem:[%s5 + $0x78] sm:$0xf]
      %v3067 = vld [vmem:[%s5 + $0x7c] sm:$0xf]
      %v3068 = vld [vmem:[%s5 + $0x80] sm:$0xf]
      %v3069 = vld [vmem:[%s5 + $0x84] sm:$0xf]
      %v3070 = vld [vmem:[%s5 + $0x88] sm:$0xf]
      %v3071 = vld [vmem:[%s5 + $0x8c] sm:$0xf]
      %v3072 = vld [vmem:[%s5 + $0x90] sm:$0xf]
      %v3073 = vld [vmem:[%s5 + $0x94] sm:$0xf]
      %v3074 = vld [vmem:[%s5 + $0x98] sm:$0xf]
      %v3075 = vld [vmem:[%s5 + $0x9c] sm:$0xf]
      %v3076 = vld [vmem:[%s5 + $0xa0] sm:$0xf]
      %v3077 = vld [vmem:[%s5 + $0xa4] sm:$0xf]
      %v3078 = vld [vmem:[%s5 + $0xa8] sm:$0xf]
      %v3079 = vld [vmem:[%s5 + $0xac] sm:$0xf]
      %v3080 = vld [vmem:[%s5 + $0xb0] sm:$0xf]
      %v3081 = vld [vmem:[%s5 + $0xb4] sm:$0xf]
      %v3082 = vld [vmem:[%s5 + $0xb8] sm:$0xf]
      %v3083 = vld [vmem:[%s5 + $0xbc] sm:$0xf]
      %v3084 = vld [vmem:[%s6] sm:$0x1]
      %v3086 = vperm.slane %v3084, 0
      %v3136 = vunpack.c.l.b16 %v3036
      %v3137 = vunpack.c.l.b16 %v3037
      %v3138 = vunpack.c.l.b16 %v3038
      %v3139 = vunpack.c.l.b16 %v3039
      %v3140 = vunpack.c.l.b16 %v3040
      %v3141 = vunpack.c.l.b16 %v3041
      %v3142 = vunpack.c.l.b16 %v3042
      %v3143 = vunpack.c.l.b16 %v3043
      %v3144 = vunpack.c.l.b16 %v3044
      %v3145 = vunpack.c.l.b16 %v3045
      %v3146 = vunpack.c.l.b16 %v3046
      %v3147 = vunpack.c.l.b16 %v3047
      %v3148 = vunpack.c.l.b16 %v3048
      %v3149 = vunpack.c.l.b16 %v3049
      %v3150 = vunpack.c.l.b16 %v3050
      %v3151 = vunpack.c.l.b16 %v3051
      %v3152 = vunpack.c.l.b16 %v3052
      %v3153 = vunpack.c.l.b16 %v3053
      %v3154 = vunpack.c.l.b16 %v3054
      %v3155 = vunpack.c.l.b16 %v3055
      %v3156 = vunpack.c.l.b16 %v3056
      %v3157 = vunpack.c.l.b16 %v3057
      %v3158 = vunpack.c.l.b16 %v3058
      %v3159 = vunpack.c.l.b16 %v3059
      %v3160 = vunpack.c.l.b16 %v3060
      %v3161 = vunpack.c.l.b16 %v3061
      %v3162 = vunpack.c.l.b16 %v3062
      %v3163 = vunpack.c.l.b16 %v3063
      %v3164 = vunpack.c.l.b16 %v3064
      %v3165 = vunpack.c.l.b16 %v3065
      %v3166 = vunpack.c.l.b16 %v3066
      %v3167 = vunpack.c.l.b16 %v3067
      %v3168 = vunpack.c.l.b16 %v3068
      %v3169 = vunpack.c.l.b16 %v3069
      %v3170 = vunpack.c.l.b16 %v3070
      %v3171 = vunpack.c.l.b16 %v3071
      %v3172 = vunpack.c.l.b16 %v3072
      %v3173 = vunpack.c.l.b16 %v3073
      %v3174 = vunpack.c.l.b16 %v3074
      %v3175 = vunpack.c.l.b16 %v3075
      %v3176 = vunpack.c.l.b16 %v3076
      %v3177 = vunpack.c.l.b16 %v3077
      %v3178 = vunpack.c.l.b16 %v3078
      %v3179 = vunpack.c.l.b16 %v3079
      %v3180 = vunpack.c.l.b16 %v3080
      %v3181 = vunpack.c.l.b16 %v3081
      %v3182 = vunpack.c.l.b16 %v3082
      %v3183 = vunpack.c.l.b16 %v3083
      %v3184 = vpack.c.b16 %v3137, %v3136
      %v3185 = vpack.c.b16 %v3139, %v3138
      %v3186 = vpack.c.b16 %v3141, %v3140
      %v3187 = vpack.c.b16 %v3143, %v3142
      %v3188 = vpack.c.b16 %v3145, %v3144
      %v3189 = vpack.c.b16 %v3147, %v3146
      %v3190 = vpack.c.b16 %v3149, %v3148
      %v3191 = vpack.c.b16 %v3151, %v3150
      %v3192 = vpack.c.b16 %v3153, %v3152
      %v3193 = vpack.c.b16 %v3155, %v3154
      %v3194 = vpack.c.b16 %v3157, %v3156
      %v3195 = vpack.c.b16 %v3159, %v3158
      %v3196 = vpack.c.b16 %v3161, %v3160
      %v3197 = vpack.c.b16 %v3163, %v3162
      %v3198 = vpack.c.b16 %v3165, %v3164
      %v3199 = vpack.c.b16 %v3167, %v3166
      %v3200 = vpack.c.b16 %v3169, %v3168
      %v3201 = vpack.c.b16 %v3171, %v3170
      %v3202 = vpack.c.b16 %v3173, %v3172
      %v3203 = vpack.c.b16 %v3175, %v3174
      %v3204 = vpack.c.b16 %v3177, %v3176
      %v3205 = vpack.c.b16 %v3179, %v3178
      %v3206 = vpack.c.b16 %v3181, %v3180
      %v3207 = vpack.c.b16 %v3183, %v3182
      %3232 = vmatpush.bf16.msra.mxu0 %v3191
      %3233 = vmatpush.bf16.msra.mxu0 %v3190
      %3234 = vmatpush.bf16.msra.mxu0 %v3189
      %3235 = vmatpush.bf16.msra.mxu0 %v3188
      %3236 = vmatpush.bf16.msra.mxu0 %v3187
      %3237 = vmatpush.bf16.msra.mxu0 %v3186
      %3238 = vmatpush.bf16.msra.mxu0 %v3185
      %3239 = vmatpush.bf16.msra.mxu0 %v3184
      %3240 = vmatmul.bf16.gmra.mxu0 %v3012
      %v3241 = vpop.f32.mrf.mxu0
      %v3242 = vadd.f32 %v3086, %v3241
      %v3243 = vpop.f32.mrf.mxu0
      %v3244 = vadd.f32 %v3086, %v3243
      %3245 = vmatmul.bf16.gmra.mxu0 %v3015
      %v3246 = vpop.f32.mrf.mxu0
      %v3247 = vadd.f32 %v3086, %v3246
      %v3248 = vpop.f32.mrf.mxu0
      %v3249 = vadd.f32 %v3086, %v3248
      %3250 = vmatmul.bf16.gmra.mxu0 %v3018
      %v3251 = vpop.f32.mrf.mxu0
      %v3252 = vadd.f32 %v3086, %v3251
      %v3253 = vpop.f32.mrf.mxu0
      %v3254 = vadd.f32 %v3086, %v3253
      %3255 = vmatmul.bf16.gmra.mxu0 %v3021
      %v3256 = vpop.f32.mrf.mxu0
      %v3257 = vadd.f32 %v3086, %v3256
      %v3258 = vpop.f32.mrf.mxu0
      %v3259 = vadd.f32 %v3086, %v3258
      %3260 = vmatmul.bf16.gmra.mxu0 %v3024
      %v3261 = vpop.f32.mrf.mxu0
      %v3262 = vadd.f32 %v3086, %v3261
      %v3263 = vpop.f32.mrf.mxu0
      %v3264 = vadd.f32 %v3086, %v3263
      %3265 = vmatmul.bf16.gmra.mxu0 %v3027
      %v3266 = vpop.f32.mrf.mxu0
      %v3267 = vadd.f32 %v3086, %v3266
      %v3268 = vpop.f32.mrf.mxu0
      %v3269 = vadd.f32 %v3086, %v3268
      %3270 = vmatmul.bf16.gmra.mxu0 %v3030
      %v3271 = vpop.f32.mrf.mxu0
      %v3272 = vadd.f32 %v3086, %v3271
      %v3273 = vpop.f32.mrf.mxu0
      %v3274 = vadd.f32 %v3086, %v3273
      %3275 = vmatmul.bf16.gmra.mxu0 %v3033
      %v3276 = vpop.f32.mrf.mxu0
      %v3277 = vadd.f32 %v3086, %v3276
      %v3278 = vpop.f32.mrf.mxu0
      %v3279 = vadd.f32 %v3086, %v3278
      %3280 = vdwg.mxu0
      %3281 = vmatpush.bf16.msra.mxu0 %v3199
      %3282 = vmatpush.bf16.msra.mxu0 %v3198
      %3283 = vmatpush.bf16.msra.mxu0 %v3197
      %3284 = vmatpush.bf16.msra.mxu0 %v3196
      %3285 = vmatpush.bf16.msra.mxu0 %v3195
      %3286 = vmatpush.bf16.msra.mxu0 %v3194
      %3287 = vmatpush.bf16.msra.mxu0 %v3193
      %3288 = vmatpush.bf16.msra.mxu0 %v3192
      %3289 = vmatmul.bf16.gmra.mxu0 %v3013
      %v3290 = vpop.f32.mrf.mxu0
      %v3291 = vadd.f32 %v3242, %v3290
      %v3292 = vpop.f32.mrf.mxu0
      %v3293 = vadd.f32 %v3244, %v3292
      %3294 = vmatmul.bf16.gmra.mxu0 %v3016
      %v3295 = vpop.f32.mrf.mxu0
      %v3296 = vadd.f32 %v3247, %v3295
      %v3297 = vpop.f32.mrf.mxu0
      %v3298 = vadd.f32 %v3249, %v3297
      %3299 = vmatmul.bf16.gmra.mxu0 %v3019
      %v3300 = vpop.f32.mrf.mxu0
      %v3301 = vadd.f32 %v3252, %v3300
      %v3302 = vpop.f32.mrf.mxu0
      %v3303 = vadd.f32 %v3254, %v3302
      %3304 = vmatmul.bf16.gmra.mxu0 %v3022
      %v3305 = vpop.f32.mrf.mxu0
      %v3306 = vadd.f32 %v3257, %v3305
      %v3307 = vpop.f32.mrf.mxu0
      %v3308 = vadd.f32 %v3259, %v3307
      %3309 = vmatmul.bf16.gmra.mxu0 %v3025
      %v3310 = vpop.f32.mrf.mxu0
      %v3311 = vadd.f32 %v3262, %v3310
      %v3312 = vpop.f32.mrf.mxu0
      %v3313 = vadd.f32 %v3264, %v3312
      %3314 = vmatmul.bf16.gmra.mxu0 %v3028
      %v3315 = vpop.f32.mrf.mxu0
      %v3316 = vadd.f32 %v3267, %v3315
      %v3317 = vpop.f32.mrf.mxu0
      %v3318 = vadd.f32 %v3269, %v3317
      %3319 = vmatmul.bf16.gmra.mxu0 %v3031
      %v3320 = vpop.f32.mrf.mxu0
      %v3321 = vadd.f32 %v3272, %v3320
      %v3322 = vpop.f32.mrf.mxu0
      %v3323 = vadd.f32 %v3274, %v3322
      %3324 = vmatmul.bf16.gmra.mxu0 %v3034
      %v3325 = vpop.f32.mrf.mxu0
      %v3326 = vadd.f32 %v3277, %v3325
      %v3327 = vpop.f32.mrf.mxu0
      %v3328 = vadd.f32 %v3279, %v3327
      %3329 = vdwg.mxu0
      %3330 = vmatpush.bf16.msra.mxu0 %v3207
      %3331 = vmatpush.bf16.msra.mxu0 %v3206
      %3332 = vmatpush.bf16.msra.mxu0 %v3205
      %3333 = vmatpush.bf16.msra.mxu0 %v3204
      %3334 = vmatpush.bf16.msra.mxu0 %v3203
      %3335 = vmatpush.bf16.msra.mxu0 %v3202
      %3336 = vmatpush.bf16.msra.mxu0 %v3201
      %3337 = vmatpush.bf16.msra.mxu0 %v3200
      %3338 = vmatmul.bf16.gmra.mxu0 %v3014
      %v3339 = vpop.f32.mrf.mxu0
      %v3340 = vadd.f32 %v3291, %v3339
      %v3341 = vpop.f32.mrf.mxu0
      %v3342 = vadd.f32 %v3293, %v3341
      %3343 = vmatmul.bf16.gmra.mxu0 %v3017
      %v3344 = vpop.f32.mrf.mxu0
      %v3345 = vadd.f32 %v3296, %v3344
      %v3346 = vpop.f32.mrf.mxu0
      %v3347 = vadd.f32 %v3298, %v3346
      %3348 = vmatmul.bf16.gmra.mxu0 %v3020
      %v3349 = vpop.f32.mrf.mxu0
      %v3350 = vadd.f32 %v3301, %v3349
      %v3351 = vpop.f32.mrf.mxu0
      %v3352 = vadd.f32 %v3303, %v3351
      %3353 = vmatmul.bf16.gmra.mxu0 %v3023
      %v3354 = vpop.f32.mrf.mxu0
      %v3355 = vadd.f32 %v3306, %v3354
      %v3356 = vpop.f32.mrf.mxu0
      %v3357 = vadd.f32 %v3308, %v3356
      %3358 = vmatmul.bf16.gmra.mxu0 %v3026
      %v3359 = vpop.f32.mrf.mxu0
      %v3360 = vadd.f32 %v3311, %v3359
      %v3361 = vpop.f32.mrf.mxu0
      %v3362 = vadd.f32 %v3313, %v3361
      %3363 = vmatmul.bf16.gmra.mxu0 %v3029
      %v3364 = vpop.f32.mrf.mxu0
      %v3365 = vadd.f32 %v3316, %v3364
      %v3366 = vpop.f32.mrf.mxu0
      %v3367 = vadd.f32 %v3318, %v3366
      %3368 = vmatmul.bf16.gmra.mxu0 %v3032
      %v3369 = vpop.f32.mrf.mxu0
      %v3370 = vadd.f32 %v3321, %v3369
      %v3371 = vpop.f32.mrf.mxu0
      %v3372 = vadd.f32 %v3323, %v3371
      %3373 = vmatmul.bf16.gmra.mxu0 %v3035
      %v3374 = vpop.f32.mrf.mxu0
      %v3375 = vadd.f32 %v3326, %v3374
      %v3376 = vpop.f32.mrf.mxu0
      %v3377 = vadd.f32 %v3328, %v3376
      %3378 = vdwg.mxu0
      %v3379 = vmin.f32 %v3340, 20.0
      %v3380 = vmin.f32 %v3342, 20.0
      %v3381 = vmin.f32 %v3345, 20.0
      %v3382 = vmin.f32 %v3347, 20.0
      %v3383 = vmin.f32 %v3350, 20.0
      %v3384 = vmin.f32 %v3352, 20.0
      %v3385 = vmin.f32 %v3355, 20.0
      %v3386 = vmin.f32 %v3357, 20.0
      %v3387 = vmin.f32 %v3360, 20.0
      %v3388 = vmin.f32 %v3362, 20.0
      %v3389 = vmin.f32 %v3365, 20.0
      %v3390 = vmin.f32 %v3367, 20.0
      %v3391 = vmin.f32 %v3370, 20.0
      %v3392 = vmin.f32 %v3372, 20.0
      %v3393 = vmin.f32 %v3375, 20.0
      %v3394 = vmin.f32 %v3377, 20.0
      %vm3395 = vcmp.gt.f32.partialorder %v3340, 20.0
      %vm3396 = vcmp.gt.f32.partialorder %v3342, 20.0
      %vm3397 = vcmp.gt.f32.partialorder %v3345, 20.0
      %vm3398 = vcmp.gt.f32.partialorder %v3347, 20.0
      %vm3399 = vcmp.gt.f32.partialorder %v3350, 20.0
      %vm3400 = vcmp.gt.f32.partialorder %v3352, 20.0
      %vm3401 = vcmp.gt.f32.partialorder %v3355, 20.0
      %vm3402 = vcmp.gt.f32.partialorder %v3357, 20.0
      %vm3403 = vcmp.gt.f32.partialorder %v3360, 20.0
      %vm3404 = vcmp.gt.f32.partialorder %v3362, 20.0
      %vm3405 = vcmp.gt.f32.partialorder %v3365, 20.0
      %vm3406 = vcmp.gt.f32.partialorder %v3367, 20.0
      %vm3407 = vcmp.gt.f32.partialorder %v3370, 20.0
      %vm3408 = vcmp.gt.f32.partialorder %v3372, 20.0
      %vm3409 = vcmp.gt.f32.partialorder %v3375, 20.0
      %vm3410 = vcmp.gt.f32.partialorder %v3377, 20.0
      %v3411 = vmul.f32 %v3379, 1.442695
      %v3412 = vpow.pop %v3411
      %v3413 = vmul.f32 %v3380, 1.442695
      %v3414 = vpow.pop %v3413
      %v3415 = vmul.f32 %v3381, 1.442695
      %v3416 = vpow.pop %v3415
      %v3417 = vmul.f32 %v3382, 1.442695
      %v3418 = vpow.pop %v3417
      %v3419 = vmul.f32 %v3383, 1.442695
      %v3420 = vpow.pop %v3419
      %v3421 = vmul.f32 %v3384, 1.442695
      %v3422 = vpow.pop %v3421
      %v3423 = vmul.f32 %v3385, 1.442695
      %v3424 = vpow.pop %v3423
      %v3425 = vmul.f32 %v3386, 1.442695
      %v3426 = vpow.pop %v3425
      %v3427 = vmul.f32 %v3387, 1.442695
      %v3428 = vpow.pop %v3427
      %v3429 = vmul.f32 %v3388, 1.442695
      %v3430 = vpow.pop %v3429
      %v3431 = vmul.f32 %v3389, 1.442695
      %v3432 = vpow.pop %v3431
      %v3433 = vmul.f32 %v3390, 1.442695
      %v3434 = vpow.pop %v3433
      %v3435 = vmul.f32 %v3391, 1.442695
      %v3436 = vpow.pop %v3435
      %v3437 = vmul.f32 %v3392, 1.442695
      %v3438 = vpow.pop %v3437
      %v3439 = vmul.f32 %v3393, 1.442695
      %v3440 = vpow.pop %v3439
      %v3441 = vmul.f32 %v3394, 1.442695
      %v3442 = vpow.pop %v3441
      %v3443 = vadd.f32 %v3412, 1.0
      %v3444 = vlog2.pop %v3443
      %v3445 = vmul.f32 %v3444, 0.6931472
      %v3446 = vmul.f32 -0.5, %v3412
      %v3447 = vadd.f32 %v3446, 1.0
      %v3448 = vmul.f32 %v3447, %v3412
      %v3449 = vand.u32 2147483647, %v3412
      %vm3450 = vcmp.lt.f32.partialorder %v3449, 0.0004427343
      %v3451 = vsel %vm3450, %v3448, %v3445
      %v3452 = vadd.f32 %v3414, 1.0
      %v3453 = vlog2.pop %v3452
      %v3454 = vmul.f32 %v3453, 0.6931472
      %v3455 = vmul.f32 -0.5, %v3414
      %v3456 = vadd.f32 %v3455, 1.0
      %v3457 = vmul.f32 %v3456, %v3414
      %v3458 = vand.u32 2147483647, %v3414
      %vm3459 = vcmp.lt.f32.partialorder %v3458, 0.0004427343
      %v3460 = vsel %vm3459, %v3457, %v3454
      %v3461 = vadd.f32 %v3416, 1.0
      %v3462 = vlog2.pop %v3461
      %v3463 = vmul.f32 %v3462, 0.6931472
      %v3464 = vmul.f32 -0.5, %v3416
      %v3465 = vadd.f32 %v3464, 1.0
      %v3466 = vmul.f32 %v3465, %v3416
      %v3467 = vand.u32 2147483647, %v3416
      %vm3468 = vcmp.lt.f32.partialorder %v3467, 0.0004427343
      %v3469 = vsel %vm3468, %v3466, %v3463
      %v3470 = vadd.f32 %v3418, 1.0
      %v3471 = vlog2.pop %v3470
      %v3472 = vmul.f32 %v3471, 0.6931472
      %v3473 = vmul.f32 -0.5, %v3418
      %v3474 = vadd.f32 %v3473, 1.0
      %v3475 = vmul.f32 %v3474, %v3418
      %v3476 = vand.u32 2147483647, %v3418
      %vm3477 = vcmp.lt.f32.partialorder %v3476, 0.0004427343
      %v3478 = vsel %vm3477, %v3475, %v3472
      %v3479 = vadd.f32 %v3420, 1.0
      %v3480 = vlog2.pop %v3479
      %v3481 = vmul.f32 %v3480, 0.6931472
      %v3482 = vmul.f32 -0.5, %v3420
      %v3483 = vadd.f32 %v3482, 1.0
      %v3484 = vmul.f32 %v3483, %v3420
      %v3485 = vand.u32 2147483647, %v3420
      %vm3486 = vcmp.lt.f32.partialorder %v3485, 0.0004427343
      %v3487 = vsel %vm3486, %v3484, %v3481
      %v3488 = vadd.f32 %v3422, 1.0
      %v3489 = vlog2.pop %v3488
      %v3490 = vmul.f32 %v3489, 0.6931472
      %v3491 = vmul.f32 -0.5, %v3422
      %v3492 = vadd.f32 %v3491, 1.0
      %v3493 = vmul.f32 %v3492, %v3422
      %v3494 = vand.u32 2147483647, %v3422
      %vm3495 = vcmp.lt.f32.partialorder %v3494, 0.0004427343
      %v3496 = vsel %vm3495, %v3493, %v3490
      %v3497 = vadd.f32 %v3424, 1.0
      %v3498 = vlog2.pop %v3497
      %v3499 = vmul.f32 %v3498, 0.6931472
      %v3500 = vmul.f32 -0.5, %v3424
      %v3501 = vadd.f32 %v3500, 1.0
      %v3502 = vmul.f32 %v3501, %v3424
      %v3503 = vand.u32 2147483647, %v3424
      %vm3504 = vcmp.lt.f32.partialorder %v3503, 0.0004427343
      %v3505 = vsel %vm3504, %v3502, %v3499
      %v3506 = vadd.f32 %v3426, 1.0
      %v3507 = vlog2.pop %v3506
      %v3508 = vmul.f32 %v3507, 0.6931472
      %v3509 = vmul.f32 -0.5, %v3426
      %v3510 = vadd.f32 %v3509, 1.0
      %v3511 = vmul.f32 %v3510, %v3426
      %v3512 = vand.u32 2147483647, %v3426
      %vm3513 = vcmp.lt.f32.partialorder %v3512, 0.0004427343
      %v3514 = vsel %vm3513, %v3511, %v3508
      %v3515 = vadd.f32 %v3428, 1.0
      %v3516 = vlog2.pop %v3515
      %v3517 = vmul.f32 %v3516, 0.6931472
      %v3518 = vmul.f32 -0.5, %v3428
      %v3519 = vadd.f32 %v3518, 1.0
      %v3520 = vmul.f32 %v3519, %v3428
      %v3521 = vand.u32 2147483647, %v3428
      %vm3522 = vcmp.lt.f32.partialorder %v3521, 0.0004427343
      %v3523 = vsel %vm3522, %v3520, %v3517
      %v3524 = vadd.f32 %v3430, 1.0
      %v3525 = vlog2.pop %v3524
      %v3526 = vmul.f32 %v3525, 0.6931472
      %v3527 = vmul.f32 -0.5, %v3430
      %v3528 = vadd.f32 %v3527, 1.0
      %v3529 = vmul.f32 %v3528, %v3430
      %v3530 = vand.u32 2147483647, %v3430
      %vm3531 = vcmp.lt.f32.partialorder %v3530, 0.0004427343
      %v3532 = vsel %vm3531, %v3529, %v3526
      %v3533 = vadd.f32 %v3432, 1.0
      %v3534 = vlog2.pop %v3533
      %v3535 = vmul.f32 %v3534, 0.6931472
      %v3536 = vmul.f32 -0.5, %v3432
      %v3537 = vadd.f32 %v3536, 1.0
      %v3538 = vmul.f32 %v3537, %v3432
      %v3539 = vand.u32 2147483647, %v3432
      %vm3540 = vcmp.lt.f32.partialorder %v3539, 0.0004427343
      %v3541 = vsel %vm3540, %v3538, %v3535
      %v3542 = vadd.f32 %v3434, 1.0
      %v3543 = vlog2.pop %v3542
      %v3544 = vmul.f32 %v3543, 0.6931472
      %v3545 = vmul.f32 -0.5, %v3434
      %v3546 = vadd.f32 %v3545, 1.0
      %v3547 = vmul.f32 %v3546, %v3434
      %v3548 = vand.u32 2147483647, %v3434
      %vm3549 = vcmp.lt.f32.partialorder %v3548, 0.0004427343
      %v3550 = vsel %vm3549, %v3547, %v3544
      %v3551 = vadd.f32 %v3436, 1.0
      %v3552 = vlog2.pop %v3551
      %v3553 = vmul.f32 %v3552, 0.6931472
      %v3554 = vmul.f32 -0.5, %v3436
      %v3555 = vadd.f32 %v3554, 1.0
      %v3556 = vmul.f32 %v3555, %v3436
      %v3557 = vand.u32 2147483647, %v3436
      %vm3558 = vcmp.lt.f32.partialorder %v3557, 0.0004427343
      %v3559 = vsel %vm3558, %v3556, %v3553
      %v3560 = vadd.f32 %v3438, 1.0
      %v3561 = vlog2.pop %v3560
      %v3562 = vmul.f32 %v3561, 0.6931472
      %v3563 = vmul.f32 -0.5, %v3438
      %v3564 = vadd.f32 %v3563, 1.0
      %v3565 = vmul.f32 %v3564, %v3438
      %v3566 = vand.u32 2147483647, %v3438
      %vm3567 = vcmp.lt.f32.partialorder %v3566, 0.0004427343
      %v3568 = vsel %vm3567, %v3565, %v3562
      %v3569 = vadd.f32 %v3440, 1.0
      %v3570 = vlog2.pop %v3569
      %v3571 = vmul.f32 %v3570, 0.6931472
      %v3572 = vmul.f32 -0.5, %v3440
      %v3573 = vadd.f32 %v3572, 1.0
      %v3574 = vmul.f32 %v3573, %v3440
      %v3575 = vand.u32 2147483647, %v3440
      %vm3576 = vcmp.lt.f32.partialorder %v3575, 0.0004427343
      %v3577 = vsel %vm3576, %v3574, %v3571
      %v3578 = vadd.f32 %v3442, 1.0
      %v3579 = vlog2.pop %v3578
      %v3580 = vmul.f32 %v3579, 0.6931472
      %v3581 = vmul.f32 -0.5, %v3442
      %v3582 = vadd.f32 %v3581, 1.0
      %v3583 = vmul.f32 %v3582, %v3442
      %v3584 = vand.u32 2147483647, %v3442
      %vm3585 = vcmp.lt.f32.partialorder %v3584, 0.0004427343
      %v3586 = vsel %vm3585, %v3583, %v3580
      %v3587 = vsel %vm3395, %v3340, %v3451
      %v3588 = vsel %vm3396, %v3342, %v3460
      %v3589 = vsel %vm3397, %v3345, %v3469
      %v3590 = vsel %vm3398, %v3347, %v3478
      %v3591 = vsel %vm3399, %v3350, %v3487
      %v3592 = vsel %vm3400, %v3352, %v3496
      %v3593 = vsel %vm3401, %v3355, %v3505
      %v3594 = vsel %vm3402, %v3357, %v3514
      %v3595 = vsel %vm3403, %v3360, %v3523
      %v3596 = vsel %vm3404, %v3362, %v3532
      %v3597 = vsel %vm3405, %v3365, %v3541
      %v3598 = vsel %vm3406, %v3367, %v3550
      %v3599 = vsel %vm3407, %v3370, %v3559
      %v3600 = vsel %vm3408, %v3372, %v3568
      %v3601 = vsel %vm3409, %v3375, %v3577
      %v3602 = vsel %vm3410, %v3377, %v3586
      %v3603 = vpack.c.bf16 %v3588, %v3587
      %v3604 = vpack.c.bf16 %v3590, %v3589
      %v3605 = vpack.c.bf16 %v3592, %v3591
      %v3606 = vpack.c.bf16 %v3594, %v3593
      %v3607 = vpack.c.bf16 %v3596, %v3595
      %v3608 = vpack.c.bf16 %v3598, %v3597
      %v3609 = vpack.c.bf16 %v3600, %v3599
      %v3610 = vpack.c.bf16 %v3602, %v3601
      %v3611 = vld [vmem:[%s7] sm:$0xf]
      %v3612 = vld [vmem:[%s7 + $0x4] sm:$0xf]
      %v3613 = vld [vmem:[%s7 + $0x8] sm:$0xf]
      %v3614 = vld [vmem:[%s7 + $0xc] sm:$0xf]
      %v3615 = vld [vmem:[%s7 + $0x10] sm:$0xf]
      %v3616 = vld [vmem:[%s7 + $0x14] sm:$0xf]
      %v3617 = vld [vmem:[%s7 + $0x18] sm:$0xf]
      %v3618 = vld [vmem:[%s7 + $0x1c] sm:$0xf]
      %v3619 = vld [vmem:[%s7 + $0x20] sm:$0xf]
      %v3620 = vld [vmem:[%s7 + $0x24] sm:$0xf]
      %v3621 = vld [vmem:[%s7 + $0x28] sm:$0xf]
      %v3622 = vld [vmem:[%s7 + $0x2c] sm:$0xf]
      %v3623 = vld [vmem:[%s7 + $0x30] sm:$0xf]
      %v3624 = vld [vmem:[%s7 + $0x34] sm:$0xf]
      %v3625 = vld [vmem:[%s7 + $0x38] sm:$0xf]
      %v3626 = vld [vmem:[%s7 + $0x3c] sm:$0xf]
      %v3627 = vld [vmem:[%s8] sm:$0x1]
      %v3629 = vperm.slane %v3627, 0
      %v3647 = vunpack.c.l.b16 %v3611
      %v3648 = vunpack.c.l.b16 %v3612
      %v3649 = vunpack.c.l.b16 %v3613
      %v3650 = vunpack.c.l.b16 %v3614
      %v3651 = vunpack.c.l.b16 %v3615
      %v3652 = vunpack.c.l.b16 %v3616
      %v3653 = vunpack.c.l.b16 %v3617
      %v3654 = vunpack.c.l.b16 %v3618
      %v3655 = vunpack.c.l.b16 %v3619
      %v3656 = vunpack.c.l.b16 %v3620
      %v3657 = vunpack.c.l.b16 %v3621
      %v3658 = vunpack.c.l.b16 %v3622
      %v3659 = vunpack.c.l.b16 %v3623
      %v3660 = vunpack.c.l.b16 %v3624
      %v3661 = vunpack.c.l.b16 %v3625
      %v3662 = vunpack.c.l.b16 %v3626
      %v3663 = vpack.c.b16 %v3648, %v3647
      %v3664 = vpack.c.b16 %v3650, %v3649
      %v3665 = vpack.c.b16 %v3652, %v3651
      %v3666 = vpack.c.b16 %v3654, %v3653
      %v3667 = vpack.c.b16 %v3656, %v3655
      %v3668 = vpack.c.b16 %v3658, %v3657
      %v3669 = vpack.c.b16 %v3660, %v3659
      %v3670 = vpack.c.b16 %v3662, %v3661
      %3679 = vmatpush.bf16.msra.mxu0 %v3670
      %3680 = vmatpush.bf16.msra.mxu0 %v3669
      %3681 = vmatpush.bf16.msra.mxu0 %v3668
      %3682 = vmatpush.bf16.msra.mxu0 %v3667
      %3683 = vmatpush.bf16.msra.mxu0 %v3666
      %3684 = vmatpush.bf16.msra.mxu0 %v3665
      %3685 = vmatpush.bf16.msra.mxu0 %v3664
      %3686 = vmatpush.bf16.msra.mxu0 %v3663
      %3687 = vmatmul.bf16.gmra.mxu0 %v3603
      %v3688 = vpop.f32.mrf.mxu0
      %v3689 = vadd.f32 %v3629, %v3688
      %v3690 = vpop.f32.mrf.mxu0
      %v3691 = vadd.f32 %v3629, %v3690
      %3692 = vmatmul.bf16.gmra.mxu0 %v3604
      %v3693 = vpop.f32.mrf.mxu0
      %v3694 = vadd.f32 %v3629, %v3693
      %v3695 = vpop.f32.mrf.mxu0
      %v3696 = vadd.f32 %v3629, %v3695
      %3697 = vmatmul.bf16.gmra.mxu0 %v3605
      %v3698 = vpop.f32.mrf.mxu0
      %v3699 = vadd.f32 %v3629, %v3698
      %v3700 = vpop.f32.mrf.mxu0
      %v3701 = vadd.f32 %v3629, %v3700
      %3702 = vmatmul.bf16.gmra.mxu0 %v3606
      %v3703 = vpop.f32.mrf.mxu0
      %v3704 = vadd.f32 %v3629, %v3703
      %v3705 = vpop.f32.mrf.mxu0
      %v3706 = vadd.f32 %v3629, %v3705
      %3707 = vmatmul.bf16.gmra.mxu0 %v3607
      %v3708 = vpop.f32.mrf.mxu0
      %v3709 = vadd.f32 %v3629, %v3708
      %v3710 = vpop.f32.mrf.mxu0
      %v3711 = vadd.f32 %v3629, %v3710
      %3712 = vmatmul.bf16.gmra.mxu0 %v3608
      %v3713 = vpop.f32.mrf.mxu0
      %v3714 = vadd.f32 %v3629, %v3713
      %v3715 = vpop.f32.mrf.mxu0
      %v3716 = vadd.f32 %v3629, %v3715
      %3717 = vmatmul.bf16.gmra.mxu0 %v3609
      %v3718 = vpop.f32.mrf.mxu0
      %v3719 = vadd.f32 %v3629, %v3718
      %v3720 = vpop.f32.mrf.mxu0
      %v3721 = vadd.f32 %v3629, %v3720
      %3722 = vmatmul.bf16.gmra.mxu0 %v3610
      %v3723 = vpop.f32.mrf.mxu0
      %v3724 = vadd.f32 %v3629, %v3723
      %v3725 = vpop.f32.mrf.mxu0
      %v3726 = vadd.f32 %v3629, %v3725
      %3727 = vdwg.mxu0
      %3728 = vst [vmem:[%s334] sm:$0xff] %v3689
      %3729 = vst [vmem:[%s334 + $0x8] sm:$0xff] %v3691
      %3730 = vst [vmem:[%s334 + $0x10] sm:$0xff] %v3694
      %3731 = vst [vmem:[%s334 + $0x18] sm:$0xff] %v3696
      %3732 = vst [vmem:[%s334 + $0x20] sm:$0xff] %v3699
      %3733 = vst [vmem:[%s334 + $0x28] sm:$0xff] %v3701
      %3734 = vst [vmem:[%s334 + $0x30] sm:$0xff] %v3704
      %3735 = vst [vmem:[%s334 + $0x38] sm:$0xff] %v3706
      %3736 = vst [vmem:[%s334 + $0x40] sm:$0xff] %v3709
      %3737 = vst [vmem:[%s334 + $0x48] sm:$0xff] %v3711
      %3738 = vst [vmem:[%s334 + $0x50] sm:$0xff] %v3714
      %3739 = vst [vmem:[%s334 + $0x58] sm:$0xff] %v3716
      %3740 = vst [vmem:[%s334 + $0x60] sm:$0xff] %v3719
      %3741 = vst [vmem:[%s334 + $0x68] sm:$0xff] %v3721
      %3742 = vst [vmem:[%s334 + $0x70] sm:$0xff] %v3724
      %3743 = vst [vmem:[%s334 + $0x78] sm:$0xff] %v3726
      %s3744 = scalar_lea.vmem %s328, 64
      %v3745 = vld [vmem:[%s3744] sm:$0xf]
      %v3746 = vld [vmem:[%s3744 + $0x4] sm:$0xf]
      %v3747 = vld [vmem:[%s3744 + $0x8] sm:$0xf]
      %v3748 = vld [vmem:[%s3744 + $0xc] sm:$0xf]
      %v3749 = vld [vmem:[%s3744 + $0x10] sm:$0xf]
      %v3750 = vld [vmem:[%s3744 + $0x14] sm:$0xf]
      %v3751 = vld [vmem:[%s3744 + $0x18] sm:$0xf]
      %v3752 = vld [vmem:[%s3744 + $0x1c] sm:$0xf]
      %v3753 = vld [vmem:[%s3744 + $0x20] sm:$0xf]
      %v3754 = vld [vmem:[%s3744 + $0x24] sm:$0xf]
      %v3755 = vld [vmem:[%s3744 + $0x28] sm:$0xf]
      %v3756 = vld [vmem:[%s3744 + $0x2c] sm:$0xf]
      %v3757 = vld [vmem:[%s3744 + $0x30] sm:$0xf]
      %v3758 = vld [vmem:[%s3744 + $0x34] sm:$0xf]
      %v3759 = vld [vmem:[%s3744 + $0x38] sm:$0xf]
      %v3760 = vld [vmem:[%s3744 + $0x3c] sm:$0xf]
      %v3761 = vld [vmem:[%s1] sm:$0xff]
      %v3762 = vld [vmem:[%s1 + $0x8] sm:$0xf]
      %v3763 = vld [vmem:[%s1 + $0xc] sm:$0xff]
      %v3764 = vld [vmem:[%s1 + $0x14] sm:$0xf]
      %v3765 = vld [vmem:[%s1 + $0x18] sm:$0xff]
      %v3766 = vld [vmem:[%s1 + $0x20] sm:$0xf]
      %v3767 = vld [vmem:[%s1 + $0x24] sm:$0xff]
      %v3768 = vld [vmem:[%s1 + $0x2c] sm:$0xf]
      %v3769 = vld [vmem:[%s1 + $0x30] sm:$0xff]
      %v3770 = vld [vmem:[%s1 + $0x38] sm:$0xf]
      %v3771 = vld [vmem:[%s1 + $0x3c] sm:$0xff]
      %v3772 = vld [vmem:[%s1 + $0x44] sm:$0xf]
      %v3773 = vld [vmem:[%s1 + $0x48] sm:$0xff]
      %v3774 = vld [vmem:[%s1 + $0x50] sm:$0xf]
      %v3775 = vld [vmem:[%s1 + $0x54] sm:$0xff]
      %v3776 = vld [vmem:[%s1 + $0x5c] sm:$0xf]
      %v3777 = vld [vmem:[%s1 + $0x60] sm:$0xff]
      %v3778 = vld [vmem:[%s1 + $0x68] sm:$0xf]
      %v3779 = vld [vmem:[%s1 + $0x6c] sm:$0xff]
      %v3780 = vld [vmem:[%s1 + $0x74] sm:$0xf]
      %v3781 = vld [vmem:[%s1 + $0x78] sm:$0xff]
      %v3782 = vld [vmem:[%s1 + $0x80] sm:$0xf]
      %v3783 = vld [vmem:[%s1 + $0x84] sm:$0xff]
      %v3784 = vld [vmem:[%s1 + $0x8c] sm:$0xf]
      %v3785 = vld [vmem:[%s1 + $0x90] sm:$0xff]
      %v3786 = vld [vmem:[%s1 + $0x98] sm:$0xf]
      %v3787 = vld [vmem:[%s1 + $0x9c] sm:$0xff]
      %v3788 = vld [vmem:[%s1 + $0xa4] sm:$0xf]
      %v3789 = vld [vmem:[%s1 + $0xa8] sm:$0xff]
      %v3790 = vld [vmem:[%s1 + $0xb0] sm:$0xf]
      %v3791 = vld [vmem:[%s1 + $0xb4] sm:$0xff]
      %v3792 = vld [vmem:[%s1 + $0xbc] sm:$0xf]
      %v3793 = vld [vmem:[%s2] sm:$0x7]
      %v3795 = vperm.slane %v3793, 0
      %v3796 = vperm.slane %v3793, 1
      %v3797 = vperm.slane %v3793, 2
      %v3817 = vunpack.c.l.b16 %v3745
      %v3818 = vunpack.c.l.b16 %v3746
      %v3819 = vunpack.c.l.b16 %v3747
      %v3820 = vunpack.c.l.b16 %v3748
      %v3821 = vunpack.c.l.b16 %v3749
      %v3822 = vunpack.c.l.b16 %v3750
      %v3823 = vunpack.c.l.b16 %v3751
      %v3824 = vunpack.c.l.b16 %v3752
      %v3825 = vunpack.c.l.b16 %v3753
      %v3826 = vunpack.c.l.b16 %v3754
      %v3827 = vunpack.c.l.b16 %v3755
      %v3828 = vunpack.c.l.b16 %v3756
      %v3829 = vunpack.c.l.b16 %v3757
      %v3830 = vunpack.c.l.b16 %v3758
      %v3831 = vunpack.c.l.b16 %v3759
      %v3832 = vunpack.c.l.b16 %v3760
      %v3833 = vpack.c.b16 %v3818, %v3817
      %v3834 = vpack.c.b16 %v3820, %v3819
      %v3835 = vpack.c.b16 %v3822, %v3821
      %v3836 = vpack.c.b16 %v3824, %v3823
      %v3837 = vpack.c.b16 %v3826, %v3825
      %v3838 = vpack.c.b16 %v3828, %v3827
      %v3839 = vpack.c.b16 %v3830, %v3829
      %v3840 = vpack.c.b16 %v3832, %v3831
      %v3881 = vunpack.c.l.b16 %v3761
      %v3882 = vunpack.c.h.b16 %v3761
      %v3883 = vunpack.c.l.b16 %v3762
      %v3884 = vunpack.c.l.b16 %v3763
      %v3885 = vunpack.c.h.b16 %v3763
      %v3886 = vunpack.c.l.b16 %v3764
      %v3887 = vunpack.c.l.b16 %v3765
      %v3888 = vunpack.c.h.b16 %v3765
      %v3889 = vunpack.c.l.b16 %v3766
      %v3890 = vunpack.c.l.b16 %v3767
      %v3891 = vunpack.c.h.b16 %v3767
      %v3892 = vunpack.c.l.b16 %v3768
      %v3893 = vunpack.c.l.b16 %v3769
      %v3894 = vunpack.c.h.b16 %v3769
      %v3895 = vunpack.c.l.b16 %v3770
      %v3896 = vunpack.c.l.b16 %v3771
      %v3897 = vunpack.c.h.b16 %v3771
      %v3898 = vunpack.c.l.b16 %v3772
      %v3899 = vunpack.c.l.b16 %v3773
      %v3900 = vunpack.c.h.b16 %v3773
      %v3901 = vunpack.c.l.b16 %v3774
      %v3902 = vunpack.c.l.b16 %v3775
      %v3903 = vunpack.c.h.b16 %v3775
      %v3904 = vunpack.c.l.b16 %v3776
      %v3905 = vunpack.c.l.b16 %v3777
      %v3906 = vunpack.c.h.b16 %v3777
      %v3907 = vunpack.c.l.b16 %v3778
      %v3908 = vunpack.c.l.b16 %v3779
      %v3909 = vunpack.c.h.b16 %v3779
      %v3910 = vunpack.c.l.b16 %v3780
      %v3911 = vunpack.c.l.b16 %v3781
      %v3912 = vunpack.c.h.b16 %v3781
      %v3913 = vunpack.c.l.b16 %v3782
      %v3914 = vunpack.c.l.b16 %v3783
      %v3915 = vunpack.c.h.b16 %v3783
      %v3916 = vunpack.c.l.b16 %v3784
      %v3917 = vunpack.c.l.b16 %v3785
      %v3918 = vunpack.c.h.b16 %v3785
      %v3919 = vunpack.c.l.b16 %v3786
      %v3920 = vunpack.c.l.b16 %v3787
      %v3921 = vunpack.c.h.b16 %v3787
      %v3922 = vunpack.c.l.b16 %v3788
      %v3923 = vunpack.c.l.b16 %v3789
      %v3924 = vunpack.c.h.b16 %v3789
      %v3925 = vunpack.c.l.b16 %v3790
      %v3926 = vunpack.c.l.b16 %v3791
      %v3927 = vunpack.c.h.b16 %v3791
      %v3928 = vunpack.c.l.b16 %v3792
      %v3929 = vpack.c.b16 %v3884, %v3881
      %v3930 = vpack.c.b16 %v3885, %v3882
      %v3931 = vpack.c.b16 %v3886, %v3883
      %v3932 = vpack.c.b16 %v3890, %v3887
      %v3933 = vpack.c.b16 %v3891, %v3888
      %v3934 = vpack.c.b16 %v3892, %v3889
      %v3935 = vpack.c.b16 %v3896, %v3893
      %v3936 = vpack.c.b16 %v3897, %v3894
      %v3937 = vpack.c.b16 %v3898, %v3895
      %v3938 = vpack.c.b16 %v3902, %v3899
      %v3939 = vpack.c.b16 %v3903, %v3900
      %v3940 = vpack.c.b16 %v3904, %v3901
      %v3941 = vpack.c.b16 %v3908, %v3905
      %v3942 = vpack.c.b16 %v3909, %v3906
      %v3943 = vpack.c.b16 %v3910, %v3907
      %v3944 = vpack.c.b16 %v3914, %v3911
      %v3945 = vpack.c.b16 %v3915, %v3912
      %v3946 = vpack.c.b16 %v3916, %v3913
      %v3947 = vpack.c.b16 %v3920, %v3917
      %v3948 = vpack.c.b16 %v3921, %v3918
      %v3949 = vpack.c.b16 %v3922, %v3919
      %v3950 = vpack.c.b16 %v3926, %v3923
      %v3951 = vpack.c.b16 %v3927, %v3924
      %v3952 = vpack.c.b16 %v3928, %v3925
      %3977 = vmatpush.bf16.msra.mxu0 %v3950
      %3978 = vmatpush.bf16.msra.mxu0 %v3947
      %3979 = vmatpush.bf16.msra.mxu0 %v3944
      %3980 = vmatpush.bf16.msra.mxu0 %v3941
      %3981 = vmatpush.bf16.msra.mxu0 %v3938
      %3982 = vmatpush.bf16.msra.mxu0 %v3935
      %3983 = vmatpush.bf16.msra.mxu0 %v3932
      %3984 = vmatpush.bf16.msra.mxu0 %v3929
      %3985 = vmatmul.bf16.gmra.mxu0 %v3833
      %v3986 = vpop.f32.mrf.mxu0
      %v3987 = vadd.f32 %v3795, %v3986
      %v3988 = vpop.f32.mrf.mxu0
      %v3989 = vadd.f32 %v3795, %v3988
      %3990 = vmatmul.bf16.gmra.mxu0 %v3834
      %v3991 = vpop.f32.mrf.mxu0
      %v3992 = vadd.f32 %v3795, %v3991
      %v3993 = vpop.f32.mrf.mxu0
      %v3994 = vadd.f32 %v3795, %v3993
      %3995 = vmatmul.bf16.gmra.mxu0 %v3835
      %v3996 = vpop.f32.mrf.mxu0
      %v3997 = vadd.f32 %v3795, %v3996
      %v3998 = vpop.f32.mrf.mxu0
      %v3999 = vadd.f32 %v3795, %v3998
      %4000 = vmatmul.bf16.gmra.mxu0 %v3836
      %v4001 = vpop.f32.mrf.mxu0
      %v4002 = vadd.f32 %v3795, %v4001
      %v4003 = vpop.f32.mrf.mxu0
      %v4004 = vadd.f32 %v3795, %v4003
      %4005 = vmatmul.bf16.gmra.mxu0 %v3837
      %v4006 = vpop.f32.mrf.mxu0
      %v4007 = vadd.f32 %v3795, %v4006
      %v4008 = vpop.f32.mrf.mxu0
      %v4009 = vadd.f32 %v3795, %v4008
      %4010 = vmatmul.bf16.gmra.mxu0 %v3838
      %v4011 = vpop.f32.mrf.mxu0
      %v4012 = vadd.f32 %v3795, %v4011
      %v4013 = vpop.f32.mrf.mxu0
      %v4014 = vadd.f32 %v3795, %v4013
      %4015 = vmatmul.bf16.gmra.mxu0 %v3839
      %v4016 = vpop.f32.mrf.mxu0
      %v4017 = vadd.f32 %v3795, %v4016
      %v4018 = vpop.f32.mrf.mxu0
      %v4019 = vadd.f32 %v3795, %v4018
      %4020 = vmatmul.bf16.gmra.mxu0 %v3840
      %v4021 = vpop.f32.mrf.mxu0
      %v4022 = vadd.f32 %v3795, %v4021
      %v4023 = vpop.f32.mrf.mxu0
      %v4024 = vadd.f32 %v3795, %v4023
      %4025 = vdwg.mxu0
      %4026 = vmatpush.bf16.msra.mxu0 %v3951
      %4027 = vmatpush.bf16.msra.mxu0 %v3948
      %4028 = vmatpush.bf16.msra.mxu0 %v3945
      %4029 = vmatpush.bf16.msra.mxu0 %v3942
      %4030 = vmatpush.bf16.msra.mxu0 %v3939
      %4031 = vmatpush.bf16.msra.mxu0 %v3936
      %4032 = vmatpush.bf16.msra.mxu0 %v3933
      %4033 = vmatpush.bf16.msra.mxu0 %v3930
      %4034 = vmatmul.bf16.gmra.mxu0 %v3833
      %v4035 = vpop.f32.mrf.mxu0
      %v4036 = vadd.f32 %v3796, %v4035
      %v4037 = vpop.f32.mrf.mxu0
      %v4038 = vadd.f32 %v3796, %v4037
      %4039 = vmatmul.bf16.gmra.mxu0 %v3834
      %v4040 = vpop.f32.mrf.mxu0
      %v4041 = vadd.f32 %v3796, %v4040
      %v4042 = vpop.f32.mrf.mxu0
      %v4043 = vadd.f32 %v3796, %v4042
      %4044 = vmatmul.bf16.gmra.mxu0 %v3835
      %v4045 = vpop.f32.mrf.mxu0
      %v4046 = vadd.f32 %v3796, %v4045
      %v4047 = vpop.f32.mrf.mxu0
      %v4048 = vadd.f32 %v3796, %v4047
      %4049 = vmatmul.bf16.gmra.mxu0 %v3836
      %v4050 = vpop.f32.mrf.mxu0
      %v4051 = vadd.f32 %v3796, %v4050
      %v4052 = vpop.f32.mrf.mxu0
      %v4053 = vadd.f32 %v3796, %v4052
      %4054 = vmatmul.bf16.gmra.mxu0 %v3837
      %v4055 = vpop.f32.mrf.mxu0
      %v4056 = vadd.f32 %v3796, %v4055
      %v4057 = vpop.f32.mrf.mxu0
      %v4058 = vadd.f32 %v3796, %v4057
      %4059 = vmatmul.bf16.gmra.mxu0 %v3838
      %v4060 = vpop.f32.mrf.mxu0
      %v4061 = vadd.f32 %v3796, %v4060
      %v4062 = vpop.f32.mrf.mxu0
      %v4063 = vadd.f32 %v3796, %v4062
      %4064 = vmatmul.bf16.gmra.mxu0 %v3839
      %v4065 = vpop.f32.mrf.mxu0
      %v4066 = vadd.f32 %v3796, %v4065
      %v4067 = vpop.f32.mrf.mxu0
      %v4068 = vadd.f32 %v3796, %v4067
      %4069 = vmatmul.bf16.gmra.mxu0 %v3840
      %v4070 = vpop.f32.mrf.mxu0
      %v4071 = vadd.f32 %v3796, %v4070
      %v4072 = vpop.f32.mrf.mxu0
      %v4073 = vadd.f32 %v3796, %v4072
      %4074 = vdwg.mxu0
      %4075 = vmatpush.bf16.msra.mxu0 %v3952
      %4076 = vmatpush.bf16.msra.mxu0 %v3949
      %4077 = vmatpush.bf16.msra.mxu0 %v3946
      %4078 = vmatpush.bf16.msra.mxu0 %v3943
      %4079 = vmatpush.bf16.msra.mxu0 %v3940
      %4080 = vmatpush.bf16.msra.mxu0 %v3937
      %4081 = vmatpush.bf16.msra.mxu0 %v3934
      %4082 = vmatpush.bf16.msra.mxu0 %v3931
      %4083 = vmatmul.bf16.gmra.mxu0 %v3833
      %v4084 = vpop.f32.mrf.mxu0
      %v4085 = vadd.f32 %v3797, %v4084
      %v4086 = vpop.f32.mrf.mxu0
      %v4087 = vadd.f32 %v3797, %v4086
      %4088 = vmatmul.bf16.gmra.mxu0 %v3834
      %v4089 = vpop.f32.mrf.mxu0
      %v4090 = vadd.f32 %v3797, %v4089
      %v4091 = vpop.f32.mrf.mxu0
      %v4092 = vadd.f32 %v3797, %v4091
      %4093 = vmatmul.bf16.gmra.mxu0 %v3835
      %v4094 = vpop.f32.mrf.mxu0
      %v4095 = vadd.f32 %v3797, %v4094
      %v4096 = vpop.f32.mrf.mxu0
      %v4097 = vadd.f32 %v3797, %v4096
      %4098 = vmatmul.bf16.gmra.mxu0 %v3836
      %v4099 = vpop.f32.mrf.mxu0
      %v4100 = vadd.f32 %v3797, %v4099
      %v4101 = vpop.f32.mrf.mxu0
      %v4102 = vadd.f32 %v3797, %v4101
      %4103 = vmatmul.bf16.gmra.mxu0 %v3837
      %v4104 = vpop.f32.mrf.mxu0
      %v4105 = vadd.f32 %v3797, %v4104
      %v4106 = vpop.f32.mrf.mxu0
      %v4107 = vadd.f32 %v3797, %v4106
      %4108 = vmatmul.bf16.gmra.mxu0 %v3838
      %v4109 = vpop.f32.mrf.mxu0
      %v4110 = vadd.f32 %v3797, %v4109
      %v4111 = vpop.f32.mrf.mxu0
      %v4112 = vadd.f32 %v3797, %v4111
      %4113 = vmatmul.bf16.gmra.mxu0 %v3839
      %v4114 = vpop.f32.mrf.mxu0
      %v4115 = vadd.f32 %v3797, %v4114
      %v4116 = vpop.f32.mrf.mxu0
      %v4117 = vadd.f32 %v3797, %v4116
      %4118 = vmatmul.bf16.gmra.mxu0 %v3840
      %v4119 = vpop.f32.mrf.mxu0
      %v4120 = vadd.f32 %v3797, %v4119
      %v4121 = vpop.f32.mrf.mxu0
      %v4122 = vadd.f32 %v3797, %v4121
      %4123 = vdwg.mxu0
      %v4124 = vmin.f32 %v3987, 20.0
      %v4125 = vmin.f32 %v4036, 20.0
      %v4126 = vmin.f32 %v4085, 20.0
      %v4127 = vmin.f32 %v3989, 20.0
      %v4128 = vmin.f32 %v4038, 20.0
      %v4129 = vmin.f32 %v4087, 20.0
      %v4130 = vmin.f32 %v3992, 20.0
      %v4131 = vmin.f32 %v4041, 20.0
      %v4132 = vmin.f32 %v4090, 20.0
      %v4133 = vmin.f32 %v3994, 20.0
      %v4134 = vmin.f32 %v4043, 20.0
      %v4135 = vmin.f32 %v4092, 20.0
      %v4136 = vmin.f32 %v3997, 20.0
      %v4137 = vmin.f32 %v4046, 20.0
      %v4138 = vmin.f32 %v4095, 20.0
      %v4139 = vmin.f32 %v3999, 20.0
      %v4140 = vmin.f32 %v4048, 20.0
      %v4141 = vmin.f32 %v4097, 20.0
      %v4142 = vmin.f32 %v4002, 20.0
      %v4143 = vmin.f32 %v4051, 20.0
      %v4144 = vmin.f32 %v4100, 20.0
      %v4145 = vmin.f32 %v4004, 20.0
      %v4146 = vmin.f32 %v4053, 20.0
      %v4147 = vmin.f32 %v4102, 20.0
      %v4148 = vmin.f32 %v4007, 20.0
      %v4149 = vmin.f32 %v4056, 20.0
      %v4150 = vmin.f32 %v4105, 20.0
      %v4151 = vmin.f32 %v4009, 20.0
      %v4152 = vmin.f32 %v4058, 20.0
      %v4153 = vmin.f32 %v4107, 20.0
      %v4154 = vmin.f32 %v4012, 20.0
      %v4155 = vmin.f32 %v4061, 20.0
      %v4156 = vmin.f32 %v4110, 20.0
      %v4157 = vmin.f32 %v4014, 20.0
      %v4158 = vmin.f32 %v4063, 20.0
      %v4159 = vmin.f32 %v4112, 20.0
      %v4160 = vmin.f32 %v4017, 20.0
      %v4161 = vmin.f32 %v4066, 20.0
      %v4162 = vmin.f32 %v4115, 20.0
      %v4163 = vmin.f32 %v4019, 20.0
      %v4164 = vmin.f32 %v4068, 20.0
      %v4165 = vmin.f32 %v4117, 20.0
      %v4166 = vmin.f32 %v4022, 20.0
      %v4167 = vmin.f32 %v4071, 20.0
      %v4168 = vmin.f32 %v4120, 20.0
      %v4169 = vmin.f32 %v4024, 20.0
      %v4170 = vmin.f32 %v4073, 20.0
      %v4171 = vmin.f32 %v4122, 20.0
      %vm4172 = vcmp.gt.f32.partialorder %v3987, 20.0
      %vm4173 = vcmp.gt.f32.partialorder %v4036, 20.0
      %vm4174 = vcmp.gt.f32.partialorder %v4085, 20.0
      %vm4175 = vcmp.gt.f32.partialorder %v3989, 20.0
      %vm4176 = vcmp.gt.f32.partialorder %v4038, 20.0
      %vm4177 = vcmp.gt.f32.partialorder %v4087, 20.0
      %vm4178 = vcmp.gt.f32.partialorder %v3992, 20.0
      %vm4179 = vcmp.gt.f32.partialorder %v4041, 20.0
      %vm4180 = vcmp.gt.f32.partialorder %v4090, 20.0
      %vm4181 = vcmp.gt.f32.partialorder %v3994, 20.0
      %vm4182 = vcmp.gt.f32.partialorder %v4043, 20.0
      %vm4183 = vcmp.gt.f32.partialorder %v4092, 20.0
      %vm4184 = vcmp.gt.f32.partialorder %v3997, 20.0
      %vm4185 = vcmp.gt.f32.partialorder %v4046, 20.0
      %vm4186 = vcmp.gt.f32.partialorder %v4095, 20.0
      %vm4187 = vcmp.gt.f32.partialorder %v3999, 20.0
      %vm4188 = vcmp.gt.f32.partialorder %v4048, 20.0
      %vm4189 = vcmp.gt.f32.partialorder %v4097, 20.0
      %vm4190 = vcmp.gt.f32.partialorder %v4002, 20.0
      %vm4191 = vcmp.gt.f32.partialorder %v4051, 20.0
      %vm4192 = vcmp.gt.f32.partialorder %v4100, 20.0
      %vm4193 = vcmp.gt.f32.partialorder %v4004, 20.0
      %vm4194 = vcmp.gt.f32.partialorder %v4053, 20.0
      %vm4195 = vcmp.gt.f32.partialorder %v4102, 20.0
      %vm4196 = vcmp.gt.f32.partialorder %v4007, 20.0
      %vm4197 = vcmp.gt.f32.partialorder %v4056, 20.0
      %vm4198 = vcmp.gt.f32.partialorder %v4105, 20.0
      %vm4199 = vcmp.gt.f32.partialorder %v4009, 20.0
      %vm4200 = vcmp.gt.f32.partialorder %v4058, 20.0
      %vm4201 = vcmp.gt.f32.partialorder %v4107, 20.0
      %vm4202 = vcmp.gt.f32.partialorder %v4012, 20.0
      %vm4203 = vcmp.gt.f32.partialorder %v4061, 20.0
      %vm4204 = vcmp.gt.f32.partialorder %v4110, 20.0
      %vm4205 = vcmp.gt.f32.partialorder %v4014, 20.0
      %vm4206 = vcmp.gt.f32.partialorder %v4063, 20.0
      %vm4207 = vcmp.gt.f32.partialorder %v4112, 20.0
      %vm4208 = vcmp.gt.f32.partialorder %v4017, 20.0
      %vm4209 = vcmp.gt.f32.partialorder %v4066, 20.0
      %vm4210 = vcmp.gt.f32.partialorder %v4115, 20.0
      %vm4211 = vcmp.gt.f32.partialorder %v4019, 20.0
      %vm4212 = vcmp.gt.f32.partialorder %v4068, 20.0
      %vm4213 = vcmp.gt.f32.partialorder %v4117, 20.0
      %vm4214 = vcmp.gt.f32.partialorder %v4022, 20.0
      %vm4215 = vcmp.gt.f32.partialorder %v4071, 20.0
      %vm4216 = vcmp.gt.f32.partialorder %v4120, 20.0
      %vm4217 = vcmp.gt.f32.partialorder %v4024, 20.0
      %vm4218 = vcmp.gt.f32.partialorder %v4073, 20.0
      %vm4219 = vcmp.gt.f32.partialorder %v4122, 20.0
      %v4220 = vmul.f32 %v4124, 1.442695
      %v4221 = vpow.pop %v4220
      %v4222 = vmul.f32 %v4125, 1.442695
      %v4223 = vpow.pop %v4222
      %v4224 = vmul.f32 %v4126, 1.442695
      %v4225 = vpow.pop %v4224
      %v4226 = vmul.f32 %v4127, 1.442695
      %v4227 = vpow.pop %v4226
      %v4228 = vmul.f32 %v4128, 1.442695
      %v4229 = vpow.pop %v4228
      %v4230 = vmul.f32 %v4129, 1.442695
      %v4231 = vpow.pop %v4230
      %v4232 = vmul.f32 %v4130, 1.442695
      %v4233 = vpow.pop %v4232
      %v4234 = vmul.f32 %v4131, 1.442695
      %v4235 = vpow.pop %v4234
      %v4236 = vmul.f32 %v4132, 1.442695
      %v4237 = vpow.pop %v4236
      %v4238 = vmul.f32 %v4133, 1.442695
      %v4239 = vpow.pop %v4238
      %v4240 = vmul.f32 %v4134, 1.442695
      %v4241 = vpow.pop %v4240
      %v4242 = vmul.f32 %v4135, 1.442695
      %v4243 = vpow.pop %v4242
      %v4244 = vmul.f32 %v4136, 1.442695
      %v4245 = vpow.pop %v4244
      %v4246 = vmul.f32 %v4137, 1.442695
      %v4247 = vpow.pop %v4246
      %v4248 = vmul.f32 %v4138, 1.442695
      %v4249 = vpow.pop %v4248
      %v4250 = vmul.f32 %v4139, 1.442695
      %v4251 = vpow.pop %v4250
      %v4252 = vmul.f32 %v4140, 1.442695
      %v4253 = vpow.pop %v4252
      %v4254 = vmul.f32 %v4141, 1.442695
      %v4255 = vpow.pop %v4254
      %v4256 = vmul.f32 %v4142, 1.442695
      %v4257 = vpow.pop %v4256
      %v4258 = vmul.f32 %v4143, 1.442695
      %v4259 = vpow.pop %v4258
      %v4260 = vmul.f32 %v4144, 1.442695
      %v4261 = vpow.pop %v4260
      %v4262 = vmul.f32 %v4145, 1.442695
      %v4263 = vpow.pop %v4262
      %v4264 = vmul.f32 %v4146, 1.442695
      %v4265 = vpow.pop %v4264
      %v4266 = vmul.f32 %v4147, 1.442695
      %v4267 = vpow.pop %v4266
      %v4268 = vmul.f32 %v4148, 1.442695
      %v4269 = vpow.pop %v4268
      %v4270 = vmul.f32 %v4149, 1.442695
      %v4271 = vpow.pop %v4270
      %v4272 = vmul.f32 %v4150, 1.442695
      %v4273 = vpow.pop %v4272
      %v4274 = vmul.f32 %v4151, 1.442695
      %v4275 = vpow.pop %v4274
      %v4276 = vmul.f32 %v4152, 1.442695
      %v4277 = vpow.pop %v4276
      %v4278 = vmul.f32 %v4153, 1.442695
      %v4279 = vpow.pop %v4278
      %v4280 = vmul.f32 %v4154, 1.442695
      %v4281 = vpow.pop %v4280
      %v4282 = vmul.f32 %v4155, 1.442695
      %v4283 = vpow.pop %v4282
      %v4284 = vmul.f32 %v4156, 1.442695
      %v4285 = vpow.pop %v4284
      %v4286 = vmul.f32 %v4157, 1.442695
      %v4287 = vpow.pop %v4286
      %v4288 = vmul.f32 %v4158, 1.442695
      %v4289 = vpow.pop %v4288
      %v4290 = vmul.f32 %v4159, 1.442695
      %v4291 = vpow.pop %v4290
      %v4292 = vmul.f32 %v4160, 1.442695
      %v4293 = vpow.pop %v4292
      %v4294 = vmul.f32 %v4161, 1.442695
      %v4295 = vpow.pop %v4294
      %v4296 = vmul.f32 %v4162, 1.442695
      %v4297 = vpow.pop %v4296
      %v4298 = vmul.f32 %v4163, 1.442695
      %v4299 = vpow.pop %v4298
      %v4300 = vmul.f32 %v4164, 1.442695
      %v4301 = vpow.pop %v4300
      %v4302 = vmul.f32 %v4165, 1.442695
      %v4303 = vpow.pop %v4302
      %v4304 = vmul.f32 %v4166, 1.442695
      %v4305 = vpow.pop %v4304
      %v4306 = vmul.f32 %v4167, 1.442695
      %v4307 = vpow.pop %v4306
      %v4308 = vmul.f32 %v4168, 1.442695
      %v4309 = vpow.pop %v4308
      %v4310 = vmul.f32 %v4169, 1.442695
      %v4311 = vpow.pop %v4310
      %v4312 = vmul.f32 %v4170, 1.442695
      %v4313 = vpow.pop %v4312
      %v4314 = vmul.f32 %v4171, 1.442695
      %v4315 = vpow.pop %v4314
      %v4316 = vadd.f32 %v4221, 1.0
      %v4317 = vlog2.pop %v4316
      %v4318 = vmul.f32 %v4317, 0.6931472
      %v4319 = vmul.f32 -0.5, %v4221
      %v4320 = vadd.f32 %v4319, 1.0
      %v4321 = vmul.f32 %v4320, %v4221
      %v4322 = vand.u32 2147483647, %v4221
      %vm4323 = vcmp.lt.f32.partialorder %v4322, 0.0004427343
      %v4324 = vsel %vm4323, %v4321, %v4318
      %v4325 = vadd.f32 %v4223, 1.0
      %v4326 = vlog2.pop %v4325
      %v4327 = vmul.f32 %v4326, 0.6931472
      %v4328 = vmul.f32 -0.5, %v4223
      %v4329 = vadd.f32 %v4328, 1.0
      %v4330 = vmul.f32 %v4329, %v4223
      %v4331 = vand.u32 2147483647, %v4223
      %vm4332 = vcmp.lt.f32.partialorder %v4331, 0.0004427343
      %v4333 = vsel %vm4332, %v4330, %v4327
      %v4334 = vadd.f32 %v4225, 1.0
      %v4335 = vlog2.pop %v4334
      %v4336 = vmul.f32 %v4335, 0.6931472
      %v4337 = vmul.f32 -0.5, %v4225
      %v4338 = vadd.f32 %v4337, 1.0
      %v4339 = vmul.f32 %v4338, %v4225
      %v4340 = vand.u32 2147483647, %v4225
      %vm4341 = vcmp.lt.f32.partialorder %v4340, 0.0004427343
      %v4342 = vsel %vm4341, %v4339, %v4336
      %v4343 = vadd.f32 %v4227, 1.0
      %v4344 = vlog2.pop %v4343
      %v4345 = vmul.f32 %v4344, 0.6931472
      %v4346 = vmul.f32 -0.5, %v4227
      %v4347 = vadd.f32 %v4346, 1.0
      %v4348 = vmul.f32 %v4347, %v4227
      %v4349 = vand.u32 2147483647, %v4227
      %vm4350 = vcmp.lt.f32.partialorder %v4349, 0.0004427343
      %v4351 = vsel %vm4350, %v4348, %v4345
      %v4352 = vadd.f32 %v4229, 1.0
      %v4353 = vlog2.pop %v4352
      %v4354 = vmul.f32 %v4353, 0.6931472
      %v4355 = vmul.f32 -0.5, %v4229
      %v4356 = vadd.f32 %v4355, 1.0
      %v4357 = vmul.f32 %v4356, %v4229
      %v4358 = vand.u32 2147483647, %v4229
      %vm4359 = vcmp.lt.f32.partialorder %v4358, 0.0004427343
      %v4360 = vsel %vm4359, %v4357, %v4354
      %v4361 = vadd.f32 %v4231, 1.0
      %v4362 = vlog2.pop %v4361
      %v4363 = vmul.f32 %v4362, 0.6931472
      %v4364 = vmul.f32 -0.5, %v4231
      %v4365 = vadd.f32 %v4364, 1.0
      %v4366 = vmul.f32 %v4365, %v4231
      %v4367 = vand.u32 2147483647, %v4231
      %vm4368 = vcmp.lt.f32.partialorder %v4367, 0.0004427343
      %v4369 = vsel %vm4368, %v4366, %v4363
      %v4370 = vadd.f32 %v4233, 1.0
      %v4371 = vlog2.pop %v4370
      %v4372 = vmul.f32 %v4371, 0.6931472
      %v4373 = vmul.f32 -0.5, %v4233
      %v4374 = vadd.f32 %v4373, 1.0
      %v4375 = vmul.f32 %v4374, %v4233
      %v4376 = vand.u32 2147483647, %v4233
      %vm4377 = vcmp.lt.f32.partialorder %v4376, 0.0004427343
      %v4378 = vsel %vm4377, %v4375, %v4372
      %v4379 = vadd.f32 %v4235, 1.0
      %v4380 = vlog2.pop %v4379
      %v4381 = vmul.f32 %v4380, 0.6931472
      %v4382 = vmul.f32 -0.5, %v4235
      %v4383 = vadd.f32 %v4382, 1.0
      %v4384 = vmul.f32 %v4383, %v4235
      %v4385 = vand.u32 2147483647, %v4235
      %vm4386 = vcmp.lt.f32.partialorder %v4385, 0.0004427343
      %v4387 = vsel %vm4386, %v4384, %v4381
      %v4388 = vadd.f32 %v4237, 1.0
      %v4389 = vlog2.pop %v4388
      %v4390 = vmul.f32 %v4389, 0.6931472
      %v4391 = vmul.f32 -0.5, %v4237
      %v4392 = vadd.f32 %v4391, 1.0
      %v4393 = vmul.f32 %v4392, %v4237
      %v4394 = vand.u32 2147483647, %v4237
      %vm4395 = vcmp.lt.f32.partialorder %v4394, 0.0004427343
      %v4396 = vsel %vm4395, %v4393, %v4390
      %v4397 = vadd.f32 %v4239, 1.0
      %v4398 = vlog2.pop %v4397
      %v4399 = vmul.f32 %v4398, 0.6931472
      %v4400 = vmul.f32 -0.5, %v4239
      %v4401 = vadd.f32 %v4400, 1.0
      %v4402 = vmul.f32 %v4401, %v4239
      %v4403 = vand.u32 2147483647, %v4239
      %vm4404 = vcmp.lt.f32.partialorder %v4403, 0.0004427343
      %v4405 = vsel %vm4404, %v4402, %v4399
      %v4406 = vadd.f32 %v4241, 1.0
      %v4407 = vlog2.pop %v4406
      %v4408 = vmul.f32 %v4407, 0.6931472
      %v4409 = vmul.f32 -0.5, %v4241
      %v4410 = vadd.f32 %v4409, 1.0
      %v4411 = vmul.f32 %v4410, %v4241
      %v4412 = vand.u32 2147483647, %v4241
      %vm4413 = vcmp.lt.f32.partialorder %v4412, 0.0004427343
      %v4414 = vsel %vm4413, %v4411, %v4408
      %v4415 = vadd.f32 %v4243, 1.0
      %v4416 = vlog2.pop %v4415
      %v4417 = vmul.f32 %v4416, 0.6931472
      %v4418 = vmul.f32 -0.5, %v4243
      %v4419 = vadd.f32 %v4418, 1.0
      %v4420 = vmul.f32 %v4419, %v4243
      %v4421 = vand.u32 2147483647, %v4243
      %vm4422 = vcmp.lt.f32.partialorder %v4421, 0.0004427343
      %v4423 = vsel %vm4422, %v4420, %v4417
      %v4424 = vadd.f32 %v4245, 1.0
      %v4425 = vlog2.pop %v4424
      %v4426 = vmul.f32 %v4425, 0.6931472
      %v4427 = vmul.f32 -0.5, %v4245
      %v4428 = vadd.f32 %v4427, 1.0
      %v4429 = vmul.f32 %v4428, %v4245
      %v4430 = vand.u32 2147483647, %v4245
      %vm4431 = vcmp.lt.f32.partialorder %v4430, 0.0004427343
      %v4432 = vsel %vm4431, %v4429, %v4426
      %v4433 = vadd.f32 %v4247, 1.0
      %v4434 = vlog2.pop %v4433
      %v4435 = vmul.f32 %v4434, 0.6931472
      %v4436 = vmul.f32 -0.5, %v4247
      %v4437 = vadd.f32 %v4436, 1.0
      %v4438 = vmul.f32 %v4437, %v4247
      %v4439 = vand.u32 2147483647, %v4247
      %vm4440 = vcmp.lt.f32.partialorder %v4439, 0.0004427343
      %v4441 = vsel %vm4440, %v4438, %v4435
      %v4442 = vadd.f32 %v4249, 1.0
      %v4443 = vlog2.pop %v4442
      %v4444 = vmul.f32 %v4443, 0.6931472
      %v4445 = vmul.f32 -0.5, %v4249
      %v4446 = vadd.f32 %v4445, 1.0
      %v4447 = vmul.f32 %v4446, %v4249
      %v4448 = vand.u32 2147483647, %v4249
      %vm4449 = vcmp.lt.f32.partialorder %v4448, 0.0004427343
      %v4450 = vsel %vm4449, %v4447, %v4444
      %v4451 = vadd.f32 %v4251, 1.0
      %v4452 = vlog2.pop %v4451
      %v4453 = vmul.f32 %v4452, 0.6931472
      %v4454 = vmul.f32 -0.5, %v4251
      %v4455 = vadd.f32 %v4454, 1.0
      %v4456 = vmul.f32 %v4455, %v4251
      %v4457 = vand.u32 2147483647, %v4251
      %vm4458 = vcmp.lt.f32.partialorder %v4457, 0.0004427343
      %v4459 = vsel %vm4458, %v4456, %v4453
      %v4460 = vadd.f32 %v4253, 1.0
      %v4461 = vlog2.pop %v4460
      %v4462 = vmul.f32 %v4461, 0.6931472
      %v4463 = vmul.f32 -0.5, %v4253
      %v4464 = vadd.f32 %v4463, 1.0
      %v4465 = vmul.f32 %v4464, %v4253
      %v4466 = vand.u32 2147483647, %v4253
      %vm4467 = vcmp.lt.f32.partialorder %v4466, 0.0004427343
      %v4468 = vsel %vm4467, %v4465, %v4462
      %v4469 = vadd.f32 %v4255, 1.0
      %v4470 = vlog2.pop %v4469
      %v4471 = vmul.f32 %v4470, 0.6931472
      %v4472 = vmul.f32 -0.5, %v4255
      %v4473 = vadd.f32 %v4472, 1.0
      %v4474 = vmul.f32 %v4473, %v4255
      %v4475 = vand.u32 2147483647, %v4255
      %vm4476 = vcmp.lt.f32.partialorder %v4475, 0.0004427343
      %v4477 = vsel %vm4476, %v4474, %v4471
      %v4478 = vadd.f32 %v4257, 1.0
      %v4479 = vlog2.pop %v4478
      %v4480 = vmul.f32 %v4479, 0.6931472
      %v4481 = vmul.f32 -0.5, %v4257
      %v4482 = vadd.f32 %v4481, 1.0
      %v4483 = vmul.f32 %v4482, %v4257
      %v4484 = vand.u32 2147483647, %v4257
      %vm4485 = vcmp.lt.f32.partialorder %v4484, 0.0004427343
      %v4486 = vsel %vm4485, %v4483, %v4480
      %v4487 = vadd.f32 %v4259, 1.0
      %v4488 = vlog2.pop %v4487
      %v4489 = vmul.f32 %v4488, 0.6931472
      %v4490 = vmul.f32 -0.5, %v4259
      %v4491 = vadd.f32 %v4490, 1.0
      %v4492 = vmul.f32 %v4491, %v4259
      %v4493 = vand.u32 2147483647, %v4259
      %vm4494 = vcmp.lt.f32.partialorder %v4493, 0.0004427343
      %v4495 = vsel %vm4494, %v4492, %v4489
      %v4496 = vadd.f32 %v4261, 1.0
      %v4497 = vlog2.pop %v4496
      %v4498 = vmul.f32 %v4497, 0.6931472
      %v4499 = vmul.f32 -0.5, %v4261
      %v4500 = vadd.f32 %v4499, 1.0
      %v4501 = vmul.f32 %v4500, %v4261
      %v4502 = vand.u32 2147483647, %v4261
      %vm4503 = vcmp.lt.f32.partialorder %v4502, 0.0004427343
      %v4504 = vsel %vm4503, %v4501, %v4498
      %v4505 = vadd.f32 %v4263, 1.0
      %v4506 = vlog2.pop %v4505
      %v4507 = vmul.f32 %v4506, 0.6931472
      %v4508 = vmul.f32 -0.5, %v4263
      %v4509 = vadd.f32 %v4508, 1.0
      %v4510 = vmul.f32 %v4509, %v4263
      %v4511 = vand.u32 2147483647, %v4263
      %vm4512 = vcmp.lt.f32.partialorder %v4511, 0.0004427343
      %v4513 = vsel %vm4512, %v4510, %v4507
      %v4514 = vadd.f32 %v4265, 1.0
      %v4515 = vlog2.pop %v4514
      %v4516 = vmul.f32 %v4515, 0.6931472
      %v4517 = vmul.f32 -0.5, %v4265
      %v4518 = vadd.f32 %v4517, 1.0
      %v4519 = vmul.f32 %v4518, %v4265
      %v4520 = vand.u32 2147483647, %v4265
      %vm4521 = vcmp.lt.f32.partialorder %v4520, 0.0004427343
      %v4522 = vsel %vm4521, %v4519, %v4516
      %v4523 = vadd.f32 %v4267, 1.0
      %v4524 = vlog2.pop %v4523
      %v4525 = vmul.f32 %v4524, 0.6931472
      %v4526 = vmul.f32 -0.5, %v4267
      %v4527 = vadd.f32 %v4526, 1.0
      %v4528 = vmul.f32 %v4527, %v4267
      %v4529 = vand.u32 2147483647, %v4267
      %vm4530 = vcmp.lt.f32.partialorder %v4529, 0.0004427343
      %v4531 = vsel %vm4530, %v4528, %v4525
      %v4532 = vadd.f32 %v4269, 1.0
      %v4533 = vlog2.pop %v4532
      %v4534 = vmul.f32 %v4533, 0.6931472
      %v4535 = vmul.f32 -0.5, %v4269
      %v4536 = vadd.f32 %v4535, 1.0
      %v4537 = vmul.f32 %v4536, %v4269
      %v4538 = vand.u32 2147483647, %v4269
      %vm4539 = vcmp.lt.f32.partialorder %v4538, 0.0004427343
      %v4540 = vsel %vm4539, %v4537, %v4534
      %v4541 = vadd.f32 %v4271, 1.0
      %v4542 = vlog2.pop %v4541
      %v4543 = vmul.f32 %v4542, 0.6931472
      %v4544 = vmul.f32 -0.5, %v4271
      %v4545 = vadd.f32 %v4544, 1.0
      %v4546 = vmul.f32 %v4545, %v4271
      %v4547 = vand.u32 2147483647, %v4271
      %vm4548 = vcmp.lt.f32.partialorder %v4547, 0.0004427343
      %v4549 = vsel %vm4548, %v4546, %v4543
      %v4550 = vadd.f32 %v4273, 1.0
      %v4551 = vlog2.pop %v4550
      %v4552 = vmul.f32 %v4551, 0.6931472
      %v4553 = vmul.f32 -0.5, %v4273
      %v4554 = vadd.f32 %v4553, 1.0
      %v4555 = vmul.f32 %v4554, %v4273
      %v4556 = vand.u32 2147483647, %v4273
      %vm4557 = vcmp.lt.f32.partialorder %v4556, 0.0004427343
      %v4558 = vsel %vm4557, %v4555, %v4552
      %v4559 = vadd.f32 %v4275, 1.0
      %v4560 = vlog2.pop %v4559
      %v4561 = vmul.f32 %v4560, 0.6931472
      %v4562 = vmul.f32 -0.5, %v4275
      %v4563 = vadd.f32 %v4562, 1.0
      %v4564 = vmul.f32 %v4563, %v4275
      %v4565 = vand.u32 2147483647, %v4275
      %vm4566 = vcmp.lt.f32.partialorder %v4565, 0.0004427343
      %v4567 = vsel %vm4566, %v4564, %v4561
      %v4568 = vadd.f32 %v4277, 1.0
      %v4569 = vlog2.pop %v4568
      %v4570 = vmul.f32 %v4569, 0.6931472
      %v4571 = vmul.f32 -0.5, %v4277
      %v4572 = vadd.f32 %v4571, 1.0
      %v4573 = vmul.f32 %v4572, %v4277
      %v4574 = vand.u32 2147483647, %v4277
      %vm4575 = vcmp.lt.f32.partialorder %v4574, 0.0004427343
      %v4576 = vsel %vm4575, %v4573, %v4570
      %v4577 = vadd.f32 %v4279, 1.0
      %v4578 = vlog2.pop %v4577
      %v4579 = vmul.f32 %v4578, 0.6931472
      %v4580 = vmul.f32 -0.5, %v4279
      %v4581 = vadd.f32 %v4580, 1.0
      %v4582 = vmul.f32 %v4581, %v4279
      %v4583 = vand.u32 2147483647, %v4279
      %vm4584 = vcmp.lt.f32.partialorder %v4583, 0.0004427343
      %v4585 = vsel %vm4584, %v4582, %v4579
      %v4586 = vadd.f32 %v4281, 1.0
      %v4587 = vlog2.pop %v4586
      %v4588 = vmul.f32 %v4587, 0.6931472
      %v4589 = vmul.f32 -0.5, %v4281
      %v4590 = vadd.f32 %v4589, 1.0
      %v4591 = vmul.f32 %v4590, %v4281
      %v4592 = vand.u32 2147483647, %v4281
      %vm4593 = vcmp.lt.f32.partialorder %v4592, 0.0004427343
      %v4594 = vsel %vm4593, %v4591, %v4588
      %v4595 = vadd.f32 %v4283, 1.0
      %v4596 = vlog2.pop %v4595
      %v4597 = vmul.f32 %v4596, 0.6931472
      %v4598 = vmul.f32 -0.5, %v4283
      %v4599 = vadd.f32 %v4598, 1.0
      %v4600 = vmul.f32 %v4599, %v4283
      %v4601 = vand.u32 2147483647, %v4283
      %vm4602 = vcmp.lt.f32.partialorder %v4601, 0.0004427343
      %v4603 = vsel %vm4602, %v4600, %v4597
      %v4604 = vadd.f32 %v4285, 1.0
      %v4605 = vlog2.pop %v4604
      %v4606 = vmul.f32 %v4605, 0.6931472
      %v4607 = vmul.f32 -0.5, %v4285
      %v4608 = vadd.f32 %v4607, 1.0
      %v4609 = vmul.f32 %v4608, %v4285
      %v4610 = vand.u32 2147483647, %v4285
      %vm4611 = vcmp.lt.f32.partialorder %v4610, 0.0004427343
      %v4612 = vsel %vm4611, %v4609, %v4606
      %v4613 = vadd.f32 %v4287, 1.0
      %v4614 = vlog2.pop %v4613
      %v4615 = vmul.f32 %v4614, 0.6931472
      %v4616 = vmul.f32 -0.5, %v4287
      %v4617 = vadd.f32 %v4616, 1.0
      %v4618 = vmul.f32 %v4617, %v4287
      %v4619 = vand.u32 2147483647, %v4287
      %vm4620 = vcmp.lt.f32.partialorder %v4619, 0.0004427343
      %v4621 = vsel %vm4620, %v4618, %v4615
      %v4622 = vadd.f32 %v4289, 1.0
      %v4623 = vlog2.pop %v4622
      %v4624 = vmul.f32 %v4623, 0.6931472
      %v4625 = vmul.f32 -0.5, %v4289
      %v4626 = vadd.f32 %v4625, 1.0
      %v4627 = vmul.f32 %v4626, %v4289
      %v4628 = vand.u32 2147483647, %v4289
      %vm4629 = vcmp.lt.f32.partialorder %v4628, 0.0004427343
      %v4630 = vsel %vm4629, %v4627, %v4624
      %v4631 = vadd.f32 %v4291, 1.0
      %v4632 = vlog2.pop %v4631
      %v4633 = vmul.f32 %v4632, 0.6931472
      %v4634 = vmul.f32 -0.5, %v4291
      %v4635 = vadd.f32 %v4634, 1.0
      %v4636 = vmul.f32 %v4635, %v4291
      %v4637 = vand.u32 2147483647, %v4291
      %vm4638 = vcmp.lt.f32.partialorder %v4637, 0.0004427343
      %v4639 = vsel %vm4638, %v4636, %v4633
      %v4640 = vadd.f32 %v4293, 1.0
      %v4641 = vlog2.pop %v4640
      %v4642 = vmul.f32 %v4641, 0.6931472
      %v4643 = vmul.f32 -0.5, %v4293
      %v4644 = vadd.f32 %v4643, 1.0
      %v4645 = vmul.f32 %v4644, %v4293
      %v4646 = vand.u32 2147483647, %v4293
      %vm4647 = vcmp.lt.f32.partialorder %v4646, 0.0004427343
      %v4648 = vsel %vm4647, %v4645, %v4642
      %v4649 = vadd.f32 %v4295, 1.0
      %v4650 = vlog2.pop %v4649
      %v4651 = vmul.f32 %v4650, 0.6931472
      %v4652 = vmul.f32 -0.5, %v4295
      %v4653 = vadd.f32 %v4652, 1.0
      %v4654 = vmul.f32 %v4653, %v4295
      %v4655 = vand.u32 2147483647, %v4295
      %vm4656 = vcmp.lt.f32.partialorder %v4655, 0.0004427343
      %v4657 = vsel %vm4656, %v4654, %v4651
      %v4658 = vadd.f32 %v4297, 1.0
      %v4659 = vlog2.pop %v4658
      %v4660 = vmul.f32 %v4659, 0.6931472
      %v4661 = vmul.f32 -0.5, %v4297
      %v4662 = vadd.f32 %v4661, 1.0
      %v4663 = vmul.f32 %v4662, %v4297
      %v4664 = vand.u32 2147483647, %v4297
      %vm4665 = vcmp.lt.f32.partialorder %v4664, 0.0004427343
      %v4666 = vsel %vm4665, %v4663, %v4660
      %v4667 = vadd.f32 %v4299, 1.0
      %v4668 = vlog2.pop %v4667
      %v4669 = vmul.f32 %v4668, 0.6931472
      %v4670 = vmul.f32 -0.5, %v4299
      %v4671 = vadd.f32 %v4670, 1.0
      %v4672 = vmul.f32 %v4671, %v4299
      %v4673 = vand.u32 2147483647, %v4299
      %vm4674 = vcmp.lt.f32.partialorder %v4673, 0.0004427343
      %v4675 = vsel %vm4674, %v4672, %v4669
      %v4676 = vadd.f32 %v4301, 1.0
      %v4677 = vlog2.pop %v4676
      %v4678 = vmul.f32 %v4677, 0.6931472
      %v4679 = vmul.f32 -0.5, %v4301
      %v4680 = vadd.f32 %v4679, 1.0
      %v4681 = vmul.f32 %v4680, %v4301
      %v4682 = vand.u32 2147483647, %v4301
      %vm4683 = vcmp.lt.f32.partialorder %v4682, 0.0004427343
      %v4684 = vsel %vm4683, %v4681, %v4678
      %v4685 = vadd.f32 %v4303, 1.0
      %v4686 = vlog2.pop %v4685
      %v4687 = vmul.f32 %v4686, 0.6931472
      %v4688 = vmul.f32 -0.5, %v4303
      %v4689 = vadd.f32 %v4688, 1.0
      %v4690 = vmul.f32 %v4689, %v4303
      %v4691 = vand.u32 2147483647, %v4303
      %vm4692 = vcmp.lt.f32.partialorder %v4691, 0.0004427343
      %v4693 = vsel %vm4692, %v4690, %v4687
      %v4694 = vadd.f32 %v4305, 1.0
      %v4695 = vlog2.pop %v4694
      %v4696 = vmul.f32 %v4695, 0.6931472
      %v4697 = vmul.f32 -0.5, %v4305
      %v4698 = vadd.f32 %v4697, 1.0
      %v4699 = vmul.f32 %v4698, %v4305
      %v4700 = vand.u32 2147483647, %v4305
      %vm4701 = vcmp.lt.f32.partialorder %v4700, 0.0004427343
      %v4702 = vsel %vm4701, %v4699, %v4696
      %v4703 = vadd.f32 %v4307, 1.0
      %v4704 = vlog2.pop %v4703
      %v4705 = vmul.f32 %v4704, 0.6931472
      %v4706 = vmul.f32 -0.5, %v4307
      %v4707 = vadd.f32 %v4706, 1.0
      %v4708 = vmul.f32 %v4707, %v4307
      %v4709 = vand.u32 2147483647, %v4307
      %vm4710 = vcmp.lt.f32.partialorder %v4709, 0.0004427343
      %v4711 = vsel %vm4710, %v4708, %v4705
      %v4712 = vadd.f32 %v4309, 1.0
      %v4713 = vlog2.pop %v4712
      %v4714 = vmul.f32 %v4713, 0.6931472
      %v4715 = vmul.f32 -0.5, %v4309
      %v4716 = vadd.f32 %v4715, 1.0
      %v4717 = vmul.f32 %v4716, %v4309
      %v4718 = vand.u32 2147483647, %v4309
      %vm4719 = vcmp.lt.f32.partialorder %v4718, 0.0004427343
      %v4720 = vsel %vm4719, %v4717, %v4714
      %v4721 = vadd.f32 %v4311, 1.0
      %v4722 = vlog2.pop %v4721
      %v4723 = vmul.f32 %v4722, 0.6931472
      %v4724 = vmul.f32 -0.5, %v4311
      %v4725 = vadd.f32 %v4724, 1.0
      %v4726 = vmul.f32 %v4725, %v4311
      %v4727 = vand.u32 2147483647, %v4311
      %vm4728 = vcmp.lt.f32.partialorder %v4727, 0.0004427343
      %v4729 = vsel %vm4728, %v4726, %v4723
      %v4730 = vadd.f32 %v4313, 1.0
      %v4731 = vlog2.pop %v4730
      %v4732 = vmul.f32 %v4731, 0.6931472
      %v4733 = vmul.f32 -0.5, %v4313
      %v4734 = vadd.f32 %v4733, 1.0
      %v4735 = vmul.f32 %v4734, %v4313
      %v4736 = vand.u32 2147483647, %v4313
      %vm4737 = vcmp.lt.f32.partialorder %v4736, 0.0004427343
      %v4738 = vsel %vm4737, %v4735, %v4732
      %v4739 = vadd.f32 %v4315, 1.0
      %v4740 = vlog2.pop %v4739
      %v4741 = vmul.f32 %v4740, 0.6931472
      %v4742 = vmul.f32 -0.5, %v4315
      %v4743 = vadd.f32 %v4742, 1.0
      %v4744 = vmul.f32 %v4743, %v4315
      %v4745 = vand.u32 2147483647, %v4315
      %vm4746 = vcmp.lt.f32.partialorder %v4745, 0.0004427343
      %v4747 = vsel %vm4746, %v4744, %v4741
      %v4748 = vsel %vm4172, %v3987, %v4324
      %v4749 = vsel %vm4173, %v4036, %v4333
      %v4750 = vsel %vm4174, %v4085, %v4342
      %v4751 = vsel %vm4175, %v3989, %v4351
      %v4752 = vsel %vm4176, %v4038, %v4360
      %v4753 = vsel %vm4177, %v4087, %v4369
      %v4754 = vsel %vm4178, %v3992, %v4378
      %v4755 = vsel %vm4179, %v4041, %v4387
      %v4756 = vsel %vm4180, %v4090, %v4396
      %v4757 = vsel %vm4181, %v3994, %v4405
      %v4758 = vsel %vm4182, %v4043, %v4414
      %v4759 = vsel %vm4183, %v4092, %v4423
      %v4760 = vsel %vm4184, %v3997, %v4432
      %v4761 = vsel %vm4185, %v4046, %v4441
      %v4762 = vsel %vm4186, %v4095, %v4450
      %v4763 = vsel %vm4187, %v3999, %v4459
      %v4764 = vsel %vm4188, %v4048, %v4468
      %v4765 = vsel %vm4189, %v4097, %v4477
      %v4766 = vsel %vm4190, %v4002, %v4486
      %v4767 = vsel %vm4191, %v4051, %v4495
      %v4768 = vsel %vm4192, %v4100, %v4504
      %v4769 = vsel %vm4193, %v4004, %v4513
      %v4770 = vsel %vm4194, %v4053, %v4522
      %v4771 = vsel %vm4195, %v4102, %v4531
      %v4772 = vsel %vm4196, %v4007, %v4540
      %v4773 = vsel %vm4197, %v4056, %v4549
      %v4774 = vsel %vm4198, %v4105, %v4558
      %v4775 = vsel %vm4199, %v4009, %v4567
      %v4776 = vsel %vm4200, %v4058, %v4576
      %v4777 = vsel %vm4201, %v4107, %v4585
      %v4778 = vsel %vm4202, %v4012, %v4594
      %v4779 = vsel %vm4203, %v4061, %v4603
      %v4780 = vsel %vm4204, %v4110, %v4612
      %v4781 = vsel %vm4205, %v4014, %v4621
      %v4782 = vsel %vm4206, %v4063, %v4630
      %v4783 = vsel %vm4207, %v4112, %v4639
      %v4784 = vsel %vm4208, %v4017, %v4648
      %v4785 = vsel %vm4209, %v4066, %v4657
      %v4786 = vsel %vm4210, %v4115, %v4666
      %v4787 = vsel %vm4211, %v4019, %v4675
      %v4788 = vsel %vm4212, %v4068, %v4684
      %v4789 = vsel %vm4213, %v4117, %v4693
      %v4790 = vsel %vm4214, %v4022, %v4702
      %v4791 = vsel %vm4215, %v4071, %v4711
      %v4792 = vsel %vm4216, %v4120, %v4720
      %v4793 = vsel %vm4217, %v4024, %v4729
      %v4794 = vsel %vm4218, %v4073, %v4738
      %v4795 = vsel %vm4219, %v4122, %v4747
      %v4796 = vpack.c.bf16 %v4751, %v4748
      %v4797 = vpack.c.bf16 %v4752, %v4749
      %v4798 = vpack.c.bf16 %v4753, %v4750
      %v4799 = vpack.c.bf16 %v4757, %v4754
      %v4800 = vpack.c.bf16 %v4758, %v4755
      %v4801 = vpack.c.bf16 %v4759, %v4756
      %v4802 = vpack.c.bf16 %v4763, %v4760
      %v4803 = vpack.c.bf16 %v4764, %v4761
      %v4804 = vpack.c.bf16 %v4765, %v4762
      %v4805 = vpack.c.bf16 %v4769, %v4766
      %v4806 = vpack.c.bf16 %v4770, %v4767
      %v4807 = vpack.c.bf16 %v4771, %v4768
      %v4808 = vpack.c.bf16 %v4775, %v4772
      %v4809 = vpack.c.bf16 %v4776, %v4773
      %v4810 = vpack.c.bf16 %v4777, %v4774
      %v4811 = vpack.c.bf16 %v4781, %v4778
      %v4812 = vpack.c.bf16 %v4782, %v4779
      %v4813 = vpack.c.bf16 %v4783, %v4780
      %v4814 = vpack.c.bf16 %v4787, %v4784
      %v4815 = vpack.c.bf16 %v4788, %v4785
      %v4816 = vpack.c.bf16 %v4789, %v4786
      %v4817 = vpack.c.bf16 %v4793, %v4790
      %v4818 = vpack.c.bf16 %v4794, %v4791
      %v4819 = vpack.c.bf16 %v4795, %v4792
      %v4820 = vld [vmem:[%s3] sm:$0xff]
      %v4821 = vld [vmem:[%s3 + $0x8] sm:$0xf]
      %v4822 = vld [vmem:[%s3 + $0xc] sm:$0xff]
      %v4823 = vld [vmem:[%s3 + $0x14] sm:$0xf]
      %v4824 = vld [vmem:[%s3 + $0x18] sm:$0xff]
      %v4825 = vld [vmem:[%s3 + $0x20] sm:$0xf]
      %v4826 = vld [vmem:[%s3 + $0x24] sm:$0xff]
      %v4827 = vld [vmem:[%s3 + $0x2c] sm:$0xf]
      %v4828 = vld [vmem:[%s3 + $0x30] sm:$0xff]
      %v4829 = vld [vmem:[%s3 + $0x38] sm:$0xf]
      %v4830 = vld [vmem:[%s3 + $0x3c] sm:$0xff]
      %v4831 = vld [vmem:[%s3 + $0x44] sm:$0xf]
      %v4832 = vld [vmem:[%s3 + $0x48] sm:$0xff]
      %v4833 = vld [vmem:[%s3 + $0x50] sm:$0xf]
      %v4834 = vld [vmem:[%s3 + $0x54] sm:$0xff]
      %v4835 = vld [vmem:[%s3 + $0x5c] sm:$0xf]
      %v4836 = vld [vmem:[%s3 + $0x60] sm:$0xff]
      %v4837 = vld [vmem:[%s3 + $0x68] sm:$0xf]
      %v4838 = vld [vmem:[%s3 + $0x6c] sm:$0xff]
      %v4839 = vld [vmem:[%s3 + $0x74] sm:$0xf]
      %v4840 = vld [vmem:[%s3 + $0x78] sm:$0xff]
      %v4841 = vld [vmem:[%s3 + $0x80] sm:$0xf]
      %v4842 = vld [vmem:[%s3 + $0x84] sm:$0xff]
      %v4843 = vld [vmem:[%s3 + $0x8c] sm:$0xf]
      %v4844 = vld [vmem:[%s3 + $0x90] sm:$0xff]
      %v4845 = vld [vmem:[%s3 + $0x98] sm:$0xf]
      %v4846 = vld [vmem:[%s3 + $0x9c] sm:$0xff]
      %v4847 = vld [vmem:[%s3 + $0xa4] sm:$0xf]
      %v4848 = vld [vmem:[%s3 + $0xa8] sm:$0xff]
      %v4849 = vld [vmem:[%s3 + $0xb0] sm:$0xf]
      %v4850 = vld [vmem:[%s3 + $0xb4] sm:$0xff]
      %v4851 = vld [vmem:[%s3 + $0xbc] sm:$0xf]
      %v4852 = vld [vmem:[%s3 + $0xc0] sm:$0xff]
      %v4853 = vld [vmem:[%s3 + $0xc8] sm:$0xf]
      %v4854 = vld [vmem:[%s3 + $0xcc] sm:$0xff]
      %v4855 = vld [vmem:[%s3 + $0xd4] sm:$0xf]
      %v4856 = vld [vmem:[%s3 + $0xd8] sm:$0xff]
      %v4857 = vld [vmem:[%s3 + $0xe0] sm:$0xf]
      %v4858 = vld [vmem:[%s3 + $0xe4] sm:$0xff]
      %v4859 = vld [vmem:[%s3 + $0xec] sm:$0xf]
      %v4860 = vld [vmem:[%s3 + $0xf0] sm:$0xff]
      %v4861 = vld [vmem:[%s3 + $0xf8] sm:$0xf]
      %v4862 = vld [vmem:[%s3 + $0xfc] sm:$0xff]
      %v4863 = vld [vmem:[%s3 + $0x104] sm:$0xf]
      %v4864 = vld [vmem:[%s3 + $0x108] sm:$0xff]
      %v4865 = vld [vmem:[%s3 + $0x110] sm:$0xf]
      %v4866 = vld [vmem:[%s3 + $0x114] sm:$0xff]
      %v4867 = vld [vmem:[%s3 + $0x11c] sm:$0xf]
      %v4868 = vld [vmem:[%s3 + $0x120] sm:$0xff]
      %v4869 = vld [vmem:[%s3 + $0x128] sm:$0xf]
      %v4870 = vld [vmem:[%s3 + $0x12c] sm:$0xff]
      %v4871 = vld [vmem:[%s3 + $0x134] sm:$0xf]
      %v4872 = vld [vmem:[%s3 + $0x138] sm:$0xff]
      %v4873 = vld [vmem:[%s3 + $0x140] sm:$0xf]
      %v4874 = vld [vmem:[%s3 + $0x144] sm:$0xff]
      %v4875 = vld [vmem:[%s3 + $0x14c] sm:$0xf]
      %v4876 = vld [vmem:[%s3 + $0x150] sm:$0xff]
      %v4877 = vld [vmem:[%s3 + $0x158] sm:$0xf]
      %v4878 = vld [vmem:[%s3 + $0x15c] sm:$0xff]
      %v4879 = vld [vmem:[%s3 + $0x164] sm:$0xf]
      %v4880 = vld [vmem:[%s3 + $0x168] sm:$0xff]
      %v4881 = vld [vmem:[%s3 + $0x170] sm:$0xf]
      %v4882 = vld [vmem:[%s3 + $0x174] sm:$0xff]
      %v4883 = vld [vmem:[%s3 + $0x17c] sm:$0xf]
      %v4884 = vld [vmem:[%s3 + $0x180] sm:$0xff]
      %v4885 = vld [vmem:[%s3 + $0x188] sm:$0xf]
      %v4886 = vld [vmem:[%s3 + $0x18c] sm:$0xff]
      %v4887 = vld [vmem:[%s3 + $0x194] sm:$0xf]
      %v4888 = vld [vmem:[%s3 + $0x198] sm:$0xff]
      %v4889 = vld [vmem:[%s3 + $0x1a0] sm:$0xf]
      %v4890 = vld [vmem:[%s3 + $0x1a4] sm:$0xff]
      %v4891 = vld [vmem:[%s3 + $0x1ac] sm:$0xf]
      %v4892 = vld [vmem:[%s3 + $0x1b0] sm:$0xff]
      %v4893 = vld [vmem:[%s3 + $0x1b8] sm:$0xf]
      %v4894 = vld [vmem:[%s3 + $0x1bc] sm:$0xff]
      %v4895 = vld [vmem:[%s3 + $0x1c4] sm:$0xf]
      %v4896 = vld [vmem:[%s3 + $0x1c8] sm:$0xff]
      %v4897 = vld [vmem:[%s3 + $0x1d0] sm:$0xf]
      %v4898 = vld [vmem:[%s3 + $0x1d4] sm:$0xff]
      %v4899 = vld [vmem:[%s3 + $0x1dc] sm:$0xf]
      %v4900 = vld [vmem:[%s3 + $0x1e0] sm:$0xff]
      %v4901 = vld [vmem:[%s3 + $0x1e8] sm:$0xf]
      %v4902 = vld [vmem:[%s3 + $0x1ec] sm:$0xff]
      %v4903 = vld [vmem:[%s3 + $0x1f4] sm:$0xf]
      %v4904 = vld [vmem:[%s3 + $0x1f8] sm:$0xff]
      %v4905 = vld [vmem:[%s3 + $0x200] sm:$0xf]
      %v4906 = vld [vmem:[%s3 + $0x204] sm:$0xff]
      %v4907 = vld [vmem:[%s3 + $0x20c] sm:$0xf]
      %v4908 = vld [vmem:[%s3 + $0x210] sm:$0xff]
      %v4909 = vld [vmem:[%s3 + $0x218] sm:$0xf]
      %v4910 = vld [vmem:[%s3 + $0x21c] sm:$0xff]
      %v4911 = vld [vmem:[%s3 + $0x224] sm:$0xf]
      %v4912 = vld [vmem:[%s3 + $0x228] sm:$0xff]
      %v4913 = vld [vmem:[%s3 + $0x230] sm:$0xf]
      %v4914 = vld [vmem:[%s3 + $0x234] sm:$0xff]
      %v4915 = vld [vmem:[%s3 + $0x23c] sm:$0xf]
      %v4916 = vld [vmem:[%s4] sm:$0x7]
      %v4918 = vperm.slane %v4916, 0
      %v4919 = vperm.slane %v4916, 1
      %v4920 = vperm.slane %v4916, 2
      %v5020 = vunpack.c.l.b16 %v4820
      %v5021 = vunpack.c.h.b16 %v4820
      %v5022 = vunpack.c.l.b16 %v4821
      %v5023 = vunpack.c.l.b16 %v4822
      %v5024 = vunpack.c.h.b16 %v4822
      %v5025 = vunpack.c.l.b16 %v4823
      %v5026 = vunpack.c.l.b16 %v4824
      %v5027 = vunpack.c.h.b16 %v4824
      %v5028 = vunpack.c.l.b16 %v4825
      %v5029 = vunpack.c.l.b16 %v4826
      %v5030 = vunpack.c.h.b16 %v4826
      %v5031 = vunpack.c.l.b16 %v4827
      %v5032 = vunpack.c.l.b16 %v4828
      %v5033 = vunpack.c.h.b16 %v4828
      %v5034 = vunpack.c.l.b16 %v4829
      %v5035 = vunpack.c.l.b16 %v4830
      %v5036 = vunpack.c.h.b16 %v4830
      %v5037 = vunpack.c.l.b16 %v4831
      %v5038 = vunpack.c.l.b16 %v4832
      %v5039 = vunpack.c.h.b16 %v4832
      %v5040 = vunpack.c.l.b16 %v4833
      %v5041 = vunpack.c.l.b16 %v4834
      %v5042 = vunpack.c.h.b16 %v4834
      %v5043 = vunpack.c.l.b16 %v4835
      %v5044 = vunpack.c.l.b16 %v4836
      %v5045 = vunpack.c.h.b16 %v4836
      %v5046 = vunpack.c.l.b16 %v4837
      %v5047 = vunpack.c.l.b16 %v4838
      %v5048 = vunpack.c.h.b16 %v4838
      %v5049 = vunpack.c.l.b16 %v4839
      %v5050 = vunpack.c.l.b16 %v4840
      %v5051 = vunpack.c.h.b16 %v4840
      %v5052 = vunpack.c.l.b16 %v4841
      %v5053 = vunpack.c.l.b16 %v4842
      %v5054 = vunpack.c.h.b16 %v4842
      %v5055 = vunpack.c.l.b16 %v4843
      %v5056 = vunpack.c.l.b16 %v4844
      %v5057 = vunpack.c.h.b16 %v4844
      %v5058 = vunpack.c.l.b16 %v4845
      %v5059 = vunpack.c.l.b16 %v4846
      %v5060 = vunpack.c.h.b16 %v4846
      %v5061 = vunpack.c.l.b16 %v4847
      %v5062 = vunpack.c.l.b16 %v4848
      %v5063 = vunpack.c.h.b16 %v4848
      %v5064 = vunpack.c.l.b16 %v4849
      %v5065 = vunpack.c.l.b16 %v4850
      %v5066 = vunpack.c.h.b16 %v4850
      %v5067 = vunpack.c.l.b16 %v4851
      %v5068 = vunpack.c.l.b16 %v4852
      %v5069 = vunpack.c.h.b16 %v4852
      %v5070 = vunpack.c.l.b16 %v4853
      %v5071 = vunpack.c.l.b16 %v4854
      %v5072 = vunpack.c.h.b16 %v4854
      %v5073 = vunpack.c.l.b16 %v4855
      %v5074 = vunpack.c.l.b16 %v4856
      %v5075 = vunpack.c.h.b16 %v4856
      %v5076 = vunpack.c.l.b16 %v4857
      %v5077 = vunpack.c.l.b16 %v4858
      %v5078 = vunpack.c.h.b16 %v4858
      %v5079 = vunpack.c.l.b16 %v4859
      %v5080 = vunpack.c.l.b16 %v4860
      %v5081 = vunpack.c.h.b16 %v4860
      %v5082 = vunpack.c.l.b16 %v4861
      %v5083 = vunpack.c.l.b16 %v4862
      %v5084 = vunpack.c.h.b16 %v4862
      %v5085 = vunpack.c.l.b16 %v4863
      %v5086 = vunpack.c.l.b16 %v4864
      %v5087 = vunpack.c.h.b16 %v4864
      %v5088 = vunpack.c.l.b16 %v4865
      %v5089 = vunpack.c.l.b16 %v4866
      %v5090 = vunpack.c.h.b16 %v4866
      %v5091 = vunpack.c.l.b16 %v4867
      %v5092 = vunpack.c.l.b16 %v4868
      %v5093 = vunpack.c.h.b16 %v4868
      %v5094 = vunpack.c.l.b16 %v4869
      %v5095 = vunpack.c.l.b16 %v4870
      %v5096 = vunpack.c.h.b16 %v4870
      %v5097 = vunpack.c.l.b16 %v4871
      %v5098 = vunpack.c.l.b16 %v4872
      %v5099 = vunpack.c.h.b16 %v4872
      %v5100 = vunpack.c.l.b16 %v4873
      %v5101 = vunpack.c.l.b16 %v4874
      %v5102 = vunpack.c.h.b16 %v4874
      %v5103 = vunpack.c.l.b16 %v4875
      %v5104 = vunpack.c.l.b16 %v4876
      %v5105 = vunpack.c.h.b16 %v4876
      %v5106 = vunpack.c.l.b16 %v4877
      %v5107 = vunpack.c.l.b16 %v4878
      %v5108 = vunpack.c.h.b16 %v4878
      %v5109 = vunpack.c.l.b16 %v4879
      %v5110 = vunpack.c.l.b16 %v4880
      %v5111 = vunpack.c.h.b16 %v4880
      %v5112 = vunpack.c.l.b16 %v4881
      %v5113 = vunpack.c.l.b16 %v4882
      %v5114 = vunpack.c.h.b16 %v4882
      %v5115 = vunpack.c.l.b16 %v4883
      %v5116 = vunpack.c.l.b16 %v4884
      %v5117 = vunpack.c.h.b16 %v4884
      %v5118 = vunpack.c.l.b16 %v4885
      %v5119 = vunpack.c.l.b16 %v4886
      %v5120 = vunpack.c.h.b16 %v4886
      %v5121 = vunpack.c.l.b16 %v4887
      %v5122 = vunpack.c.l.b16 %v4888
      %v5123 = vunpack.c.h.b16 %v4888
      %v5124 = vunpack.c.l.b16 %v4889
      %v5125 = vunpack.c.l.b16 %v4890
      %v5126 = vunpack.c.h.b16 %v4890
      %v5127 = vunpack.c.l.b16 %v4891
      %v5128 = vunpack.c.l.b16 %v4892
      %v5129 = vunpack.c.h.b16 %v4892
      %v5130 = vunpack.c.l.b16 %v4893
      %v5131 = vunpack.c.l.b16 %v4894
      %v5132 = vunpack.c.h.b16 %v4894
      %v5133 = vunpack.c.l.b16 %v4895
      %v5134 = vunpack.c.l.b16 %v4896
      %v5135 = vunpack.c.h.b16 %v4896
      %v5136 = vunpack.c.l.b16 %v4897
      %v5137 = vunpack.c.l.b16 %v4898
      %v5138 = vunpack.c.h.b16 %v4898
      %v5139 = vunpack.c.l.b16 %v4899
      %v5140 = vunpack.c.l.b16 %v4900
      %v5141 = vunpack.c.h.b16 %v4900
      %v5142 = vunpack.c.l.b16 %v4901
      %v5143 = vunpack.c.l.b16 %v4902
      %v5144 = vunpack.c.h.b16 %v4902
      %v5145 = vunpack.c.l.b16 %v4903
      %v5146 = vunpack.c.l.b16 %v4904
      %v5147 = vunpack.c.h.b16 %v4904
      %v5148 = vunpack.c.l.b16 %v4905
      %v5149 = vunpack.c.l.b16 %v4906
      %v5150 = vunpack.c.h.b16 %v4906
      %v5151 = vunpack.c.l.b16 %v4907
      %v5152 = vunpack.c.l.b16 %v4908
      %v5153 = vunpack.c.h.b16 %v4908
      %v5154 = vunpack.c.l.b16 %v4909
      %v5155 = vunpack.c.l.b16 %v4910
      %v5156 = vunpack.c.h.b16 %v4910
      %v5157 = vunpack.c.l.b16 %v4911
      %v5158 = vunpack.c.l.b16 %v4912
      %v5159 = vunpack.c.h.b16 %v4912
      %v5160 = vunpack.c.l.b16 %v4913
      %v5161 = vunpack.c.l.b16 %v4914
      %v5162 = vunpack.c.h.b16 %v4914
      %v5163 = vunpack.c.l.b16 %v4915
      %v5164 = vpack.c.b16 %v5023, %v5020
      %v5165 = vpack.c.b16 %v5024, %v5021
      %v5166 = vpack.c.b16 %v5025, %v5022
      %v5167 = vpack.c.b16 %v5029, %v5026
      %v5168 = vpack.c.b16 %v5030, %v5027
      %v5169 = vpack.c.b16 %v5031, %v5028
      %v5170 = vpack.c.b16 %v5035, %v5032
      %v5171 = vpack.c.b16 %v5036, %v5033
      %v5172 = vpack.c.b16 %v5037, %v5034
      %v5173 = vpack.c.b16 %v5041, %v5038
      %v5174 = vpack.c.b16 %v5042, %v5039
      %v5175 = vpack.c.b16 %v5043, %v5040
      %v5176 = vpack.c.b16 %v5047, %v5044
      %v5177 = vpack.c.b16 %v5048, %v5045
      %v5178 = vpack.c.b16 %v5049, %v5046
      %v5179 = vpack.c.b16 %v5053, %v5050
      %v5180 = vpack.c.b16 %v5054, %v5051
      %v5181 = vpack.c.b16 %v5055, %v5052
      %v5182 = vpack.c.b16 %v5059, %v5056
      %v5183 = vpack.c.b16 %v5060, %v5057
      %v5184 = vpack.c.b16 %v5061, %v5058
      %v5185 = vpack.c.b16 %v5065, %v5062
      %v5186 = vpack.c.b16 %v5066, %v5063
      %v5187 = vpack.c.b16 %v5067, %v5064
      %v5188 = vpack.c.b16 %v5071, %v5068
      %v5189 = vpack.c.b16 %v5072, %v5069
      %v5190 = vpack.c.b16 %v5073, %v5070
      %v5191 = vpack.c.b16 %v5077, %v5074
      %v5192 = vpack.c.b16 %v5078, %v5075
      %v5193 = vpack.c.b16 %v5079, %v5076
      %v5194 = vpack.c.b16 %v5083, %v5080
      %v5195 = vpack.c.b16 %v5084, %v5081
      %v5196 = vpack.c.b16 %v5085, %v5082
      %v5197 = vpack.c.b16 %v5089, %v5086
      %v5198 = vpack.c.b16 %v5090, %v5087
      %v5199 = vpack.c.b16 %v5091, %v5088
      %v5200 = vpack.c.b16 %v5095, %v5092
      %v5201 = vpack.c.b16 %v5096, %v5093
      %v5202 = vpack.c.b16 %v5097, %v5094
      %v5203 = vpack.c.b16 %v5101, %v5098
      %v5204 = vpack.c.b16 %v5102, %v5099
      %v5205 = vpack.c.b16 %v5103, %v5100
      %v5206 = vpack.c.b16 %v5107, %v5104
      %v5207 = vpack.c.b16 %v5108, %v5105
      %v5208 = vpack.c.b16 %v5109, %v5106
      %v5209 = vpack.c.b16 %v5113, %v5110
      %v5210 = vpack.c.b16 %v5114, %v5111
      %v5211 = vpack.c.b16 %v5115, %v5112
      %v5212 = vpack.c.b16 %v5119, %v5116
      %v5213 = vpack.c.b16 %v5120, %v5117
      %v5214 = vpack.c.b16 %v5121, %v5118
      %v5215 = vpack.c.b16 %v5125, %v5122
      %v5216 = vpack.c.b16 %v5126, %v5123
      %v5217 = vpack.c.b16 %v5127, %v5124
      %v5218 = vpack.c.b16 %v5131, %v5128
      %v5219 = vpack.c.b16 %v5132, %v5129
      %v5220 = vpack.c.b16 %v5133, %v5130
      %v5221 = vpack.c.b16 %v5137, %v5134
      %v5222 = vpack.c.b16 %v5138, %v5135
      %v5223 = vpack.c.b16 %v5139, %v5136
      %v5224 = vpack.c.b16 %v5143, %v5140
      %v5225 = vpack.c.b16 %v5144, %v5141
      %v5226 = vpack.c.b16 %v5145, %v5142
      %v5227 = vpack.c.b16 %v5149, %v5146
      %v5228 = vpack.c.b16 %v5150, %v5147
      %v5229 = vpack.c.b16 %v5151, %v5148
      %v5230 = vpack.c.b16 %v5155, %v5152
      %v5231 = vpack.c.b16 %v5156, %v5153
      %v5232 = vpack.c.b16 %v5157, %v5154
      %v5233 = vpack.c.b16 %v5161, %v5158
      %v5234 = vpack.c.b16 %v5162, %v5159
      %v5235 = vpack.c.b16 %v5163, %v5160
      %5308 = vmatpush.bf16.msra.mxu0 %v5185
      %5309 = vmatpush.bf16.msra.mxu0 %v5182
      %5310 = vmatpush.bf16.msra.mxu0 %v5179
      %5311 = vmatpush.bf16.msra.mxu0 %v5176
      %5312 = vmatpush.bf16.msra.mxu0 %v5173
      %5313 = vmatpush.bf16.msra.mxu0 %v5170
      %5314 = vmatpush.bf16.msra.mxu0 %v5167
      %5315 = vmatpush.bf16.msra.mxu0 %v5164
      %5316 = vmatmul.bf16.gmra.mxu0 %v4796
      %v5317 = vpop.f32.mrf.mxu0
      %v5318 = vadd.f32 %v4918, %v5317
      %v5319 = vpop.f32.mrf.mxu0
      %v5320 = vadd.f32 %v4918, %v5319
      %5321 = vmatmul.bf16.gmra.mxu0 %v4799
      %v5322 = vpop.f32.mrf.mxu0
      %v5323 = vadd.f32 %v4918, %v5322
      %v5324 = vpop.f32.mrf.mxu0
      %v5325 = vadd.f32 %v4918, %v5324
      %5326 = vmatmul.bf16.gmra.mxu0 %v4802
      %v5327 = vpop.f32.mrf.mxu0
      %v5328 = vadd.f32 %v4918, %v5327
      %v5329 = vpop.f32.mrf.mxu0
      %v5330 = vadd.f32 %v4918, %v5329
      %5331 = vmatmul.bf16.gmra.mxu0 %v4805
      %v5332 = vpop.f32.mrf.mxu0
      %v5333 = vadd.f32 %v4918, %v5332
      %v5334 = vpop.f32.mrf.mxu0
      %v5335 = vadd.f32 %v4918, %v5334
      %5336 = vmatmul.bf16.gmra.mxu0 %v4808
      %v5337 = vpop.f32.mrf.mxu0
      %v5338 = vadd.f32 %v4918, %v5337
      %v5339 = vpop.f32.mrf.mxu0
      %v5340 = vadd.f32 %v4918, %v5339
      %5341 = vmatmul.bf16.gmra.mxu0 %v4811
      %v5342 = vpop.f32.mrf.mxu0
      %v5343 = vadd.f32 %v4918, %v5342
      %v5344 = vpop.f32.mrf.mxu0
      %v5345 = vadd.f32 %v4918, %v5344
      %5346 = vmatmul.bf16.gmra.mxu0 %v4814
      %v5347 = vpop.f32.mrf.mxu0
      %v5348 = vadd.f32 %v4918, %v5347
      %v5349 = vpop.f32.mrf.mxu0
      %v5350 = vadd.f32 %v4918, %v5349
      %5351 = vmatmul.bf16.gmra.mxu0 %v4817
      %v5352 = vpop.f32.mrf.mxu0
      %v5353 = vadd.f32 %v4918, %v5352
      %v5354 = vpop.f32.mrf.mxu0
      %v5355 = vadd.f32 %v4918, %v5354
      %5356 = vdwg.mxu0
      %5357 = vmatpush.bf16.msra.mxu0 %v5209
      %5358 = vmatpush.bf16.msra.mxu0 %v5206
      %5359 = vmatpush.bf16.msra.mxu0 %v5203
      %5360 = vmatpush.bf16.msra.mxu0 %v5200
      %5361 = vmatpush.bf16.msra.mxu0 %v5197
      %5362 = vmatpush.bf16.msra.mxu0 %v5194
      %5363 = vmatpush.bf16.msra.mxu0 %v5191
      %5364 = vmatpush.bf16.msra.mxu0 %v5188
      %5365 = vmatmul.bf16.gmra.mxu0 %v4797
      %v5366 = vpop.f32.mrf.mxu0
      %v5367 = vadd.f32 %v5318, %v5366
      %v5368 = vpop.f32.mrf.mxu0
      %v5369 = vadd.f32 %v5320, %v5368
      %5370 = vmatmul.bf16.gmra.mxu0 %v4800
      %v5371 = vpop.f32.mrf.mxu0
      %v5372 = vadd.f32 %v5323, %v5371
      %v5373 = vpop.f32.mrf.mxu0
      %v5374 = vadd.f32 %v5325, %v5373
      %5375 = vmatmul.bf16.gmra.mxu0 %v4803
      %v5376 = vpop.f32.mrf.mxu0
      %v5377 = vadd.f32 %v5328, %v5376
      %v5378 = vpop.f32.mrf.mxu0
      %v5379 = vadd.f32 %v5330, %v5378
      %5380 = vmatmul.bf16.gmra.mxu0 %v4806
      %v5381 = vpop.f32.mrf.mxu0
      %v5382 = vadd.f32 %v5333, %v5381
      %v5383 = vpop.f32.mrf.mxu0
      %v5384 = vadd.f32 %v5335, %v5383
      %5385 = vmatmul.bf16.gmra.mxu0 %v4809
      %v5386 = vpop.f32.mrf.mxu0
      %v5387 = vadd.f32 %v5338, %v5386
      %v5388 = vpop.f32.mrf.mxu0
      %v5389 = vadd.f32 %v5340, %v5388
      %5390 = vmatmul.bf16.gmra.mxu0 %v4812
      %v5391 = vpop.f32.mrf.mxu0
      %v5392 = vadd.f32 %v5343, %v5391
      %v5393 = vpop.f32.mrf.mxu0
      %v5394 = vadd.f32 %v5345, %v5393
      %5395 = vmatmul.bf16.gmra.mxu0 %v4815
      %v5396 = vpop.f32.mrf.mxu0
      %v5397 = vadd.f32 %v5348, %v5396
      %v5398 = vpop.f32.mrf.mxu0
      %v5399 = vadd.f32 %v5350, %v5398
      %5400 = vmatmul.bf16.gmra.mxu0 %v4818
      %v5401 = vpop.f32.mrf.mxu0
      %v5402 = vadd.f32 %v5353, %v5401
      %v5403 = vpop.f32.mrf.mxu0
      %v5404 = vadd.f32 %v5355, %v5403
      %5405 = vdwg.mxu0
      %5406 = vmatpush.bf16.msra.mxu0 %v5233
      %5407 = vmatpush.bf16.msra.mxu0 %v5230
      %5408 = vmatpush.bf16.msra.mxu0 %v5227
      %5409 = vmatpush.bf16.msra.mxu0 %v5224
      %5410 = vmatpush.bf16.msra.mxu0 %v5221
      %5411 = vmatpush.bf16.msra.mxu0 %v5218
      %5412 = vmatpush.bf16.msra.mxu0 %v5215
      %5413 = vmatpush.bf16.msra.mxu0 %v5212
      %5414 = vmatmul.bf16.gmra.mxu0 %v4798
      %v5415 = vpop.f32.mrf.mxu0
      %v5416 = vadd.f32 %v5367, %v5415
      %v5417 = vpop.f32.mrf.mxu0
      %v5418 = vadd.f32 %v5369, %v5417
      %5419 = vmatmul.bf16.gmra.mxu0 %v4801
      %v5420 = vpop.f32.mrf.mxu0
      %v5421 = vadd.f32 %v5372, %v5420
      %v5422 = vpop.f32.mrf.mxu0
      %v5423 = vadd.f32 %v5374, %v5422
      %5424 = vmatmul.bf16.gmra.mxu0 %v4804
      %v5425 = vpop.f32.mrf.mxu0
      %v5426 = vadd.f32 %v5377, %v5425
      %v5427 = vpop.f32.mrf.mxu0
      %v5428 = vadd.f32 %v5379, %v5427
      %5429 = vmatmul.bf16.gmra.mxu0 %v4807
      %v5430 = vpop.f32.mrf.mxu0
      %v5431 = vadd.f32 %v5382, %v5430
      %v5432 = vpop.f32.mrf.mxu0
      %v5433 = vadd.f32 %v5384, %v5432
      %5434 = vmatmul.bf16.gmra.mxu0 %v4810
      %v5435 = vpop.f32.mrf.mxu0
      %v5436 = vadd.f32 %v5387, %v5435
      %v5437 = vpop.f32.mrf.mxu0
      %v5438 = vadd.f32 %v5389, %v5437
      %5439 = vmatmul.bf16.gmra.mxu0 %v4813
      %v5440 = vpop.f32.mrf.mxu0
      %v5441 = vadd.f32 %v5392, %v5440
      %v5442 = vpop.f32.mrf.mxu0
      %v5443 = vadd.f32 %v5394, %v5442
      %5444 = vmatmul.bf16.gmra.mxu0 %v4816
      %v5445 = vpop.f32.mrf.mxu0
      %v5446 = vadd.f32 %v5397, %v5445
      %v5447 = vpop.f32.mrf.mxu0
      %v5448 = vadd.f32 %v5399, %v5447
      %5449 = vmatmul.bf16.gmra.mxu0 %v4819
      %v5450 = vpop.f32.mrf.mxu0
      %v5451 = vadd.f32 %v5402, %v5450
      %v5452 = vpop.f32.mrf.mxu0
      %v5453 = vadd.f32 %v5404, %v5452
      %5454 = vdwg.mxu0
      %5455 = vmatpush.bf16.msra.mxu0 %v5186
      %5456 = vmatpush.bf16.msra.mxu0 %v5183
      %5457 = vmatpush.bf16.msra.mxu0 %v5180
      %5458 = vmatpush.bf16.msra.mxu0 %v5177
      %5459 = vmatpush.bf16.msra.mxu0 %v5174
      %5460 = vmatpush.bf16.msra.mxu0 %v5171
      %5461 = vmatpush.bf16.msra.mxu0 %v5168
      %5462 = vmatpush.bf16.msra.mxu0 %v5165
      %5463 = vmatmul.bf16.gmra.mxu0 %v4796
      %v5464 = vpop.f32.mrf.mxu0
      %v5465 = vadd.f32 %v4919, %v5464
      %v5466 = vpop.f32.mrf.mxu0
      %v5467 = vadd.f32 %v4919, %v5466
      %5468 = vmatmul.bf16.gmra.mxu0 %v4799
      %v5469 = vpop.f32.mrf.mxu0
      %v5470 = vadd.f32 %v4919, %v5469
      %v5471 = vpop.f32.mrf.mxu0
      %v5472 = vadd.f32 %v4919, %v5471
      %5473 = vmatmul.bf16.gmra.mxu0 %v4802
      %v5474 = vpop.f32.mrf.mxu0
      %v5475 = vadd.f32 %v4919, %v5474
      %v5476 = vpop.f32.mrf.mxu0
      %v5477 = vadd.f32 %v4919, %v5476
      %5478 = vmatmul.bf16.gmra.mxu0 %v4805
      %v5479 = vpop.f32.mrf.mxu0
      %v5480 = vadd.f32 %v4919, %v5479
      %v5481 = vpop.f32.mrf.mxu0
      %v5482 = vadd.f32 %v4919, %v5481
      %5483 = vmatmul.bf16.gmra.mxu0 %v4808
      %v5484 = vpop.f32.mrf.mxu0
      %v5485 = vadd.f32 %v4919, %v5484
      %v5486 = vpop.f32.mrf.mxu0
      %v5487 = vadd.f32 %v4919, %v5486
      %5488 = vmatmul.bf16.gmra.mxu0 %v4811
      %v5489 = vpop.f32.mrf.mxu0
      %v5490 = vadd.f32 %v4919, %v5489
      %v5491 = vpop.f32.mrf.mxu0
      %v5492 = vadd.f32 %v4919, %v5491
      %5493 = vmatmul.bf16.gmra.mxu0 %v4814
      %v5494 = vpop.f32.mrf.mxu0
      %v5495 = vadd.f32 %v4919, %v5494
      %v5496 = vpop.f32.mrf.mxu0
      %v5497 = vadd.f32 %v4919, %v5496
      %5498 = vmatmul.bf16.gmra.mxu0 %v4817
      %v5499 = vpop.f32.mrf.mxu0
      %v5500 = vadd.f32 %v4919, %v5499
      %v5501 = vpop.f32.mrf.mxu0
      %v5502 = vadd.f32 %v4919, %v5501
      %5503 = vdwg.mxu0
      %5504 = vmatpush.bf16.msra.mxu0 %v5210
      %5505 = vmatpush.bf16.msra.mxu0 %v5207
      %5506 = vmatpush.bf16.msra.mxu0 %v5204
      %5507 = vmatpush.bf16.msra.mxu0 %v5201
      %5508 = vmatpush.bf16.msra.mxu0 %v5198
      %5509 = vmatpush.bf16.msra.mxu0 %v5195
      %5510 = vmatpush.bf16.msra.mxu0 %v5192
      %5511 = vmatpush.bf16.msra.mxu0 %v5189
      %5512 = vmatmul.bf16.gmra.mxu0 %v4797
      %v5513 = vpop.f32.mrf.mxu0
      %v5514 = vadd.f32 %v5465, %v5513
      %v5515 = vpop.f32.mrf.mxu0
      %v5516 = vadd.f32 %v5467, %v5515
      %5517 = vmatmul.bf16.gmra.mxu0 %v4800
      %v5518 = vpop.f32.mrf.mxu0
      %v5519 = vadd.f32 %v5470, %v5518
      %v5520 = vpop.f32.mrf.mxu0
      %v5521 = vadd.f32 %v5472, %v5520
      %5522 = vmatmul.bf16.gmra.mxu0 %v4803
      %v5523 = vpop.f32.mrf.mxu0
      %v5524 = vadd.f32 %v5475, %v5523
      %v5525 = vpop.f32.mrf.mxu0
      %v5526 = vadd.f32 %v5477, %v5525
      %5527 = vmatmul.bf16.gmra.mxu0 %v4806
      %v5528 = vpop.f32.mrf.mxu0
      %v5529 = vadd.f32 %v5480, %v5528
      %v5530 = vpop.f32.mrf.mxu0
      %v5531 = vadd.f32 %v5482, %v5530
      %5532 = vmatmul.bf16.gmra.mxu0 %v4809
      %v5533 = vpop.f32.mrf.mxu0
      %v5534 = vadd.f32 %v5485, %v5533
      %v5535 = vpop.f32.mrf.mxu0
      %v5536 = vadd.f32 %v5487, %v5535
      %5537 = vmatmul.bf16.gmra.mxu0 %v4812
      %v5538 = vpop.f32.mrf.mxu0
      %v5539 = vadd.f32 %v5490, %v5538
      %v5540 = vpop.f32.mrf.mxu0
      %v5541 = vadd.f32 %v5492, %v5540
      %5542 = vmatmul.bf16.gmra.mxu0 %v4815
      %v5543 = vpop.f32.mrf.mxu0
      %v5544 = vadd.f32 %v5495, %v5543
      %v5545 = vpop.f32.mrf.mxu0
      %v5546 = vadd.f32 %v5497, %v5545
      %5547 = vmatmul.bf16.gmra.mxu0 %v4818
      %v5548 = vpop.f32.mrf.mxu0
      %v5549 = vadd.f32 %v5500, %v5548
      %v5550 = vpop.f32.mrf.mxu0
      %v5551 = vadd.f32 %v5502, %v5550
      %5552 = vdwg.mxu0
      %5553 = vmatpush.bf16.msra.mxu0 %v5234
      %5554 = vmatpush.bf16.msra.mxu0 %v5231
      %5555 = vmatpush.bf16.msra.mxu0 %v5228
      %5556 = vmatpush.bf16.msra.mxu0 %v5225
      %5557 = vmatpush.bf16.msra.mxu0 %v5222
      %5558 = vmatpush.bf16.msra.mxu0 %v5219
      %5559 = vmatpush.bf16.msra.mxu0 %v5216
      %5560 = vmatpush.bf16.msra.mxu0 %v5213
      %5561 = vmatmul.bf16.gmra.mxu0 %v4798
      %v5562 = vpop.f32.mrf.mxu0
      %v5563 = vadd.f32 %v5514, %v5562
      %v5564 = vpop.f32.mrf.mxu0
      %v5565 = vadd.f32 %v5516, %v5564
      %5566 = vmatmul.bf16.gmra.mxu0 %v4801
      %v5567 = vpop.f32.mrf.mxu0
      %v5568 = vadd.f32 %v5519, %v5567
      %v5569 = vpop.f32.mrf.mxu0
      %v5570 = vadd.f32 %v5521, %v5569
      %5571 = vmatmul.bf16.gmra.mxu0 %v4804
      %v5572 = vpop.f32.mrf.mxu0
      %v5573 = vadd.f32 %v5524, %v5572
      %v5574 = vpop.f32.mrf.mxu0
      %v5575 = vadd.f32 %v5526, %v5574
      %5576 = vmatmul.bf16.gmra.mxu0 %v4807
      %v5577 = vpop.f32.mrf.mxu0
      %v5578 = vadd.f32 %v5529, %v5577
      %v5579 = vpop.f32.mrf.mxu0
      %v5580 = vadd.f32 %v5531, %v5579
      %5581 = vmatmul.bf16.gmra.mxu0 %v4810
      %v5582 = vpop.f32.mrf.mxu0
      %v5583 = vadd.f32 %v5534, %v5582
      %v5584 = vpop.f32.mrf.mxu0
      %v5585 = vadd.f32 %v5536, %v5584
      %5586 = vmatmul.bf16.gmra.mxu0 %v4813
      %v5587 = vpop.f32.mrf.mxu0
      %v5588 = vadd.f32 %v5539, %v5587
      %v5589 = vpop.f32.mrf.mxu0
      %v5590 = vadd.f32 %v5541, %v5589
      %5591 = vmatmul.bf16.gmra.mxu0 %v4816
      %v5592 = vpop.f32.mrf.mxu0
      %v5593 = vadd.f32 %v5544, %v5592
      %v5594 = vpop.f32.mrf.mxu0
      %v5595 = vadd.f32 %v5546, %v5594
      %5596 = vmatmul.bf16.gmra.mxu0 %v4819
      %v5597 = vpop.f32.mrf.mxu0
      %v5598 = vadd.f32 %v5549, %v5597
      %v5599 = vpop.f32.mrf.mxu0
      %v5600 = vadd.f32 %v5551, %v5599
      %5601 = vdwg.mxu0
      %5602 = vmatpush.bf16.msra.mxu0 %v5187
      %5603 = vmatpush.bf16.msra.mxu0 %v5184
      %5604 = vmatpush.bf16.msra.mxu0 %v5181
      %5605 = vmatpush.bf16.msra.mxu0 %v5178
      %5606 = vmatpush.bf16.msra.mxu0 %v5175
      %5607 = vmatpush.bf16.msra.mxu0 %v5172
      %5608 = vmatpush.bf16.msra.mxu0 %v5169
      %5609 = vmatpush.bf16.msra.mxu0 %v5166
      %5610 = vmatmul.bf16.gmra.mxu0 %v4796
      %v5611 = vpop.f32.mrf.mxu0
      %v5612 = vadd.f32 %v4920, %v5611
      %v5613 = vpop.f32.mrf.mxu0
      %v5614 = vadd.f32 %v4920, %v5613
      %5615 = vmatmul.bf16.gmra.mxu0 %v4799
      %v5616 = vpop.f32.mrf.mxu0
      %v5617 = vadd.f32 %v4920, %v5616
      %v5618 = vpop.f32.mrf.mxu0
      %v5619 = vadd.f32 %v4920, %v5618
      %5620 = vmatmul.bf16.gmra.mxu0 %v4802
      %v5621 = vpop.f32.mrf.mxu0
      %v5622 = vadd.f32 %v4920, %v5621
      %v5623 = vpop.f32.mrf.mxu0
      %v5624 = vadd.f32 %v4920, %v5623
      %5625 = vmatmul.bf16.gmra.mxu0 %v4805
      %v5626 = vpop.f32.mrf.mxu0
      %v5627 = vadd.f32 %v4920, %v5626
      %v5628 = vpop.f32.mrf.mxu0
      %v5629 = vadd.f32 %v4920, %v5628
      %5630 = vmatmul.bf16.gmra.mxu0 %v4808
      %v5631 = vpop.f32.mrf.mxu0
      %v5632 = vadd.f32 %v4920, %v5631
      %v5633 = vpop.f32.mrf.mxu0
      %v5634 = vadd.f32 %v4920, %v5633
      %5635 = vmatmul.bf16.gmra.mxu0 %v4811
      %v5636 = vpop.f32.mrf.mxu0
      %v5637 = vadd.f32 %v4920, %v5636
      %v5638 = vpop.f32.mrf.mxu0
      %v5639 = vadd.f32 %v4920, %v5638
      %5640 = vmatmul.bf16.gmra.mxu0 %v4814
      %v5641 = vpop.f32.mrf.mxu0
      %v5642 = vadd.f32 %v4920, %v5641
      %v5643 = vpop.f32.mrf.mxu0
      %v5644 = vadd.f32 %v4920, %v5643
      %5645 = vmatmul.bf16.gmra.mxu0 %v4817
      %v5646 = vpop.f32.mrf.mxu0
      %v5647 = vadd.f32 %v4920, %v5646
      %v5648 = vpop.f32.mrf.mxu0
      %v5649 = vadd.f32 %v4920, %v5648
      %5650 = vdwg.mxu0
      %5651 = vmatpush.bf16.msra.mxu0 %v5211
      %5652 = vmatpush.bf16.msra.mxu0 %v5208
      %5653 = vmatpush.bf16.msra.mxu0 %v5205
      %5654 = vmatpush.bf16.msra.mxu0 %v5202
      %5655 = vmatpush.bf16.msra.mxu0 %v5199
      %5656 = vmatpush.bf16.msra.mxu0 %v5196
      %5657 = vmatpush.bf16.msra.mxu0 %v5193
      %5658 = vmatpush.bf16.msra.mxu0 %v5190
      %5659 = vmatmul.bf16.gmra.mxu0 %v4797
      %v5660 = vpop.f32.mrf.mxu0
      %v5661 = vadd.f32 %v5612, %v5660
      %v5662 = vpop.f32.mrf.mxu0
      %v5663 = vadd.f32 %v5614, %v5662
      %5664 = vmatmul.bf16.gmra.mxu0 %v4800
      %v5665 = vpop.f32.mrf.mxu0
      %v5666 = vadd.f32 %v5617, %v5665
      %v5667 = vpop.f32.mrf.mxu0
      %v5668 = vadd.f32 %v5619, %v5667
      %5669 = vmatmul.bf16.gmra.mxu0 %v4803
      %v5670 = vpop.f32.mrf.mxu0
      %v5671 = vadd.f32 %v5622, %v5670
      %v5672 = vpop.f32.mrf.mxu0
      %v5673 = vadd.f32 %v5624, %v5672
      %5674 = vmatmul.bf16.gmra.mxu0 %v4806
      %v5675 = vpop.f32.mrf.mxu0
      %v5676 = vadd.f32 %v5627, %v5675
      %v5677 = vpop.f32.mrf.mxu0
      %v5678 = vadd.f32 %v5629, %v5677
      %5679 = vmatmul.bf16.gmra.mxu0 %v4809
      %v5680 = vpop.f32.mrf.mxu0
      %v5681 = vadd.f32 %v5632, %v5680
      %v5682 = vpop.f32.mrf.mxu0
      %v5683 = vadd.f32 %v5634, %v5682
      %5684 = vmatmul.bf16.gmra.mxu0 %v4812
      %v5685 = vpop.f32.mrf.mxu0
      %v5686 = vadd.f32 %v5637, %v5685
      %v5687 = vpop.f32.mrf.mxu0
      %v5688 = vadd.f32 %v5639, %v5687
      %5689 = vmatmul.bf16.gmra.mxu0 %v4815
      %v5690 = vpop.f32.mrf.mxu0
      %v5691 = vadd.f32 %v5642, %v5690
      %v5692 = vpop.f32.mrf.mxu0
      %v5693 = vadd.f32 %v5644, %v5692
      %5694 = vmatmul.bf16.gmra.mxu0 %v4818
      %v5695 = vpop.f32.mrf.mxu0
      %v5696 = vadd.f32 %v5647, %v5695
      %v5697 = vpop.f32.mrf.mxu0
      %v5698 = vadd.f32 %v5649, %v5697
      %5699 = vdwg.mxu0
      %5700 = vmatpush.bf16.msra.mxu0 %v5235
      %5701 = vmatpush.bf16.msra.mxu0 %v5232
      %5702 = vmatpush.bf16.msra.mxu0 %v5229
      %5703 = vmatpush.bf16.msra.mxu0 %v5226
      %5704 = vmatpush.bf16.msra.mxu0 %v5223
      %5705 = vmatpush.bf16.msra.mxu0 %v5220
      %5706 = vmatpush.bf16.msra.mxu0 %v5217
      %5707 = vmatpush.bf16.msra.mxu0 %v5214
      %5708 = vmatmul.bf16.gmra.mxu0 %v4798
      %v5709 = vpop.f32.mrf.mxu0
      %v5710 = vadd.f32 %v5661, %v5709
      %v5711 = vpop.f32.mrf.mxu0
      %v5712 = vadd.f32 %v5663, %v5711
      %5713 = vmatmul.bf16.gmra.mxu0 %v4801
      %v5714 = vpop.f32.mrf.mxu0
      %v5715 = vadd.f32 %v5666, %v5714
      %v5716 = vpop.f32.mrf.mxu0
      %v5717 = vadd.f32 %v5668, %v5716
      %5718 = vmatmul.bf16.gmra.mxu0 %v4804
      %v5719 = vpop.f32.mrf.mxu0
      %v5720 = vadd.f32 %v5671, %v5719
      %v5721 = vpop.f32.mrf.mxu0
      %v5722 = vadd.f32 %v5673, %v5721
      %5723 = vmatmul.bf16.gmra.mxu0 %v4807
      %v5724 = vpop.f32.mrf.mxu0
      %v5725 = vadd.f32 %v5676, %v5724
      %v5726 = vpop.f32.mrf.mxu0
      %v5727 = vadd.f32 %v5678, %v5726
      %5728 = vmatmul.bf16.gmra.mxu0 %v4810
      %v5729 = vpop.f32.mrf.mxu0
      %v5730 = vadd.f32 %v5681, %v5729
      %v5731 = vpop.f32.mrf.mxu0
      %v5732 = vadd.f32 %v5683, %v5731
      %5733 = vmatmul.bf16.gmra.mxu0 %v4813
      %v5734 = vpop.f32.mrf.mxu0
      %v5735 = vadd.f32 %v5686, %v5734
      %v5736 = vpop.f32.mrf.mxu0
      %v5737 = vadd.f32 %v5688, %v5736
      %5738 = vmatmul.bf16.gmra.mxu0 %v4816
      %v5739 = vpop.f32.mrf.mxu0
      %v5740 = vadd.f32 %v5691, %v5739
      %v5741 = vpop.f32.mrf.mxu0
      %v5742 = vadd.f32 %v5693, %v5741
      %5743 = vmatmul.bf16.gmra.mxu0 %v4819
      %v5744 = vpop.f32.mrf.mxu0
      %v5745 = vadd.f32 %v5696, %v5744
      %v5746 = vpop.f32.mrf.mxu0
      %v5747 = vadd.f32 %v5698, %v5746
      %5748 = vdwg.mxu0
      %v5749 = vmin.f32 %v5416, 20.0
      %v5750 = vmin.f32 %v5563, 20.0
      %v5751 = vmin.f32 %v5710, 20.0
      %v5752 = vmin.f32 %v5418, 20.0
      %v5753 = vmin.f32 %v5565, 20.0
      %v5754 = vmin.f32 %v5712, 20.0
      %v5755 = vmin.f32 %v5421, 20.0
      %v5756 = vmin.f32 %v5568, 20.0
      %v5757 = vmin.f32 %v5715, 20.0
      %v5758 = vmin.f32 %v5423, 20.0
      %v5759 = vmin.f32 %v5570, 20.0
      %v5760 = vmin.f32 %v5717, 20.0
      %v5761 = vmin.f32 %v5426, 20.0
      %v5762 = vmin.f32 %v5573, 20.0
      %v5763 = vmin.f32 %v5720, 20.0
      %v5764 = vmin.f32 %v5428, 20.0
      %v5765 = vmin.f32 %v5575, 20.0
      %v5766 = vmin.f32 %v5722, 20.0
      %v5767 = vmin.f32 %v5431, 20.0
      %v5768 = vmin.f32 %v5578, 20.0
      %v5769 = vmin.f32 %v5725, 20.0
      %v5770 = vmin.f32 %v5433, 20.0
      %v5771 = vmin.f32 %v5580, 20.0
      %v5772 = vmin.f32 %v5727, 20.0
      %v5773 = vmin.f32 %v5436, 20.0
      %v5774 = vmin.f32 %v5583, 20.0
      %v5775 = vmin.f32 %v5730, 20.0
      %v5776 = vmin.f32 %v5438, 20.0
      %v5777 = vmin.f32 %v5585, 20.0
      %v5778 = vmin.f32 %v5732, 20.0
      %v5779 = vmin.f32 %v5441, 20.0
      %v5780 = vmin.f32 %v5588, 20.0
      %v5781 = vmin.f32 %v5735, 20.0
      %v5782 = vmin.f32 %v5443, 20.0
      %v5783 = vmin.f32 %v5590, 20.0
      %v5784 = vmin.f32 %v5737, 20.0
      %v5785 = vmin.f32 %v5446, 20.0
      %v5786 = vmin.f32 %v5593, 20.0
      %v5787 = vmin.f32 %v5740, 20.0
      %v5788 = vmin.f32 %v5448, 20.0
      %v5789 = vmin.f32 %v5595, 20.0
      %v5790 = vmin.f32 %v5742, 20.0
      %v5791 = vmin.f32 %v5451, 20.0
      %v5792 = vmin.f32 %v5598, 20.0
      %v5793 = vmin.f32 %v5745, 20.0
      %v5794 = vmin.f32 %v5453, 20.0
      %v5795 = vmin.f32 %v5600, 20.0
      %v5796 = vmin.f32 %v5747, 20.0
      %vm5797 = vcmp.gt.f32.partialorder %v5416, 20.0
      %vm5798 = vcmp.gt.f32.partialorder %v5563, 20.0
      %vm5799 = vcmp.gt.f32.partialorder %v5710, 20.0
      %vm5800 = vcmp.gt.f32.partialorder %v5418, 20.0
      %vm5801 = vcmp.gt.f32.partialorder %v5565, 20.0
      %vm5802 = vcmp.gt.f32.partialorder %v5712, 20.0
      %vm5803 = vcmp.gt.f32.partialorder %v5421, 20.0
      %vm5804 = vcmp.gt.f32.partialorder %v5568, 20.0
      %vm5805 = vcmp.gt.f32.partialorder %v5715, 20.0
      %vm5806 = vcmp.gt.f32.partialorder %v5423, 20.0
      %vm5807 = vcmp.gt.f32.partialorder %v5570, 20.0
      %vm5808 = vcmp.gt.f32.partialorder %v5717, 20.0
      %vm5809 = vcmp.gt.f32.partialorder %v5426, 20.0
      %vm5810 = vcmp.gt.f32.partialorder %v5573, 20.0
      %vm5811 = vcmp.gt.f32.partialorder %v5720, 20.0
      %vm5812 = vcmp.gt.f32.partialorder %v5428, 20.0
      %vm5813 = vcmp.gt.f32.partialorder %v5575, 20.0
      %vm5814 = vcmp.gt.f32.partialorder %v5722, 20.0
      %vm5815 = vcmp.gt.f32.partialorder %v5431, 20.0
      %vm5816 = vcmp.gt.f32.partialorder %v5578, 20.0
      %vm5817 = vcmp.gt.f32.partialorder %v5725, 20.0
      %vm5818 = vcmp.gt.f32.partialorder %v5433, 20.0
      %vm5819 = vcmp.gt.f32.partialorder %v5580, 20.0
      %vm5820 = vcmp.gt.f32.partialorder %v5727, 20.0
      %vm5821 = vcmp.gt.f32.partialorder %v5436, 20.0
      %vm5822 = vcmp.gt.f32.partialorder %v5583, 20.0
      %vm5823 = vcmp.gt.f32.partialorder %v5730, 20.0
      %vm5824 = vcmp.gt.f32.partialorder %v5438, 20.0
      %vm5825 = vcmp.gt.f32.partialorder %v5585, 20.0
      %vm5826 = vcmp.gt.f32.partialorder %v5732, 20.0
      %vm5827 = vcmp.gt.f32.partialorder %v5441, 20.0
      %vm5828 = vcmp.gt.f32.partialorder %v5588, 20.0
      %vm5829 = vcmp.gt.f32.partialorder %v5735, 20.0
      %vm5830 = vcmp.gt.f32.partialorder %v5443, 20.0
      %vm5831 = vcmp.gt.f32.partialorder %v5590, 20.0
      %vm5832 = vcmp.gt.f32.partialorder %v5737, 20.0
      %vm5833 = vcmp.gt.f32.partialorder %v5446, 20.0
      %vm5834 = vcmp.gt.f32.partialorder %v5593, 20.0
      %vm5835 = vcmp.gt.f32.partialorder %v5740, 20.0
      %vm5836 = vcmp.gt.f32.partialorder %v5448, 20.0
      %vm5837 = vcmp.gt.f32.partialorder %v5595, 20.0
      %vm5838 = vcmp.gt.f32.partialorder %v5742, 20.0
      %vm5839 = vcmp.gt.f32.partialorder %v5451, 20.0
      %vm5840 = vcmp.gt.f32.partialorder %v5598, 20.0
      %vm5841 = vcmp.gt.f32.partialorder %v5745, 20.0
      %vm5842 = vcmp.gt.f32.partialorder %v5453, 20.0
      %vm5843 = vcmp.gt.f32.partialorder %v5600, 20.0
      %vm5844 = vcmp.gt.f32.partialorder %v5747, 20.0
      %v5845 = vmul.f32 %v5749, 1.442695
      %v5846 = vpow.pop %v5845
      %v5847 = vmul.f32 %v5750, 1.442695
      %v5848 = vpow.pop %v5847
      %v5849 = vmul.f32 %v5751, 1.442695
      %v5850 = vpow.pop %v5849
      %v5851 = vmul.f32 %v5752, 1.442695
      %v5852 = vpow.pop %v5851
      %v5853 = vmul.f32 %v5753, 1.442695
      %v5854 = vpow.pop %v5853
      %v5855 = vmul.f32 %v5754, 1.442695
      %v5856 = vpow.pop %v5855
      %v5857 = vmul.f32 %v5755, 1.442695
      %v5858 = vpow.pop %v5857
      %v5859 = vmul.f32 %v5756, 1.442695
      %v5860 = vpow.pop %v5859
      %v5861 = vmul.f32 %v5757, 1.442695
      %v5862 = vpow.pop %v5861
      %v5863 = vmul.f32 %v5758, 1.442695
      %v5864 = vpow.pop %v5863
      %v5865 = vmul.f32 %v5759, 1.442695
      %v5866 = vpow.pop %v5865
      %v5867 = vmul.f32 %v5760, 1.442695
      %v5868 = vpow.pop %v5867
      %v5869 = vmul.f32 %v5761, 1.442695
      %v5870 = vpow.pop %v5869
      %v5871 = vmul.f32 %v5762, 1.442695
      %v5872 = vpow.pop %v5871
      %v5873 = vmul.f32 %v5763, 1.442695
      %v5874 = vpow.pop %v5873
      %v5875 = vmul.f32 %v5764, 1.442695
      %v5876 = vpow.pop %v5875
      %v5877 = vmul.f32 %v5765, 1.442695
      %v5878 = vpow.pop %v5877
      %v5879 = vmul.f32 %v5766, 1.442695
      %v5880 = vpow.pop %v5879
      %v5881 = vmul.f32 %v5767, 1.442695
      %v5882 = vpow.pop %v5881
      %v5883 = vmul.f32 %v5768, 1.442695
      %v5884 = vpow.pop %v5883
      %v5885 = vmul.f32 %v5769, 1.442695
      %v5886 = vpow.pop %v5885
      %v5887 = vmul.f32 %v5770, 1.442695
      %v5888 = vpow.pop %v5887
      %v5889 = vmul.f32 %v5771, 1.442695
      %v5890 = vpow.pop %v5889
      %v5891 = vmul.f32 %v5772, 1.442695
      %v5892 = vpow.pop %v5891
      %v5893 = vmul.f32 %v5773, 1.442695
      %v5894 = vpow.pop %v5893
      %v5895 = vmul.f32 %v5774, 1.442695
      %v5896 = vpow.pop %v5895
      %v5897 = vmul.f32 %v5775, 1.442695
      %v5898 = vpow.pop %v5897
      %v5899 = vmul.f32 %v5776, 1.442695
      %v5900 = vpow.pop %v5899
      %v5901 = vmul.f32 %v5777, 1.442695
      %v5902 = vpow.pop %v5901
      %v5903 = vmul.f32 %v5778, 1.442695
      %v5904 = vpow.pop %v5903
      %v5905 = vmul.f32 %v5779, 1.442695
      %v5906 = vpow.pop %v5905
      %v5907 = vmul.f32 %v5780, 1.442695
      %v5908 = vpow.pop %v5907
      %v5909 = vmul.f32 %v5781, 1.442695
      %v5910 = vpow.pop %v5909
      %v5911 = vmul.f32 %v5782, 1.442695
      %v5912 = vpow.pop %v5911
      %v5913 = vmul.f32 %v5783, 1.442695
      %v5914 = vpow.pop %v5913
      %v5915 = vmul.f32 %v5784, 1.442695
      %v5916 = vpow.pop %v5915
      %v5917 = vmul.f32 %v5785, 1.442695
      %v5918 = vpow.pop %v5917
      %v5919 = vmul.f32 %v5786, 1.442695
      %v5920 = vpow.pop %v5919
      %v5921 = vmul.f32 %v5787, 1.442695
      %v5922 = vpow.pop %v5921
      %v5923 = vmul.f32 %v5788, 1.442695
      %v5924 = vpow.pop %v5923
      %v5925 = vmul.f32 %v5789, 1.442695
      %v5926 = vpow.pop %v5925
      %v5927 = vmul.f32 %v5790, 1.442695
      %v5928 = vpow.pop %v5927
      %v5929 = vmul.f32 %v5791, 1.442695
      %v5930 = vpow.pop %v5929
      %v5931 = vmul.f32 %v5792, 1.442695
      %v5932 = vpow.pop %v5931
      %v5933 = vmul.f32 %v5793, 1.442695
      %v5934 = vpow.pop %v5933
      %v5935 = vmul.f32 %v5794, 1.442695
      %v5936 = vpow.pop %v5935
      %v5937 = vmul.f32 %v5795, 1.442695
      %v5938 = vpow.pop %v5937
      %v5939 = vmul.f32 %v5796, 1.442695
      %v5940 = vpow.pop %v5939
      %v5941 = vadd.f32 %v5846, 1.0
      %v5942 = vlog2.pop %v5941
      %v5943 = vmul.f32 %v5942, 0.6931472
      %v5944 = vmul.f32 -0.5, %v5846
      %v5945 = vadd.f32 %v5944, 1.0
      %v5946 = vmul.f32 %v5945, %v5846
      %v5947 = vand.u32 2147483647, %v5846
      %vm5948 = vcmp.lt.f32.partialorder %v5947, 0.0004427343
      %v5949 = vsel %vm5948, %v5946, %v5943
      %v5950 = vadd.f32 %v5848, 1.0
      %v5951 = vlog2.pop %v5950
      %v5952 = vmul.f32 %v5951, 0.6931472
      %v5953 = vmul.f32 -0.5, %v5848
      %v5954 = vadd.f32 %v5953, 1.0
      %v5955 = vmul.f32 %v5954, %v5848
      %v5956 = vand.u32 2147483647, %v5848
      %vm5957 = vcmp.lt.f32.partialorder %v5956, 0.0004427343
      %v5958 = vsel %vm5957, %v5955, %v5952
      %v5959 = vadd.f32 %v5850, 1.0
      %v5960 = vlog2.pop %v5959
      %v5961 = vmul.f32 %v5960, 0.6931472
      %v5962 = vmul.f32 -0.5, %v5850
      %v5963 = vadd.f32 %v5962, 1.0
      %v5964 = vmul.f32 %v5963, %v5850
      %v5965 = vand.u32 2147483647, %v5850
      %vm5966 = vcmp.lt.f32.partialorder %v5965, 0.0004427343
      %v5967 = vsel %vm5966, %v5964, %v5961
      %v5968 = vadd.f32 %v5852, 1.0
      %v5969 = vlog2.pop %v5968
      %v5970 = vmul.f32 %v5969, 0.6931472
      %v5971 = vmul.f32 -0.5, %v5852
      %v5972 = vadd.f32 %v5971, 1.0
      %v5973 = vmul.f32 %v5972, %v5852
      %v5974 = vand.u32 2147483647, %v5852
      %vm5975 = vcmp.lt.f32.partialorder %v5974, 0.0004427343
      %v5976 = vsel %vm5975, %v5973, %v5970
      %v5977 = vadd.f32 %v5854, 1.0
      %v5978 = vlog2.pop %v5977
      %v5979 = vmul.f32 %v5978, 0.6931472
      %v5980 = vmul.f32 -0.5, %v5854
      %v5981 = vadd.f32 %v5980, 1.0
      %v5982 = vmul.f32 %v5981, %v5854
      %v5983 = vand.u32 2147483647, %v5854
      %vm5984 = vcmp.lt.f32.partialorder %v5983, 0.0004427343
      %v5985 = vsel %vm5984, %v5982, %v5979
      %v5986 = vadd.f32 %v5856, 1.0
      %v5987 = vlog2.pop %v5986
      %v5988 = vmul.f32 %v5987, 0.6931472
      %v5989 = vmul.f32 -0.5, %v5856
      %v5990 = vadd.f32 %v5989, 1.0
      %v5991 = vmul.f32 %v5990, %v5856
      %v5992 = vand.u32 2147483647, %v5856
      %vm5993 = vcmp.lt.f32.partialorder %v5992, 0.0004427343
      %v5994 = vsel %vm5993, %v5991, %v5988
      %v5995 = vadd.f32 %v5858, 1.0
      %v5996 = vlog2.pop %v5995
      %v5997 = vmul.f32 %v5996, 0.6931472
      %v5998 = vmul.f32 -0.5, %v5858
      %v5999 = vadd.f32 %v5998, 1.0
      %v6000 = vmul.f32 %v5999, %v5858
      %v6001 = vand.u32 2147483647, %v5858
      %vm6002 = vcmp.lt.f32.partialorder %v6001, 0.0004427343
      %v6003 = vsel %vm6002, %v6000, %v5997
      %v6004 = vadd.f32 %v5860, 1.0
      %v6005 = vlog2.pop %v6004
      %v6006 = vmul.f32 %v6005, 0.6931472
      %v6007 = vmul.f32 -0.5, %v5860
      %v6008 = vadd.f32 %v6007, 1.0
      %v6009 = vmul.f32 %v6008, %v5860
      %v6010 = vand.u32 2147483647, %v5860
      %vm6011 = vcmp.lt.f32.partialorder %v6010, 0.0004427343
      %v6012 = vsel %vm6011, %v6009, %v6006
      %v6013 = vadd.f32 %v5862, 1.0
      %v6014 = vlog2.pop %v6013
      %v6015 = vmul.f32 %v6014, 0.6931472
      %v6016 = vmul.f32 -0.5, %v5862
      %v6017 = vadd.f32 %v6016, 1.0
      %v6018 = vmul.f32 %v6017, %v5862
      %v6019 = vand.u32 2147483647, %v5862
      %vm6020 = vcmp.lt.f32.partialorder %v6019, 0.0004427343
      %v6021 = vsel %vm6020, %v6018, %v6015
      %v6022 = vadd.f32 %v5864, 1.0
      %v6023 = vlog2.pop %v6022
      %v6024 = vmul.f32 %v6023, 0.6931472
      %v6025 = vmul.f32 -0.5, %v5864
      %v6026 = vadd.f32 %v6025, 1.0
      %v6027 = vmul.f32 %v6026, %v5864
      %v6028 = vand.u32 2147483647, %v5864
      %vm6029 = vcmp.lt.f32.partialorder %v6028, 0.0004427343
      %v6030 = vsel %vm6029, %v6027, %v6024
      %v6031 = vadd.f32 %v5866, 1.0
      %v6032 = vlog2.pop %v6031
      %v6033 = vmul.f32 %v6032, 0.6931472
      %v6034 = vmul.f32 -0.5, %v5866
      %v6035 = vadd.f32 %v6034, 1.0
      %v6036 = vmul.f32 %v6035, %v5866
      %v6037 = vand.u32 2147483647, %v5866
      %vm6038 = vcmp.lt.f32.partialorder %v6037, 0.0004427343
      %v6039 = vsel %vm6038, %v6036, %v6033
      %v6040 = vadd.f32 %v5868, 1.0
      %v6041 = vlog2.pop %v6040
      %v6042 = vmul.f32 %v6041, 0.6931472
      %v6043 = vmul.f32 -0.5, %v5868
      %v6044 = vadd.f32 %v6043, 1.0
      %v6045 = vmul.f32 %v6044, %v5868
      %v6046 = vand.u32 2147483647, %v5868
      %vm6047 = vcmp.lt.f32.partialorder %v6046, 0.0004427343
      %v6048 = vsel %vm6047, %v6045, %v6042
      %v6049 = vadd.f32 %v5870, 1.0
      %v6050 = vlog2.pop %v6049
      %v6051 = vmul.f32 %v6050, 0.6931472
      %v6052 = vmul.f32 -0.5, %v5870
      %v6053 = vadd.f32 %v6052, 1.0
      %v6054 = vmul.f32 %v6053, %v5870
      %v6055 = vand.u32 2147483647, %v5870
      %vm6056 = vcmp.lt.f32.partialorder %v6055, 0.0004427343
      %v6057 = vsel %vm6056, %v6054, %v6051
      %v6058 = vadd.f32 %v5872, 1.0
      %v6059 = vlog2.pop %v6058
      %v6060 = vmul.f32 %v6059, 0.6931472
      %v6061 = vmul.f32 -0.5, %v5872
      %v6062 = vadd.f32 %v6061, 1.0
      %v6063 = vmul.f32 %v6062, %v5872
      %v6064 = vand.u32 2147483647, %v5872
      %vm6065 = vcmp.lt.f32.partialorder %v6064, 0.0004427343
      %v6066 = vsel %vm6065, %v6063, %v6060
      %v6067 = vadd.f32 %v5874, 1.0
      %v6068 = vlog2.pop %v6067
      %v6069 = vmul.f32 %v6068, 0.6931472
      %v6070 = vmul.f32 -0.5, %v5874
      %v6071 = vadd.f32 %v6070, 1.0
      %v6072 = vmul.f32 %v6071, %v5874
      %v6073 = vand.u32 2147483647, %v5874
      %vm6074 = vcmp.lt.f32.partialorder %v6073, 0.0004427343
      %v6075 = vsel %vm6074, %v6072, %v6069
      %v6076 = vadd.f32 %v5876, 1.0
      %v6077 = vlog2.pop %v6076
      %v6078 = vmul.f32 %v6077, 0.6931472
      %v6079 = vmul.f32 -0.5, %v5876
      %v6080 = vadd.f32 %v6079, 1.0
      %v6081 = vmul.f32 %v6080, %v5876
      %v6082 = vand.u32 2147483647, %v5876
      %vm6083 = vcmp.lt.f32.partialorder %v6082, 0.0004427343
      %v6084 = vsel %vm6083, %v6081, %v6078
      %v6085 = vadd.f32 %v5878, 1.0
      %v6086 = vlog2.pop %v6085
      %v6087 = vmul.f32 %v6086, 0.6931472
      %v6088 = vmul.f32 -0.5, %v5878
      %v6089 = vadd.f32 %v6088, 1.0
      %v6090 = vmul.f32 %v6089, %v5878
      %v6091 = vand.u32 2147483647, %v5878
      %vm6092 = vcmp.lt.f32.partialorder %v6091, 0.0004427343
      %v6093 = vsel %vm6092, %v6090, %v6087
      %v6094 = vadd.f32 %v5880, 1.0
      %v6095 = vlog2.pop %v6094
      %v6096 = vmul.f32 %v6095, 0.6931472
      %v6097 = vmul.f32 -0.5, %v5880
      %v6098 = vadd.f32 %v6097, 1.0
      %v6099 = vmul.f32 %v6098, %v5880
      %v6100 = vand.u32 2147483647, %v5880
      %vm6101 = vcmp.lt.f32.partialorder %v6100, 0.0004427343
      %v6102 = vsel %vm6101, %v6099, %v6096
      %v6103 = vadd.f32 %v5882, 1.0
      %v6104 = vlog2.pop %v6103
      %v6105 = vmul.f32 %v6104, 0.6931472
      %v6106 = vmul.f32 -0.5, %v5882
      %v6107 = vadd.f32 %v6106, 1.0
      %v6108 = vmul.f32 %v6107, %v5882
      %v6109 = vand.u32 2147483647, %v5882
      %vm6110 = vcmp.lt.f32.partialorder %v6109, 0.0004427343
      %v6111 = vsel %vm6110, %v6108, %v6105
      %v6112 = vadd.f32 %v5884, 1.0
      %v6113 = vlog2.pop %v6112
      %v6114 = vmul.f32 %v6113, 0.6931472
      %v6115 = vmul.f32 -0.5, %v5884
      %v6116 = vadd.f32 %v6115, 1.0
      %v6117 = vmul.f32 %v6116, %v5884
      %v6118 = vand.u32 2147483647, %v5884
      %vm6119 = vcmp.lt.f32.partialorder %v6118, 0.0004427343
      %v6120 = vsel %vm6119, %v6117, %v6114
      %v6121 = vadd.f32 %v5886, 1.0
      %v6122 = vlog2.pop %v6121
      %v6123 = vmul.f32 %v6122, 0.6931472
      %v6124 = vmul.f32 -0.5, %v5886
      %v6125 = vadd.f32 %v6124, 1.0
      %v6126 = vmul.f32 %v6125, %v5886
      %v6127 = vand.u32 2147483647, %v5886
      %vm6128 = vcmp.lt.f32.partialorder %v6127, 0.0004427343
      %v6129 = vsel %vm6128, %v6126, %v6123
      %v6130 = vadd.f32 %v5888, 1.0
      %v6131 = vlog2.pop %v6130
      %v6132 = vmul.f32 %v6131, 0.6931472
      %v6133 = vmul.f32 -0.5, %v5888
      %v6134 = vadd.f32 %v6133, 1.0
      %v6135 = vmul.f32 %v6134, %v5888
      %v6136 = vand.u32 2147483647, %v5888
      %vm6137 = vcmp.lt.f32.partialorder %v6136, 0.0004427343
      %v6138 = vsel %vm6137, %v6135, %v6132
      %v6139 = vadd.f32 %v5890, 1.0
      %v6140 = vlog2.pop %v6139
      %v6141 = vmul.f32 %v6140, 0.6931472
      %v6142 = vmul.f32 -0.5, %v5890
      %v6143 = vadd.f32 %v6142, 1.0
      %v6144 = vmul.f32 %v6143, %v5890
      %v6145 = vand.u32 2147483647, %v5890
      %vm6146 = vcmp.lt.f32.partialorder %v6145, 0.0004427343
      %v6147 = vsel %vm6146, %v6144, %v6141
      %v6148 = vadd.f32 %v5892, 1.0
      %v6149 = vlog2.pop %v6148
      %v6150 = vmul.f32 %v6149, 0.6931472
      %v6151 = vmul.f32 -0.5, %v5892
      %v6152 = vadd.f32 %v6151, 1.0
      %v6153 = vmul.f32 %v6152, %v5892
      %v6154 = vand.u32 2147483647, %v5892
      %vm6155 = vcmp.lt.f32.partialorder %v6154, 0.0004427343
      %v6156 = vsel %vm6155, %v6153, %v6150
      %v6157 = vadd.f32 %v5894, 1.0
      %v6158 = vlog2.pop %v6157
      %v6159 = vmul.f32 %v6158, 0.6931472
      %v6160 = vmul.f32 -0.5, %v5894
      %v6161 = vadd.f32 %v6160, 1.0
      %v6162 = vmul.f32 %v6161, %v5894
      %v6163 = vand.u32 2147483647, %v5894
      %vm6164 = vcmp.lt.f32.partialorder %v6163, 0.0004427343
      %v6165 = vsel %vm6164, %v6162, %v6159
      %v6166 = vadd.f32 %v5896, 1.0
      %v6167 = vlog2.pop %v6166
      %v6168 = vmul.f32 %v6167, 0.6931472
      %v6169 = vmul.f32 -0.5, %v5896
      %v6170 = vadd.f32 %v6169, 1.0
      %v6171 = vmul.f32 %v6170, %v5896
      %v6172 = vand.u32 2147483647, %v5896
      %vm6173 = vcmp.lt.f32.partialorder %v6172, 0.0004427343
      %v6174 = vsel %vm6173, %v6171, %v6168
      %v6175 = vadd.f32 %v5898, 1.0
      %v6176 = vlog2.pop %v6175
      %v6177 = vmul.f32 %v6176, 0.6931472
      %v6178 = vmul.f32 -0.5, %v5898
      %v6179 = vadd.f32 %v6178, 1.0
      %v6180 = vmul.f32 %v6179, %v5898
      %v6181 = vand.u32 2147483647, %v5898
      %vm6182 = vcmp.lt.f32.partialorder %v6181, 0.0004427343
      %v6183 = vsel %vm6182, %v6180, %v6177
      %v6184 = vadd.f32 %v5900, 1.0
      %v6185 = vlog2.pop %v6184
      %v6186 = vmul.f32 %v6185, 0.6931472
      %v6187 = vmul.f32 -0.5, %v5900
      %v6188 = vadd.f32 %v6187, 1.0
      %v6189 = vmul.f32 %v6188, %v5900
      %v6190 = vand.u32 2147483647, %v5900
      %vm6191 = vcmp.lt.f32.partialorder %v6190, 0.0004427343
      %v6192 = vsel %vm6191, %v6189, %v6186
      %v6193 = vadd.f32 %v5902, 1.0
      %v6194 = vlog2.pop %v6193
      %v6195 = vmul.f32 %v6194, 0.6931472
      %v6196 = vmul.f32 -0.5, %v5902
      %v6197 = vadd.f32 %v6196, 1.0
      %v6198 = vmul.f32 %v6197, %v5902
      %v6199 = vand.u32 2147483647, %v5902
      %vm6200 = vcmp.lt.f32.partialorder %v6199, 0.0004427343
      %v6201 = vsel %vm6200, %v6198, %v6195
      %v6202 = vadd.f32 %v5904, 1.0
      %v6203 = vlog2.pop %v6202
      %v6204 = vmul.f32 %v6203, 0.6931472
      %v6205 = vmul.f32 -0.5, %v5904
      %v6206 = vadd.f32 %v6205, 1.0
      %v6207 = vmul.f32 %v6206, %v5904
      %v6208 = vand.u32 2147483647, %v5904
      %vm6209 = vcmp.lt.f32.partialorder %v6208, 0.0004427343
      %v6210 = vsel %vm6209, %v6207, %v6204
      %v6211 = vadd.f32 %v5906, 1.0
      %v6212 = vlog2.pop %v6211
      %v6213 = vmul.f32 %v6212, 0.6931472
      %v6214 = vmul.f32 -0.5, %v5906
      %v6215 = vadd.f32 %v6214, 1.0
      %v6216 = vmul.f32 %v6215, %v5906
      %v6217 = vand.u32 2147483647, %v5906
      %vm6218 = vcmp.lt.f32.partialorder %v6217, 0.0004427343
      %v6219 = vsel %vm6218, %v6216, %v6213
      %v6220 = vadd.f32 %v5908, 1.0
      %v6221 = vlog2.pop %v6220
      %v6222 = vmul.f32 %v6221, 0.6931472
      %v6223 = vmul.f32 -0.5, %v5908
      %v6224 = vadd.f32 %v6223, 1.0
      %v6225 = vmul.f32 %v6224, %v5908
      %v6226 = vand.u32 2147483647, %v5908
      %vm6227 = vcmp.lt.f32.partialorder %v6226, 0.0004427343
      %v6228 = vsel %vm6227, %v6225, %v6222
      %v6229 = vadd.f32 %v5910, 1.0
      %v6230 = vlog2.pop %v6229
      %v6231 = vmul.f32 %v6230, 0.6931472
      %v6232 = vmul.f32 -0.5, %v5910
      %v6233 = vadd.f32 %v6232, 1.0
      %v6234 = vmul.f32 %v6233, %v5910
      %v6235 = vand.u32 2147483647, %v5910
      %vm6236 = vcmp.lt.f32.partialorder %v6235, 0.0004427343
      %v6237 = vsel %vm6236, %v6234, %v6231
      %v6238 = vadd.f32 %v5912, 1.0
      %v6239 = vlog2.pop %v6238
      %v6240 = vmul.f32 %v6239, 0.6931472
      %v6241 = vmul.f32 -0.5, %v5912
      %v6242 = vadd.f32 %v6241, 1.0
      %v6243 = vmul.f32 %v6242, %v5912
      %v6244 = vand.u32 2147483647, %v5912
      %vm6245 = vcmp.lt.f32.partialorder %v6244, 0.0004427343
      %v6246 = vsel %vm6245, %v6243, %v6240
      %v6247 = vadd.f32 %v5914, 1.0
      %v6248 = vlog2.pop %v6247
      %v6249 = vmul.f32 %v6248, 0.6931472
      %v6250 = vmul.f32 -0.5, %v5914
      %v6251 = vadd.f32 %v6250, 1.0
      %v6252 = vmul.f32 %v6251, %v5914
      %v6253 = vand.u32 2147483647, %v5914
      %vm6254 = vcmp.lt.f32.partialorder %v6253, 0.0004427343
      %v6255 = vsel %vm6254, %v6252, %v6249
      %v6256 = vadd.f32 %v5916, 1.0
      %v6257 = vlog2.pop %v6256
      %v6258 = vmul.f32 %v6257, 0.6931472
      %v6259 = vmul.f32 -0.5, %v5916
      %v6260 = vadd.f32 %v6259, 1.0
      %v6261 = vmul.f32 %v6260, %v5916
      %v6262 = vand.u32 2147483647, %v5916
      %vm6263 = vcmp.lt.f32.partialorder %v6262, 0.0004427343
      %v6264 = vsel %vm6263, %v6261, %v6258
      %v6265 = vadd.f32 %v5918, 1.0
      %v6266 = vlog2.pop %v6265
      %v6267 = vmul.f32 %v6266, 0.6931472
      %v6268 = vmul.f32 -0.5, %v5918
      %v6269 = vadd.f32 %v6268, 1.0
      %v6270 = vmul.f32 %v6269, %v5918
      %v6271 = vand.u32 2147483647, %v5918
      %vm6272 = vcmp.lt.f32.partialorder %v6271, 0.0004427343
      %v6273 = vsel %vm6272, %v6270, %v6267
      %v6274 = vadd.f32 %v5920, 1.0
      %v6275 = vlog2.pop %v6274
      %v6276 = vmul.f32 %v6275, 0.6931472
      %v6277 = vmul.f32 -0.5, %v5920
      %v6278 = vadd.f32 %v6277, 1.0
      %v6279 = vmul.f32 %v6278, %v5920
      %v6280 = vand.u32 2147483647, %v5920
      %vm6281 = vcmp.lt.f32.partialorder %v6280, 0.0004427343
      %v6282 = vsel %vm6281, %v6279, %v6276
      %v6283 = vadd.f32 %v5922, 1.0
      %v6284 = vlog2.pop %v6283
      %v6285 = vmul.f32 %v6284, 0.6931472
      %v6286 = vmul.f32 -0.5, %v5922
      %v6287 = vadd.f32 %v6286, 1.0
      %v6288 = vmul.f32 %v6287, %v5922
      %v6289 = vand.u32 2147483647, %v5922
      %vm6290 = vcmp.lt.f32.partialorder %v6289, 0.0004427343
      %v6291 = vsel %vm6290, %v6288, %v6285
      %v6292 = vadd.f32 %v5924, 1.0
      %v6293 = vlog2.pop %v6292
      %v6294 = vmul.f32 %v6293, 0.6931472
      %v6295 = vmul.f32 -0.5, %v5924
      %v6296 = vadd.f32 %v6295, 1.0
      %v6297 = vmul.f32 %v6296, %v5924
      %v6298 = vand.u32 2147483647, %v5924
      %vm6299 = vcmp.lt.f32.partialorder %v6298, 0.0004427343
      %v6300 = vsel %vm6299, %v6297, %v6294
      %v6301 = vadd.f32 %v5926, 1.0
      %v6302 = vlog2.pop %v6301
      %v6303 = vmul.f32 %v6302, 0.6931472
      %v6304 = vmul.f32 -0.5, %v5926
      %v6305 = vadd.f32 %v6304, 1.0
      %v6306 = vmul.f32 %v6305, %v5926
      %v6307 = vand.u32 2147483647, %v5926
      %vm6308 = vcmp.lt.f32.partialorder %v6307, 0.0004427343
      %v6309 = vsel %vm6308, %v6306, %v6303
      %v6310 = vadd.f32 %v5928, 1.0
      %v6311 = vlog2.pop %v6310
      %v6312 = vmul.f32 %v6311, 0.6931472
      %v6313 = vmul.f32 -0.5, %v5928
      %v6314 = vadd.f32 %v6313, 1.0
      %v6315 = vmul.f32 %v6314, %v5928
      %v6316 = vand.u32 2147483647, %v5928
      %vm6317 = vcmp.lt.f32.partialorder %v6316, 0.0004427343
      %v6318 = vsel %vm6317, %v6315, %v6312
      %v6319 = vadd.f32 %v5930, 1.0
      %v6320 = vlog2.pop %v6319
      %v6321 = vmul.f32 %v6320, 0.6931472
      %v6322 = vmul.f32 -0.5, %v5930
      %v6323 = vadd.f32 %v6322, 1.0
      %v6324 = vmul.f32 %v6323, %v5930
      %v6325 = vand.u32 2147483647, %v5930
      %vm6326 = vcmp.lt.f32.partialorder %v6325, 0.0004427343
      %v6327 = vsel %vm6326, %v6324, %v6321
      %v6328 = vadd.f32 %v5932, 1.0
      %v6329 = vlog2.pop %v6328
      %v6330 = vmul.f32 %v6329, 0.6931472
      %v6331 = vmul.f32 -0.5, %v5932
      %v6332 = vadd.f32 %v6331, 1.0
      %v6333 = vmul.f32 %v6332, %v5932
      %v6334 = vand.u32 2147483647, %v5932
      %vm6335 = vcmp.lt.f32.partialorder %v6334, 0.0004427343
      %v6336 = vsel %vm6335, %v6333, %v6330
      %v6337 = vadd.f32 %v5934, 1.0
      %v6338 = vlog2.pop %v6337
      %v6339 = vmul.f32 %v6338, 0.6931472
      %v6340 = vmul.f32 -0.5, %v5934
      %v6341 = vadd.f32 %v6340, 1.0
      %v6342 = vmul.f32 %v6341, %v5934
      %v6343 = vand.u32 2147483647, %v5934
      %vm6344 = vcmp.lt.f32.partialorder %v6343, 0.0004427343
      %v6345 = vsel %vm6344, %v6342, %v6339
      %v6346 = vadd.f32 %v5936, 1.0
      %v6347 = vlog2.pop %v6346
      %v6348 = vmul.f32 %v6347, 0.6931472
      %v6349 = vmul.f32 -0.5, %v5936
      %v6350 = vadd.f32 %v6349, 1.0
      %v6351 = vmul.f32 %v6350, %v5936
      %v6352 = vand.u32 2147483647, %v5936
      %vm6353 = vcmp.lt.f32.partialorder %v6352, 0.0004427343
      %v6354 = vsel %vm6353, %v6351, %v6348
      %v6355 = vadd.f32 %v5938, 1.0
      %v6356 = vlog2.pop %v6355
      %v6357 = vmul.f32 %v6356, 0.6931472
      %v6358 = vmul.f32 -0.5, %v5938
      %v6359 = vadd.f32 %v6358, 1.0
      %v6360 = vmul.f32 %v6359, %v5938
      %v6361 = vand.u32 2147483647, %v5938
      %vm6362 = vcmp.lt.f32.partialorder %v6361, 0.0004427343
      %v6363 = vsel %vm6362, %v6360, %v6357
      %v6364 = vadd.f32 %v5940, 1.0
      %v6365 = vlog2.pop %v6364
      %v6366 = vmul.f32 %v6365, 0.6931472
      %v6367 = vmul.f32 -0.5, %v5940
      %v6368 = vadd.f32 %v6367, 1.0
      %v6369 = vmul.f32 %v6368, %v5940
      %v6370 = vand.u32 2147483647, %v5940
      %vm6371 = vcmp.lt.f32.partialorder %v6370, 0.0004427343
      %v6372 = vsel %vm6371, %v6369, %v6366
      %v6373 = vsel %vm5797, %v5416, %v5949
      %v6374 = vsel %vm5798, %v5563, %v5958
      %v6375 = vsel %vm5799, %v5710, %v5967
      %v6376 = vsel %vm5800, %v5418, %v5976
      %v6377 = vsel %vm5801, %v5565, %v5985
      %v6378 = vsel %vm5802, %v5712, %v5994
      %v6379 = vsel %vm5803, %v5421, %v6003
      %v6380 = vsel %vm5804, %v5568, %v6012
      %v6381 = vsel %vm5805, %v5715, %v6021
      %v6382 = vsel %vm5806, %v5423, %v6030
      %v6383 = vsel %vm5807, %v5570, %v6039
      %v6384 = vsel %vm5808, %v5717, %v6048
      %v6385 = vsel %vm5809, %v5426, %v6057
      %v6386 = vsel %vm5810, %v5573, %v6066
      %v6387 = vsel %vm5811, %v5720, %v6075
      %v6388 = vsel %vm5812, %v5428, %v6084
      %v6389 = vsel %vm5813, %v5575, %v6093
      %v6390 = vsel %vm5814, %v5722, %v6102
      %v6391 = vsel %vm5815, %v5431, %v6111
      %v6392 = vsel %vm5816, %v5578, %v6120
      %v6393 = vsel %vm5817, %v5725, %v6129
      %v6394 = vsel %vm5818, %v5433, %v6138
      %v6395 = vsel %vm5819, %v5580, %v6147
      %v6396 = vsel %vm5820, %v5727, %v6156
      %v6397 = vsel %vm5821, %v5436, %v6165
      %v6398 = vsel %vm5822, %v5583, %v6174
      %v6399 = vsel %vm5823, %v5730, %v6183
      %v6400 = vsel %vm5824, %v5438, %v6192
      %v6401 = vsel %vm5825, %v5585, %v6201
      %v6402 = vsel %vm5826, %v5732, %v6210
      %v6403 = vsel %vm5827, %v5441, %v6219
      %v6404 = vsel %vm5828, %v5588, %v6228
      %v6405 = vsel %vm5829, %v5735, %v6237
      %v6406 = vsel %vm5830, %v5443, %v6246
      %v6407 = vsel %vm5831, %v5590, %v6255
      %v6408 = vsel %vm5832, %v5737, %v6264
      %v6409 = vsel %vm5833, %v5446, %v6273
      %v6410 = vsel %vm5834, %v5593, %v6282
      %v6411 = vsel %vm5835, %v5740, %v6291
      %v6412 = vsel %vm5836, %v5448, %v6300
      %v6413 = vsel %vm5837, %v5595, %v6309
      %v6414 = vsel %vm5838, %v5742, %v6318
      %v6415 = vsel %vm5839, %v5451, %v6327
      %v6416 = vsel %vm5840, %v5598, %v6336
      %v6417 = vsel %vm5841, %v5745, %v6345
      %v6418 = vsel %vm5842, %v5453, %v6354
      %v6419 = vsel %vm5843, %v5600, %v6363
      %v6420 = vsel %vm5844, %v5747, %v6372
      %v6421 = vpack.c.bf16 %v6376, %v6373
      %v6422 = vpack.c.bf16 %v6377, %v6374
      %v6423 = vpack.c.bf16 %v6378, %v6375
      %v6424 = vpack.c.bf16 %v6382, %v6379
      %v6425 = vpack.c.bf16 %v6383, %v6380
      %v6426 = vpack.c.bf16 %v6384, %v6381
      %v6427 = vpack.c.bf16 %v6388, %v6385
      %v6428 = vpack.c.bf16 %v6389, %v6386
      %v6429 = vpack.c.bf16 %v6390, %v6387
      %v6430 = vpack.c.bf16 %v6394, %v6391
      %v6431 = vpack.c.bf16 %v6395, %v6392
      %v6432 = vpack.c.bf16 %v6396, %v6393
      %v6433 = vpack.c.bf16 %v6400, %v6397
      %v6434 = vpack.c.bf16 %v6401, %v6398
      %v6435 = vpack.c.bf16 %v6402, %v6399
      %v6436 = vpack.c.bf16 %v6406, %v6403
      %v6437 = vpack.c.bf16 %v6407, %v6404
      %v6438 = vpack.c.bf16 %v6408, %v6405
      %v6439 = vpack.c.bf16 %v6412, %v6409
      %v6440 = vpack.c.bf16 %v6413, %v6410
      %v6441 = vpack.c.bf16 %v6414, %v6411
      %v6442 = vpack.c.bf16 %v6418, %v6415
      %v6443 = vpack.c.bf16 %v6419, %v6416
      %v6444 = vpack.c.bf16 %v6420, %v6417
      %v6445 = vld [vmem:[%s5] sm:$0xf]
      %v6446 = vld [vmem:[%s5 + $0x4] sm:$0xf]
      %v6447 = vld [vmem:[%s5 + $0x8] sm:$0xf]
      %v6448 = vld [vmem:[%s5 + $0xc] sm:$0xf]
      %v6449 = vld [vmem:[%s5 + $0x10] sm:$0xf]
      %v6450 = vld [vmem:[%s5 + $0x14] sm:$0xf]
      %v6451 = vld [vmem:[%s5 + $0x18] sm:$0xf]
      %v6452 = vld [vmem:[%s5 + $0x1c] sm:$0xf]
      %v6453 = vld [vmem:[%s5 + $0x20] sm:$0xf]
      %v6454 = vld [vmem:[%s5 + $0x24] sm:$0xf]
      %v6455 = vld [vmem:[%s5 + $0x28] sm:$0xf]
      %v6456 = vld [vmem:[%s5 + $0x2c] sm:$0xf]
      %v6457 = vld [vmem:[%s5 + $0x30] sm:$0xf]
      %v6458 = vld [vmem:[%s5 + $0x34] sm:$0xf]
      %v6459 = vld [vmem:[%s5 + $0x38] sm:$0xf]
      %v6460 = vld [vmem:[%s5 + $0x3c] sm:$0xf]
      %v6461 = vld [vmem:[%s5 + $0x40] sm:$0xf]
      %v6462 = vld [vmem:[%s5 + $0x44] sm:$0xf]
      %v6463 = vld [vmem:[%s5 + $0x48] sm:$0xf]
      %v6464 = vld [vmem:[%s5 + $0x4c] sm:$0xf]
      %v6465 = vld [vmem:[%s5 + $0x50] sm:$0xf]
      %v6466 = vld [vmem:[%s5 + $0x54] sm:$0xf]
      %v6467 = vld [vmem:[%s5 + $0x58] sm:$0xf]
      %v6468 = vld [vmem:[%s5 + $0x5c] sm:$0xf]
      %v6469 = vld [vmem:[%s5 + $0x60] sm:$0xf]
      %v6470 = vld [vmem:[%s5 + $0x64] sm:$0xf]
      %v6471 = vld [vmem:[%s5 + $0x68] sm:$0xf]
      %v6472 = vld [vmem:[%s5 + $0x6c] sm:$0xf]
      %v6473 = vld [vmem:[%s5 + $0x70] sm:$0xf]
      %v6474 = vld [vmem:[%s5 + $0x74] sm:$0xf]
      %v6475 = vld [vmem:[%s5 + $0x78] sm:$0xf]
      %v6476 = vld [vmem:[%s5 + $0x7c] sm:$0xf]
      %v6477 = vld [vmem:[%s5 + $0x80] sm:$0xf]
      %v6478 = vld [vmem:[%s5 + $0x84] sm:$0xf]
      %v6479 = vld [vmem:[%s5 + $0x88] sm:$0xf]
      %v6480 = vld [vmem:[%s5 + $0x8c] sm:$0xf]
      %v6481 = vld [vmem:[%s5 + $0x90] sm:$0xf]
      %v6482 = vld [vmem:[%s5 + $0x94] sm:$0xf]
      %v6483 = vld [vmem:[%s5 + $0x98] sm:$0xf]
      %v6484 = vld [vmem:[%s5 + $0x9c] sm:$0xf]
      %v6485 = vld [vmem:[%s5 + $0xa0] sm:$0xf]
      %v6486 = vld [vmem:[%s5 + $0xa4] sm:$0xf]
      %v6487 = vld [vmem:[%s5 + $0xa8] sm:$0xf]
      %v6488 = vld [vmem:[%s5 + $0xac] sm:$0xf]
      %v6489 = vld [vmem:[%s5 + $0xb0] sm:$0xf]
      %v6490 = vld [vmem:[%s5 + $0xb4] sm:$0xf]
      %v6491 = vld [vmem:[%s5 + $0xb8] sm:$0xf]
      %v6492 = vld [vmem:[%s5 + $0xbc] sm:$0xf]
      %v6493 = vld [vmem:[%s6] sm:$0x1]
      %v6495 = vperm.slane %v6493, 0
      %v6545 = vunpack.c.l.b16 %v6445
      %v6546 = vunpack.c.l.b16 %v6446
      %v6547 = vunpack.c.l.b16 %v6447
      %v6548 = vunpack.c.l.b16 %v6448
      %v6549 = vunpack.c.l.b16 %v6449
      %v6550 = vunpack.c.l.b16 %v6450
      %v6551 = vunpack.c.l.b16 %v6451
      %v6552 = vunpack.c.l.b16 %v6452
      %v6553 = vunpack.c.l.b16 %v6453
      %v6554 = vunpack.c.l.b16 %v6454
      %v6555 = vunpack.c.l.b16 %v6455
      %v6556 = vunpack.c.l.b16 %v6456
      %v6557 = vunpack.c.l.b16 %v6457
      %v6558 = vunpack.c.l.b16 %v6458
      %v6559 = vunpack.c.l.b16 %v6459
      %v6560 = vunpack.c.l.b16 %v6460
      %v6561 = vunpack.c.l.b16 %v6461
      %v6562 = vunpack.c.l.b16 %v6462
      %v6563 = vunpack.c.l.b16 %v6463
      %v6564 = vunpack.c.l.b16 %v6464
      %v6565 = vunpack.c.l.b16 %v6465
      %v6566 = vunpack.c.l.b16 %v6466
      %v6567 = vunpack.c.l.b16 %v6467
      %v6568 = vunpack.c.l.b16 %v6468
      %v6569 = vunpack.c.l.b16 %v6469
      %v6570 = vunpack.c.l.b16 %v6470
      %v6571 = vunpack.c.l.b16 %v6471
      %v6572 = vunpack.c.l.b16 %v6472
      %v6573 = vunpack.c.l.b16 %v6473
      %v6574 = vunpack.c.l.b16 %v6474
      %v6575 = vunpack.c.l.b16 %v6475
      %v6576 = vunpack.c.l.b16 %v6476
      %v6577 = vunpack.c.l.b16 %v6477
      %v6578 = vunpack.c.l.b16 %v6478
      %v6579 = vunpack.c.l.b16 %v6479
      %v6580 = vunpack.c.l.b16 %v6480
      %v6581 = vunpack.c.l.b16 %v6481
      %v6582 = vunpack.c.l.b16 %v6482
      %v6583 = vunpack.c.l.b16 %v6483
      %v6584 = vunpack.c.l.b16 %v6484
      %v6585 = vunpack.c.l.b16 %v6485
      %v6586 = vunpack.c.l.b16 %v6486
      %v6587 = vunpack.c.l.b16 %v6487
      %v6588 = vunpack.c.l.b16 %v6488
      %v6589 = vunpack.c.l.b16 %v6489
      %v6590 = vunpack.c.l.b16 %v6490
      %v6591 = vunpack.c.l.b16 %v6491
      %v6592 = vunpack.c.l.b16 %v6492
      %v6593 = vpack.c.b16 %v6546, %v6545
      %v6594 = vpack.c.b16 %v6548, %v6547
      %v6595 = vpack.c.b16 %v6550, %v6549
      %v6596 = vpack.c.b16 %v6552, %v6551
      %v6597 = vpack.c.b16 %v6554, %v6553
      %v6598 = vpack.c.b16 %v6556, %v6555
      %v6599 = vpack.c.b16 %v6558, %v6557
      %v6600 = vpack.c.b16 %v6560, %v6559
      %v6601 = vpack.c.b16 %v6562, %v6561
      %v6602 = vpack.c.b16 %v6564, %v6563
      %v6603 = vpack.c.b16 %v6566, %v6565
      %v6604 = vpack.c.b16 %v6568, %v6567
      %v6605 = vpack.c.b16 %v6570, %v6569
      %v6606 = vpack.c.b16 %v6572, %v6571
      %v6607 = vpack.c.b16 %v6574, %v6573
      %v6608 = vpack.c.b16 %v6576, %v6575
      %v6609 = vpack.c.b16 %v6578, %v6577
      %v6610 = vpack.c.b16 %v6580, %v6579
      %v6611 = vpack.c.b16 %v6582, %v6581
      %v6612 = vpack.c.b16 %v6584, %v6583
      %v6613 = vpack.c.b16 %v6586, %v6585
      %v6614 = vpack.c.b16 %v6588, %v6587
      %v6615 = vpack.c.b16 %v6590, %v6589
      %v6616 = vpack.c.b16 %v6592, %v6591
      %6641 = vmatpush.bf16.msra.mxu0 %v6600
      %6642 = vmatpush.bf16.msra.mxu0 %v6599
      %6643 = vmatpush.bf16.msra.mxu0 %v6598
      %6644 = vmatpush.bf16.msra.mxu0 %v6597
      %6645 = vmatpush.bf16.msra.mxu0 %v6596
      %6646 = vmatpush.bf16.msra.mxu0 %v6595
      %6647 = vmatpush.bf16.msra.mxu0 %v6594
      %6648 = vmatpush.bf16.msra.mxu0 %v6593
      %6649 = vmatmul.bf16.gmra.mxu0 %v6421
      %v6650 = vpop.f32.mrf.mxu0
      %v6651 = vadd.f32 %v6495, %v6650
      %v6652 = vpop.f32.mrf.mxu0
      %v6653 = vadd.f32 %v6495, %v6652
      %6654 = vmatmul.bf16.gmra.mxu0 %v6424
      %v6655 = vpop.f32.mrf.mxu0
      %v6656 = vadd.f32 %v6495, %v6655
      %v6657 = vpop.f32.mrf.mxu0
      %v6658 = vadd.f32 %v6495, %v6657
      %6659 = vmatmul.bf16.gmra.mxu0 %v6427
      %v6660 = vpop.f32.mrf.mxu0
      %v6661 = vadd.f32 %v6495, %v6660
      %v6662 = vpop.f32.mrf.mxu0
      %v6663 = vadd.f32 %v6495, %v6662
      %6664 = vmatmul.bf16.gmra.mxu0 %v6430
      %v6665 = vpop.f32.mrf.mxu0
      %v6666 = vadd.f32 %v6495, %v6665
      %v6667 = vpop.f32.mrf.mxu0
      %v6668 = vadd.f32 %v6495, %v6667
      %6669 = vmatmul.bf16.gmra.mxu0 %v6433
      %v6670 = vpop.f32.mrf.mxu0
      %v6671 = vadd.f32 %v6495, %v6670
      %v6672 = vpop.f32.mrf.mxu0
      %v6673 = vadd.f32 %v6495, %v6672
      %6674 = vmatmul.bf16.gmra.mxu0 %v6436
      %v6675 = vpop.f32.mrf.mxu0
      %v6676 = vadd.f32 %v6495, %v6675
      %v6677 = vpop.f32.mrf.mxu0
      %v6678 = vadd.f32 %v6495, %v6677
      %6679 = vmatmul.bf16.gmra.mxu0 %v6439
      %v6680 = vpop.f32.mrf.mxu0
      %v6681 = vadd.f32 %v6495, %v6680
      %v6682 = vpop.f32.mrf.mxu0
      %v6683 = vadd.f32 %v6495, %v6682
      %6684 = vmatmul.bf16.gmra.mxu0 %v6442
      %v6685 = vpop.f32.mrf.mxu0
      %v6686 = vadd.f32 %v6495, %v6685
      %v6687 = vpop.f32.mrf.mxu0
      %v6688 = vadd.f32 %v6495, %v6687
      %6689 = vdwg.mxu0
      %6690 = vmatpush.bf16.msra.mxu0 %v6608
      %6691 = vmatpush.bf16.msra.mxu0 %v6607
      %6692 = vmatpush.bf16.msra.mxu0 %v6606
      %6693 = vmatpush.bf16.msra.mxu0 %v6605
      %6694 = vmatpush.bf16.msra.mxu0 %v6604
      %6695 = vmatpush.bf16.msra.mxu0 %v6603
      %6696 = vmatpush.bf16.msra.mxu0 %v6602
      %6697 = vmatpush.bf16.msra.mxu0 %v6601
      %6698 = vmatmul.bf16.gmra.mxu0 %v6422
      %v6699 = vpop.f32.mrf.mxu0
      %v6700 = vadd.f32 %v6651, %v6699
      %v6701 = vpop.f32.mrf.mxu0
      %v6702 = vadd.f32 %v6653, %v6701
      %6703 = vmatmul.bf16.gmra.mxu0 %v6425
      %v6704 = vpop.f32.mrf.mxu0
      %v6705 = vadd.f32 %v6656, %v6704
      %v6706 = vpop.f32.mrf.mxu0
      %v6707 = vadd.f32 %v6658, %v6706
      %6708 = vmatmul.bf16.gmra.mxu0 %v6428
      %v6709 = vpop.f32.mrf.mxu0
      %v6710 = vadd.f32 %v6661, %v6709
      %v6711 = vpop.f32.mrf.mxu0
      %v6712 = vadd.f32 %v6663, %v6711
      %6713 = vmatmul.bf16.gmra.mxu0 %v6431
      %v6714 = vpop.f32.mrf.mxu0
      %v6715 = vadd.f32 %v6666, %v6714
      %v6716 = vpop.f32.mrf.mxu0
      %v6717 = vadd.f32 %v6668, %v6716
      %6718 = vmatmul.bf16.gmra.mxu0 %v6434
      %v6719 = vpop.f32.mrf.mxu0
      %v6720 = vadd.f32 %v6671, %v6719
      %v6721 = vpop.f32.mrf.mxu0
      %v6722 = vadd.f32 %v6673, %v6721
      %6723 = vmatmul.bf16.gmra.mxu0 %v6437
      %v6724 = vpop.f32.mrf.mxu0
      %v6725 = vadd.f32 %v6676, %v6724
      %v6726 = vpop.f32.mrf.mxu0
      %v6727 = vadd.f32 %v6678, %v6726
      %6728 = vmatmul.bf16.gmra.mxu0 %v6440
      %v6729 = vpop.f32.mrf.mxu0
      %v6730 = vadd.f32 %v6681, %v6729
      %v6731 = vpop.f32.mrf.mxu0
      %v6732 = vadd.f32 %v6683, %v6731
      %6733 = vmatmul.bf16.gmra.mxu0 %v6443
      %v6734 = vpop.f32.mrf.mxu0
      %v6735 = vadd.f32 %v6686, %v6734
      %v6736 = vpop.f32.mrf.mxu0
      %v6737 = vadd.f32 %v6688, %v6736
      %6738 = vdwg.mxu0
      %6739 = vmatpush.bf16.msra.mxu0 %v6616
      %6740 = vmatpush.bf16.msra.mxu0 %v6615
      %6741 = vmatpush.bf16.msra.mxu0 %v6614
      %6742 = vmatpush.bf16.msra.mxu0 %v6613
      %6743 = vmatpush.bf16.msra.mxu0 %v6612
      %6744 = vmatpush.bf16.msra.mxu0 %v6611
      %6745 = vmatpush.bf16.msra.mxu0 %v6610
      %6746 = vmatpush.bf16.msra.mxu0 %v6609
      %6747 = vmatmul.bf16.gmra.mxu0 %v6423
      %v6748 = vpop.f32.mrf.mxu0
      %v6749 = vadd.f32 %v6700, %v6748
      %v6750 = vpop.f32.mrf.mxu0
      %v6751 = vadd.f32 %v6702, %v6750
      %6752 = vmatmul.bf16.gmra.mxu0 %v6426
      %v6753 = vpop.f32.mrf.mxu0
      %v6754 = vadd.f32 %v6705, %v6753
      %v6755 = vpop.f32.mrf.mxu0
      %v6756 = vadd.f32 %v6707, %v6755
      %6757 = vmatmul.bf16.gmra.mxu0 %v6429
      %v6758 = vpop.f32.mrf.mxu0
      %v6759 = vadd.f32 %v6710, %v6758
      %v6760 = vpop.f32.mrf.mxu0
      %v6761 = vadd.f32 %v6712, %v6760
      %6762 = vmatmul.bf16.gmra.mxu0 %v6432
      %v6763 = vpop.f32.mrf.mxu0
      %v6764 = vadd.f32 %v6715, %v6763
      %v6765 = vpop.f32.mrf.mxu0
      %v6766 = vadd.f32 %v6717, %v6765
      %6767 = vmatmul.bf16.gmra.mxu0 %v6435
      %v6768 = vpop.f32.mrf.mxu0
      %v6769 = vadd.f32 %v6720, %v6768
      %v6770 = vpop.f32.mrf.mxu0
      %v6771 = vadd.f32 %v6722, %v6770
      %6772 = vmatmul.bf16.gmra.mxu0 %v6438
      %v6773 = vpop.f32.mrf.mxu0
      %v6774 = vadd.f32 %v6725, %v6773
      %v6775 = vpop.f32.mrf.mxu0
      %v6776 = vadd.f32 %v6727, %v6775
      %6777 = vmatmul.bf16.gmra.mxu0 %v6441
      %v6778 = vpop.f32.mrf.mxu0
      %v6779 = vadd.f32 %v6730, %v6778
      %v6780 = vpop.f32.mrf.mxu0
      %v6781 = vadd.f32 %v6732, %v6780
      %6782 = vmatmul.bf16.gmra.mxu0 %v6444
      %v6783 = vpop.f32.mrf.mxu0
      %v6784 = vadd.f32 %v6735, %v6783
      %v6785 = vpop.f32.mrf.mxu0
      %v6786 = vadd.f32 %v6737, %v6785
      %6787 = vdwg.mxu0
      %v6788 = vmin.f32 %v6749, 20.0
      %v6789 = vmin.f32 %v6751, 20.0
      %v6790 = vmin.f32 %v6754, 20.0
      %v6791 = vmin.f32 %v6756, 20.0
      %v6792 = vmin.f32 %v6759, 20.0
      %v6793 = vmin.f32 %v6761, 20.0
      %v6794 = vmin.f32 %v6764, 20.0
      %v6795 = vmin.f32 %v6766, 20.0
      %v6796 = vmin.f32 %v6769, 20.0
      %v6797 = vmin.f32 %v6771, 20.0
      %v6798 = vmin.f32 %v6774, 20.0
      %v6799 = vmin.f32 %v6776, 20.0
      %v6800 = vmin.f32 %v6779, 20.0
      %v6801 = vmin.f32 %v6781, 20.0
      %v6802 = vmin.f32 %v6784, 20.0
      %v6803 = vmin.f32 %v6786, 20.0
      %vm6804 = vcmp.gt.f32.partialorder %v6749, 20.0
      %vm6805 = vcmp.gt.f32.partialorder %v6751, 20.0
      %vm6806 = vcmp.gt.f32.partialorder %v6754, 20.0
      %vm6807 = vcmp.gt.f32.partialorder %v6756, 20.0
      %vm6808 = vcmp.gt.f32.partialorder %v6759, 20.0
      %vm6809 = vcmp.gt.f32.partialorder %v6761, 20.0
      %vm6810 = vcmp.gt.f32.partialorder %v6764, 20.0
      %vm6811 = vcmp.gt.f32.partialorder %v6766, 20.0
      %vm6812 = vcmp.gt.f32.partialorder %v6769, 20.0
      %vm6813 = vcmp.gt.f32.partialorder %v6771, 20.0
      %vm6814 = vcmp.gt.f32.partialorder %v6774, 20.0
      %vm6815 = vcmp.gt.f32.partialorder %v6776, 20.0
      %vm6816 = vcmp.gt.f32.partialorder %v6779, 20.0
      %vm6817 = vcmp.gt.f32.partialorder %v6781, 20.0
      %vm6818 = vcmp.gt.f32.partialorder %v6784, 20.0
      %vm6819 = vcmp.gt.f32.partialorder %v6786, 20.0
      %v6820 = vmul.f32 %v6788, 1.442695
      %v6821 = vpow.pop %v6820
      %v6822 = vmul.f32 %v6789, 1.442695
      %v6823 = vpow.pop %v6822
      %v6824 = vmul.f32 %v6790, 1.442695
      %v6825 = vpow.pop %v6824
      %v6826 = vmul.f32 %v6791, 1.442695
      %v6827 = vpow.pop %v6826
      %v6828 = vmul.f32 %v6792, 1.442695
      %v6829 = vpow.pop %v6828
      %v6830 = vmul.f32 %v6793, 1.442695
      %v6831 = vpow.pop %v6830
      %v6832 = vmul.f32 %v6794, 1.442695
      %v6833 = vpow.pop %v6832
      %v6834 = vmul.f32 %v6795, 1.442695
      %v6835 = vpow.pop %v6834
      %v6836 = vmul.f32 %v6796, 1.442695
      %v6837 = vpow.pop %v6836
      %v6838 = vmul.f32 %v6797, 1.442695
      %v6839 = vpow.pop %v6838
      %v6840 = vmul.f32 %v6798, 1.442695
      %v6841 = vpow.pop %v6840
      %v6842 = vmul.f32 %v6799, 1.442695
      %v6843 = vpow.pop %v6842
      %v6844 = vmul.f32 %v6800, 1.442695
      %v6845 = vpow.pop %v6844
      %v6846 = vmul.f32 %v6801, 1.442695
      %v6847 = vpow.pop %v6846
      %v6848 = vmul.f32 %v6802, 1.442695
      %v6849 = vpow.pop %v6848
      %v6850 = vmul.f32 %v6803, 1.442695
      %v6851 = vpow.pop %v6850
      %v6852 = vadd.f32 %v6821, 1.0
      %v6853 = vlog2.pop %v6852
      %v6854 = vmul.f32 %v6853, 0.6931472
      %v6855 = vmul.f32 -0.5, %v6821
      %v6856 = vadd.f32 %v6855, 1.0
      %v6857 = vmul.f32 %v6856, %v6821
      %v6858 = vand.u32 2147483647, %v6821
      %vm6859 = vcmp.lt.f32.partialorder %v6858, 0.0004427343
      %v6860 = vsel %vm6859, %v6857, %v6854
      %v6861 = vadd.f32 %v6823, 1.0
      %v6862 = vlog2.pop %v6861
      %v6863 = vmul.f32 %v6862, 0.6931472
      %v6864 = vmul.f32 -0.5, %v6823
      %v6865 = vadd.f32 %v6864, 1.0
      %v6866 = vmul.f32 %v6865, %v6823
      %v6867 = vand.u32 2147483647, %v6823
      %vm6868 = vcmp.lt.f32.partialorder %v6867, 0.0004427343
      %v6869 = vsel %vm6868, %v6866, %v6863
      %v6870 = vadd.f32 %v6825, 1.0
      %v6871 = vlog2.pop %v6870
      %v6872 = vmul.f32 %v6871, 0.6931472
      %v6873 = vmul.f32 -0.5, %v6825
      %v6874 = vadd.f32 %v6873, 1.0
      %v6875 = vmul.f32 %v6874, %v6825
      %v6876 = vand.u32 2147483647, %v6825
      %vm6877 = vcmp.lt.f32.partialorder %v6876, 0.0004427343
      %v6878 = vsel %vm6877, %v6875, %v6872
      %v6879 = vadd.f32 %v6827, 1.0
      %v6880 = vlog2.pop %v6879
      %v6881 = vmul.f32 %v6880, 0.6931472
      %v6882 = vmul.f32 -0.5, %v6827
      %v6883 = vadd.f32 %v6882, 1.0
      %v6884 = vmul.f32 %v6883, %v6827
      %v6885 = vand.u32 2147483647, %v6827
      %vm6886 = vcmp.lt.f32.partialorder %v6885, 0.0004427343
      %v6887 = vsel %vm6886, %v6884, %v6881
      %v6888 = vadd.f32 %v6829, 1.0
      %v6889 = vlog2.pop %v6888
      %v6890 = vmul.f32 %v6889, 0.6931472
      %v6891 = vmul.f32 -0.5, %v6829
      %v6892 = vadd.f32 %v6891, 1.0
      %v6893 = vmul.f32 %v6892, %v6829
      %v6894 = vand.u32 2147483647, %v6829
      %vm6895 = vcmp.lt.f32.partialorder %v6894, 0.0004427343
      %v6896 = vsel %vm6895, %v6893, %v6890
      %v6897 = vadd.f32 %v6831, 1.0
      %v6898 = vlog2.pop %v6897
      %v6899 = vmul.f32 %v6898, 0.6931472
      %v6900 = vmul.f32 -0.5, %v6831
      %v6901 = vadd.f32 %v6900, 1.0
      %v6902 = vmul.f32 %v6901, %v6831
      %v6903 = vand.u32 2147483647, %v6831
      %vm6904 = vcmp.lt.f32.partialorder %v6903, 0.0004427343
      %v6905 = vsel %vm6904, %v6902, %v6899
      %v6906 = vadd.f32 %v6833, 1.0
      %v6907 = vlog2.pop %v6906
      %v6908 = vmul.f32 %v6907, 0.6931472
      %v6909 = vmul.f32 -0.5, %v6833
      %v6910 = vadd.f32 %v6909, 1.0
      %v6911 = vmul.f32 %v6910, %v6833
      %v6912 = vand.u32 2147483647, %v6833
      %vm6913 = vcmp.lt.f32.partialorder %v6912, 0.0004427343
      %v6914 = vsel %vm6913, %v6911, %v6908
      %v6915 = vadd.f32 %v6835, 1.0
      %v6916 = vlog2.pop %v6915
      %v6917 = vmul.f32 %v6916, 0.6931472
      %v6918 = vmul.f32 -0.5, %v6835
      %v6919 = vadd.f32 %v6918, 1.0
      %v6920 = vmul.f32 %v6919, %v6835
      %v6921 = vand.u32 2147483647, %v6835
      %vm6922 = vcmp.lt.f32.partialorder %v6921, 0.0004427343
      %v6923 = vsel %vm6922, %v6920, %v6917
      %v6924 = vadd.f32 %v6837, 1.0
      %v6925 = vlog2.pop %v6924
      %v6926 = vmul.f32 %v6925, 0.6931472
      %v6927 = vmul.f32 -0.5, %v6837
      %v6928 = vadd.f32 %v6927, 1.0
      %v6929 = vmul.f32 %v6928, %v6837
      %v6930 = vand.u32 2147483647, %v6837
      %vm6931 = vcmp.lt.f32.partialorder %v6930, 0.0004427343
      %v6932 = vsel %vm6931, %v6929, %v6926
      %v6933 = vadd.f32 %v6839, 1.0
      %v6934 = vlog2.pop %v6933
      %v6935 = vmul.f32 %v6934, 0.6931472
      %v6936 = vmul.f32 -0.5, %v6839
      %v6937 = vadd.f32 %v6936, 1.0
      %v6938 = vmul.f32 %v6937, %v6839
      %v6939 = vand.u32 2147483647, %v6839
      %vm6940 = vcmp.lt.f32.partialorder %v6939, 0.0004427343
      %v6941 = vsel %vm6940, %v6938, %v6935
      %v6942 = vadd.f32 %v6841, 1.0
      %v6943 = vlog2.pop %v6942
      %v6944 = vmul.f32 %v6943, 0.6931472
      %v6945 = vmul.f32 -0.5, %v6841
      %v6946 = vadd.f32 %v6945, 1.0
      %v6947 = vmul.f32 %v6946, %v6841
      %v6948 = vand.u32 2147483647, %v6841
      %vm6949 = vcmp.lt.f32.partialorder %v6948, 0.0004427343
      %v6950 = vsel %vm6949, %v6947, %v6944
      %v6951 = vadd.f32 %v6843, 1.0
      %v6952 = vlog2.pop %v6951
      %v6953 = vmul.f32 %v6952, 0.6931472
      %v6954 = vmul.f32 -0.5, %v6843
      %v6955 = vadd.f32 %v6954, 1.0
      %v6956 = vmul.f32 %v6955, %v6843
      %v6957 = vand.u32 2147483647, %v6843
      %vm6958 = vcmp.lt.f32.partialorder %v6957, 0.0004427343
      %v6959 = vsel %vm6958, %v6956, %v6953
      %v6960 = vadd.f32 %v6845, 1.0
      %v6961 = vlog2.pop %v6960
      %v6962 = vmul.f32 %v6961, 0.6931472
      %v6963 = vmul.f32 -0.5, %v6845
      %v6964 = vadd.f32 %v6963, 1.0
      %v6965 = vmul.f32 %v6964, %v6845
      %v6966 = vand.u32 2147483647, %v6845
      %vm6967 = vcmp.lt.f32.partialorder %v6966, 0.0004427343
      %v6968 = vsel %vm6967, %v6965, %v6962
      %v6969 = vadd.f32 %v6847, 1.0
      %v6970 = vlog2.pop %v6969
      %v6971 = vmul.f32 %v6970, 0.6931472
      %v6972 = vmul.f32 -0.5, %v6847
      %v6973 = vadd.f32 %v6972, 1.0
      %v6974 = vmul.f32 %v6973, %v6847
      %v6975 = vand.u32 2147483647, %v6847
      %vm6976 = vcmp.lt.f32.partialorder %v6975, 0.0004427343
      %v6977 = vsel %vm6976, %v6974, %v6971
      %v6978 = vadd.f32 %v6849, 1.0
      %v6979 = vlog2.pop %v6978
      %v6980 = vmul.f32 %v6979, 0.6931472
      %v6981 = vmul.f32 -0.5, %v6849
      %v6982 = vadd.f32 %v6981, 1.0
      %v6983 = vmul.f32 %v6982, %v6849
      %v6984 = vand.u32 2147483647, %v6849
      %vm6985 = vcmp.lt.f32.partialorder %v6984, 0.0004427343
      %v6986 = vsel %vm6985, %v6983, %v6980
      %v6987 = vadd.f32 %v6851, 1.0
      %v6988 = vlog2.pop %v6987
      %v6989 = vmul.f32 %v6988, 0.6931472
      %v6990 = vmul.f32 -0.5, %v6851
      %v6991 = vadd.f32 %v6990, 1.0
      %v6992 = vmul.f32 %v6991, %v6851
      %v6993 = vand.u32 2147483647, %v6851
      %vm6994 = vcmp.lt.f32.partialorder %v6993, 0.0004427343
      %v6995 = vsel %vm6994, %v6992, %v6989
      %v6996 = vsel %vm6804, %v6749, %v6860
      %v6997 = vsel %vm6805, %v6751, %v6869
      %v6998 = vsel %vm6806, %v6754, %v6878
      %v6999 = vsel %vm6807, %v6756, %v6887
      %v7000 = vsel %vm6808, %v6759, %v6896
      %v7001 = vsel %vm6809, %v6761, %v6905
      %v7002 = vsel %vm6810, %v6764, %v6914
      %v7003 = vsel %vm6811, %v6766, %v6923
      %v7004 = vsel %vm6812, %v6769, %v6932
      %v7005 = vsel %vm6813, %v6771, %v6941
      %v7006 = vsel %vm6814, %v6774, %v6950
      %v7007 = vsel %vm6815, %v6776, %v6959
      %v7008 = vsel %vm6816, %v6779, %v6968
      %v7009 = vsel %vm6817, %v6781, %v6977
      %v7010 = vsel %vm6818, %v6784, %v6986
      %v7011 = vsel %vm6819, %v6786, %v6995
      %v7012 = vpack.c.bf16 %v6997, %v6996
      %v7013 = vpack.c.bf16 %v6999, %v6998
      %v7014 = vpack.c.bf16 %v7001, %v7000
      %v7015 = vpack.c.bf16 %v7003, %v7002
      %v7016 = vpack.c.bf16 %v7005, %v7004
      %v7017 = vpack.c.bf16 %v7007, %v7006
      %v7018 = vpack.c.bf16 %v7009, %v7008
      %v7019 = vpack.c.bf16 %v7011, %v7010
      %v7020 = vld [vmem:[%s7] sm:$0xf]
      %v7021 = vld [vmem:[%s7 + $0x4] sm:$0xf]
      %v7022 = vld [vmem:[%s7 + $0x8] sm:$0xf]
      %v7023 = vld [vmem:[%s7 + $0xc] sm:$0xf]
      %v7024 = vld [vmem:[%s7 + $0x10] sm:$0xf]
      %v7025 = vld [vmem:[%s7 + $0x14] sm:$0xf]
      %v7026 = vld [vmem:[%s7 + $0x18] sm:$0xf]
      %v7027 = vld [vmem:[%s7 + $0x1c] sm:$0xf]
      %v7028 = vld [vmem:[%s7 + $0x20] sm:$0xf]
      %v7029 = vld [vmem:[%s7 + $0x24] sm:$0xf]
      %v7030 = vld [vmem:[%s7 + $0x28] sm:$0xf]
      %v7031 = vld [vmem:[%s7 + $0x2c] sm:$0xf]
      %v7032 = vld [vmem:[%s7 + $0x30] sm:$0xf]
      %v7033 = vld [vmem:[%s7 + $0x34] sm:$0xf]
      %v7034 = vld [vmem:[%s7 + $0x38] sm:$0xf]
      %v7035 = vld [vmem:[%s7 + $0x3c] sm:$0xf]
      %v7036 = vld [vmem:[%s8] sm:$0x1]
      %v7038 = vperm.slane %v7036, 0
      %v7056 = vunpack.c.l.b16 %v7020
      %v7057 = vunpack.c.l.b16 %v7021
      %v7058 = vunpack.c.l.b16 %v7022
      %v7059 = vunpack.c.l.b16 %v7023
      %v7060 = vunpack.c.l.b16 %v7024
      %v7061 = vunpack.c.l.b16 %v7025
      %v7062 = vunpack.c.l.b16 %v7026
      %v7063 = vunpack.c.l.b16 %v7027
      %v7064 = vunpack.c.l.b16 %v7028
      %v7065 = vunpack.c.l.b16 %v7029
      %v7066 = vunpack.c.l.b16 %v7030
      %v7067 = vunpack.c.l.b16 %v7031
      %v7068 = vunpack.c.l.b16 %v7032
      %v7069 = vunpack.c.l.b16 %v7033
      %v7070 = vunpack.c.l.b16 %v7034
      %v7071 = vunpack.c.l.b16 %v7035
      %v7072 = vpack.c.b16 %v7057, %v7056
      %v7073 = vpack.c.b16 %v7059, %v7058
      %v7074 = vpack.c.b16 %v7061, %v7060
      %v7075 = vpack.c.b16 %v7063, %v7062
      %v7076 = vpack.c.b16 %v7065, %v7064
      %v7077 = vpack.c.b16 %v7067, %v7066
      %v7078 = vpack.c.b16 %v7069, %v7068
      %v7079 = vpack.c.b16 %v7071, %v7070
      %7088 = vmatpush.bf16.msra.mxu0 %v7079
      %7089 = vmatpush.bf16.msra.mxu0 %v7078
      %7090 = vmatpush.bf16.msra.mxu0 %v7077
      %7091 = vmatpush.bf16.msra.mxu0 %v7076
      %7092 = vmatpush.bf16.msra.mxu0 %v7075
      %7093 = vmatpush.bf16.msra.mxu0 %v7074
      %7094 = vmatpush.bf16.msra.mxu0 %v7073
      %7095 = vmatpush.bf16.msra.mxu0 %v7072
      %7096 = vmatmul.bf16.gmra.mxu0 %v7012
      %v7097 = vpop.f32.mrf.mxu0
      %v7098 = vadd.f32 %v7038, %v7097
      %v7099 = vpop.f32.mrf.mxu0
      %v7100 = vadd.f32 %v7038, %v7099
      %7101 = vmatmul.bf16.gmra.mxu0 %v7013
      %v7102 = vpop.f32.mrf.mxu0
      %v7103 = vadd.f32 %v7038, %v7102
      %v7104 = vpop.f32.mrf.mxu0
      %v7105 = vadd.f32 %v7038, %v7104
      %7106 = vmatmul.bf16.gmra.mxu0 %v7014
      %v7107 = vpop.f32.mrf.mxu0
      %v7108 = vadd.f32 %v7038, %v7107
      %v7109 = vpop.f32.mrf.mxu0
      %v7110 = vadd.f32 %v7038, %v7109
      %7111 = vmatmul.bf16.gmra.mxu0 %v7015
      %v7112 = vpop.f32.mrf.mxu0
      %v7113 = vadd.f32 %v7038, %v7112
      %v7114 = vpop.f32.mrf.mxu0
      %v7115 = vadd.f32 %v7038, %v7114
      %7116 = vmatmul.bf16.gmra.mxu0 %v7016
      %v7117 = vpop.f32.mrf.mxu0
      %v7118 = vadd.f32 %v7038, %v7117
      %v7119 = vpop.f32.mrf.mxu0
      %v7120 = vadd.f32 %v7038, %v7119
      %7121 = vmatmul.bf16.gmra.mxu0 %v7017
      %v7122 = vpop.f32.mrf.mxu0
      %v7123 = vadd.f32 %v7038, %v7122
      %v7124 = vpop.f32.mrf.mxu0
      %v7125 = vadd.f32 %v7038, %v7124
      %7126 = vmatmul.bf16.gmra.mxu0 %v7018
      %v7127 = vpop.f32.mrf.mxu0
      %v7128 = vadd.f32 %v7038, %v7127
      %v7129 = vpop.f32.mrf.mxu0
      %v7130 = vadd.f32 %v7038, %v7129
      %7131 = vmatmul.bf16.gmra.mxu0 %v7019
      %v7132 = vpop.f32.mrf.mxu0
      %v7133 = vadd.f32 %v7038, %v7132
      %v7134 = vpop.f32.mrf.mxu0
      %v7135 = vadd.f32 %v7038, %v7134
      %7136 = vdwg.mxu0
      %s7137 = scalar_lea.vmem %s334, 128
      %7138 = vst [vmem:[%s7137] sm:$0xff] %v7098
      %7139 = vst [vmem:[%s7137 + $0x8] sm:$0xff] %v7100
      %7140 = vst [vmem:[%s7137 + $0x10] sm:$0xff] %v7103
      %7141 = vst [vmem:[%s7137 + $0x18] sm:$0xff] %v7105
      %7142 = vst [vmem:[%s7137 + $0x20] sm:$0xff] %v7108
      %7143 = vst [vmem:[%s7137 + $0x28] sm:$0xff] %v7110
      %7144 = vst [vmem:[%s7137 + $0x30] sm:$0xff] %v7113
      %7145 = vst [vmem:[%s7137 + $0x38] sm:$0xff] %v7115
      %7146 = vst [vmem:[%s7137 + $0x40] sm:$0xff] %v7118
      %7147 = vst [vmem:[%s7137 + $0x48] sm:$0xff] %v7120
      %7148 = vst [vmem:[%s7137 + $0x50] sm:$0xff] %v7123
      %7149 = vst [vmem:[%s7137 + $0x58] sm:$0xff] %v7125
      %7150 = vst [vmem:[%s7137 + $0x60] sm:$0xff] %v7128
      %7151 = vst [vmem:[%s7137 + $0x68] sm:$0xff] %v7130
      %7152 = vst [vmem:[%s7137 + $0x70] sm:$0xff] %v7133
      %7153 = vst [vmem:[%s7137 + $0x78] sm:$0xff] %v7135
      %s7154 = smul.u32 32, %s20
      %p7155 = scmp.lt.s32.totalorder %s7154, 63
      %s7156 = scalar_select %p7155, %s7154, 63
      %s7157 = smul.addr %s7156, 8
      %s7158 = scalar_lea.vmem %s9, %s7157
      // Predicated region
      $region57: #{softplusnet_forward.1} parent=55 // pred_check
        %p7159 = pneg %p232
      $region58: #{softplusnet_forward.1} parent=55 // pred_check_branch
        %7161 = sbr.rel (%p7159) target = $region60
      $region59: #{softplusnet_forward.1} parent=55 // pred_region
        %s7162 = smul.u32 32, %s20
      $region60: #{softplusnet_forward.1} parent=55 // pred_fallthru
        _
    $region56: #{softplusnet_forward.1} parent=5 // pred_fallthru
      _
    %p7163 = scmp.le.s32.totalorder 2, %s15
    // Predicated region
    $region61: #{softplusnet_forward.1} parent=5 // pred_check
      %p7164 = pneg %p7163
    $region62: #{softplusnet_forward.1} parent=5 // pred_check_branch
      %7166 = sbr.rel (%p7164) target = $region64
    $region63: #{softplusnet_forward.1} parent=5 // pred_region
      %s7167 = ssub.s32 %s15, 2
      // Predicated region
      $region65: #{softplusnet_forward.1} parent=63 // pred_check
        %p7168 = pneg %p238
      $region66: #{softplusnet_forward.1} parent=63 // pred_check_branch
        %7170 = sbr.rel (%p7168) target = $region68
      $region67: #{softplusnet_forward.1} parent=63 // pred_region
        %s7171 = smul.u32 32, %s21
        %p7172 = scmp.lt.s32.totalorder %s7171, 63
        %s7173 = scalar_select %p7172, %s7171, 63
        %s7174 = smul.addr %s7173, 8
        %s7175 = scalar_lea.vmem %s9, %s7174
      $region68: #{softplusnet_forward.1} parent=63 // pred_fallthru
        _
    $region64: #{softplusnet_forward.1} parent=5 // pred_fallthru
      _
  $region6: #{softplusnet_forward.1} parent=0 // loop_footer
    %s19 = sadd.s32 1, %s15
  $region7: #{softplusnet_forward.1} parent=0 // loop_footer_branch
    %14 = sbr.rel target = $region3
  $region8: #{softplusnet_forward.1} parent=0 // loop_exit
    _

</llo_original>
